<compile_context>
chip_gen: v7x
topology: tpu7x:2x2x1
jax: 0.10.0
libtpu: 0.0.40
codegen_flags: <defaults>
</compile_context>

<pallas_src>
import math

import jax
import jax.numpy as jnp
import numpy as np
from jax.experimental import pallas as pl
from jax.experimental.pallas import tpu as pltpu


# ----------------------------------------------------------------------------
# Kernel 1: fused conv1 -> conv2 -> conv3 (one image per grid step)
# ----------------------------------------------------------------------------
def _conv_stack_kernel(p1_ref, w1_ref, b1_ref, w2_ref, b2_ref, w3_ref, b3_ref,
                       a3_ref, a1_s, p2_s, a2_s, p3_s):
    f32 = jnp.float32

    # conv1: (400, C*64) @ (C*64, 32) on the MXU, f32 accumulate, f32 epilogue.
    a1 = jnp.dot(p1_ref[0], w1_ref[...], preferred_element_type=f32)
    a1 = jnp.maximum(a1 + b1_ref[...], 0.0)
    a1_s[...] = a1.astype(a1_s.dtype)

    # conv2 im2col from VMEM.  Thanks to the wrapper-side permutation of the
    # conv1 patch rows (row = h*20 + (w%2)*10 + w//2), every gather below is a
    # contiguous 9-row slice.  Column block order is (kh, kw, c_in), matching
    # the pre-permuted conv2 weight.
    for oh in range(9):
        for i in range(4):
            for j in range(4):
                src = (2 * oh + i) * 20 + (j % 2) * 10 + j // 2
                p2_s[oh * 9:(oh + 1) * 9,
                     (i * 4 + j) * 32:(i * 4 + j + 1) * 32] = a1_s[src:src + 9, :]
    a2 = jnp.dot(p2_s[...], w2_ref[...], preferred_element_type=f32)
    a2 = jnp.maximum(a2 + b2_ref[...], 0.0)
    a2_s[...] = a2.astype(a2_s.dtype)

    # conv3 im2col (stride 1 -> contiguous 7-row slices).
    for oh in range(7):
        for i in range(3):
            for j in range(3):
                src = (oh + i) * 9 + j
                p3_s[oh * 7:(oh + 1) * 7,
                     (i * 3 + j) * 64:(i * 3 + j + 1) * 64] = a2_s[src:src + 7, :]
    a3 = jnp.dot(p3_s[...], w3_ref[...], preferred_element_type=f32)
    a3 = jnp.maximum(a3 + b3_ref[...], 0.0)

    # Output rows padded 49 -> 56 (8-aligned); pad rows explicitly zeroed so the
    # padded fc1 rows (also zero) can never see garbage/NaN.
    a3_ref[0, 0:49, :] = a3.astype(a3_ref.dtype)
    a3_ref[0, 49:56, :] = jnp.zeros((56 - 49, 64), a3_ref.dtype)


def conv_stack(p1, w1, b1, w2, b2, w3, b3):
    """p1: (B, 400, C*64) bf16 conv1 patches -> (B, 56, 64) bf16 conv3 output."""
    B, M1, K1 = p1.shape
    return pl.pallas_call(
        _conv_stack_kernel,
        out_shape=jax.ShapeDtypeStruct((B, 56, 64), jnp.bfloat16),
        grid_spec=pltpu.PrefetchScalarGridSpec(
            num_scalar_prefetch=0,
            grid=(B,),
            in_specs=[
                pl.BlockSpec((1, M1, K1), lambda b: (b, 0, 0)),   # per-image patches
                pl.BlockSpec((K1, 32), lambda b: (0, 0)),          # VMEM-resident weights
                pl.BlockSpec((1, 32), lambda b: (0, 0)),
                pl.BlockSpec((512, 64), lambda b: (0, 0)),
                pl.BlockSpec((1, 64), lambda b: (0, 0)),
                pl.BlockSpec((576, 64), lambda b: (0, 0)),
                pl.BlockSpec((1, 64), lambda b: (0, 0)),
            ],
            out_specs=pl.BlockSpec((1, 56, 64), lambda b: (b, 0, 0)),
            scratch_shapes=[
                pltpu.VMEM((400, 32), jnp.bfloat16),   # conv1 activations
                pltpu.VMEM((81, 512), jnp.bfloat16),   # conv2 patches
                pltpu.VMEM((81, 64), jnp.bfloat16),    # conv2 activations
                pltpu.VMEM((49, 576), jnp.bfloat16),   # conv3 patches
            ],
        ),
        compiler_params=pltpu.CompilerParams(
            dimension_semantics=("parallel",)),        # v7x: 2 TCs split the batch
    )(p1, w1, b1, w2, b2, w3, b3)


# ----------------------------------------------------------------------------
# Kernel 2: fused fc1 (K-tiled) + relu + fc2, whole batch at once
# ----------------------------------------------------------------------------
def _fc_kernel(x_ref, w1_ref, b1_ref, w2_ref, b2_ref, o_ref, acc_ref):
    k = pl.program_id(0)

    @pl.when(k == 0)
    def _():
        acc_ref[...] = jnp.zeros_like(acc_ref)

    acc_ref[...] += jnp.dot(x_ref[...], w1_ref[...],
                            preferred_element_type=jnp.float32)

    @pl.when(k == pl.num_programs(0) - 1)
    def _():
        h = jnp.maximum(acc_ref[...] + b1_ref[...], 0.0).astype(w2_ref.dtype)
        o_ref[...] = (jnp.dot(h, w2_ref[...], preferred_element_type=jnp.float32)
                      + b2_ref[...])


def fc_stack(x, w1, b1, w2, b2, *, tk=512):
    """x: (B, 3584) bf16 -> (B, 128) f32 (lane-dense, padded fc2 output)."""
    B, K = x.shape
    N1 = w1.shape[1]
    N2 = w2.shape[1]
    assert K % tk == 0
    return pl.pallas_call(
        _fc_kernel,
        out_shape=jax.ShapeDtypeStruct((B, N2), jnp.float32),
        grid_spec=pltpu.PrefetchScalarGridSpec(
            num_scalar_prefetch=0,
            grid=(K // tk,),
            in_specs=[
                pl.BlockSpec((B, tk), lambda k: (0, k)),
                pl.BlockSpec((tk, N1), lambda k: (k, 0)),   # fc1 weight streamed K-tile-wise
                pl.BlockSpec((1, N1), lambda k: (0, 0)),
                pl.BlockSpec((N1, N2), lambda k: (0, 0)),
                pl.BlockSpec((1, N2), lambda k: (0, 0)),
            ],
            out_specs=pl.BlockSpec((B, N2), lambda k: (0, 0)),
            scratch_shapes=[pltpu.VMEM((B, N1), jnp.float32)],
        ),
        compiler_params=pltpu.CompilerParams(
            dimension_semantics=("arbitrary",)),        # K is a reduction axis
    )(x, w1, b1, w2, b2)


# ----------------------------------------------------------------------------
# Wrapper glue: conv1 im2col of the raw NCHW input (XLA slicing, runs once per
# forward on the input only; every later layer stays inside kernel 1).
# ----------------------------------------------------------------------------
def _conv1_patches(x):
    """x: (B, C, 84, 84) -> (B, 400, C*64) bf16, rows ordered so that the
    in-kernel conv2 (stride 2) gathers are contiguous."""
    B, C, H, W = x.shape
    cols = []
    for i in range(8):
        for j in range(8):
            cols.append(x[:, :, i:i + 80:4, j:j + 80:4])            # (B, C, 20, 20)
    pat = jnp.stack(cols, axis=0).reshape(8, 8, B, C, 20, 20)
    pat = pat.transpose(2, 4, 5, 3, 0, 1).reshape(B, 20, 20, C * 64)  # K = (c, kh, kw)
    # permute w axis: row = h*20 + (w % 2)*10 + w//2
    pat = pat.reshape(B, 20, 10, 2, C * 64).transpose(0, 1, 3, 2, 4)
    return pat.reshape(B, 400, C * 64).astype(jnp.bfloat16)


# ----------------------------------------------------------------------------
# Parameters: raw torch-layout init + one-time (hoisted) kernel-layout prep
# ----------------------------------------------------------------------------
def _uniform(key, shape, fan_in):
    bound = 1.0 / math.sqrt(fan_in)
    return jax.random.uniform(key, shape, jnp.float32, -bound, bound)


def init_raw_params(key, in_channels, output_dim):
    ks = jax.random.split(key, 10)
    return {
        "c1_w": _uniform(ks[0], (32, in_channels, 8, 8), in_channels * 64),
        "c1_b": _uniform(ks[1], (32,), in_channels * 64),
        "c2_w": _uniform(ks[2], (64, 32, 4, 4), 32 * 16),
        "c2_b": _uniform(ks[3], (64,), 32 * 16),
        "c3_w": _uniform(ks[4], (64, 64, 3, 3), 64 * 9),
        "c3_b": _uniform(ks[5], (64,), 64 * 9),
        "f1_w": _uniform(ks[6], (512, 3136), 3136),   # torch Linear: (out, in)
        "f1_b": _uniform(ks[7], (512,), 3136),
        "f2_w": _uniform(ks[8], (output_dim, 512), 512),
        "f2_b": _uniform(ks[9], (output_dim,), 512),
    }


def prepare_params(raw, output_dim):
    """One-time weight prep: reorder / pad / cast into kernel-ready layouts."""
    assert output_dim <= 128
    oc1, c, kh, kw = raw["c1_w"].shape
    prep = {
        # conv1: K order (c, kh, kw) == torch flatten
        "c1_w": raw["c1_w"].reshape(oc1, c * kh * kw).T.astype(jnp.bfloat16),
        "c1_b": raw["c1_b"].reshape(1, -1).astype(jnp.float32),
        # conv2/conv3: K order (kh, kw, c_in), matching in-kernel patch layout
        "c2_w": raw["c2_w"].transpose(2, 3, 1, 0).reshape(16 * 32, 64).astype(jnp.bfloat16),
        "c2_b": raw["c2_b"].reshape(1, -1).astype(jnp.float32),
        "c3_w": raw["c3_w"].transpose(2, 3, 1, 0).reshape(9 * 64, 64).astype(jnp.bfloat16),
        "c3_b": raw["c3_b"].reshape(1, -1).astype(jnp.float32),
    }
    # fc1: torch flatten is (c, h, w); kernel supplies (h*w, c) rows padded to 56
    w1 = raw["f1_w"].reshape(512, 64, 49).transpose(2, 1, 0).reshape(3136, 512)
    w1 = jnp.pad(w1, ((0, 56 * 64 - 3136), (0, 0)))
    prep["f1_w"] = w1.astype(jnp.bfloat16)
    prep["f1_b"] = raw["f1_b"].reshape(1, -1).astype(jnp.float32)
    # fc2: pad N -> 128 for a lane-dense HBM store (sliced back in the wrapper)
    prep["f2_w"] = jnp.pad(raw["f2_w"].T, ((0, 0), (0, 128 - output_dim))).astype(jnp.bfloat16)
    prep["f2_b"] = jnp.pad(raw["f2_b"], (0, 128 - output_dim)).reshape(1, -1).astype(jnp.float32)
    return prep


def init_params(key, in_channels, output_dim):
    raw = init_raw_params(key, in_channels, output_dim)
    prep = prepare_params(raw, output_dim)
    params = {"online": prep,
              "target": jax.tree_util.tree_map(lambda a: a, prep)}  # deepcopy-equivalent
    return params, raw


# ----------------------------------------------------------------------------
# Forward pass (equivalent to MarioArch.forward(input, model))
# ----------------------------------------------------------------------------
def mario_forward(params, x, model, output_dim):
    if model not in ("online", "target"):
        raise ValueError(model)
    if x.shape[2] != 84 or x.shape[3] != 84:
        raise ValueError("Expecting 84x84 input")
    p = params[model]
    B = x.shape[0]
    p1 = _conv1_patches(x)                                   # (B, 400, 256)
    a3 = conv_stack(p1, p["c1_w"], p["c1_b"], p["c2_w"], p["c2_b"],
                    p["c3_w"], p["c3_b"])                    # (B, 56, 64)
    h = a3.reshape(B, 56 * 64)                               # (B, 3584), free reshape
    q = fc_stack(h, p["f1_w"], p["f1_b"], p["f2_w"], p["f2_b"])   # (B, 128)
    return q[:, :output_dim]


# ----------------------------------------------------------------------------
# Pure-JAX f32 reference (for a numerical sanity check)
# ----------------------------------------------------------------------------
def _reference_forward(raw, x):
    hi = jax.lax.Precision.HIGHEST

    def conv(h, w, b, stride):
        y = jax.lax.conv_general_dilated(
            h, w, (stride, stride), "VALID",
            dimension_numbers=("NCHW", "OIHW", "NCHW"), precision=hi)
        return jax.nn.relu(y + b[None, :, None, None])

    h = conv(x, raw["c1_w"], raw["c1_b"], 4)
    h = conv(h, raw["c2_w"], raw["c2_b"], 2)
    h = conv(h, raw["c3_w"], raw["c3_b"], 1)
    h = h.reshape(x.shape[0], -1)
    h = jax.nn.relu(jnp.dot(h, raw["f1_w"].T, precision=hi) + raw["f1_b"])
    return jnp.dot(h, raw["f2_w"].T, precision=hi) + raw["f2_b"]


if __name__ == "__main__":
    key = jax.random.PRNGKey(0)
    k_param, k_x = jax.random.split(key)

    batch, in_channels, output_dim = 2, 4, 8   # 4 stacked 84x84 frames, 8 actions
    params, raw = init_params(k_param, in_channels, output_dim)
    x = jax.random.normal(k_x, (batch, in_channels, 84, 84), jnp.float32)

    fwd = jax.jit(mario_forward, static_argnames=("model", "output_dim"))
    q_online = fwd(params, x, model="online", output_dim=output_dim)
    q_target = fwd(params, x, model="target", output_dim=output_dim)
    jax.block_until_ready((q_online, q_target))

    assert q_online.shape == (batch, output_dim), q_online.shape
    assert q_target.shape == (batch, output_dim), q_target.shape

    # Sanity check vs. pure-JAX f32 reference (bf16 MXU operands -> loose tol).
    q_ref = jax.jit(_reference_forward)(raw, x)
    np.testing.assert_allclose(np.asarray(q_online), np.asarray(q_ref),
                               rtol=5e-2, atol=1e-2)
    np.testing.assert_allclose(np.asarray(q_target), np.asarray(q_ref),
                               rtol=5e-2, atol=1e-2)

    print("KERNEL_OK")
</pallas_src>

<mosaic_0001>
module attributes {stable_mosaic.version = 11 : i64} {
  func.func @_fc_kernel(%arg0: i32, %arg1: memref<2x512xbf16, #tpu.memory_space<vmem>>, %arg2: memref<512x512xbf16, #tpu.memory_space<vmem>>, %arg3: memref<1x512xf32, #tpu.memory_space<vmem>>, %arg4: memref<512x128xbf16, #tpu.memory_space<vmem>>, %arg5: memref<1x128xf32, #tpu.memory_space<vmem>>, %arg6: memref<2x128xf32, #tpu.memory_space<vmem>>, %arg7: memref<2x512xf32, #tpu.memory_space<vmem>>) attributes {dimension_semantics = [#tpu.dimension_semantics<arbitrary>], iteration_bounds = array<i64: 7>, scalar_prefetch = 0 : i64, scratch_operands = 1 : i64, tpu.core_type = #tpu.core_type<tc>, window_params = [{transform_indices = @transform_0, window_bounds = array<i64: 2, 512>}, {transform_indices = @transform_1, window_bounds = array<i64: 512, 512>}, {pipeline_mode = #tpu.pipeline_mode<synchronous>, transform_indices = @transform_2, window_bounds = array<i64: 1, 512>}, {pipeline_mode = #tpu.pipeline_mode<synchronous>, transform_indices = @transform_3, window_bounds = array<i64: 512, 128>}, {pipeline_mode = #tpu.pipeline_mode<synchronous>, transform_indices = @transform_4, window_bounds = array<i64: 1, 128>}, {pipeline_mode = #tpu.pipeline_mode<synchronous>, transform_indices = @transform_5, window_bounds = array<i64: 2, 128>}]} {
    %c0_i32 = arith.constant 0 : i32
    %0 = arith.cmpi eq, %arg0, %c0_i32 : i32
    %1 = arith.extui %0 : i1 to i32
    %c0_i32_0 = arith.constant 0 : i32
    %2 = arith.cmpi ne, %1, %c0_i32_0 : i32
    scf.if %2 {
      %cst_9 = arith.constant 0.000000e+00 : f32
      %12 = vector.broadcast %cst_9 : f32 to vector<2x512xf32>
      %c0_10 = arith.constant 0 : index
      %c0_11 = arith.constant 0 : index
      %13 = vector.load %arg7[%c0_10, %c0_11] : memref<2x512xf32, #tpu.memory_space<vmem>>, vector<2x512xf32>
      tpu.vector_store %arg7[%c0_10, %c0_11], %12 {strides = array<i32>} : memref<2x512xf32, #tpu.memory_space<vmem>>, vector<2x512xf32>,
    } else {
    }
    %c0 = arith.constant 0 : index
    %c0_1 = arith.constant 0 : index
    %3 = vector.load %arg7[%c0, %c0_1] : memref<2x512xf32, #tpu.memory_space<vmem>>, vector<2x512xf32>
    %c0_2 = arith.constant 0 : index
    %c0_3 = arith.constant 0 : index
    %4 = vector.load %arg1[%c0_2, %c0_3] : memref<2x512xbf16, #tpu.memory_space<vmem>>, vector<2x512xbf16>
    %c0_4 = arith.constant 0 : index
    %c0_5 = arith.constant 0 : index
    %5 = vector.load %arg2[%c0_4, %c0_5] : memref<512x512xbf16, #tpu.memory_space<vmem>>, vector<512x512xbf16>
    %cst = arith.constant dense<0.000000e+00> : vector<2x512xf32>
    %6 = tpu.matmul %4, %5, %cst {dimension_numbers = #tpu.dot_dimension_numbers<[1], [0], [0], [1], [0, 0, 1, 1], [], []>} : vector<2x512xbf16>, vector<512x512xbf16>, vector<2x512xf32> -> vector<2x512xf32>
    %7 = arith.addf %3, %6 : vector<2x512xf32>
    %c0_6 = arith.constant 0 : index
    %c0_7 = arith.constant 0 : index
    %8 = vector.load %arg7[%c0_6, %c0_7] : memref<2x512xf32, #tpu.memory_space<vmem>>, vector<2x512xf32>
    tpu.vector_store %arg7[%c0_6, %c0_7], %7 {strides = array<i32>} : memref<2x512xf32, #tpu.memory_space<vmem>>, vector<2x512xf32>,
    %c6_i32 = arith.constant 6 : i32
    %9 = arith.cmpi eq, %arg0, %c6_i32 : i32
    %10 = arith.extui %9 : i1 to i32
    %c0_i32_8 = arith.constant 0 : i32
    %11 = arith.cmpi ne, %10, %c0_i32_8 : i32
    scf.if %11 {
      %c0_9 = arith.constant 0 : index
      %c0_10 = arith.constant 0 : index
      %12 = vector.load %arg7[%c0_9, %c0_10] : memref<2x512xf32, #tpu.memory_space<vmem>>, vector<2x512xf32>
      %c0_11 = arith.constant 0 : index
      %c0_12 = arith.constant 0 : index
      %13 = vector.load %arg3[%c0_11, %c0_12] : memref<1x512xf32, #tpu.memory_space<vmem>>, vector<1x512xf32>
      %14 = vector.broadcast %13 : vector<1x512xf32> to vector<2x512xf32>
      %15 = arith.addf %12, %14 : vector<2x512xf32>
      %cst_13 = arith.constant 0.000000e+00 : f32
      %16 = vector.broadcast %cst_13 : f32 to vector<2x512xf32>
      %17 = arith.maximumf %15, %16 : vector<2x512xf32>
      %18 = arith.truncf %17 : vector<2x512xf32> to vector<2x512xbf16>
      %c0_14 = arith.constant 0 : index
      %c0_15 = arith.constant 0 : index
      %19 = vector.load %arg4[%c0_14, %c0_15] : memref<512x128xbf16, #tpu.memory_space<vmem>>, vector<512x128xbf16>
      %cst_16 = arith.constant dense<0.000000e+00> : vector<2x128xf32>
      %20 = tpu.matmul %18, %19, %cst_16 {dimension_numbers = #tpu.dot_dimension_numbers<[1], [0], [0], [1], [0, 0, 1, 1], [], []>} : vector<2x512xbf16>, vector<512x128xbf16>, vector<2x128xf32> -> vector<2x128xf32>
      %c0_17 = arith.constant 0 : index
      %c0_18 = arith.constant 0 : index
      %21 = vector.load %arg5[%c0_17, %c0_18] : memref<1x128xf32, #tpu.memory_space<vmem>>, vector<1x128xf32>
      %22 = vector.broadcast %21 : vector<1x128xf32> to vector<2x128xf32>
      %23 = arith.addf %20, %22 : vector<2x128xf32>
      %c0_19 = arith.constant 0 : index
      %c0_20 = arith.constant 0 : index
      %24 = vector.load %arg6[%c0_19, %c0_20] : memref<2x128xf32, #tpu.memory_space<vmem>>, vector<2x128xf32>
      tpu.vector_store %arg6[%c0_19, %c0_20], %23 {strides = array<i32>} : memref<2x128xf32, #tpu.memory_space<vmem>>, vector<2x128xf32>,
    } else {
    }
    return
  }
  func.func @transform_0(%arg0: i32) -> (i32, i32) {
    %c0_i32 = arith.constant 0 : i32
    %c0_i32_0 = arith.constant 0 : i32
    return %c0_i32, %arg0 : i32, i32
  }
  func.func @transform_1(%arg0: i32) -> (i32, i32) {
    %c0_i32 = arith.constant 0 : i32
    %c0_i32_0 = arith.constant 0 : i32
    return %arg0, %c0_i32 : i32, i32
  }
  func.func @transform_2(%arg0: i32) -> (i32, i32) {
    %c0_i32 = arith.constant 0 : i32
    %c0_i32_0 = arith.constant 0 : i32
    %c0_i32_1 = arith.constant 0 : i32
    return %c0_i32, %c0_i32_0 : i32, i32
  }
  func.func @transform_3(%arg0: i32) -> (i32, i32) {
    %c0_i32 = arith.constant 0 : i32
    %c0_i32_0 = arith.constant 0 : i32
    %c0_i32_1 = arith.constant 0 : i32
    return %c0_i32, %c0_i32_0 : i32, i32
  }
  func.func @transform_4(%arg0: i32) -> (i32, i32) {
    %c0_i32 = arith.constant 0 : i32
    %c0_i32_0 = arith.constant 0 : i32
    %c0_i32_1 = arith.constant 0 : i32
    return %c0_i32, %c0_i32_0 : i32, i32
  }
  func.func @transform_5(%arg0: i32) -> (i32, i32) {
    %c0_i32 = arith.constant 0 : i32
    %c0_i32_0 = arith.constant 0 : i32
    %c0_i32_1 = arith.constant 0 : i32
    return %c0_i32, %c0_i32_0 : i32, i32
  }
}

module attributes {stable_mosaic.version = 11 : i64} {
  func.func @_conv_stack_kernel(%arg0: i32, %arg1: memref<1x400x256xbf16, #tpu.memory_space<vmem>>, %arg2: memref<256x32xbf16, #tpu.memory_space<vmem>>, %arg3: memref<1x32xf32, #tpu.memory_space<vmem>>, %arg4: memref<512x64xbf16, #tpu.memory_space<vmem>>, %arg5: memref<1x64xf32, #tpu.memory_space<vmem>>, %arg6: memref<576x64xbf16, #tpu.memory_space<vmem>>, %arg7: memref<1x64xf32, #tpu.memory_space<vmem>>, %arg8: memref<1x56x64xbf16, #tpu.memory_space<vmem>>, %arg9: memref<400x32xbf16, #tpu.memory_space<vmem>>, %arg10: memref<81x512xbf16, #tpu.memory_space<vmem>>, %arg11: memref<81x64xbf16, #tpu.memory_space<vmem>>, %arg12: memref<49x576xbf16, #tpu.memory_space<vmem>>) attributes {dimension_semantics = [#tpu.dimension_semantics<parallel>], iteration_bounds = array<i64: 2>, scalar_prefetch = 0 : i64, scratch_operands = 4 : i64, tpu.core_type = #tpu.core_type<tc>, window_params = [{transform_indices = @transform_0, window_bounds = array<i64: 1, 400, 256>}, {pipeline_mode = #tpu.pipeline_mode<synchronous>, transform_indices = @transform_1, window_bounds = array<i64: 256, 32>}, {pipeline_mode = #tpu.pipeline_mode<synchronous>, transform_indices = @transform_2, window_bounds = array<i64: 1, 32>}, {pipeline_mode = #tpu.pipeline_mode<synchronous>, transform_indices = @transform_3, window_bounds = array<i64: 512, 64>}, {pipeline_mode = #tpu.pipeline_mode<synchronous>, transform_indices = @transform_4, window_bounds = array<i64: 1, 64>}, {pipeline_mode = #tpu.pipeline_mode<synchronous>, transform_indices = @transform_5, window_bounds = array<i64: 576, 64>}, {pipeline_mode = #tpu.pipeline_mode<synchronous>, transform_indices = @transform_6, window_bounds = array<i64: 1, 64>}, {transform_indices = @transform_7, window_bounds = array<i64: 1, 56, 64>}]} {
    %c0 = arith.constant 0 : index
    %c0_0 = arith.constant 0 : index
    %c0_1 = arith.constant 0 : index
    %0 = vector.load %arg1[%c0, %c0_0, %c0_1] : memref<1x400x256xbf16, #tpu.memory_space<vmem>>, vector<1x400x256xbf16>
    %1 = vector.shape_cast %0 : vector<1x400x256xbf16> to vector<400x256xbf16>
    %c0_2 = arith.constant 0 : index
    %c0_3 = arith.constant 0 : index
    %2 = vector.load %arg2[%c0_2, %c0_3] : memref<256x32xbf16, #tpu.memory_space<vmem>>, vector<256x32xbf16>
    %cst = arith.constant dense<0.000000e+00> : vector<400x32xf32>
    %3 = tpu.matmul %1, %2, %cst {dimension_numbers = #tpu.dot_dimension_numbers<[1], [0], [0], [1], [0, 0, 1, 1], [], []>} : vector<400x256xbf16>, vector<256x32xbf16>, vector<400x32xf32> -> vector<400x32xf32>
    %c0_4 = arith.constant 0 : index
    %c0_5 = arith.constant 0 : index
    %4 = vector.load %arg3[%c0_4, %c0_5] : memref<1x32xf32, #tpu.memory_space<vmem>>, vector<1x32xf32>
    %5 = vector.broadcast %4 : vector<1x32xf32> to vector<400x32xf32>
    %6 = arith.addf %3, %5 : vector<400x32xf32>
    %cst_6 = arith.constant 0.000000e+00 : f32
    %7 = vector.broadcast %cst_6 : f32 to vector<400x32xf32>
    %8 = arith.maximumf %6, %7 : vector<400x32xf32>
    %9 = arith.truncf %8 : vector<400x32xf32> to vector<400x32xbf16>
    %c0_7 = arith.constant 0 : index
    %c0_8 = arith.constant 0 : index
    %10 = vector.load %arg9[%c0_7, %c0_8] : memref<400x32xbf16, #tpu.memory_space<vmem>>, vector<400x32xbf16>
    tpu.vector_store %arg9[%c0_7, %c0_8], %9 {strides = array<i32>} : memref<400x32xbf16, #tpu.memory_space<vmem>>, vector<400x32xbf16>,
    %c0_9 = arith.constant 0 : index
    %c0_10 = arith.constant 0 : index
    %11 = vector.load %arg9[%c0_9, %c0_10] : memref<400x32xbf16, #tpu.memory_space<vmem>>, vector<9x32xbf16>
    %c0_11 = arith.constant 0 : index
    %c0_12 = arith.constant 0 : index
    %12 = vector.load %arg10[%c0_11, %c0_12] : memref<81x512xbf16, #tpu.memory_space<vmem>>, vector<9x32xbf16>
    tpu.vector_store %arg10[%c0_11, %c0_12], %11 {strides = array<i32>} : memref<81x512xbf16, #tpu.memory_space<vmem>>, vector<9x32xbf16>,
    %c10 = arith.constant 10 : index
    %c0_13 = arith.constant 0 : index
    %13 = vector.load %arg9[%c10, %c0_13] : memref<400x32xbf16, #tpu.memory_space<vmem>>, vector<9x32xbf16>
    %c0_14 = arith.constant 0 : index
    %c32 = arith.constant 32 : index
    %14 = vector.load %arg10[%c0_14, %c32] : memref<81x512xbf16, #tpu.memory_space<vmem>>, vector<9x32xbf16>
    tpu.vector_store %arg10[%c0_14, %c32], %13 {strides = array<i32>} : memref<81x512xbf16, #tpu.memory_space<vmem>>, vector<9x32xbf16>,
    %c1 = arith.constant 1 : index
    %c0_15 = arith.constant 0 : index
    %15 = vector.load %arg9[%c1, %c0_15] : memref<400x32xbf16, #tpu.memory_space<vmem>>, vector<9x32xbf16>
    %c0_16 = arith.constant 0 : index
    %c64 = arith.constant 64 : index
    %16 = vector.load %arg10[%c0_16, %c64] : memref<81x512xbf16, #tpu.memory_space<vmem>>, vector<9x32xbf16>
    tpu.vector_store %arg10[%c0_16, %c64], %15 {strides = array<i32>} : memref<81x512xbf16, #tpu.memory_space<vmem>>, vector<9x32xbf16>,
    %c11 = arith.constant 11 : index
    %c0_17 = arith.constant 0 : index
    %17 = vector.load %arg9[%c11, %c0_17] : memref<400x32xbf16, #tpu.memory_space<vmem>>, vector<9x32xbf16>
    %c0_18 = arith.constant 0 : index
    %c96 = arith.constant 96 : index
    %18 = vector.load %arg10[%c0_18, %c96] : memref<81x512xbf16, #tpu.memory_space<vmem>>, vector<9x32xbf16>
    tpu.vector_store %arg10[%c0_18, %c96], %17 {strides = array<i32>} : memref<81x512xbf16, #tpu.memory_space<vmem>>, vector<9x32xbf16>,
    %c20 = arith.constant 20 : index
    %c0_19 = arith.constant 0 : index
    %19 = vector.load %arg9[%c20, %c0_19] : memref<400x32xbf16, #tpu.memory_space<vmem>>, vector<9x32xbf16>
    %c0_20 = arith.constant 0 : index
    %c128 = arith.constant 128 : index
    %20 = vector.load %arg10[%c0_20, %c128] : memref<81x512xbf16, #tpu.memory_space<vmem>>, vector<9x32xbf16>
    tpu.vector_store %arg10[%c0_20, %c128], %19 {strides = array<i32>} : memref<81x512xbf16, #tpu.memory_space<vmem>>, vector<9x32xbf16>,
    %c30 = arith.constant 30 : index
    %c0_21 = arith.constant 0 : index
    %21 = vector.load %arg9[%c30, %c0_21] : memref<400x32xbf16, #tpu.memory_space<vmem>>, vector<9x32xbf16>
    %c0_22 = arith.constant 0 : index
    %c160 = arith.constant 160 : index
    %22 = vector.load %arg10[%c0_22, %c160] : memref<81x512xbf16, #tpu.memory_space<vmem>>, vector<9x32xbf16>
    tpu.vector_store %arg10[%c0_22, %c160], %21 {strides = array<i32>} : memref<81x512xbf16, #tpu.memory_space<vmem>>, vector<9x32xbf16>,
    %c21 = arith.constant 21 : index
    %c0_23 = arith.constant 0 : index
    %23 = vector.load %arg9[%c21, %c0_23] : memref<400x32xbf16, #tpu.memory_space<vmem>>, vector<9x32xbf16>
    %c0_24 = arith.constant 0 : index
    %c192 = arith.constant 192 : index
    %24 = vector.load %arg10[%c0_24, %c192] : memref<81x512xbf16, #tpu.memory_space<vmem>>, vector<9x32xbf16>
    tpu.vector_store %arg10[%c0_24, %c192], %23 {strides = array<i32>} : memref<81x512xbf16, #tpu.memory_space<vmem>>, vector<9x32xbf16>,
    %c31 = arith.constant 31 : index
    %c0_25 = arith.constant 0 : index
    %25 = vector.load %arg9[%c31, %c0_25] : memref<400x32xbf16, #tpu.memory_space<vmem>>, vector<9x32xbf16>
    %c0_26 = arith.constant 0 : index
    %c224 = arith.constant 224 : index
    %26 = vector.load %arg10[%c0_26, %c224] : memref<81x512xbf16, #tpu.memory_space<vmem>>, vector<9x32xbf16>
    tpu.vector_store %arg10[%c0_26, %c224], %25 {strides = array<i32>} : memref<81x512xbf16, #tpu.memory_space<vmem>>, vector<9x32xbf16>,
    %c40 = arith.constant 40 : index
    %c0_27 = arith.constant 0 : index
    %27 = vector.load %arg9[%c40, %c0_27] : memref<400x32xbf16, #tpu.memory_space<vmem>>, vector<9x32xbf16>
    %c0_28 = arith.constant 0 : index
    %c256 = arith.constant 256 : index
    %28 = vector.load %arg10[%c0_28, %c256] : memref<81x512xbf16, #tpu.memory_space<vmem>>, vector<9x32xbf16>
    tpu.vector_store %arg10[%c0_28, %c256], %27 {strides = array<i32>} : memref<81x512xbf16, #tpu.memory_space<vmem>>, vector<9x32xbf16>,
    %c50 = arith.constant 50 : index
    %c0_29 = arith.constant 0 : index
    %29 = vector.load %arg9[%c50, %c0_29] : memref<400x32xbf16, #tpu.memory_space<vmem>>, vector<9x32xbf16>
    %c0_30 = arith.constant 0 : index
    %c288 = arith.constant 288 : index
    %30 = vector.load %arg10[%c0_30, %c288] : memref<81x512xbf16, #tpu.memory_space<vmem>>, vector<9x32xbf16>
    tpu.vector_store %arg10[%c0_30, %c288], %29 {strides = array<i32>} : memref<81x512xbf16, #tpu.memory_space<vmem>>, vector<9x32xbf16>,
    %c41 = arith.constant 41 : index
    %c0_31 = arith.constant 0 : index
    %31 = vector.load %arg9[%c41, %c0_31] : memref<400x32xbf16, #tpu.memory_space<vmem>>, vector<9x32xbf16>
    %c0_32 = arith.constant 0 : index
    %c320 = arith.constant 320 : index
    %32 = vector.load %arg10[%c0_32, %c320] : memref<81x512xbf16, #tpu.memory_space<vmem>>, vector<9x32xbf16>
    tpu.vector_store %arg10[%c0_32, %c320], %31 {strides = array<i32>} : memref<81x512xbf16, #tpu.memory_space<vmem>>, vector<9x32xbf16>,
    %c51 = arith.constant 51 : index
    %c0_33 = arith.constant 0 : index
    %33 = vector.load %arg9[%c51, %c0_33] : memref<400x32xbf16, #tpu.memory_space<vmem>>, vector<9x32xbf16>
    %c0_34 = arith.constant 0 : index
    %c352 = arith.constant 352 : index
    %34 = vector.load %arg10[%c0_34, %c352] : memref<81x512xbf16, #tpu.memory_space<vmem>>, vector<9x32xbf16>
    tpu.vector_store %arg10[%c0_34, %c352], %33 {strides = array<i32>} : memref<81x512xbf16, #tpu.memory_space<vmem>>, vector<9x32xbf16>,
    %c60 = arith.constant 60 : index
    %c0_35 = arith.constant 0 : index
    %35 = vector.load %arg9[%c60, %c0_35] : memref<400x32xbf16, #tpu.memory_space<vmem>>, vector<9x32xbf16>
    %c0_36 = arith.constant 0 : index
    %c384 = arith.constant 384 : index
    %36 = vector.load %arg10[%c0_36, %c384] : memref<81x512xbf16, #tpu.memory_space<vmem>>, vector<9x32xbf16>
    tpu.vector_store %arg10[%c0_36, %c384], %35 {strides = array<i32>} : memref<81x512xbf16, #tpu.memory_space<vmem>>, vector<9x32xbf16>,
    %c70 = arith.constant 70 : index
    %c0_37 = arith.constant 0 : index
    %37 = vector.load %arg9[%c70, %c0_37] : memref<400x32xbf16, #tpu.memory_space<vmem>>, vector<9x32xbf16>
    %c0_38 = arith.constant 0 : index
    %c416 = arith.constant 416 : index
    %38 = vector.load %arg10[%c0_38, %c416] : memref<81x512xbf16, #tpu.memory_space<vmem>>, vector<9x32xbf16>
    tpu.vector_store %arg10[%c0_38, %c416], %37 {strides = array<i32>} : memref<81x512xbf16, #tpu.memory_space<vmem>>, vector<9x32xbf16>,
    %c61 = arith.constant 61 : index
    %c0_39 = arith.constant 0 : index
    %39 = vector.load %arg9[%c61, %c0_39] : memref<400x32xbf16, #tpu.memory_space<vmem>>, vector<9x32xbf16>
    %c0_40 = arith.constant 0 : index
    %c448 = arith.constant 448 : index
    %40 = vector.load %arg10[%c0_40, %c448] : memref<81x512xbf16, #tpu.memory_space<vmem>>, vector<9x32xbf16>
    tpu.vector_store %arg10[%c0_40, %c448], %39 {strides = array<i32>} : memref<81x512xbf16, #tpu.memory_space<vmem>>, vector<9x32xbf16>,
    %c71 = arith.constant 71 : index
    %c0_41 = arith.constant 0 : index
    %41 = vector.load %arg9[%c71, %c0_41] : memref<400x32xbf16, #tpu.memory_space<vmem>>, vector<9x32xbf16>
    %c0_42 = arith.constant 0 : index
    %c480 = arith.constant 480 : index
    %42 = vector.load %arg10[%c0_42, %c480] : memref<81x512xbf16, #tpu.memory_space<vmem>>, vector<9x32xbf16>
    tpu.vector_store %arg10[%c0_42, %c480], %41 {strides = array<i32>} : memref<81x512xbf16, #tpu.memory_space<vmem>>, vector<9x32xbf16>,
    %c40_43 = arith.constant 40 : index
    %c0_44 = arith.constant 0 : index
    %43 = vector.load %arg9[%c40_43, %c0_44] : memref<400x32xbf16, #tpu.memory_space<vmem>>, vector<9x32xbf16>
    %c9 = arith.constant 9 : index
    %c0_45 = arith.constant 0 : index
    %44 = vector.load %arg10[%c9, %c0_45] : memref<81x512xbf16, #tpu.memory_space<vmem>>, vector<9x32xbf16>
    tpu.vector_store %arg10[%c9, %c0_45], %43 {strides = array<i32>} : memref<81x512xbf16, #tpu.memory_space<vmem>>, vector<9x32xbf16>,
    %c50_46 = arith.constant 50 : index
    %c0_47 = arith.constant 0 : index
    %45 = vector.load %arg9[%c50_46, %c0_47] : memref<400x32xbf16, #tpu.memory_space<vmem>>, vector<9x32xbf16>
    %c9_48 = arith.constant 9 : index
    %c32_49 = arith.constant 32 : index
    %46 = vector.load %arg10[%c9_48, %c32_49] : memref<81x512xbf16, #tpu.memory_space<vmem>>, vector<9x32xbf16>
    tpu.vector_store %arg10[%c9_48, %c32_49], %45 {strides = array<i32>} : memref<81x512xbf16, #tpu.memory_space<vmem>>, vector<9x32xbf16>,
    %c41_50 = arith.constant 41 : index
    %c0_51 = arith.constant 0 : index
    %47 = vector.load %arg9[%c41_50, %c0_51] : memref<400x32xbf16, #tpu.memory_space<vmem>>, vector<9x32xbf16>
    %c9_52 = arith.constant 9 : index
    %c64_53 = arith.constant 64 : index
    %48 = vector.load %arg10[%c9_52, %c64_53] : memref<81x512xbf16, #tpu.memory_space<vmem>>, vector<9x32xbf16>
    tpu.vector_store %arg10[%c9_52, %c64_53], %47 {strides = array<i32>} : memref<81x512xbf16, #tpu.memory_space<vmem>>, vector<9x32xbf16>,
    %c51_54 = arith.constant 51 : index
    %c0_55 = arith.constant 0 : index
    %49 = vector.load %arg9[%c51_54, %c0_55] : memref<400x32xbf16, #tpu.memory_space<vmem>>, vector<9x32xbf16>
    %c9_56 = arith.constant 9 : index
    %c96_57 = arith.constant 96 : index
    %50 = vector.load %arg10[%c9_56, %c96_57] : memref<81x512xbf16, #tpu.memory_space<vmem>>, vector<9x32xbf16>
    tpu.vector_store %arg10[%c9_56, %c96_57], %49 {strides = array<i32>} : memref<81x512xbf16, #tpu.memory_space<vmem>>, vector<9x32xbf16>,
    %c60_58 = arith.constant 60 : index
    %c0_59 = arith.constant 0 : index
    %51 = vector.load %arg9[%c60_58, %c0_59] : memref<400x32xbf16, #tpu.memory_space<vmem>>, vector<9x32xbf16>
    %c9_60 = arith.constant 9 : index
    %c128_61 = arith.constant 128 : index
    %52 = vector.load %arg10[%c9_60, %c128_61] : memref<81x512xbf16, #tpu.memory_space<vmem>>, vector<9x32xbf16>
    tpu.vector_store %arg10[%c9_60, %c128_61], %51 {strides = array<i32>} : memref<81x512xbf16, #tpu.memory_space<vmem>>, vector<9x32xbf16>,
    %c70_62 = arith.constant 70 : index
    %c0_63 = arith.constant 0 : index
    %53 = vector.load %arg9[%c70_62, %c0_63] : memref<400x32xbf16, #tpu.memory_space<vmem>>, vector<9x32xbf16>
    %c9_64 = arith.constant 9 : index
    %c160_65 = arith.constant 160 : index
    %54 = vector.load %arg10[%c9_64, %c160_65] : memref<81x512xbf16, #tpu.memory_space<vmem>>, vector<9x32xbf16>
    tpu.vector_store %arg10[%c9_64, %c160_65], %53 {strides = array<i32>} : memref<81x512xbf16, #tpu.memory_space<vmem>>, vector<9x32xbf16>,
    %c61_66 = arith.constant 61 : index
    %c0_67 = arith.constant 0 : index
    %55 = vector.load %arg9[%c61_66, %c0_67] : memref<400x32xbf16, #tpu.memory_space<vmem>>, vector<9x32xbf16>
    %c9_68 = arith.constant 9 : index
    %c192_69 = arith.constant 192 : index
    %56 = vector.load %arg10[%c9_68, %c192_69] : memref<81x512xbf16, #tpu.memory_space<vmem>>, vector<9x32xbf16>
    tpu.vector_store %arg10[%c9_68, %c192_69], %55 {strides = array<i32>} : memref<81x512xbf16, #tpu.memory_space<vmem>>, vector<9x32xbf16>,
    %c71_70 = arith.constant 71 : index
    %c0_71 = arith.constant 0 : index
    %57 = vector.load %arg9[%c71_70, %c0_71] : memref<400x32xbf16, #tpu.memory_space<vmem>>, vector<9x32xbf16>
    %c9_72 = arith.constant 9 : index
    %c224_73 = arith.constant 224 : index
    %58 = vector.load %arg10[%c9_72, %c224_73] : memref<81x512xbf16, #tpu.memory_space<vmem>>, vector<9x32xbf16>
    tpu.vector_store %arg10[%c9_72, %c224_73], %57 {strides = array<i32>} : memref<81x512xbf16, #tpu.memory_space<vmem>>, vector<9x32xbf16>,
    %c80 = arith.constant 80 : index
    %c0_74 = arith.constant 0 : index
    %59 = vector.load %arg9[%c80, %c0_74] : memref<400x32xbf16, #tpu.memory_space<vmem>>, vector<9x32xbf16>
    %c9_75 = arith.constant 9 : index
    %c256_76 = arith.constant 256 : index
    %60 = vector.load %arg10[%c9_75, %c256_76] : memref<81x512xbf16, #tpu.memory_space<vmem>>, vector<9x32xbf16>
    tpu.vector_store %arg10[%c9_75, %c256_76], %59 {strides = array<i32>} : memref<81x512xbf16, #tpu.memory_space<vmem>>, vector<9x32xbf16>,
    %c90 = arith.constant 90 : index
    %c0_77 = arith.constant 0 : index
    %61 = vector.load %arg9[%c90, %c0_77] : memref<400x32xbf16, #tpu.memory_space<vmem>>, vector<9x32xbf16>
    %c9_78 = arith.constant 9 : index
    %c288_79 = arith.constant 288 : index
    %62 = vector.load %arg10[%c9_78, %c288_79] : memref<81x512xbf16, #tpu.memory_space<vmem>>, vector<9x32xbf16>
    tpu.vector_store %arg10[%c9_78, %c288_79], %61 {strides = array<i32>} : memref<81x512xbf16, #tpu.memory_space<vmem>>, vector<9x32xbf16>,
    %c81 = arith.constant 81 : index
    %c0_80 = arith.constant 0 : index
    %63 = vector.load %arg9[%c81, %c0_80] : memref<400x32xbf16, #tpu.memory_space<vmem>>, vector<9x32xbf16>
    %c9_81 = arith.constant 9 : index
    %c320_82 = arith.constant 320 : index
    %64 = vector.load %arg10[%c9_81, %c320_82] : memref<81x512xbf16, #tpu.memory_space<vmem>>, vector<9x32xbf16>
    tpu.vector_store %arg10[%c9_81, %c320_82], %63 {strides = array<i32>} : memref<81x512xbf16, #tpu.memory_space<vmem>>, vector<9x32xbf16>,
    %c91 = arith.constant 91 : index
    %c0_83 = arith.constant 0 : index
    %65 = vector.load %arg9[%c91, %c0_83] : memref<400x32xbf16, #tpu.memory_space<vmem>>, vector<9x32xbf16>
    %c9_84 = arith.constant 9 : index
    %c352_85 = arith.constant 352 : index
    %66 = vector.load %arg10[%c9_84, %c352_85] : memref<81x512xbf16, #tpu.memory_space<vmem>>, vector<9x32xbf16>
    tpu.vector_store %arg10[%c9_84, %c352_85], %65 {strides = array<i32>} : memref<81x512xbf16, #tpu.memory_space<vmem>>, vector<9x32xbf16>,
    %c100 = arith.constant 100 : index
    %c0_86 = arith.constant 0 : index
    %67 = vector.load %arg9[%c100, %c0_86] : memref<400x32xbf16, #tpu.memory_space<vmem>>, vector<9x32xbf16>
    %c9_87 = arith.constant 9 : index
    %c384_88 = arith.constant 384 : index
    %68 = vector.load %arg10[%c9_87, %c384_88] : memref<81x512xbf16, #tpu.memory_space<vmem>>, vector<9x32xbf16>
    tpu.vector_store %arg10[%c9_87, %c384_88], %67 {strides = array<i32>} : memref<81x512xbf16, #tpu.memory_space<vmem>>, vector<9x32xbf16>,
    %c110 = arith.constant 110 : index
    %c0_89 = arith.constant 0 : index
    %69 = vector.load %arg9[%c110, %c0_89] : memref<400x32xbf16, #tpu.memory_space<vmem>>, vector<9x32xbf16>
    %c9_90 = arith.constant 9 : index
    %c416_91 = arith.constant 416 : index
    %70 = vector.load %arg10[%c9_90, %c416_91] : memref<81x512xbf16, #tpu.memory_space<vmem>>, vector<9x32xbf16>
    tpu.vector_store %arg10[%c9_90, %c416_91], %69 {strides = array<i32>} : memref<81x512xbf16, #tpu.memory_space<vmem>>, vector<9x32xbf16>,
    %c101 = arith.constant 101 : index
    %c0_92 = arith.constant 0 : index
    %71 = vector.load %arg9[%c101, %c0_92] : memref<400x32xbf16, #tpu.memory_space<vmem>>, vector<9x32xbf16>
    %c9_93 = arith.constant 9 : index
    %c448_94 = arith.constant 448 : index
    %72 = vector.load %arg10[%c9_93, %c448_94] : memref<81x512xbf16, #tpu.memory_space<vmem>>, vector<9x32xbf16>
    tpu.vector_store %arg10[%c9_93, %c448_94], %71 {strides = array<i32>} : memref<81x512xbf16, #tpu.memory_space<vmem>>, vector<9x32xbf16>,
    %c111 = arith.constant 111 : index
    %c0_95 = arith.constant 0 : index
    %73 = vector.load %arg9[%c111, %c0_95] : memref<400x32xbf16, #tpu.memory_space<vmem>>, vector<9x32xbf16>
    %c9_96 = arith.constant 9 : index
    %c480_97 = arith.constant 480 : index
    %74 = vector.load %arg10[%c9_96, %c480_97] : memref<81x512xbf16, #tpu.memory_space<vmem>>, vector<9x32xbf16>
    tpu.vector_store %arg10[%c9_96, %c480_97], %73 {strides = array<i32>} : memref<81x512xbf16, #tpu.memory_space<vmem>>, vector<9x32xbf16>,
    %c80_98 = arith.constant 80 : index
    %c0_99 = arith.constant 0 : index
    %75 = vector.load %arg9[%c80_98, %c0_99] : memref<400x32xbf16, #tpu.memory_space<vmem>>, vector<9x32xbf16>
    %c18 = arith.constant 18 : index
    %c0_100 = arith.constant 0 : index
    %76 = vector.load %arg10[%c18, %c0_100] : memref<81x512xbf16, #tpu.memory_space<vmem>>, vector<9x32xbf16>
    tpu.vector_store %arg10[%c18, %c0_100], %75 {strides = array<i32>} : memref<81x512xbf16, #tpu.memory_space<vmem>>, vector<9x32xbf16>,
    %c90_101 = arith.constant 90 : index
    %c0_102 = arith.constant 0 : index
    %77 = vector.load %arg9[%c90_101, %c0_102] : memref<400x32xbf16, #tpu.memory_space<vmem>>, vector<9x32xbf16>
    %c18_103 = arith.constant 18 : index
    %c32_104 = arith.constant 32 : index
    %78 = vector.load %arg10[%c18_103, %c32_104] : memref<81x512xbf16, #tpu.memory_space<vmem>>, vector<9x32xbf16>
    tpu.vector_store %arg10[%c18_103, %c32_104], %77 {strides = array<i32>} : memref<81x512xbf16, #tpu.memory_space<vmem>>, vector<9x32xbf16>,
    %c81_105 = arith.constant 81 : index
    %c0_106 = arith.constant 0 : index
    %79 = vector.load %arg9[%c81_105, %c0_106] : memref<400x32xbf16, #tpu.memory_space<vmem>>, vector<9x32xbf16>
    %c18_107 = arith.constant 18 : index
    %c64_108 = arith.constant 64 : index
    %80 = vector.load %arg10[%c18_107, %c64_108] : memref<81x512xbf16, #tpu.memory_space<vmem>>, vector<9x32xbf16>
    tpu.vector_store %arg10[%c18_107, %c64_108], %79 {strides = array<i32>} : memref<81x512xbf16, #tpu.memory_space<vmem>>, vector<9x32xbf16>,
    %c91_109 = arith.constant 91 : index
    %c0_110 = arith.constant 0 : index
    %81 = vector.load %arg9[%c91_109, %c0_110] : memref<400x32xbf16, #tpu.memory_space<vmem>>, vector<9x32xbf16>
    %c18_111 = arith.constant 18 : index
    %c96_112 = arith.constant 96 : index
    %82 = vector.load %arg10[%c18_111, %c96_112] : memref<81x512xbf16, #tpu.memory_space<vmem>>, vector<9x32xbf16>
    tpu.vector_store %arg10[%c18_111, %c96_112], %81 {strides = array<i32>} : memref<81x512xbf16, #tpu.memory_space<vmem>>, vector<9x32xbf16>,
    %c100_113 = arith.constant 100 : index
    %c0_114 = arith.constant 0 : index
    %83 = vector.load %arg9[%c100_113, %c0_114] : memref<400x32xbf16, #tpu.memory_space<vmem>>, vector<9x32xbf16>
    %c18_115 = arith.constant 18 : index
    %c128_116 = arith.constant 128 : index
    %84 = vector.load %arg10[%c18_115, %c128_116] : memref<81x512xbf16, #tpu.memory_space<vmem>>, vector<9x32xbf16>
    tpu.vector_store %arg10[%c18_115, %c128_116], %83 {strides = array<i32>} : memref<81x512xbf16, #tpu.memory_space<vmem>>, vector<9x32xbf16>,
    %c110_117 = arith.constant 110 : index
    %c0_118 = arith.constant 0 : index
    %85 = vector.load %arg9[%c110_117, %c0_118] : memref<400x32xbf16, #tpu.memory_space<vmem>>, vector<9x32xbf16>
    %c18_119 = arith.constant 18 : index
    %c160_120 = arith.constant 160 : index
    %86 = vector.load %arg10[%c18_119, %c160_120] : memref<81x512xbf16, #tpu.memory_space<vmem>>, vector<9x32xbf16>
    tpu.vector_store %arg10[%c18_119, %c160_120], %85 {strides = array<i32>} : memref<81x512xbf16, #tpu.memory_space<vmem>>, vector<9x32xbf16>,
    %c101_121 = arith.constant 101 : index
    %c0_122 = arith.constant 0 : index
    %87 = vector.load %arg9[%c101_121, %c0_122] : memref<400x32xbf16, #tpu.memory_space<vmem>>, vector<9x32xbf16>
    %c18_123 = arith.constant 18 : index
    %c192_124 = arith.constant 192 : index
    %88 = vector.load %arg10[%c18_123, %c192_124] : memref<81x512xbf16, #tpu.memory_space<vmem>>, vector<9x32xbf16>
    tpu.vector_store %arg10[%c18_123, %c192_124], %87 {strides = array<i32>} : memref<81x512xbf16, #tpu.memory_space<vmem>>, vector<9x32xbf16>,
    %c111_125 = arith.constant 111 : index
    %c0_126 = arith.constant 0 : index
    %89 = vector.load %arg9[%c111_125, %c0_126] : memref<400x32xbf16, #tpu.memory_space<vmem>>, vector<9x32xbf16>
    %c18_127 = arith.constant 18 : index
    %c224_128 = arith.constant 224 : index
    %90 = vector.load %arg10[%c18_127, %c224_128] : memref<81x512xbf16, #tpu.memory_space<vmem>>, vector<9x32xbf16>
    tpu.vector_store %arg10[%c18_127, %c224_128], %89 {strides = array<i32>} : memref<81x512xbf16, #tpu.memory_space<vmem>>, vector<9x32xbf16>,
    %c120 = arith.constant 120 : index
    %c0_129 = arith.constant 0 : index
    %91 = vector.load %arg9[%c120, %c0_129] : memref<400x32xbf16, #tpu.memory_space<vmem>>, vector<9x32xbf16>
    %c18_130 = arith.constant 18 : index
    %c256_131 = arith.constant 256 : index
    %92 = vector.load %arg10[%c18_130, %c256_131] : memref<81x512xbf16, #tpu.memory_space<vmem>>, vector<9x32xbf16>
    tpu.vector_store %arg10[%c18_130, %c256_131], %91 {strides = array<i32>} : memref<81x512xbf16, #tpu.memory_space<vmem>>, vector<9x32xbf16>,
    %c130 = arith.constant 130 : index
    %c0_132 = arith.constant 0 : index
    %93 = vector.load %arg9[%c130, %c0_132] : memref<400x32xbf16, #tpu.memory_space<vmem>>, vector<9x32xbf16>
    %c18_133 = arith.constant 18 : index
    %c288_134 = arith.constant 288 : index
    %94 = vector.load %arg10[%c18_133, %c288_134] : memref<81x512xbf16, #tpu.memory_space<vmem>>, vector<9x32xbf16>
    tpu.vector_store %arg10[%c18_133, %c288_134], %93 {strides = array<i32>} : memref<81x512xbf16, #tpu.memory_space<vmem>>, vector<9x32xbf16>,
    %c121 = arith.constant 121 : index
    %c0_135 = arith.constant 0 : index
    %95 = vector.load %arg9[%c121, %c0_135] : memref<400x32xbf16, #tpu.memory_space<vmem>>, vector<9x32xbf16>
    %c18_136 = arith.constant 18 : index
    %c320_137 = arith.constant 320 : index
    %96 = vector.load %arg10[%c18_136, %c320_137] : memref<81x512xbf16, #tpu.memory_space<vmem>>, vector<9x32xbf16>
    tpu.vector_store %arg10[%c18_136, %c320_137], %95 {strides = array<i32>} : memref<81x512xbf16, #tpu.memory_space<vmem>>, vector<9x32xbf16>,
    %c131 = arith.constant 131 : index
    %c0_138 = arith.constant 0 : index
    %97 = vector.load %arg9[%c131, %c0_138] : memref<400x32xbf16, #tpu.memory_space<vmem>>, vector<9x32xbf16>
    %c18_139 = arith.constant 18 : index
    %c352_140 = arith.constant 352 : index
    %98 = vector.load %arg10[%c18_139, %c352_140] : memref<81x512xbf16, #tpu.memory_space<vmem>>, vector<9x32xbf16>
    tpu.vector_store %arg10[%c18_139, %c352_140], %97 {strides = array<i32>} : memref<81x512xbf16, #tpu.memory_space<vmem>>, vector<9x32xbf16>,
    %c140 = arith.constant 140 : index
    %c0_141 = arith.constant 0 : index
    %99 = vector.load %arg9[%c140, %c0_141] : memref<400x32xbf16, #tpu.memory_space<vmem>>, vector<9x32xbf16>
    %c18_142 = arith.constant 18 : index
    %c384_143 = arith.constant 384 : index
    %100 = vector.load %arg10[%c18_142, %c384_143] : memref<81x512xbf16, #tpu.memory_space<vmem>>, vector<9x32xbf16>
    tpu.vector_store %arg10[%c18_142, %c384_143], %99 {strides = array<i32>} : memref<81x512xbf16, #tpu.memory_space<vmem>>, vector<9x32xbf16>,
    %c150 = arith.constant 150 : index
    %c0_144 = arith.constant 0 : index
    %101 = vector.load %arg9[%c150, %c0_144] : memref<400x32xbf16, #tpu.memory_space<vmem>>, vector<9x32xbf16>
    %c18_145 = arith.constant 18 : index
    %c416_146 = arith.constant 416 : index
    %102 = vector.load %arg10[%c18_145, %c416_146] : memref<81x512xbf16, #tpu.memory_space<vmem>>, vector<9x32xbf16>
    tpu.vector_store %arg10[%c18_145, %c416_146], %101 {strides = array<i32>} : memref<81x512xbf16, #tpu.memory_space<vmem>>, vector<9x32xbf16>,
    %c141 = arith.constant 141 : index
    %c0_147 = arith.constant 0 : index
    %103 = vector.load %arg9[%c141, %c0_147] : memref<400x32xbf16, #tpu.memory_space<vmem>>, vector<9x32xbf16>
    %c18_148 = arith.constant 18 : index
    %c448_149 = arith.constant 448 : index
    %104 = vector.load %arg10[%c18_148, %c448_149] : memref<81x512xbf16, #tpu.memory_space<vmem>>, vector<9x32xbf16>
    tpu.vector_store %arg10[%c18_148, %c448_149], %103 {strides = array<i32>} : memref<81x512xbf16, #tpu.memory_space<vmem>>, vector<9x32xbf16>,
    %c151 = arith.constant 151 : index
    %c0_150 = arith.constant 0 : index
    %105 = vector.load %arg9[%c151, %c0_150] : memref<400x32xbf16, #tpu.memory_space<vmem>>, vector<9x32xbf16>
    %c18_151 = arith.constant 18 : index
    %c480_152 = arith.constant 480 : index
    %106 = vector.load %arg10[%c18_151, %c480_152] : memref<81x512xbf16, #tpu.memory_space<vmem>>, vector<9x32xbf16>
    tpu.vector_store %arg10[%c18_151, %c480_152], %105 {strides = array<i32>} : memref<81x512xbf16, #tpu.memory_space<vmem>>, vector<9x32xbf16>,
    %c120_153 = arith.constant 120 : index
    %c0_154 = arith.constant 0 : index
    %107 = vector.load %arg9[%c120_153, %c0_154] : memref<400x32xbf16, #tpu.memory_space<vmem>>, vector<9x32xbf16>
    %c27 = arith.constant 27 : index
    %c0_155 = arith.constant 0 : index
    %108 = vector.load %arg10[%c27, %c0_155] : memref<81x512xbf16, #tpu.memory_space<vmem>>, vector<9x32xbf16>
    tpu.vector_store %arg10[%c27, %c0_155], %107 {strides = array<i32>} : memref<81x512xbf16, #tpu.memory_space<vmem>>, vector<9x32xbf16>,
    %c130_156 = arith.constant 130 : index
    %c0_157 = arith.constant 0 : index
    %109 = vector.load %arg9[%c130_156, %c0_157] : memref<400x32xbf16, #tpu.memory_space<vmem>>, vector<9x32xbf16>
    %c27_158 = arith.constant 27 : index
    %c32_159 = arith.constant 32 : index
    %110 = vector.load %arg10[%c27_158, %c32_159] : memref<81x512xbf16, #tpu.memory_space<vmem>>, vector<9x32xbf16>
    tpu.vector_store %arg10[%c27_158, %c32_159], %109 {strides = array<i32>} : memref<81x512xbf16, #tpu.memory_space<vmem>>, vector<9x32xbf16>,
    %c121_160 = arith.constant 121 : index
    %c0_161 = arith.constant 0 : index
    %111 = vector.load %arg9[%c121_160, %c0_161] : memref<400x32xbf16, #tpu.memory_space<vmem>>, vector<9x32xbf16>
    %c27_162 = arith.constant 27 : index
    %c64_163 = arith.constant 64 : index
    %112 = vector.load %arg10[%c27_162, %c64_163] : memref<81x512xbf16, #tpu.memory_space<vmem>>, vector<9x32xbf16>
    tpu.vector_store %arg10[%c27_162, %c64_163], %111 {strides = array<i32>} : memref<81x512xbf16, #tpu.memory_space<vmem>>, vector<9x32xbf16>,
    %c131_164 = arith.constant 131 : index
    %c0_165 = arith.constant 0 : index
    %113 = vector.load %arg9[%c131_164, %c0_165] : memref<400x32xbf16, #tpu.memory_space<vmem>>, vector<9x32xbf16>
    %c27_166 = arith.constant 27 : index
    %c96_167 = arith.constant 96 : index
    %114 = vector.load %arg10[%c27_166, %c96_167] : memref<81x512xbf16, #tpu.memory_space<vmem>>, vector<9x32xbf16>
    tpu.vector_store %arg10[%c27_166, %c96_167], %113 {strides = array<i32>} : memref<81x512xbf16, #tpu.memory_space<vmem>>, vector<9x32xbf16>,
    %c140_168 = arith.constant 140 : index
    %c0_169 = arith.constant 0 : index
    %115 = vector.load %arg9[%c140_168, %c0_169] : memref<400x32xbf16, #tpu.memory_space<vmem>>, vector<9x32xbf16>
    %c27_170 = arith.constant 27 : index
    %c128_171 = arith.constant 128 : index
    %116 = vector.load %arg10[%c27_170, %c128_171] : memref<81x512xbf16, #tpu.memory_space<vmem>>, vector<9x32xbf16>
    tpu.vector_store %arg10[%c27_170, %c128_171], %115 {strides = array<i32>} : memref<81x512xbf16, #tpu.memory_space<vmem>>, vector<9x32xbf16>,
    %c150_172 = arith.constant 150 : index
    %c0_173 = arith.constant 0 : index
    %117 = vector.load %arg9[%c150_172, %c0_173] : memref<400x32xbf16, #tpu.memory_space<vmem>>, vector<9x32xbf16>
    %c27_174 = arith.constant 27 : index
    %c160_175 = arith.constant 160 : index
    %118 = vector.load %arg10[%c27_174, %c160_175] : memref<81x512xbf16, #tpu.memory_space<vmem>>, vector<9x32xbf16>
    tpu.vector_store %arg10[%c27_174, %c160_175], %117 {strides = array<i32>} : memref<81x512xbf16, #tpu.memory_space<vmem>>, vector<9x32xbf16>,
    %c141_176 = arith.constant 141 : index
    %c0_177 = arith.constant 0 : index
    %119 = vector.load %arg9[%c141_176, %c0_177] : memref<400x32xbf16, #tpu.memory_space<vmem>>, vector<9x32xbf16>
    %c27_178 = arith.constant 27 : index
    %c192_179 = arith.constant 192 : index
    %120 = vector.load %arg10[%c27_178, %c192_179] : memref<81x512xbf16, #tpu.memory_space<vmem>>, vector<9x32xbf16>
    tpu.vector_store %arg10[%c27_178, %c192_179], %119 {strides = array<i32>} : memref<81x512xbf16, #tpu.memory_space<vmem>>, vector<9x32xbf16>,
    %c151_180 = arith.constant 151 : index
    %c0_181 = arith.constant 0 : index
    %121 = vector.load %arg9[%c151_180, %c0_181] : memref<400x32xbf16, #tpu.memory_space<vmem>>, vector<9x32xbf16>
    %c27_182 = arith.constant 27 : index
    %c224_183 = arith.constant 224 : index
    %122 = vector.load %arg10[%c27_182, %c224_183] : memref<81x512xbf16, #tpu.memory_space<vmem>>, vector<9x32xbf16>
    tpu.vector_store %arg10[%c27_182, %c224_183], %121 {strides = array<i32>} : memref<81x512xbf16, #tpu.memory_space<vmem>>, vector<9x32xbf16>,
    %c160_184 = arith.constant 160 : index
    %c0_185 = arith.constant 0 : index
    %123 = vector.load %arg9[%c160_184, %c0_185] : memref<400x32xbf16, #tpu.memory_space<vmem>>, vector<9x32xbf16>
    %c27_186 = arith.constant 27 : index
    %c256_187 = arith.constant 256 : index
    %124 = vector.load %arg10[%c27_186, %c256_187] : memref<81x512xbf16, #tpu.memory_space<vmem>>, vector<9x32xbf16>
    tpu.vector_store %arg10[%c27_186, %c256_187], %123 {strides = array<i32>} : memref<81x512xbf16, #tpu.memory_space<vmem>>, vector<9x32xbf16>,
    %c170 = arith.constant 170 : index
    %c0_188 = arith.constant 0 : index
    %125 = vector.load %arg9[%c170, %c0_188] : memref<400x32xbf16, #tpu.memory_space<vmem>>, vector<9x32xbf16>
    %c27_189 = arith.constant 27 : index
    %c288_190 = arith.constant 288 : index
    %126 = vector.load %arg10[%c27_189, %c288_190] : memref<81x512xbf16, #tpu.memory_space<vmem>>, vector<9x32xbf16>
    tpu.vector_store %arg10[%c27_189, %c288_190], %125 {strides = array<i32>} : memref<81x512xbf16, #tpu.memory_space<vmem>>, vector<9x32xbf16>,
    %c161 = arith.constant 161 : index
    %c0_191 = arith.constant 0 : index
    %127 = vector.load %arg9[%c161, %c0_191] : memref<400x32xbf16, #tpu.memory_space<vmem>>, vector<9x32xbf16>
    %c27_192 = arith.constant 27 : index
    %c320_193 = arith.constant 320 : index
    %128 = vector.load %arg10[%c27_192, %c320_193] : memref<81x512xbf16, #tpu.memory_space<vmem>>, vector<9x32xbf16>
    tpu.vector_store %arg10[%c27_192, %c320_193], %127 {strides = array<i32>} : memref<81x512xbf16, #tpu.memory_space<vmem>>, vector<9x32xbf16>,
    %c171 = arith.constant 171 : index
    %c0_194 = arith.constant 0 : index
    %129 = vector.load %arg9[%c171, %c0_194] : memref<400x32xbf16, #tpu.memory_space<vmem>>, vector<9x32xbf16>
    %c27_195 = arith.constant 27 : index
    %c352_196 = arith.constant 352 : index
    %130 = vector.load %arg10[%c27_195, %c352_196] : memref<81x512xbf16, #tpu.memory_space<vmem>>, vector<9x32xbf16>
    tpu.vector_store %arg10[%c27_195, %c352_196], %129 {strides = array<i32>} : memref<81x512xbf16, #tpu.memory_space<vmem>>, vector<9x32xbf16>,
    %c180 = arith.constant 180 : index
    %c0_197 = arith.constant 0 : index
    %131 = vector.load %arg9[%c180, %c0_197] : memref<400x32xbf16, #tpu.memory_space<vmem>>, vector<9x32xbf16>
    %c27_198 = arith.constant 27 : index
    %c384_199 = arith.constant 384 : index
    %132 = vector.load %arg10[%c27_198, %c384_199] : memref<81x512xbf16, #tpu.memory_space<vmem>>, vector<9x32xbf16>
    tpu.vector_store %arg10[%c27_198, %c384_199], %131 {strides = array<i32>} : memref<81x512xbf16, #tpu.memory_space<vmem>>, vector<9x32xbf16>,
    %c190 = arith.constant 190 : index
    %c0_200 = arith.constant 0 : index
    %133 = vector.load %arg9[%c190, %c0_200] : memref<400x32xbf16, #tpu.memory_space<vmem>>, vector<9x32xbf16>
    %c27_201 = arith.constant 27 : index
    %c416_202 = arith.constant 416 : index
    %134 = vector.load %arg10[%c27_201, %c416_202] : memref<81x512xbf16, #tpu.memory_space<vmem>>, vector<9x32xbf16>
    tpu.vector_store %arg10[%c27_201, %c416_202], %133 {strides = array<i32>} : memref<81x512xbf16, #tpu.memory_space<vmem>>, vector<9x32xbf16>,
    %c181 = arith.constant 181 : index
    %c0_203 = arith.constant 0 : index
    %135 = vector.load %arg9[%c181, %c0_203] : memref<400x32xbf16, #tpu.memory_space<vmem>>, vector<9x32xbf16>
    %c27_204 = arith.constant 27 : index
    %c448_205 = arith.constant 448 : index
    %136 = vector.load %arg10[%c27_204, %c448_205] : memref<81x512xbf16, #tpu.memory_space<vmem>>, vector<9x32xbf16>
    tpu.vector_store %arg10[%c27_204, %c448_205], %135 {strides = array<i32>} : memref<81x512xbf16, #tpu.memory_space<vmem>>, vector<9x32xbf16>,
    %c191 = arith.constant 191 : index
    %c0_206 = arith.constant 0 : index
    %137 = vector.load %arg9[%c191, %c0_206] : memref<400x32xbf16, #tpu.memory_space<vmem>>, vector<9x32xbf16>
    %c27_207 = arith.constant 27 : index
    %c480_208 = arith.constant 480 : index
    %138 = vector.load %arg10[%c27_207, %c480_208] : memref<81x512xbf16, #tpu.memory_space<vmem>>, vector<9x32xbf16>
    tpu.vector_store %arg10[%c27_207, %c480_208], %137 {strides = array<i32>} : memref<81x512xbf16, #tpu.memory_space<vmem>>, vector<9x32xbf16>,
    %c160_209 = arith.constant 160 : index
    %c0_210 = arith.constant 0 : index
    %139 = vector.load %arg9[%c160_209, %c0_210] : memref<400x32xbf16, #tpu.memory_space<vmem>>, vector<9x32xbf16>
    %c36 = arith.constant 36 : index
    %c0_211 = arith.constant 0 : index
    %140 = vector.load %arg10[%c36, %c0_211] : memref<81x512xbf16, #tpu.memory_space<vmem>>, vector<9x32xbf16>
    tpu.vector_store %arg10[%c36, %c0_211], %139 {strides = array<i32>} : memref<81x512xbf16, #tpu.memory_space<vmem>>, vector<9x32xbf16>,
    %c170_212 = arith.constant 170 : index
    %c0_213 = arith.constant 0 : index
    %141 = vector.load %arg9[%c170_212, %c0_213] : memref<400x32xbf16, #tpu.memory_space<vmem>>, vector<9x32xbf16>
    %c36_214 = arith.constant 36 : index
    %c32_215 = arith.constant 32 : index
    %142 = vector.load %arg10[%c36_214, %c32_215] : memref<81x512xbf16, #tpu.memory_space<vmem>>, vector<9x32xbf16>
    tpu.vector_store %arg10[%c36_214, %c32_215], %141 {strides = array<i32>} : memref<81x512xbf16, #tpu.memory_space<vmem>>, vector<9x32xbf16>,
    %c161_216 = arith.constant 161 : index
    %c0_217 = arith.constant 0 : index
    %143 = vector.load %arg9[%c161_216, %c0_217] : memref<400x32xbf16, #tpu.memory_space<vmem>>, vector<9x32xbf16>
    %c36_218 = arith.constant 36 : index
    %c64_219 = arith.constant 64 : index
    %144 = vector.load %arg10[%c36_218, %c64_219] : memref<81x512xbf16, #tpu.memory_space<vmem>>, vector<9x32xbf16>
    tpu.vector_store %arg10[%c36_218, %c64_219], %143 {strides = array<i32>} : memref<81x512xbf16, #tpu.memory_space<vmem>>, vector<9x32xbf16>,
    %c171_220 = arith.constant 171 : index
    %c0_221 = arith.constant 0 : index
    %145 = vector.load %arg9[%c171_220, %c0_221] : memref<400x32xbf16, #tpu.memory_space<vmem>>, vector<9x32xbf16>
    %c36_222 = arith.constant 36 : index
    %c96_223 = arith.constant 96 : index
    %146 = vector.load %arg10[%c36_222, %c96_223] : memref<81x512xbf16, #tpu.memory_space<vmem>>, vector<9x32xbf16>
    tpu.vector_store %arg10[%c36_222, %c96_223], %145 {strides = array<i32>} : memref<81x512xbf16, #tpu.memory_space<vmem>>, vector<9x32xbf16>,
    %c180_224 = arith.constant 180 : index
    %c0_225 = arith.constant 0 : index
    %147 = vector.load %arg9[%c180_224, %c0_225] : memref<400x32xbf16, #tpu.memory_space<vmem>>, vector<9x32xbf16>
    %c36_226 = arith.constant 36 : index
    %c128_227 = arith.constant 128 : index
    %148 = vector.load %arg10[%c36_226, %c128_227] : memref<81x512xbf16, #tpu.memory_space<vmem>>, vector<9x32xbf16>
    tpu.vector_store %arg10[%c36_226, %c128_227], %147 {strides = array<i32>} : memref<81x512xbf16, #tpu.memory_space<vmem>>, vector<9x32xbf16>,
    %c190_228 = arith.constant 190 : index
    %c0_229 = arith.constant 0 : index
    %149 = vector.load %arg9[%c190_228, %c0_229] : memref<400x32xbf16, #tpu.memory_space<vmem>>, vector<9x32xbf16>
    %c36_230 = arith.constant 36 : index
    %c160_231 = arith.constant 160 : index
    %150 = vector.load %arg10[%c36_230, %c160_231] : memref<81x512xbf16, #tpu.memory_space<vmem>>, vector<9x32xbf16>
    tpu.vector_store %arg10[%c36_230, %c160_231], %149 {strides = array<i32>} : memref<81x512xbf16, #tpu.memory_space<vmem>>, vector<9x32xbf16>,
    %c181_232 = arith.constant 181 : index
    %c0_233 = arith.constant 0 : index
    %151 = vector.load %arg9[%c181_232, %c0_233] : memref<400x32xbf16, #tpu.memory_space<vmem>>, vector<9x32xbf16>
    %c36_234 = arith.constant 36 : index
    %c192_235 = arith.constant 192 : index
    %152 = vector.load %arg10[%c36_234, %c192_235] : memref<81x512xbf16, #tpu.memory_space<vmem>>, vector<9x32xbf16>
    tpu.vector_store %arg10[%c36_234, %c192_235], %151 {strides = array<i32>} : memref<81x512xbf16, #tpu.memory_space<vmem>>, vector<9x32xbf16>,
    %c191_236 = arith.constant 191 : index
    %c0_237 = arith.constant 0 : index
    %153 = vector.load %arg9[%c191_236, %c0_237] : memref<400x32xbf16, #tpu.memory_space<vmem>>, vector<9x32xbf16>
    %c36_238 = arith.constant 36 : index
    %c224_239 = arith.constant 224 : index
    %154 = vector.load %arg10[%c36_238, %c224_239] : memref<81x512xbf16, #tpu.memory_space<vmem>>, vector<9x32xbf16>
    tpu.vector_store %arg10[%c36_238, %c224_239], %153 {strides = array<i32>} : memref<81x512xbf16, #tpu.memory_space<vmem>>, vector<9x32xbf16>,
    %c200 = arith.constant 200 : index
    %c0_240 = arith.constant 0 : index
    %155 = vector.load %arg9[%c200, %c0_240] : memref<400x32xbf16, #tpu.memory_space<vmem>>, vector<9x32xbf16>
    %c36_241 = arith.constant 36 : index
    %c256_242 = arith.constant 256 : index
    %156 = vector.load %arg10[%c36_241, %c256_242] : memref<81x512xbf16, #tpu.memory_space<vmem>>, vector<9x32xbf16>
    tpu.vector_store %arg10[%c36_241, %c256_242], %155 {strides = array<i32>} : memref<81x512xbf16, #tpu.memory_space<vmem>>, vector<9x32xbf16>,
    %c210 = arith.constant 210 : index
    %c0_243 = arith.constant 0 : index
    %157 = vector.load %arg9[%c210, %c0_243] : memref<400x32xbf16, #tpu.memory_space<vmem>>, vector<9x32xbf16>
    %c36_244 = arith.constant 36 : index
    %c288_245 = arith.constant 288 : index
    %158 = vector.load %arg10[%c36_244, %c288_245] : memref<81x512xbf16, #tpu.memory_space<vmem>>, vector<9x32xbf16>
    tpu.vector_store %arg10[%c36_244, %c288_245], %157 {strides = array<i32>} : memref<81x512xbf16, #tpu.memory_space<vmem>>, vector<9x32xbf16>,
    %c201 = arith.constant 201 : index
    %c0_246 = arith.constant 0 : index
    %159 = vector.load %arg9[%c201, %c0_246] : memref<400x32xbf16, #tpu.memory_space<vmem>>, vector<9x32xbf16>
    %c36_247 = arith.constant 36 : index
    %c320_248 = arith.constant 320 : index
    %160 = vector.load %arg10[%c36_247, %c320_248] : memref<81x512xbf16, #tpu.memory_space<vmem>>, vector<9x32xbf16>
    tpu.vector_store %arg10[%c36_247, %c320_248], %159 {strides = array<i32>} : memref<81x512xbf16, #tpu.memory_space<vmem>>, vector<9x32xbf16>,
    %c211 = arith.constant 211 : index
    %c0_249 = arith.constant 0 : index
    %161 = vector.load %arg9[%c211, %c0_249] : memref<400x32xbf16, #tpu.memory_space<vmem>>, vector<9x32xbf16>
    %c36_250 = arith.constant 36 : index
    %c352_251 = arith.constant 352 : index
    %162 = vector.load %arg10[%c36_250, %c352_251] : memref<81x512xbf16, #tpu.memory_space<vmem>>, vector<9x32xbf16>
    tpu.vector_store %arg10[%c36_250, %c352_251], %161 {strides = array<i32>} : memref<81x512xbf16, #tpu.memory_space<vmem>>, vector<9x32xbf16>,
    %c220 = arith.constant 220 : index
    %c0_252 = arith.constant 0 : index
    %163 = vector.load %arg9[%c220, %c0_252] : memref<400x32xbf16, #tpu.memory_space<vmem>>, vector<9x32xbf16>
    %c36_253 = arith.constant 36 : index
    %c384_254 = arith.constant 384 : index
    %164 = vector.load %arg10[%c36_253, %c384_254] : memref<81x512xbf16, #tpu.memory_space<vmem>>, vector<9x32xbf16>
    tpu.vector_store %arg10[%c36_253, %c384_254], %163 {strides = array<i32>} : memref<81x512xbf16, #tpu.memory_space<vmem>>, vector<9x32xbf16>,
    %c230 = arith.constant 230 : index
    %c0_255 = arith.constant 0 : index
    %165 = vector.load %arg9[%c230, %c0_255] : memref<400x32xbf16, #tpu.memory_space<vmem>>, vector<9x32xbf16>
    %c36_256 = arith.constant 36 : index
    %c416_257 = arith.constant 416 : index
    %166 = vector.load %arg10[%c36_256, %c416_257] : memref<81x512xbf16, #tpu.memory_space<vmem>>, vector<9x32xbf16>
    tpu.vector_store %arg10[%c36_256, %c416_257], %165 {strides = array<i32>} : memref<81x512xbf16, #tpu.memory_space<vmem>>, vector<9x32xbf16>,
    %c221 = arith.constant 221 : index
    %c0_258 = arith.constant 0 : index
    %167 = vector.load %arg9[%c221, %c0_258] : memref<400x32xbf16, #tpu.memory_space<vmem>>, vector<9x32xbf16>
    %c36_259 = arith.constant 36 : index
    %c448_260 = arith.constant 448 : index
    %168 = vector.load %arg10[%c36_259, %c448_260] : memref<81x512xbf16, #tpu.memory_space<vmem>>, vector<9x32xbf16>
    tpu.vector_store %arg10[%c36_259, %c448_260], %167 {strides = array<i32>} : memref<81x512xbf16, #tpu.memory_space<vmem>>, vector<9x32xbf16>,
    %c231 = arith.constant 231 : index
    %c0_261 = arith.constant 0 : index
    %169 = vector.load %arg9[%c231, %c0_261] : memref<400x32xbf16, #tpu.memory_space<vmem>>, vector<9x32xbf16>
    %c36_262 = arith.constant 36 : index
    %c480_263 = arith.constant 480 : index
    %170 = vector.load %arg10[%c36_262, %c480_263] : memref<81x512xbf16, #tpu.memory_space<vmem>>, vector<9x32xbf16>
    tpu.vector_store %arg10[%c36_262, %c480_263], %169 {strides = array<i32>} : memref<81x512xbf16, #tpu.memory_space<vmem>>, vector<9x32xbf16>,
    %c200_264 = arith.constant 200 : index
    %c0_265 = arith.constant 0 : index
    %171 = vector.load %arg9[%c200_264, %c0_265] : memref<400x32xbf16, #tpu.memory_space<vmem>>, vector<9x32xbf16>
    %c45 = arith.constant 45 : index
    %c0_266 = arith.constant 0 : index
    %172 = vector.load %arg10[%c45, %c0_266] : memref<81x512xbf16, #tpu.memory_space<vmem>>, vector<9x32xbf16>
    tpu.vector_store %arg10[%c45, %c0_266], %171 {strides = array<i32>} : memref<81x512xbf16, #tpu.memory_space<vmem>>, vector<9x32xbf16>,
    %c210_267 = arith.constant 210 : index
    %c0_268 = arith.constant 0 : index
    %173 = vector.load %arg9[%c210_267, %c0_268] : memref<400x32xbf16, #tpu.memory_space<vmem>>, vector<9x32xbf16>
    %c45_269 = arith.constant 45 : index
    %c32_270 = arith.constant 32 : index
    %174 = vector.load %arg10[%c45_269, %c32_270] : memref<81x512xbf16, #tpu.memory_space<vmem>>, vector<9x32xbf16>
    tpu.vector_store %arg10[%c45_269, %c32_270], %173 {strides = array<i32>} : memref<81x512xbf16, #tpu.memory_space<vmem>>, vector<9x32xbf16>,
    %c201_271 = arith.constant 201 : index
    %c0_272 = arith.constant 0 : index
    %175 = vector.load %arg9[%c201_271, %c0_272] : memref<400x32xbf16, #tpu.memory_space<vmem>>, vector<9x32xbf16>
    %c45_273 = arith.constant 45 : index
    %c64_274 = arith.constant 64 : index
    %176 = vector.load %arg10[%c45_273, %c64_274] : memref<81x512xbf16, #tpu.memory_space<vmem>>, vector<9x32xbf16>
    tpu.vector_store %arg10[%c45_273, %c64_274], %175 {strides = array<i32>} : memref<81x512xbf16, #tpu.memory_space<vmem>>, vector<9x32xbf16>,
    %c211_275 = arith.constant 211 : index
    %c0_276 = arith.constant 0 : index
    %177 = vector.load %arg9[%c211_275, %c0_276] : memref<400x32xbf16, #tpu.memory_space<vmem>>, vector<9x32xbf16>
    %c45_277 = arith.constant 45 : index
    %c96_278 = arith.constant 96 : index
    %178 = vector.load %arg10[%c45_277, %c96_278] : memref<81x512xbf16, #tpu.memory_space<vmem>>, vector<9x32xbf16>
    tpu.vector_store %arg10[%c45_277, %c96_278], %177 {strides = array<i32>} : memref<81x512xbf16, #tpu.memory_space<vmem>>, vector<9x32xbf16>,
    %c220_279 = arith.constant 220 : index
    %c0_280 = arith.constant 0 : index
    %179 = vector.load %arg9[%c220_279, %c0_280] : memref<400x32xbf16, #tpu.memory_space<vmem>>, vector<9x32xbf16>
    %c45_281 = arith.constant 45 : index
    %c128_282 = arith.constant 128 : index
    %180 = vector.load %arg10[%c45_281, %c128_282] : memref<81x512xbf16, #tpu.memory_space<vmem>>, vector<9x32xbf16>
    tpu.vector_store %arg10[%c45_281, %c128_282], %179 {strides = array<i32>} : memref<81x512xbf16, #tpu.memory_space<vmem>>, vector<9x32xbf16>,
    %c230_283 = arith.constant 230 : index
    %c0_284 = arith.constant 0 : index
    %181 = vector.load %arg9[%c230_283, %c0_284] : memref<400x32xbf16, #tpu.memory_space<vmem>>, vector<9x32xbf16>
    %c45_285 = arith.constant 45 : index
    %c160_286 = arith.constant 160 : index
    %182 = vector.load %arg10[%c45_285, %c160_286] : memref<81x512xbf16, #tpu.memory_space<vmem>>, vector<9x32xbf16>
    tpu.vector_store %arg10[%c45_285, %c160_286], %181 {strides = array<i32>} : memref<81x512xbf16, #tpu.memory_space<vmem>>, vector<9x32xbf16>,
    %c221_287 = arith.constant 221 : index
    %c0_288 = arith.constant 0 : index
    %183 = vector.load %arg9[%c221_287, %c0_288] : memref<400x32xbf16, #tpu.memory_space<vmem>>, vector<9x32xbf16>
    %c45_289 = arith.constant 45 : index
    %c192_290 = arith.constant 192 : index
    %184 = vector.load %arg10[%c45_289, %c192_290] : memref<81x512xbf16, #tpu.memory_space<vmem>>, vector<9x32xbf16>
    tpu.vector_store %arg10[%c45_289, %c192_290], %183 {strides = array<i32>} : memref<81x512xbf16, #tpu.memory_space<vmem>>, vector<9x32xbf16>,
    %c231_291 = arith.constant 231 : index
    %c0_292 = arith.constant 0 : index
    %185 = vector.load %arg9[%c231_291, %c0_292] : memref<400x32xbf16, #tpu.memory_space<vmem>>, vector<9x32xbf16>
    %c45_293 = arith.constant 45 : index
    %c224_294 = arith.constant 224 : index
    %186 = vector.load %arg10[%c45_293, %c224_294] : memref<81x512xbf16, #tpu.memory_space<vmem>>, vector<9x32xbf16>
    tpu.vector_store %arg10[%c45_293, %c224_294], %185 {strides = array<i32>} : memref<81x512xbf16, #tpu.memory_space<vmem>>, vector<9x32xbf16>,
    %c240 = arith.constant 240 : index
    %c0_295 = arith.constant 0 : index
    %187 = vector.load %arg9[%c240, %c0_295] : memref<400x32xbf16, #tpu.memory_space<vmem>>, vector<9x32xbf16>
    %c45_296 = arith.constant 45 : index
    %c256_297 = arith.constant 256 : index
    %188 = vector.load %arg10[%c45_296, %c256_297] : memref<81x512xbf16, #tpu.memory_space<vmem>>, vector<9x32xbf16>
    tpu.vector_store %arg10[%c45_296, %c256_297], %187 {strides = array<i32>} : memref<81x512xbf16, #tpu.memory_space<vmem>>, vector<9x32xbf16>,
    %c250 = arith.constant 250 : index
    %c0_298 = arith.constant 0 : index
    %189 = vector.load %arg9[%c250, %c0_298] : memref<400x32xbf16, #tpu.memory_space<vmem>>, vector<9x32xbf16>
    %c45_299 = arith.constant 45 : index
    %c288_300 = arith.constant 288 : index
    %190 = vector.load %arg10[%c45_299, %c288_300] : memref<81x512xbf16, #tpu.memory_space<vmem>>, vector<9x32xbf16>
    tpu.vector_store %arg10[%c45_299, %c288_300], %189 {strides = array<i32>} : memref<81x512xbf16, #tpu.memory_space<vmem>>, vector<9x32xbf16>,
    %c241 = arith.constant 241 : index
    %c0_301 = arith.constant 0 : index
    %191 = vector.load %arg9[%c241, %c0_301] : memref<400x32xbf16, #tpu.memory_space<vmem>>, vector<9x32xbf16>
    %c45_302 = arith.constant 45 : index
    %c320_303 = arith.constant 320 : index
    %192 = vector.load %arg10[%c45_302, %c320_303] : memref<81x512xbf16, #tpu.memory_space<vmem>>, vector<9x32xbf16>
    tpu.vector_store %arg10[%c45_302, %c320_303], %191 {strides = array<i32>} : memref<81x512xbf16, #tpu.memory_space<vmem>>, vector<9x32xbf16>,
    %c251 = arith.constant 251 : index
    %c0_304 = arith.constant 0 : index
    %193 = vector.load %arg9[%c251, %c0_304] : memref<400x32xbf16, #tpu.memory_space<vmem>>, vector<9x32xbf16>
    %c45_305 = arith.constant 45 : index
    %c352_306 = arith.constant 352 : index
    %194 = vector.load %arg10[%c45_305, %c352_306] : memref<81x512xbf16, #tpu.memory_space<vmem>>, vector<9x32xbf16>
    tpu.vector_store %arg10[%c45_305, %c352_306], %193 {strides = array<i32>} : memref<81x512xbf16, #tpu.memory_space<vmem>>, vector<9x32xbf16>,
    %c260 = arith.constant 260 : index
    %c0_307 = arith.constant 0 : index
    %195 = vector.load %arg9[%c260, %c0_307] : memref<400x32xbf16, #tpu.memory_space<vmem>>, vector<9x32xbf16>
    %c45_308 = arith.constant 45 : index
    %c384_309 = arith.constant 384 : index
    %196 = vector.load %arg10[%c45_308, %c384_309] : memref<81x512xbf16, #tpu.memory_space<vmem>>, vector<9x32xbf16>
    tpu.vector_store %arg10[%c45_308, %c384_309], %195 {strides = array<i32>} : memref<81x512xbf16, #tpu.memory_space<vmem>>, vector<9x32xbf16>,
    %c270 = arith.constant 270 : index
    %c0_310 = arith.constant 0 : index
    %197 = vector.load %arg9[%c270, %c0_310] : memref<400x32xbf16, #tpu.memory_space<vmem>>, vector<9x32xbf16>
    %c45_311 = arith.constant 45 : index
    %c416_312 = arith.constant 416 : index
    %198 = vector.load %arg10[%c45_311, %c416_312] : memref<81x512xbf16, #tpu.memory_space<vmem>>, vector<9x32xbf16>
    tpu.vector_store %arg10[%c45_311, %c416_312], %197 {strides = array<i32>} : memref<81x512xbf16, #tpu.memory_space<vmem>>, vector<9x32xbf16>,
    %c261 = arith.constant 261 : index
    %c0_313 = arith.constant 0 : index
    %199 = vector.load %arg9[%c261, %c0_313] : memref<400x32xbf16, #tpu.memory_space<vmem>>, vector<9x32xbf16>
    %c45_314 = arith.constant 45 : index
    %c448_315 = arith.constant 448 : index
    %200 = vector.load %arg10[%c45_314, %c448_315] : memref<81x512xbf16, #tpu.memory_space<vmem>>, vector<9x32xbf16>
    tpu.vector_store %arg10[%c45_314, %c448_315], %199 {strides = array<i32>} : memref<81x512xbf16, #tpu.memory_space<vmem>>, vector<9x32xbf16>,
    %c271 = arith.constant 271 : index
    %c0_316 = arith.constant 0 : index
    %201 = vector.load %arg9[%c271, %c0_316] : memref<400x32xbf16, #tpu.memory_space<vmem>>, vector<9x32xbf16>
    %c45_317 = arith.constant 45 : index
    %c480_318 = arith.constant 480 : index
    %202 = vector.load %arg10[%c45_317, %c480_318] : memref<81x512xbf16, #tpu.memory_space<vmem>>, vector<9x32xbf16>
    tpu.vector_store %arg10[%c45_317, %c480_318], %201 {strides = array<i32>} : memref<81x512xbf16, #tpu.memory_space<vmem>>, vector<9x32xbf16>,
    %c240_319 = arith.constant 240 : index
    %c0_320 = arith.constant 0 : index
    %203 = vector.load %arg9[%c240_319, %c0_320] : memref<400x32xbf16, #tpu.memory_space<vmem>>, vector<9x32xbf16>
    %c54 = arith.constant 54 : index
    %c0_321 = arith.constant 0 : index
    %204 = vector.load %arg10[%c54, %c0_321] : memref<81x512xbf16, #tpu.memory_space<vmem>>, vector<9x32xbf16>
    tpu.vector_store %arg10[%c54, %c0_321], %203 {strides = array<i32>} : memref<81x512xbf16, #tpu.memory_space<vmem>>, vector<9x32xbf16>,
    %c250_322 = arith.constant 250 : index
    %c0_323 = arith.constant 0 : index
    %205 = vector.load %arg9[%c250_322, %c0_323] : memref<400x32xbf16, #tpu.memory_space<vmem>>, vector<9x32xbf16>
    %c54_324 = arith.constant 54 : index
    %c32_325 = arith.constant 32 : index
    %206 = vector.load %arg10[%c54_324, %c32_325] : memref<81x512xbf16, #tpu.memory_space<vmem>>, vector<9x32xbf16>
    tpu.vector_store %arg10[%c54_324, %c32_325], %205 {strides = array<i32>} : memref<81x512xbf16, #tpu.memory_space<vmem>>, vector<9x32xbf16>,
    %c241_326 = arith.constant 241 : index
    %c0_327 = arith.constant 0 : index
    %207 = vector.load %arg9[%c241_326, %c0_327] : memref<400x32xbf16, #tpu.memory_space<vmem>>, vector<9x32xbf16>
    %c54_328 = arith.constant 54 : index
    %c64_329 = arith.constant 64 : index
    %208 = vector.load %arg10[%c54_328, %c64_329] : memref<81x512xbf16, #tpu.memory_space<vmem>>, vector<9x32xbf16>
    tpu.vector_store %arg10[%c54_328, %c64_329], %207 {strides = array<i32>} : memref<81x512xbf16, #tpu.memory_space<vmem>>, vector<9x32xbf16>,
    %c251_330 = arith.constant 251 : index
    %c0_331 = arith.constant 0 : index
    %209 = vector.load %arg9[%c251_330, %c0_331] : memref<400x32xbf16, #tpu.memory_space<vmem>>, vector<9x32xbf16>
    %c54_332 = arith.constant 54 : index
    %c96_333 = arith.constant 96 : index
    %210 = vector.load %arg10[%c54_332, %c96_333] : memref<81x512xbf16, #tpu.memory_space<vmem>>, vector<9x32xbf16>
    tpu.vector_store %arg10[%c54_332, %c96_333], %209 {strides = array<i32>} : memref<81x512xbf16, #tpu.memory_space<vmem>>, vector<9x32xbf16>,
    %c260_334 = arith.constant 260 : index
    %c0_335 = arith.constant 0 : index
    %211 = vector.load %arg9[%c260_334, %c0_335] : memref<400x32xbf16, #tpu.memory_space<vmem>>, vector<9x32xbf16>
    %c54_336 = arith.constant 54 : index
    %c128_337 = arith.constant 128 : index
    %212 = vector.load %arg10[%c54_336, %c128_337] : memref<81x512xbf16, #tpu.memory_space<vmem>>, vector<9x32xbf16>
    tpu.vector_store %arg10[%c54_336, %c128_337], %211 {strides = array<i32>} : memref<81x512xbf16, #tpu.memory_space<vmem>>, vector<9x32xbf16>,
    %c270_338 = arith.constant 270 : index
    %c0_339 = arith.constant 0 : index
    %213 = vector.load %arg9[%c270_338, %c0_339] : memref<400x32xbf16, #tpu.memory_space<vmem>>, vector<9x32xbf16>
    %c54_340 = arith.constant 54 : index
    %c160_341 = arith.constant 160 : index
    %214 = vector.load %arg10[%c54_340, %c160_341] : memref<81x512xbf16, #tpu.memory_space<vmem>>, vector<9x32xbf16>
    tpu.vector_store %arg10[%c54_340, %c160_341], %213 {strides = array<i32>} : memref<81x512xbf16, #tpu.memory_space<vmem>>, vector<9x32xbf16>,
    %c261_342 = arith.constant 261 : index
    %c0_343 = arith.constant 0 : index
    %215 = vector.load %arg9[%c261_342, %c0_343] : memref<400x32xbf16, #tpu.memory_space<vmem>>, vector<9x32xbf16>
    %c54_344 = arith.constant 54 : index
    %c192_345 = arith.constant 192 : index
    %216 = vector.load %arg10[%c54_344, %c192_345] : memref<81x512xbf16, #tpu.memory_space<vmem>>, vector<9x32xbf16>
    tpu.vector_store %arg10[%c54_344, %c192_345], %215 {strides = array<i32>} : memref<81x512xbf16, #tpu.memory_space<vmem>>, vector<9x32xbf16>,
    %c271_346 = arith.constant 271 : index
    %c0_347 = arith.constant 0 : index
    %217 = vector.load %arg9[%c271_346, %c0_347] : memref<400x32xbf16, #tpu.memory_space<vmem>>, vector<9x32xbf16>
    %c54_348 = arith.constant 54 : index
    %c224_349 = arith.constant 224 : index
    %218 = vector.load %arg10[%c54_348, %c224_349] : memref<81x512xbf16, #tpu.memory_space<vmem>>, vector<9x32xbf16>
    tpu.vector_store %arg10[%c54_348, %c224_349], %217 {strides = array<i32>} : memref<81x512xbf16, #tpu.memory_space<vmem>>, vector<9x32xbf16>,
    %c280 = arith.constant 280 : index
    %c0_350 = arith.constant 0 : index
    %219 = vector.load %arg9[%c280, %c0_350] : memref<400x32xbf16, #tpu.memory_space<vmem>>, vector<9x32xbf16>
    %c54_351 = arith.constant 54 : index
    %c256_352 = arith.constant 256 : index
    %220 = vector.load %arg10[%c54_351, %c256_352] : memref<81x512xbf16, #tpu.memory_space<vmem>>, vector<9x32xbf16>
    tpu.vector_store %arg10[%c54_351, %c256_352], %219 {strides = array<i32>} : memref<81x512xbf16, #tpu.memory_space<vmem>>, vector<9x32xbf16>,
    %c290 = arith.constant 290 : index
    %c0_353 = arith.constant 0 : index
    %221 = vector.load %arg9[%c290, %c0_353] : memref<400x32xbf16, #tpu.memory_space<vmem>>, vector<9x32xbf16>
    %c54_354 = arith.constant 54 : index
    %c288_355 = arith.constant 288 : index
    %222 = vector.load %arg10[%c54_354, %c288_355] : memref<81x512xbf16, #tpu.memory_space<vmem>>, vector<9x32xbf16>
    tpu.vector_store %arg10[%c54_354, %c288_355], %221 {strides = array<i32>} : memref<81x512xbf16, #tpu.memory_space<vmem>>, vector<9x32xbf16>,
    %c281 = arith.constant 281 : index
    %c0_356 = arith.constant 0 : index
    %223 = vector.load %arg9[%c281, %c0_356] : memref<400x32xbf16, #tpu.memory_space<vmem>>, vector<9x32xbf16>
    %c54_357 = arith.constant 54 : index
    %c320_358 = arith.constant 320 : index
    %224 = vector.load %arg10[%c54_357, %c320_358] : memref<81x512xbf16, #tpu.memory_space<vmem>>, vector<9x32xbf16>
    tpu.vector_store %arg10[%c54_357, %c320_358], %223 {strides = array<i32>} : memref<81x512xbf16, #tpu.memory_space<vmem>>, vector<9x32xbf16>,
    %c291 = arith.constant 291 : index
    %c0_359 = arith.constant 0 : index
    %225 = vector.load %arg9[%c291, %c0_359] : memref<400x32xbf16, #tpu.memory_space<vmem>>, vector<9x32xbf16>
    %c54_360 = arith.constant 54 : index
    %c352_361 = arith.constant 352 : index
    %226 = vector.load %arg10[%c54_360, %c352_361] : memref<81x512xbf16, #tpu.memory_space<vmem>>, vector<9x32xbf16>
    tpu.vector_store %arg10[%c54_360, %c352_361], %225 {strides = array<i32>} : memref<81x512xbf16, #tpu.memory_space<vmem>>, vector<9x32xbf16>,
    %c300 = arith.constant 300 : index
    %c0_362 = arith.constant 0 : index
    %227 = vector.load %arg9[%c300, %c0_362] : memref<400x32xbf16, #tpu.memory_space<vmem>>, vector<9x32xbf16>
    %c54_363 = arith.constant 54 : index
    %c384_364 = arith.constant 384 : index
    %228 = vector.load %arg10[%c54_363, %c384_364] : memref<81x512xbf16, #tpu.memory_space<vmem>>, vector<9x32xbf16>
    tpu.vector_store %arg10[%c54_363, %c384_364], %227 {strides = array<i32>} : memref<81x512xbf16, #tpu.memory_space<vmem>>, vector<9x32xbf16>,
    %c310 = arith.constant 310 : index
    %c0_365 = arith.constant 0 : index
    %229 = vector.load %arg9[%c310, %c0_365] : memref<400x32xbf16, #tpu.memory_space<vmem>>, vector<9x32xbf16>
    %c54_366 = arith.constant 54 : index
    %c416_367 = arith.constant 416 : index
    %230 = vector.load %arg10[%c54_366, %c416_367] : memref<81x512xbf16, #tpu.memory_space<vmem>>, vector<9x32xbf16>
    tpu.vector_store %arg10[%c54_366, %c416_367], %229 {strides = array<i32>} : memref<81x512xbf16, #tpu.memory_space<vmem>>, vector<9x32xbf16>,
    %c301 = arith.constant 301 : index
    %c0_368 = arith.constant 0 : index
    %231 = vector.load %arg9[%c301, %c0_368] : memref<400x32xbf16, #tpu.memory_space<vmem>>, vector<9x32xbf16>
    %c54_369 = arith.constant 54 : index
    %c448_370 = arith.constant 448 : index
    %232 = vector.load %arg10[%c54_369, %c448_370] : memref<81x512xbf16, #tpu.memory_space<vmem>>, vector<9x32xbf16>
    tpu.vector_store %arg10[%c54_369, %c448_370], %231 {strides = array<i32>} : memref<81x512xbf16, #tpu.memory_space<vmem>>, vector<9x32xbf16>,
    %c311 = arith.constant 311 : index
    %c0_371 = arith.constant 0 : index
    %233 = vector.load %arg9[%c311, %c0_371] : memref<400x32xbf16, #tpu.memory_space<vmem>>, vector<9x32xbf16>
    %c54_372 = arith.constant 54 : index
    %c480_373 = arith.constant 480 : index
    %234 = vector.load %arg10[%c54_372, %c480_373] : memref<81x512xbf16, #tpu.memory_space<vmem>>, vector<9x32xbf16>
    tpu.vector_store %arg10[%c54_372, %c480_373], %233 {strides = array<i32>} : memref<81x512xbf16, #tpu.memory_space<vmem>>, vector<9x32xbf16>,
    %c280_374 = arith.constant 280 : index
    %c0_375 = arith.constant 0 : index
    %235 = vector.load %arg9[%c280_374, %c0_375] : memref<400x32xbf16, #tpu.memory_space<vmem>>, vector<9x32xbf16>
    %c63 = arith.constant 63 : index
    %c0_376 = arith.constant 0 : index
    %236 = vector.load %arg10[%c63, %c0_376] : memref<81x512xbf16, #tpu.memory_space<vmem>>, vector<9x32xbf16>
    tpu.vector_store %arg10[%c63, %c0_376], %235 {strides = array<i32>} : memref<81x512xbf16, #tpu.memory_space<vmem>>, vector<9x32xbf16>,
    %c290_377 = arith.constant 290 : index
    %c0_378 = arith.constant 0 : index
    %237 = vector.load %arg9[%c290_377, %c0_378] : memref<400x32xbf16, #tpu.memory_space<vmem>>, vector<9x32xbf16>
    %c63_379 = arith.constant 63 : index
    %c32_380 = arith.constant 32 : index
    %238 = vector.load %arg10[%c63_379, %c32_380] : memref<81x512xbf16, #tpu.memory_space<vmem>>, vector<9x32xbf16>
    tpu.vector_store %arg10[%c63_379, %c32_380], %237 {strides = array<i32>} : memref<81x512xbf16, #tpu.memory_space<vmem>>, vector<9x32xbf16>,
    %c281_381 = arith.constant 281 : index
    %c0_382 = arith.constant 0 : index
    %239 = vector.load %arg9[%c281_381, %c0_382] : memref<400x32xbf16, #tpu.memory_space<vmem>>, vector<9x32xbf16>
    %c63_383 = arith.constant 63 : index
    %c64_384 = arith.constant 64 : index
    %240 = vector.load %arg10[%c63_383, %c64_384] : memref<81x512xbf16, #tpu.memory_space<vmem>>, vector<9x32xbf16>
    tpu.vector_store %arg10[%c63_383, %c64_384], %239 {strides = array<i32>} : memref<81x512xbf16, #tpu.memory_space<vmem>>, vector<9x32xbf16>,
    %c291_385 = arith.constant 291 : index
    %c0_386 = arith.constant 0 : index
    %241 = vector.load %arg9[%c291_385, %c0_386] : memref<400x32xbf16, #tpu.memory_space<vmem>>, vector<9x32xbf16>
    %c63_387 = arith.constant 63 : index
    %c96_388 = arith.constant 96 : index
    %242 = vector.load %arg10[%c63_387, %c96_388] : memref<81x512xbf16, #tpu.memory_space<vmem>>, vector<9x32xbf16>
    tpu.vector_store %arg10[%c63_387, %c96_388], %241 {strides = array<i32>} : memref<81x512xbf16, #tpu.memory_space<vmem>>, vector<9x32xbf16>,
    %c300_389 = arith.constant 300 : index
    %c0_390 = arith.constant 0 : index
    %243 = vector.load %arg9[%c300_389, %c0_390] : memref<400x32xbf16, #tpu.memory_space<vmem>>, vector<9x32xbf16>
    %c63_391 = arith.constant 63 : index
    %c128_392 = arith.constant 128 : index
    %244 = vector.load %arg10[%c63_391, %c128_392] : memref<81x512xbf16, #tpu.memory_space<vmem>>, vector<9x32xbf16>
    tpu.vector_store %arg10[%c63_391, %c128_392], %243 {strides = array<i32>} : memref<81x512xbf16, #tpu.memory_space<vmem>>, vector<9x32xbf16>,
    %c310_393 = arith.constant 310 : index
    %c0_394 = arith.constant 0 : index
    %245 = vector.load %arg9[%c310_393, %c0_394] : memref<400x32xbf16, #tpu.memory_space<vmem>>, vector<9x32xbf16>
    %c63_395 = arith.constant 63 : index
    %c160_396 = arith.constant 160 : index
    %246 = vector.load %arg10[%c63_395, %c160_396] : memref<81x512xbf16, #tpu.memory_space<vmem>>, vector<9x32xbf16>
    tpu.vector_store %arg10[%c63_395, %c160_396], %245 {strides = array<i32>} : memref<81x512xbf16, #tpu.memory_space<vmem>>, vector<9x32xbf16>,
    %c301_397 = arith.constant 301 : index
    %c0_398 = arith.constant 0 : index
    %247 = vector.load %arg9[%c301_397, %c0_398] : memref<400x32xbf16, #tpu.memory_space<vmem>>, vector<9x32xbf16>
    %c63_399 = arith.constant 63 : index
    %c192_400 = arith.constant 192 : index
    %248 = vector.load %arg10[%c63_399, %c192_400] : memref<81x512xbf16, #tpu.memory_space<vmem>>, vector<9x32xbf16>
    tpu.vector_store %arg10[%c63_399, %c192_400], %247 {strides = array<i32>} : memref<81x512xbf16, #tpu.memory_space<vmem>>, vector<9x32xbf16>,
    %c311_401 = arith.constant 311 : index
    %c0_402 = arith.constant 0 : index
    %249 = vector.load %arg9[%c311_401, %c0_402] : memref<400x32xbf16, #tpu.memory_space<vmem>>, vector<9x32xbf16>
    %c63_403 = arith.constant 63 : index
    %c224_404 = arith.constant 224 : index
    %250 = vector.load %arg10[%c63_403, %c224_404] : memref<81x512xbf16, #tpu.memory_space<vmem>>, vector<9x32xbf16>
    tpu.vector_store %arg10[%c63_403, %c224_404], %249 {strides = array<i32>} : memref<81x512xbf16, #tpu.memory_space<vmem>>, vector<9x32xbf16>,
    %c320_405 = arith.constant 320 : index
    %c0_406 = arith.constant 0 : index
    %251 = vector.load %arg9[%c320_405, %c0_406] : memref<400x32xbf16, #tpu.memory_space<vmem>>, vector<9x32xbf16>
    %c63_407 = arith.constant 63 : index
    %c256_408 = arith.constant 256 : index
    %252 = vector.load %arg10[%c63_407, %c256_408] : memref<81x512xbf16, #tpu.memory_space<vmem>>, vector<9x32xbf16>
    tpu.vector_store %arg10[%c63_407, %c256_408], %251 {strides = array<i32>} : memref<81x512xbf16, #tpu.memory_space<vmem>>, vector<9x32xbf16>,
    %c330 = arith.constant 330 : index
    %c0_409 = arith.constant 0 : index
    %253 = vector.load %arg9[%c330, %c0_409] : memref<400x32xbf16, #tpu.memory_space<vmem>>, vector<9x32xbf16>
    %c63_410 = arith.constant 63 : index
    %c288_411 = arith.constant 288 : index
    %254 = vector.load %arg10[%c63_410, %c288_411] : memref<81x512xbf16, #tpu.memory_space<vmem>>, vector<9x32xbf16>
    tpu.vector_store %arg10[%c63_410, %c288_411], %253 {strides = array<i32>} : memref<81x512xbf16, #tpu.memory_space<vmem>>, vector<9x32xbf16>,
    %c321 = arith.constant 321 : index
    %c0_412 = arith.constant 0 : index
    %255 = vector.load %arg9[%c321, %c0_412] : memref<400x32xbf16, #tpu.memory_space<vmem>>, vector<9x32xbf16>
    %c63_413 = arith.constant 63 : index
    %c320_414 = arith.constant 320 : index
    %256 = vector.load %arg10[%c63_413, %c320_414] : memref<81x512xbf16, #tpu.memory_space<vmem>>, vector<9x32xbf16>
    tpu.vector_store %arg10[%c63_413, %c320_414], %255 {strides = array<i32>} : memref<81x512xbf16, #tpu.memory_space<vmem>>, vector<9x32xbf16>,
    %c331 = arith.constant 331 : index
    %c0_415 = arith.constant 0 : index
    %257 = vector.load %arg9[%c331, %c0_415] : memref<400x32xbf16, #tpu.memory_space<vmem>>, vector<9x32xbf16>
    %c63_416 = arith.constant 63 : index
    %c352_417 = arith.constant 352 : index
    %258 = vector.load %arg10[%c63_416, %c352_417] : memref<81x512xbf16, #tpu.memory_space<vmem>>, vector<9x32xbf16>
    tpu.vector_store %arg10[%c63_416, %c352_417], %257 {strides = array<i32>} : memref<81x512xbf16, #tpu.memory_space<vmem>>, vector<9x32xbf16>,
    %c340 = arith.constant 340 : index
    %c0_418 = arith.constant 0 : index
    %259 = vector.load %arg9[%c340, %c0_418] : memref<400x32xbf16, #tpu.memory_space<vmem>>, vector<9x32xbf16>
    %c63_419 = arith.constant 63 : index
    %c384_420 = arith.constant 384 : index
    %260 = vector.load %arg10[%c63_419, %c384_420] : memref<81x512xbf16, #tpu.memory_space<vmem>>, vector<9x32xbf16>
    tpu.vector_store %arg10[%c63_419, %c384_420], %259 {strides = array<i32>} : memref<81x512xbf16, #tpu.memory_space<vmem>>, vector<9x32xbf16>,
    %c350 = arith.constant 350 : index
    %c0_421 = arith.constant 0 : index
    %261 = vector.load %arg9[%c350, %c0_421] : memref<400x32xbf16, #tpu.memory_space<vmem>>, vector<9x32xbf16>
    %c63_422 = arith.constant 63 : index
    %c416_423 = arith.constant 416 : index
    %262 = vector.load %arg10[%c63_422, %c416_423] : memref<81x512xbf16, #tpu.memory_space<vmem>>, vector<9x32xbf16>
    tpu.vector_store %arg10[%c63_422, %c416_423], %261 {strides = array<i32>} : memref<81x512xbf16, #tpu.memory_space<vmem>>, vector<9x32xbf16>,
    %c341 = arith.constant 341 : index
    %c0_424 = arith.constant 0 : index
    %263 = vector.load %arg9[%c341, %c0_424] : memref<400x32xbf16, #tpu.memory_space<vmem>>, vector<9x32xbf16>
    %c63_425 = arith.constant 63 : index
    %c448_426 = arith.constant 448 : index
    %264 = vector.load %arg10[%c63_425, %c448_426] : memref<81x512xbf16, #tpu.memory_space<vmem>>, vector<9x32xbf16>
    tpu.vector_store %arg10[%c63_425, %c448_426], %263 {strides = array<i32>} : memref<81x512xbf16, #tpu.memory_space<vmem>>, vector<9x32xbf16>,
    %c351 = arith.constant 351 : index
    %c0_427 = arith.constant 0 : index
    %265 = vector.load %arg9[%c351, %c0_427] : memref<400x32xbf16, #tpu.memory_space<vmem>>, vector<9x32xbf16>
    %c63_428 = arith.constant 63 : index
    %c480_429 = arith.constant 480 : index
    %266 = vector.load %arg10[%c63_428, %c480_429] : memref<81x512xbf16, #tpu.memory_space<vmem>>, vector<9x32xbf16>
    tpu.vector_store %arg10[%c63_428, %c480_429], %265 {strides = array<i32>} : memref<81x512xbf16, #tpu.memory_space<vmem>>, vector<9x32xbf16>,
    %c320_430 = arith.constant 320 : index
    %c0_431 = arith.constant 0 : index
    %267 = vector.load %arg9[%c320_430, %c0_431] : memref<400x32xbf16, #tpu.memory_space<vmem>>, vector<9x32xbf16>
    %c72 = arith.constant 72 : index
    %c0_432 = arith.constant 0 : index
    %268 = vector.load %arg10[%c72, %c0_432] : memref<81x512xbf16, #tpu.memory_space<vmem>>, vector<9x32xbf16>
    tpu.vector_store %arg10[%c72, %c0_432], %267 {strides = array<i32>} : memref<81x512xbf16, #tpu.memory_space<vmem>>, vector<9x32xbf16>,
    %c330_433 = arith.constant 330 : index
    %c0_434 = arith.constant 0 : index
    %269 = vector.load %arg9[%c330_433, %c0_434] : memref<400x32xbf16, #tpu.memory_space<vmem>>, vector<9x32xbf16>
    %c72_435 = arith.constant 72 : index
    %c32_436 = arith.constant 32 : index
    %270 = vector.load %arg10[%c72_435, %c32_436] : memref<81x512xbf16, #tpu.memory_space<vmem>>, vector<9x32xbf16>
    tpu.vector_store %arg10[%c72_435, %c32_436], %269 {strides = array<i32>} : memref<81x512xbf16, #tpu.memory_space<vmem>>, vector<9x32xbf16>,
    %c321_437 = arith.constant 321 : index
    %c0_438 = arith.constant 0 : index
    %271 = vector.load %arg9[%c321_437, %c0_438] : memref<400x32xbf16, #tpu.memory_space<vmem>>, vector<9x32xbf16>
    %c72_439 = arith.constant 72 : index
    %c64_440 = arith.constant 64 : index
    %272 = vector.load %arg10[%c72_439, %c64_440] : memref<81x512xbf16, #tpu.memory_space<vmem>>, vector<9x32xbf16>
    tpu.vector_store %arg10[%c72_439, %c64_440], %271 {strides = array<i32>} : memref<81x512xbf16, #tpu.memory_space<vmem>>, vector<9x32xbf16>,
    %c331_441 = arith.constant 331 : index
    %c0_442 = arith.constant 0 : index
    %273 = vector.load %arg9[%c331_441, %c0_442] : memref<400x32xbf16, #tpu.memory_space<vmem>>, vector<9x32xbf16>
    %c72_443 = arith.constant 72 : index
    %c96_444 = arith.constant 96 : index
    %274 = vector.load %arg10[%c72_443, %c96_444] : memref<81x512xbf16, #tpu.memory_space<vmem>>, vector<9x32xbf16>
    tpu.vector_store %arg10[%c72_443, %c96_444], %273 {strides = array<i32>} : memref<81x512xbf16, #tpu.memory_space<vmem>>, vector<9x32xbf16>,
    %c340_445 = arith.constant 340 : index
    %c0_446 = arith.constant 0 : index
    %275 = vector.load %arg9[%c340_445, %c0_446] : memref<400x32xbf16, #tpu.memory_space<vmem>>, vector<9x32xbf16>
    %c72_447 = arith.constant 72 : index
    %c128_448 = arith.constant 128 : index
    %276 = vector.load %arg10[%c72_447, %c128_448] : memref<81x512xbf16, #tpu.memory_space<vmem>>, vector<9x32xbf16>
    tpu.vector_store %arg10[%c72_447, %c128_448], %275 {strides = array<i32>} : memref<81x512xbf16, #tpu.memory_space<vmem>>, vector<9x32xbf16>,
    %c350_449 = arith.constant 350 : index
    %c0_450 = arith.constant 0 : index
    %277 = vector.load %arg9[%c350_449, %c0_450] : memref<400x32xbf16, #tpu.memory_space<vmem>>, vector<9x32xbf16>
    %c72_451 = arith.constant 72 : index
    %c160_452 = arith.constant 160 : index
    %278 = vector.load %arg10[%c72_451, %c160_452] : memref<81x512xbf16, #tpu.memory_space<vmem>>, vector<9x32xbf16>
    tpu.vector_store %arg10[%c72_451, %c160_452], %277 {strides = array<i32>} : memref<81x512xbf16, #tpu.memory_space<vmem>>, vector<9x32xbf16>,
    %c341_453 = arith.constant 341 : index
    %c0_454 = arith.constant 0 : index
    %279 = vector.load %arg9[%c341_453, %c0_454] : memref<400x32xbf16, #tpu.memory_space<vmem>>, vector<9x32xbf16>
    %c72_455 = arith.constant 72 : index
    %c192_456 = arith.constant 192 : index
    %280 = vector.load %arg10[%c72_455, %c192_456] : memref<81x512xbf16, #tpu.memory_space<vmem>>, vector<9x32xbf16>
    tpu.vector_store %arg10[%c72_455, %c192_456], %279 {strides = array<i32>} : memref<81x512xbf16, #tpu.memory_space<vmem>>, vector<9x32xbf16>,
    %c351_457 = arith.constant 351 : index
    %c0_458 = arith.constant 0 : index
    %281 = vector.load %arg9[%c351_457, %c0_458] : memref<400x32xbf16, #tpu.memory_space<vmem>>, vector<9x32xbf16>
    %c72_459 = arith.constant 72 : index
    %c224_460 = arith.constant 224 : index
    %282 = vector.load %arg10[%c72_459, %c224_460] : memref<81x512xbf16, #tpu.memory_space<vmem>>, vector<9x32xbf16>
    tpu.vector_store %arg10[%c72_459, %c224_460], %281 {strides = array<i32>} : memref<81x512xbf16, #tpu.memory_space<vmem>>, vector<9x32xbf16>,
    %c360 = arith.constant 360 : index
    %c0_461 = arith.constant 0 : index
    %283 = vector.load %arg9[%c360, %c0_461] : memref<400x32xbf16, #tpu.memory_space<vmem>>, vector<9x32xbf16>
    %c72_462 = arith.constant 72 : index
    %c256_463 = arith.constant 256 : index
    %284 = vector.load %arg10[%c72_462, %c256_463] : memref<81x512xbf16, #tpu.memory_space<vmem>>, vector<9x32xbf16>
    tpu.vector_store %arg10[%c72_462, %c256_463], %283 {strides = array<i32>} : memref<81x512xbf16, #tpu.memory_space<vmem>>, vector<9x32xbf16>,
    %c370 = arith.constant 370 : index
    %c0_464 = arith.constant 0 : index
    %285 = vector.load %arg9[%c370, %c0_464] : memref<400x32xbf16, #tpu.memory_space<vmem>>, vector<9x32xbf16>
    %c72_465 = arith.constant 72 : index
    %c288_466 = arith.constant 288 : index
    %286 = vector.load %arg10[%c72_465, %c288_466] : memref<81x512xbf16, #tpu.memory_space<vmem>>, vector<9x32xbf16>
    tpu.vector_store %arg10[%c72_465, %c288_466], %285 {strides = array<i32>} : memref<81x512xbf16, #tpu.memory_space<vmem>>, vector<9x32xbf16>,
    %c361 = arith.constant 361 : index
    %c0_467 = arith.constant 0 : index
    %287 = vector.load %arg9[%c361, %c0_467] : memref<400x32xbf16, #tpu.memory_space<vmem>>, vector<9x32xbf16>
    %c72_468 = arith.constant 72 : index
    %c320_469 = arith.constant 320 : index
    %288 = vector.load %arg10[%c72_468, %c320_469] : memref<81x512xbf16, #tpu.memory_space<vmem>>, vector<9x32xbf16>
    tpu.vector_store %arg10[%c72_468, %c320_469], %287 {strides = array<i32>} : memref<81x512xbf16, #tpu.memory_space<vmem>>, vector<9x32xbf16>,
    %c371 = arith.constant 371 : index
    %c0_470 = arith.constant 0 : index
    %289 = vector.load %arg9[%c371, %c0_470] : memref<400x32xbf16, #tpu.memory_space<vmem>>, vector<9x32xbf16>
    %c72_471 = arith.constant 72 : index
    %c352_472 = arith.constant 352 : index
    %290 = vector.load %arg10[%c72_471, %c352_472] : memref<81x512xbf16, #tpu.memory_space<vmem>>, vector<9x32xbf16>
    tpu.vector_store %arg10[%c72_471, %c352_472], %289 {strides = array<i32>} : memref<81x512xbf16, #tpu.memory_space<vmem>>, vector<9x32xbf16>,
    %c380 = arith.constant 380 : index
    %c0_473 = arith.constant 0 : index
    %291 = vector.load %arg9[%c380, %c0_473] : memref<400x32xbf16, #tpu.memory_space<vmem>>, vector<9x32xbf16>
    %c72_474 = arith.constant 72 : index
    %c384_475 = arith.constant 384 : index
    %292 = vector.load %arg10[%c72_474, %c384_475] : memref<81x512xbf16, #tpu.memory_space<vmem>>, vector<9x32xbf16>
    tpu.vector_store %arg10[%c72_474, %c384_475], %291 {strides = array<i32>} : memref<81x512xbf16, #tpu.memory_space<vmem>>, vector<9x32xbf16>,
    %c390 = arith.constant 390 : index
    %c0_476 = arith.constant 0 : index
    %293 = vector.load %arg9[%c390, %c0_476] : memref<400x32xbf16, #tpu.memory_space<vmem>>, vector<9x32xbf16>
    %c72_477 = arith.constant 72 : index
    %c416_478 = arith.constant 416 : index
    %294 = vector.load %arg10[%c72_477, %c416_478] : memref<81x512xbf16, #tpu.memory_space<vmem>>, vector<9x32xbf16>
    tpu.vector_store %arg10[%c72_477, %c416_478], %293 {strides = array<i32>} : memref<81x512xbf16, #tpu.memory_space<vmem>>, vector<9x32xbf16>,
    %c381 = arith.constant 381 : index
    %c0_479 = arith.constant 0 : index
    %295 = vector.load %arg9[%c381, %c0_479] : memref<400x32xbf16, #tpu.memory_space<vmem>>, vector<9x32xbf16>
    %c72_480 = arith.constant 72 : index
    %c448_481 = arith.constant 448 : index
    %296 = vector.load %arg10[%c72_480, %c448_481] : memref<81x512xbf16, #tpu.memory_space<vmem>>, vector<9x32xbf16>
    tpu.vector_store %arg10[%c72_480, %c448_481], %295 {strides = array<i32>} : memref<81x512xbf16, #tpu.memory_space<vmem>>, vector<9x32xbf16>,
    %c391 = arith.constant 391 : index
    %c0_482 = arith.constant 0 : index
    %297 = vector.load %arg9[%c391, %c0_482] : memref<400x32xbf16, #tpu.memory_space<vmem>>, vector<9x32xbf16>
    %c72_483 = arith.constant 72 : index
    %c480_484 = arith.constant 480 : index
    %298 = vector.load %arg10[%c72_483, %c480_484] : memref<81x512xbf16, #tpu.memory_space<vmem>>, vector<9x32xbf16>
    tpu.vector_store %arg10[%c72_483, %c480_484], %297 {strides = array<i32>} : memref<81x512xbf16, #tpu.memory_space<vmem>>, vector<9x32xbf16>,
    %c0_485 = arith.constant 0 : index
    %c0_486 = arith.constant 0 : index
    %299 = vector.load %arg10[%c0_485, %c0_486] : memref<81x512xbf16, #tpu.memory_space<vmem>>, vector<81x512xbf16>
    %c0_487 = arith.constant 0 : index
    %c0_488 = arith.constant 0 : index
    %300 = vector.load %arg4[%c0_487, %c0_488] : memref<512x64xbf16, #tpu.memory_space<vmem>>, vector<512x64xbf16>
    %cst_489 = arith.constant dense<0.000000e+00> : vector<81x64xf32>
    %301 = tpu.matmul %299, %300, %cst_489 {dimension_numbers = #tpu.dot_dimension_numbers<[1], [0], [0], [1], [0, 0, 1, 1], [], []>} : vector<81x512xbf16>, vector<512x64xbf16>, vector<81x64xf32> -> vector<81x64xf32>
    %c0_490 = arith.constant 0 : index
    %c0_491 = arith.constant 0 : index
    %302 = vector.load %arg5[%c0_490, %c0_491] : memref<1x64xf32, #tpu.memory_space<vmem>>, vector<1x64xf32>
    %303 = vector.broadcast %302 : vector<1x64xf32> to vector<81x64xf32>
    %304 = arith.addf %301, %303 : vector<81x64xf32>
    %cst_492 = arith.constant 0.000000e+00 : f32
    %305 = vector.broadcast %cst_492 : f32 to vector<81x64xf32>
    %306 = arith.maximumf %304, %305 : vector<81x64xf32>
    %307 = arith.truncf %306 : vector<81x64xf32> to vector<81x64xbf16>
    %c0_493 = arith.constant 0 : index
    %c0_494 = arith.constant 0 : index
    %308 = vector.load %arg11[%c0_493, %c0_494] : memref<81x64xbf16, #tpu.memory_space<vmem>>, vector<81x64xbf16>
    tpu.vector_store %arg11[%c0_493, %c0_494], %307 {strides = array<i32>} : memref<81x64xbf16, #tpu.memory_space<vmem>>, vector<81x64xbf16>,
    %c0_495 = arith.constant 0 : index
    %c0_496 = arith.constant 0 : index
    %309 = vector.load %arg11[%c0_495, %c0_496] : memref<81x64xbf16, #tpu.memory_space<vmem>>, vector<7x64xbf16>
    %c0_497 = arith.constant 0 : index
    %c0_498 = arith.constant 0 : index
    %310 = vector.load %arg12[%c0_497, %c0_498] : memref<49x576xbf16, #tpu.memory_space<vmem>>, vector<7x64xbf16>
    tpu.vector_store %arg12[%c0_497, %c0_498], %309 {strides = array<i32>} : memref<49x576xbf16, #tpu.memory_space<vmem>>, vector<7x64xbf16>,
    %c1_499 = arith.constant 1 : index
    %c0_500 = arith.constant 0 : index
    %311 = vector.load %arg11[%c1_499, %c0_500] : memref<81x64xbf16, #tpu.memory_space<vmem>>, vector<7x64xbf16>
    %c0_501 = arith.constant 0 : index
    %c64_502 = arith.constant 64 : index
    %312 = vector.load %arg12[%c0_501, %c64_502] : memref<49x576xbf16, #tpu.memory_space<vmem>>, vector<7x64xbf16>
    tpu.vector_store %arg12[%c0_501, %c64_502], %311 {strides = array<i32>} : memref<49x576xbf16, #tpu.memory_space<vmem>>, vector<7x64xbf16>,
    %c2 = arith.constant 2 : index
    %c0_503 = arith.constant 0 : index
    %313 = vector.load %arg11[%c2, %c0_503] : memref<81x64xbf16, #tpu.memory_space<vmem>>, vector<7x64xbf16>
    %c0_504 = arith.constant 0 : index
    %c128_505 = arith.constant 128 : index
    %314 = vector.load %arg12[%c0_504, %c128_505] : memref<49x576xbf16, #tpu.memory_space<vmem>>, vector<7x64xbf16>
    tpu.vector_store %arg12[%c0_504, %c128_505], %313 {strides = array<i32>} : memref<49x576xbf16, #tpu.memory_space<vmem>>, vector<7x64xbf16>,
    %c9_506 = arith.constant 9 : index
    %c0_507 = arith.constant 0 : index
    %315 = vector.load %arg11[%c9_506, %c0_507] : memref<81x64xbf16, #tpu.memory_space<vmem>>, vector<7x64xbf16>
    %c0_508 = arith.constant 0 : index
    %c192_509 = arith.constant 192 : index
    %316 = vector.load %arg12[%c0_508, %c192_509] : memref<49x576xbf16, #tpu.memory_space<vmem>>, vector<7x64xbf16>
    tpu.vector_store %arg12[%c0_508, %c192_509], %315 {strides = array<i32>} : memref<49x576xbf16, #tpu.memory_space<vmem>>, vector<7x64xbf16>,
    %c10_510 = arith.constant 10 : index
    %c0_511 = arith.constant 0 : index
    %317 = vector.load %arg11[%c10_510, %c0_511] : memref<81x64xbf16, #tpu.memory_space<vmem>>, vector<7x64xbf16>
    %c0_512 = arith.constant 0 : index
    %c256_513 = arith.constant 256 : index
    %318 = vector.load %arg12[%c0_512, %c256_513] : memref<49x576xbf16, #tpu.memory_space<vmem>>, vector<7x64xbf16>
    tpu.vector_store %arg12[%c0_512, %c256_513], %317 {strides = array<i32>} : memref<49x576xbf16, #tpu.memory_space<vmem>>, vector<7x64xbf16>,
    %c11_514 = arith.constant 11 : index
    %c0_515 = arith.constant 0 : index
    %319 = vector.load %arg11[%c11_514, %c0_515] : memref<81x64xbf16, #tpu.memory_space<vmem>>, vector<7x64xbf16>
    %c0_516 = arith.constant 0 : index
    %c320_517 = arith.constant 320 : index
    %320 = vector.load %arg12[%c0_516, %c320_517] : memref<49x576xbf16, #tpu.memory_space<vmem>>, vector<7x64xbf16>
    tpu.vector_store %arg12[%c0_516, %c320_517], %319 {strides = array<i32>} : memref<49x576xbf16, #tpu.memory_space<vmem>>, vector<7x64xbf16>,
    %c18_518 = arith.constant 18 : index
    %c0_519 = arith.constant 0 : index
    %321 = vector.load %arg11[%c18_518, %c0_519] : memref<81x64xbf16, #tpu.memory_space<vmem>>, vector<7x64xbf16>
    %c0_520 = arith.constant 0 : index
    %c384_521 = arith.constant 384 : index
    %322 = vector.load %arg12[%c0_520, %c384_521] : memref<49x576xbf16, #tpu.memory_space<vmem>>, vector<7x64xbf16>
    tpu.vector_store %arg12[%c0_520, %c384_521], %321 {strides = array<i32>} : memref<49x576xbf16, #tpu.memory_space<vmem>>, vector<7x64xbf16>,
    %c19 = arith.constant 19 : index
    %c0_522 = arith.constant 0 : index
    %323 = vector.load %arg11[%c19, %c0_522] : memref<81x64xbf16, #tpu.memory_space<vmem>>, vector<7x64xbf16>
    %c0_523 = arith.constant 0 : index
    %c448_524 = arith.constant 448 : index
    %324 = vector.load %arg12[%c0_523, %c448_524] : memref<49x576xbf16, #tpu.memory_space<vmem>>, vector<7x64xbf16>
    tpu.vector_store %arg12[%c0_523, %c448_524], %323 {strides = array<i32>} : memref<49x576xbf16, #tpu.memory_space<vmem>>, vector<7x64xbf16>,
    %c20_525 = arith.constant 20 : index
    %c0_526 = arith.constant 0 : index
    %325 = vector.load %arg11[%c20_525, %c0_526] : memref<81x64xbf16, #tpu.memory_space<vmem>>, vector<7x64xbf16>
    %c0_527 = arith.constant 0 : index
    %c512 = arith.constant 512 : index
    %326 = vector.load %arg12[%c0_527, %c512] : memref<49x576xbf16, #tpu.memory_space<vmem>>, vector<7x64xbf16>
    tpu.vector_store %arg12[%c0_527, %c512], %325 {strides = array<i32>} : memref<49x576xbf16, #tpu.memory_space<vmem>>, vector<7x64xbf16>,
    %c9_528 = arith.constant 9 : index
    %c0_529 = arith.constant 0 : index
    %327 = vector.load %arg11[%c9_528, %c0_529] : memref<81x64xbf16, #tpu.memory_space<vmem>>, vector<7x64xbf16>
    %c7 = arith.constant 7 : index
    %c0_530 = arith.constant 0 : index
    %328 = vector.load %arg12[%c7, %c0_530] : memref<49x576xbf16, #tpu.memory_space<vmem>>, vector<7x64xbf16>
    tpu.vector_store %arg12[%c7, %c0_530], %327 {strides = array<i32>} : memref<49x576xbf16, #tpu.memory_space<vmem>>, vector<7x64xbf16>,
    %c10_531 = arith.constant 10 : index
    %c0_532 = arith.constant 0 : index
    %329 = vector.load %arg11[%c10_531, %c0_532] : memref<81x64xbf16, #tpu.memory_space<vmem>>, vector<7x64xbf16>
    %c7_533 = arith.constant 7 : index
    %c64_534 = arith.constant 64 : index
    %330 = vector.load %arg12[%c7_533, %c64_534] : memref<49x576xbf16, #tpu.memory_space<vmem>>, vector<7x64xbf16>
    tpu.vector_store %arg12[%c7_533, %c64_534], %329 {strides = array<i32>} : memref<49x576xbf16, #tpu.memory_space<vmem>>, vector<7x64xbf16>,
    %c11_535 = arith.constant 11 : index
    %c0_536 = arith.constant 0 : index
    %331 = vector.load %arg11[%c11_535, %c0_536] : memref<81x64xbf16, #tpu.memory_space<vmem>>, vector<7x64xbf16>
    %c7_537 = arith.constant 7 : index
    %c128_538 = arith.constant 128 : index
    %332 = vector.load %arg12[%c7_537, %c128_538] : memref<49x576xbf16, #tpu.memory_space<vmem>>, vector<7x64xbf16>
    tpu.vector_store %arg12[%c7_537, %c128_538], %331 {strides = array<i32>} : memref<49x576xbf16, #tpu.memory_space<vmem>>, vector<7x64xbf16>,
    %c18_539 = arith.constant 18 : index
    %c0_540 = arith.constant 0 : index
    %333 = vector.load %arg11[%c18_539, %c0_540] : memref<81x64xbf16, #tpu.memory_space<vmem>>, vector<7x64xbf16>
    %c7_541 = arith.constant 7 : index
    %c192_542 = arith.constant 192 : index
    %334 = vector.load %arg12[%c7_541, %c192_542] : memref<49x576xbf16, #tpu.memory_space<vmem>>, vector<7x64xbf16>
    tpu.vector_store %arg12[%c7_541, %c192_542], %333 {strides = array<i32>} : memref<49x576xbf16, #tpu.memory_space<vmem>>, vector<7x64xbf16>,
    %c19_543 = arith.constant 19 : index
    %c0_544 = arith.constant 0 : index
    %335 = vector.load %arg11[%c19_543, %c0_544] : memref<81x64xbf16, #tpu.memory_space<vmem>>, vector<7x64xbf16>
    %c7_545 = arith.constant 7 : index
    %c256_546 = arith.constant 256 : index
    %336 = vector.load %arg12[%c7_545, %c256_546] : memref<49x576xbf16, #tpu.memory_space<vmem>>, vector<7x64xbf16>
    tpu.vector_store %arg12[%c7_545, %c256_546], %335 {strides = array<i32>} : memref<49x576xbf16, #tpu.memory_space<vmem>>, vector<7x64xbf16>,
    %c20_547 = arith.constant 20 : index
    %c0_548 = arith.constant 0 : index
    %337 = vector.load %arg11[%c20_547, %c0_548] : memref<81x64xbf16, #tpu.memory_space<vmem>>, vector<7x64xbf16>
    %c7_549 = arith.constant 7 : index
    %c320_550 = arith.constant 320 : index
    %338 = vector.load %arg12[%c7_549, %c320_550] : memref<49x576xbf16, #tpu.memory_space<vmem>>, vector<7x64xbf16>
    tpu.vector_store %arg12[%c7_549, %c320_550], %337 {strides = array<i32>} : memref<49x576xbf16, #tpu.memory_space<vmem>>, vector<7x64xbf16>,
    %c27_551 = arith.constant 27 : index
    %c0_552 = arith.constant 0 : index
    %339 = vector.load %arg11[%c27_551, %c0_552] : memref<81x64xbf16, #tpu.memory_space<vmem>>, vector<7x64xbf16>
    %c7_553 = arith.constant 7 : index
    %c384_554 = arith.constant 384 : index
    %340 = vector.load %arg12[%c7_553, %c384_554] : memref<49x576xbf16, #tpu.memory_space<vmem>>, vector<7x64xbf16>
    tpu.vector_store %arg12[%c7_553, %c384_554], %339 {strides = array<i32>} : memref<49x576xbf16, #tpu.memory_space<vmem>>, vector<7x64xbf16>,
    %c28 = arith.constant 28 : index
    %c0_555 = arith.constant 0 : index
    %341 = vector.load %arg11[%c28, %c0_555] : memref<81x64xbf16, #tpu.memory_space<vmem>>, vector<7x64xbf16>
    %c7_556 = arith.constant 7 : index
    %c448_557 = arith.constant 448 : index
    %342 = vector.load %arg12[%c7_556, %c448_557] : memref<49x576xbf16, #tpu.memory_space<vmem>>, vector<7x64xbf16>
    tpu.vector_store %arg12[%c7_556, %c448_557], %341 {strides = array<i32>} : memref<49x576xbf16, #tpu.memory_space<vmem>>, vector<7x64xbf16>,
    %c29 = arith.constant 29 : index
    %c0_558 = arith.constant 0 : index
    %343 = vector.load %arg11[%c29, %c0_558] : memref<81x64xbf16, #tpu.memory_space<vmem>>, vector<7x64xbf16>
    %c7_559 = arith.constant 7 : index
    %c512_560 = arith.constant 512 : index
    %344 = vector.load %arg12[%c7_559, %c512_560] : memref<49x576xbf16, #tpu.memory_space<vmem>>, vector<7x64xbf16>
    tpu.vector_store %arg12[%c7_559, %c512_560], %343 {strides = array<i32>} : memref<49x576xbf16, #tpu.memory_space<vmem>>, vector<7x64xbf16>,
    %c18_561 = arith.constant 18 : index
    %c0_562 = arith.constant 0 : index
    %345 = vector.load %arg11[%c18_561, %c0_562] : memref<81x64xbf16, #tpu.memory_space<vmem>>, vector<7x64xbf16>
    %c14 = arith.constant 14 : index
    %c0_563 = arith.constant 0 : index
    %346 = vector.load %arg12[%c14, %c0_563] : memref<49x576xbf16, #tpu.memory_space<vmem>>, vector<7x64xbf16>
    tpu.vector_store %arg12[%c14, %c0_563], %345 {strides = array<i32>} : memref<49x576xbf16, #tpu.memory_space<vmem>>, vector<7x64xbf16>,
    %c19_564 = arith.constant 19 : index
    %c0_565 = arith.constant 0 : index
    %347 = vector.load %arg11[%c19_564, %c0_565] : memref<81x64xbf16, #tpu.memory_space<vmem>>, vector<7x64xbf16>
    %c14_566 = arith.constant 14 : index
    %c64_567 = arith.constant 64 : index
    %348 = vector.load %arg12[%c14_566, %c64_567] : memref<49x576xbf16, #tpu.memory_space<vmem>>, vector<7x64xbf16>
    tpu.vector_store %arg12[%c14_566, %c64_567], %347 {strides = array<i32>} : memref<49x576xbf16, #tpu.memory_space<vmem>>, vector<7x64xbf16>,
    %c20_568 = arith.constant 20 : index
    %c0_569 = arith.constant 0 : index
    %349 = vector.load %arg11[%c20_568, %c0_569] : memref<81x64xbf16, #tpu.memory_space<vmem>>, vector<7x64xbf16>
    %c14_570 = arith.constant 14 : index
    %c128_571 = arith.constant 128 : index
    %350 = vector.load %arg12[%c14_570, %c128_571] : memref<49x576xbf16, #tpu.memory_space<vmem>>, vector<7x64xbf16>
    tpu.vector_store %arg12[%c14_570, %c128_571], %349 {strides = array<i32>} : memref<49x576xbf16, #tpu.memory_space<vmem>>, vector<7x64xbf16>,
    %c27_572 = arith.constant 27 : index
    %c0_573 = arith.constant 0 : index
    %351 = vector.load %arg11[%c27_572, %c0_573] : memref<81x64xbf16, #tpu.memory_space<vmem>>, vector<7x64xbf16>
    %c14_574 = arith.constant 14 : index
    %c192_575 = arith.constant 192 : index
    %352 = vector.load %arg12[%c14_574, %c192_575] : memref<49x576xbf16, #tpu.memory_space<vmem>>, vector<7x64xbf16>
    tpu.vector_store %arg12[%c14_574, %c192_575], %351 {strides = array<i32>} : memref<49x576xbf16, #tpu.memory_space<vmem>>, vector<7x64xbf16>,
    %c28_576 = arith.constant 28 : index
    %c0_577 = arith.constant 0 : index
    %353 = vector.load %arg11[%c28_576, %c0_577] : memref<81x64xbf16, #tpu.memory_space<vmem>>, vector<7x64xbf16>
    %c14_578 = arith.constant 14 : index
    %c256_579 = arith.constant 256 : index
    %354 = vector.load %arg12[%c14_578, %c256_579] : memref<49x576xbf16, #tpu.memory_space<vmem>>, vector<7x64xbf16>
    tpu.vector_store %arg12[%c14_578, %c256_579], %353 {strides = array<i32>} : memref<49x576xbf16, #tpu.memory_space<vmem>>, vector<7x64xbf16>,
    %c29_580 = arith.constant 29 : index
    %c0_581 = arith.constant 0 : index
    %355 = vector.load %arg11[%c29_580, %c0_581] : memref<81x64xbf16, #tpu.memory_space<vmem>>, vector<7x64xbf16>
    %c14_582 = arith.constant 14 : index
    %c320_583 = arith.constant 320 : index
    %356 = vector.load %arg12[%c14_582, %c320_583] : memref<49x576xbf16, #tpu.memory_space<vmem>>, vector<7x64xbf16>
    tpu.vector_store %arg12[%c14_582, %c320_583], %355 {strides = array<i32>} : memref<49x576xbf16, #tpu.memory_space<vmem>>, vector<7x64xbf16>,
    %c36_584 = arith.constant 36 : index
    %c0_585 = arith.constant 0 : index
    %357 = vector.load %arg11[%c36_584, %c0_585] : memref<81x64xbf16, #tpu.memory_space<vmem>>, vector<7x64xbf16>
    %c14_586 = arith.constant 14 : index
    %c384_587 = arith.constant 384 : index
    %358 = vector.load %arg12[%c14_586, %c384_587] : memref<49x576xbf16, #tpu.memory_space<vmem>>, vector<7x64xbf16>
    tpu.vector_store %arg12[%c14_586, %c384_587], %357 {strides = array<i32>} : memref<49x576xbf16, #tpu.memory_space<vmem>>, vector<7x64xbf16>,
    %c37 = arith.constant 37 : index
    %c0_588 = arith.constant 0 : index
    %359 = vector.load %arg11[%c37, %c0_588] : memref<81x64xbf16, #tpu.memory_space<vmem>>, vector<7x64xbf16>
    %c14_589 = arith.constant 14 : index
    %c448_590 = arith.constant 448 : index
    %360 = vector.load %arg12[%c14_589, %c448_590] : memref<49x576xbf16, #tpu.memory_space<vmem>>, vector<7x64xbf16>
    tpu.vector_store %arg12[%c14_589, %c448_590], %359 {strides = array<i32>} : memref<49x576xbf16, #tpu.memory_space<vmem>>, vector<7x64xbf16>,
    %c38 = arith.constant 38 : index
    %c0_591 = arith.constant 0 : index
    %361 = vector.load %arg11[%c38, %c0_591] : memref<81x64xbf16, #tpu.memory_space<vmem>>, vector<7x64xbf16>
    %c14_592 = arith.constant 14 : index
    %c512_593 = arith.constant 512 : index
    %362 = vector.load %arg12[%c14_592, %c512_593] : memref<49x576xbf16, #tpu.memory_space<vmem>>, vector<7x64xbf16>
    tpu.vector_store %arg12[%c14_592, %c512_593], %361 {strides = array<i32>} : memref<49x576xbf16, #tpu.memory_space<vmem>>, vector<7x64xbf16>,
    %c27_594 = arith.constant 27 : index
    %c0_595 = arith.constant 0 : index
    %363 = vector.load %arg11[%c27_594, %c0_595] : memref<81x64xbf16, #tpu.memory_space<vmem>>, vector<7x64xbf16>
    %c21_596 = arith.constant 21 : index
    %c0_597 = arith.constant 0 : index
    %364 = vector.load %arg12[%c21_596, %c0_597] : memref<49x576xbf16, #tpu.memory_space<vmem>>, vector<7x64xbf16>
    tpu.vector_store %arg12[%c21_596, %c0_597], %363 {strides = array<i32>} : memref<49x576xbf16, #tpu.memory_space<vmem>>, vector<7x64xbf16>,
    %c28_598 = arith.constant 28 : index
    %c0_599 = arith.constant 0 : index
    %365 = vector.load %arg11[%c28_598, %c0_599] : memref<81x64xbf16, #tpu.memory_space<vmem>>, vector<7x64xbf16>
    %c21_600 = arith.constant 21 : index
    %c64_601 = arith.constant 64 : index
    %366 = vector.load %arg12[%c21_600, %c64_601] : memref<49x576xbf16, #tpu.memory_space<vmem>>, vector<7x64xbf16>
    tpu.vector_store %arg12[%c21_600, %c64_601], %365 {strides = array<i32>} : memref<49x576xbf16, #tpu.memory_space<vmem>>, vector<7x64xbf16>,
    %c29_602 = arith.constant 29 : index
    %c0_603 = arith.constant 0 : index
    %367 = vector.load %arg11[%c29_602, %c0_603] : memref<81x64xbf16, #tpu.memory_space<vmem>>, vector<7x64xbf16>
    %c21_604 = arith.constant 21 : index
    %c128_605 = arith.constant 128 : index
    %368 = vector.load %arg12[%c21_604, %c128_605] : memref<49x576xbf16, #tpu.memory_space<vmem>>, vector<7x64xbf16>
    tpu.vector_store %arg12[%c21_604, %c128_605], %367 {strides = array<i32>} : memref<49x576xbf16, #tpu.memory_space<vmem>>, vector<7x64xbf16>,
    %c36_606 = arith.constant 36 : index
    %c0_607 = arith.constant 0 : index
    %369 = vector.load %arg11[%c36_606, %c0_607] : memref<81x64xbf16, #tpu.memory_space<vmem>>, vector<7x64xbf16>
    %c21_608 = arith.constant 21 : index
    %c192_609 = arith.constant 192 : index
    %370 = vector.load %arg12[%c21_608, %c192_609] : memref<49x576xbf16, #tpu.memory_space<vmem>>, vector<7x64xbf16>
    tpu.vector_store %arg12[%c21_608, %c192_609], %369 {strides = array<i32>} : memref<49x576xbf16, #tpu.memory_space<vmem>>, vector<7x64xbf16>,
    %c37_610 = arith.constant 37 : index
    %c0_611 = arith.constant 0 : index
    %371 = vector.load %arg11[%c37_610, %c0_611] : memref<81x64xbf16, #tpu.memory_space<vmem>>, vector<7x64xbf16>
    %c21_612 = arith.constant 21 : index
    %c256_613 = arith.constant 256 : index
    %372 = vector.load %arg12[%c21_612, %c256_613] : memref<49x576xbf16, #tpu.memory_space<vmem>>, vector<7x64xbf16>
    tpu.vector_store %arg12[%c21_612, %c256_613], %371 {strides = array<i32>} : memref<49x576xbf16, #tpu.memory_space<vmem>>, vector<7x64xbf16>,
    %c38_614 = arith.constant 38 : index
    %c0_615 = arith.constant 0 : index
    %373 = vector.load %arg11[%c38_614, %c0_615] : memref<81x64xbf16, #tpu.memory_space<vmem>>, vector<7x64xbf16>
    %c21_616 = arith.constant 21 : index
    %c320_617 = arith.constant 320 : index
    %374 = vector.load %arg12[%c21_616, %c320_617] : memref<49x576xbf16, #tpu.memory_space<vmem>>, vector<7x64xbf16>
    tpu.vector_store %arg12[%c21_616, %c320_617], %373 {strides = array<i32>} : memref<49x576xbf16, #tpu.memory_space<vmem>>, vector<7x64xbf16>,
    %c45_618 = arith.constant 45 : index
    %c0_619 = arith.constant 0 : index
    %375 = vector.load %arg11[%c45_618, %c0_619] : memref<81x64xbf16, #tpu.memory_space<vmem>>, vector<7x64xbf16>
    %c21_620 = arith.constant 21 : index
    %c384_621 = arith.constant 384 : index
    %376 = vector.load %arg12[%c21_620, %c384_621] : memref<49x576xbf16, #tpu.memory_space<vmem>>, vector<7x64xbf16>
    tpu.vector_store %arg12[%c21_620, %c384_621], %375 {strides = array<i32>} : memref<49x576xbf16, #tpu.memory_space<vmem>>, vector<7x64xbf16>,
    %c46 = arith.constant 46 : index
    %c0_622 = arith.constant 0 : index
    %377 = vector.load %arg11[%c46, %c0_622] : memref<81x64xbf16, #tpu.memory_space<vmem>>, vector<7x64xbf16>
    %c21_623 = arith.constant 21 : index
    %c448_624 = arith.constant 448 : index
    %378 = vector.load %arg12[%c21_623, %c448_624] : memref<49x576xbf16, #tpu.memory_space<vmem>>, vector<7x64xbf16>
    tpu.vector_store %arg12[%c21_623, %c448_624], %377 {strides = array<i32>} : memref<49x576xbf16, #tpu.memory_space<vmem>>, vector<7x64xbf16>,
    %c47 = arith.constant 47 : index
    %c0_625 = arith.constant 0 : index
    %379 = vector.load %arg11[%c47, %c0_625] : memref<81x64xbf16, #tpu.memory_space<vmem>>, vector<7x64xbf16>
    %c21_626 = arith.constant 21 : index
    %c512_627 = arith.constant 512 : index
    %380 = vector.load %arg12[%c21_626, %c512_627] : memref<49x576xbf16, #tpu.memory_space<vmem>>, vector<7x64xbf16>
    tpu.vector_store %arg12[%c21_626, %c512_627], %379 {strides = array<i32>} : memref<49x576xbf16, #tpu.memory_space<vmem>>, vector<7x64xbf16>,
    %c36_628 = arith.constant 36 : index
    %c0_629 = arith.constant 0 : index
    %381 = vector.load %arg11[%c36_628, %c0_629] : memref<81x64xbf16, #tpu.memory_space<vmem>>, vector<7x64xbf16>
    %c28_630 = arith.constant 28 : index
    %c0_631 = arith.constant 0 : index
    %382 = vector.load %arg12[%c28_630, %c0_631] : memref<49x576xbf16, #tpu.memory_space<vmem>>, vector<7x64xbf16>
    tpu.vector_store %arg12[%c28_630, %c0_631], %381 {strides = array<i32>} : memref<49x576xbf16, #tpu.memory_space<vmem>>, vector<7x64xbf16>,
    %c37_632 = arith.constant 37 : index
    %c0_633 = arith.constant 0 : index
    %383 = vector.load %arg11[%c37_632, %c0_633] : memref<81x64xbf16, #tpu.memory_space<vmem>>, vector<7x64xbf16>
    %c28_634 = arith.constant 28 : index
    %c64_635 = arith.constant 64 : index
    %384 = vector.load %arg12[%c28_634, %c64_635] : memref<49x576xbf16, #tpu.memory_space<vmem>>, vector<7x64xbf16>
    tpu.vector_store %arg12[%c28_634, %c64_635], %383 {strides = array<i32>} : memref<49x576xbf16, #tpu.memory_space<vmem>>, vector<7x64xbf16>,
    %c38_636 = arith.constant 38 : index
    %c0_637 = arith.constant 0 : index
    %385 = vector.load %arg11[%c38_636, %c0_637] : memref<81x64xbf16, #tpu.memory_space<vmem>>, vector<7x64xbf16>
    %c28_638 = arith.constant 28 : index
    %c128_639 = arith.constant 128 : index
    %386 = vector.load %arg12[%c28_638, %c128_639] : memref<49x576xbf16, #tpu.memory_space<vmem>>, vector<7x64xbf16>
    tpu.vector_store %arg12[%c28_638, %c128_639], %385 {strides = array<i32>} : memref<49x576xbf16, #tpu.memory_space<vmem>>, vector<7x64xbf16>,
    %c45_640 = arith.constant 45 : index
    %c0_641 = arith.constant 0 : index
    %387 = vector.load %arg11[%c45_640, %c0_641] : memref<81x64xbf16, #tpu.memory_space<vmem>>, vector<7x64xbf16>
    %c28_642 = arith.constant 28 : index
    %c192_643 = arith.constant 192 : index
    %388 = vector.load %arg12[%c28_642, %c192_643] : memref<49x576xbf16, #tpu.memory_space<vmem>>, vector<7x64xbf16>
    tpu.vector_store %arg12[%c28_642, %c192_643], %387 {strides = array<i32>} : memref<49x576xbf16, #tpu.memory_space<vmem>>, vector<7x64xbf16>,
    %c46_644 = arith.constant 46 : index
    %c0_645 = arith.constant 0 : index
    %389 = vector.load %arg11[%c46_644, %c0_645] : memref<81x64xbf16, #tpu.memory_space<vmem>>, vector<7x64xbf16>
    %c28_646 = arith.constant 28 : index
    %c256_647 = arith.constant 256 : index
    %390 = vector.load %arg12[%c28_646, %c256_647] : memref<49x576xbf16, #tpu.memory_space<vmem>>, vector<7x64xbf16>
    tpu.vector_store %arg12[%c28_646, %c256_647], %389 {strides = array<i32>} : memref<49x576xbf16, #tpu.memory_space<vmem>>, vector<7x64xbf16>,
    %c47_648 = arith.constant 47 : index
    %c0_649 = arith.constant 0 : index
    %391 = vector.load %arg11[%c47_648, %c0_649] : memref<81x64xbf16, #tpu.memory_space<vmem>>, vector<7x64xbf16>
    %c28_650 = arith.constant 28 : index
    %c320_651 = arith.constant 320 : index
    %392 = vector.load %arg12[%c28_650, %c320_651] : memref<49x576xbf16, #tpu.memory_space<vmem>>, vector<7x64xbf16>
    tpu.vector_store %arg12[%c28_650, %c320_651], %391 {strides = array<i32>} : memref<49x576xbf16, #tpu.memory_space<vmem>>, vector<7x64xbf16>,
    %c54_652 = arith.constant 54 : index
    %c0_653 = arith.constant 0 : index
    %393 = vector.load %arg11[%c54_652, %c0_653] : memref<81x64xbf16, #tpu.memory_space<vmem>>, vector<7x64xbf16>
    %c28_654 = arith.constant 28 : index
    %c384_655 = arith.constant 384 : index
    %394 = vector.load %arg12[%c28_654, %c384_655] : memref<49x576xbf16, #tpu.memory_space<vmem>>, vector<7x64xbf16>
    tpu.vector_store %arg12[%c28_654, %c384_655], %393 {strides = array<i32>} : memref<49x576xbf16, #tpu.memory_space<vmem>>, vector<7x64xbf16>,
    %c55 = arith.constant 55 : index
    %c0_656 = arith.constant 0 : index
    %395 = vector.load %arg11[%c55, %c0_656] : memref<81x64xbf16, #tpu.memory_space<vmem>>, vector<7x64xbf16>
    %c28_657 = arith.constant 28 : index
    %c448_658 = arith.constant 448 : index
    %396 = vector.load %arg12[%c28_657, %c448_658] : memref<49x576xbf16, #tpu.memory_space<vmem>>, vector<7x64xbf16>
    tpu.vector_store %arg12[%c28_657, %c448_658], %395 {strides = array<i32>} : memref<49x576xbf16, #tpu.memory_space<vmem>>, vector<7x64xbf16>,
    %c56 = arith.constant 56 : index
    %c0_659 = arith.constant 0 : index
    %397 = vector.load %arg11[%c56, %c0_659] : memref<81x64xbf16, #tpu.memory_space<vmem>>, vector<7x64xbf16>
    %c28_660 = arith.constant 28 : index
    %c512_661 = arith.constant 512 : index
    %398 = vector.load %arg12[%c28_660, %c512_661] : memref<49x576xbf16, #tpu.memory_space<vmem>>, vector<7x64xbf16>
    tpu.vector_store %arg12[%c28_660, %c512_661], %397 {strides = array<i32>} : memref<49x576xbf16, #tpu.memory_space<vmem>>, vector<7x64xbf16>,
    %c45_662 = arith.constant 45 : index
    %c0_663 = arith.constant 0 : index
    %399 = vector.load %arg11[%c45_662, %c0_663] : memref<81x64xbf16, #tpu.memory_space<vmem>>, vector<7x64xbf16>
    %c35 = arith.constant 35 : index
    %c0_664 = arith.constant 0 : index
    %400 = vector.load %arg12[%c35, %c0_664] : memref<49x576xbf16, #tpu.memory_space<vmem>>, vector<7x64xbf16>
    tpu.vector_store %arg12[%c35, %c0_664], %399 {strides = array<i32>} : memref<49x576xbf16, #tpu.memory_space<vmem>>, vector<7x64xbf16>,
    %c46_665 = arith.constant 46 : index
    %c0_666 = arith.constant 0 : index
    %401 = vector.load %arg11[%c46_665, %c0_666] : memref<81x64xbf16, #tpu.memory_space<vmem>>, vector<7x64xbf16>
    %c35_667 = arith.constant 35 : index
    %c64_668 = arith.constant 64 : index
    %402 = vector.load %arg12[%c35_667, %c64_668] : memref<49x576xbf16, #tpu.memory_space<vmem>>, vector<7x64xbf16>
    tpu.vector_store %arg12[%c35_667, %c64_668], %401 {strides = array<i32>} : memref<49x576xbf16, #tpu.memory_space<vmem>>, vector<7x64xbf16>,
    %c47_669 = arith.constant 47 : index
    %c0_670 = arith.constant 0 : index
    %403 = vector.load %arg11[%c47_669, %c0_670] : memref<81x64xbf16, #tpu.memory_space<vmem>>, vector<7x64xbf16>
    %c35_671 = arith.constant 35 : index
    %c128_672 = arith.constant 128 : index
    %404 = vector.load %arg12[%c35_671, %c128_672] : memref<49x576xbf16, #tpu.memory_space<vmem>>, vector<7x64xbf16>
    tpu.vector_store %arg12[%c35_671, %c128_672], %403 {strides = array<i32>} : memref<49x576xbf16, #tpu.memory_space<vmem>>, vector<7x64xbf16>,
    %c54_673 = arith.constant 54 : index
    %c0_674 = arith.constant 0 : index
    %405 = vector.load %arg11[%c54_673, %c0_674] : memref<81x64xbf16, #tpu.memory_space<vmem>>, vector<7x64xbf16>
    %c35_675 = arith.constant 35 : index
    %c192_676 = arith.constant 192 : index
    %406 = vector.load %arg12[%c35_675, %c192_676] : memref<49x576xbf16, #tpu.memory_space<vmem>>, vector<7x64xbf16>
    tpu.vector_store %arg12[%c35_675, %c192_676], %405 {strides = array<i32>} : memref<49x576xbf16, #tpu.memory_space<vmem>>, vector<7x64xbf16>,
    %c55_677 = arith.constant 55 : index
    %c0_678 = arith.constant 0 : index
    %407 = vector.load %arg11[%c55_677, %c0_678] : memref<81x64xbf16, #tpu.memory_space<vmem>>, vector<7x64xbf16>
    %c35_679 = arith.constant 35 : index
    %c256_680 = arith.constant 256 : index
    %408 = vector.load %arg12[%c35_679, %c256_680] : memref<49x576xbf16, #tpu.memory_space<vmem>>, vector<7x64xbf16>
    tpu.vector_store %arg12[%c35_679, %c256_680], %407 {strides = array<i32>} : memref<49x576xbf16, #tpu.memory_space<vmem>>, vector<7x64xbf16>,
    %c56_681 = arith.constant 56 : index
    %c0_682 = arith.constant 0 : index
    %409 = vector.load %arg11[%c56_681, %c0_682] : memref<81x64xbf16, #tpu.memory_space<vmem>>, vector<7x64xbf16>
    %c35_683 = arith.constant 35 : index
    %c320_684 = arith.constant 320 : index
    %410 = vector.load %arg12[%c35_683, %c320_684] : memref<49x576xbf16, #tpu.memory_space<vmem>>, vector<7x64xbf16>
    tpu.vector_store %arg12[%c35_683, %c320_684], %409 {strides = array<i32>} : memref<49x576xbf16, #tpu.memory_space<vmem>>, vector<7x64xbf16>,
    %c63_685 = arith.constant 63 : index
    %c0_686 = arith.constant 0 : index
    %411 = vector.load %arg11[%c63_685, %c0_686] : memref<81x64xbf16, #tpu.memory_space<vmem>>, vector<7x64xbf16>
    %c35_687 = arith.constant 35 : index
    %c384_688 = arith.constant 384 : index
    %412 = vector.load %arg12[%c35_687, %c384_688] : memref<49x576xbf16, #tpu.memory_space<vmem>>, vector<7x64xbf16>
    tpu.vector_store %arg12[%c35_687, %c384_688], %411 {strides = array<i32>} : memref<49x576xbf16, #tpu.memory_space<vmem>>, vector<7x64xbf16>,
    %c64_689 = arith.constant 64 : index
    %c0_690 = arith.constant 0 : index
    %413 = vector.load %arg11[%c64_689, %c0_690] : memref<81x64xbf16, #tpu.memory_space<vmem>>, vector<7x64xbf16>
    %c35_691 = arith.constant 35 : index
    %c448_692 = arith.constant 448 : index
    %414 = vector.load %arg12[%c35_691, %c448_692] : memref<49x576xbf16, #tpu.memory_space<vmem>>, vector<7x64xbf16>
    tpu.vector_store %arg12[%c35_691, %c448_692], %413 {strides = array<i32>} : memref<49x576xbf16, #tpu.memory_space<vmem>>, vector<7x64xbf16>,
    %c65 = arith.constant 65 : index
    %c0_693 = arith.constant 0 : index
    %415 = vector.load %arg11[%c65, %c0_693] : memref<81x64xbf16, #tpu.memory_space<vmem>>, vector<7x64xbf16>
    %c35_694 = arith.constant 35 : index
    %c512_695 = arith.constant 512 : index
    %416 = vector.load %arg12[%c35_694, %c512_695] : memref<49x576xbf16, #tpu.memory_space<vmem>>, vector<7x64xbf16>
    tpu.vector_store %arg12[%c35_694, %c512_695], %415 {strides = array<i32>} : memref<49x576xbf16, #tpu.memory_space<vmem>>, vector<7x64xbf16>,
    %c54_696 = arith.constant 54 : index
    %c0_697 = arith.constant 0 : index
    %417 = vector.load %arg11[%c54_696, %c0_697] : memref<81x64xbf16, #tpu.memory_space<vmem>>, vector<7x64xbf16>
    %c42 = arith.constant 42 : index
    %c0_698 = arith.constant 0 : index
    %418 = vector.load %arg12[%c42, %c0_698] : memref<49x576xbf16, #tpu.memory_space<vmem>>, vector<7x64xbf16>
    tpu.vector_store %arg12[%c42, %c0_698], %417 {strides = array<i32>} : memref<49x576xbf16, #tpu.memory_space<vmem>>, vector<7x64xbf16>,
    %c55_699 = arith.constant 55 : index
    %c0_700 = arith.constant 0 : index
    %419 = vector.load %arg11[%c55_699, %c0_700] : memref<81x64xbf16, #tpu.memory_space<vmem>>, vector<7x64xbf16>
    %c42_701 = arith.constant 42 : index
    %c64_702 = arith.constant 64 : index
    %420 = vector.load %arg12[%c42_701, %c64_702] : memref<49x576xbf16, #tpu.memory_space<vmem>>, vector<7x64xbf16>
    tpu.vector_store %arg12[%c42_701, %c64_702], %419 {strides = array<i32>} : memref<49x576xbf16, #tpu.memory_space<vmem>>, vector<7x64xbf16>,
    %c56_703 = arith.constant 56 : index
    %c0_704 = arith.constant 0 : index
    %421 = vector.load %arg11[%c56_703, %c0_704] : memref<81x64xbf16, #tpu.memory_space<vmem>>, vector<7x64xbf16>
    %c42_705 = arith.constant 42 : index
    %c128_706 = arith.constant 128 : index
    %422 = vector.load %arg12[%c42_705, %c128_706] : memref<49x576xbf16, #tpu.memory_space<vmem>>, vector<7x64xbf16>
    tpu.vector_store %arg12[%c42_705, %c128_706], %421 {strides = array<i32>} : memref<49x576xbf16, #tpu.memory_space<vmem>>, vector<7x64xbf16>,
    %c63_707 = arith.constant 63 : index
    %c0_708 = arith.constant 0 : index
    %423 = vector.load %arg11[%c63_707, %c0_708] : memref<81x64xbf16, #tpu.memory_space<vmem>>, vector<7x64xbf16>
    %c42_709 = arith.constant 42 : index
    %c192_710 = arith.constant 192 : index
    %424 = vector.load %arg12[%c42_709, %c192_710] : memref<49x576xbf16, #tpu.memory_space<vmem>>, vector<7x64xbf16>
    tpu.vector_store %arg12[%c42_709, %c192_710], %423 {strides = array<i32>} : memref<49x576xbf16, #tpu.memory_space<vmem>>, vector<7x64xbf16>,
    %c64_711 = arith.constant 64 : index
    %c0_712 = arith.constant 0 : index
    %425 = vector.load %arg11[%c64_711, %c0_712] : memref<81x64xbf16, #tpu.memory_space<vmem>>, vector<7x64xbf16>
    %c42_713 = arith.constant 42 : index
    %c256_714 = arith.constant 256 : index
    %426 = vector.load %arg12[%c42_713, %c256_714] : memref<49x576xbf16, #tpu.memory_space<vmem>>, vector<7x64xbf16>
    tpu.vector_store %arg12[%c42_713, %c256_714], %425 {strides = array<i32>} : memref<49x576xbf16, #tpu.memory_space<vmem>>, vector<7x64xbf16>,
    %c65_715 = arith.constant 65 : index
    %c0_716 = arith.constant 0 : index
    %427 = vector.load %arg11[%c65_715, %c0_716] : memref<81x64xbf16, #tpu.memory_space<vmem>>, vector<7x64xbf16>
    %c42_717 = arith.constant 42 : index
    %c320_718 = arith.constant 320 : index
    %428 = vector.load %arg12[%c42_717, %c320_718] : memref<49x576xbf16, #tpu.memory_space<vmem>>, vector<7x64xbf16>
    tpu.vector_store %arg12[%c42_717, %c320_718], %427 {strides = array<i32>} : memref<49x576xbf16, #tpu.memory_space<vmem>>, vector<7x64xbf16>,
    %c72_719 = arith.constant 72 : index
    %c0_720 = arith.constant 0 : index
    %429 = vector.load %arg11[%c72_719, %c0_720] : memref<81x64xbf16, #tpu.memory_space<vmem>>, vector<7x64xbf16>
    %c42_721 = arith.constant 42 : index
    %c384_722 = arith.constant 384 : index
    %430 = vector.load %arg12[%c42_721, %c384_722] : memref<49x576xbf16, #tpu.memory_space<vmem>>, vector<7x64xbf16>
    tpu.vector_store %arg12[%c42_721, %c384_722], %429 {strides = array<i32>} : memref<49x576xbf16, #tpu.memory_space<vmem>>, vector<7x64xbf16>,
    %c73 = arith.constant 73 : index
    %c0_723 = arith.constant 0 : index
    %431 = vector.load %arg11[%c73, %c0_723] : memref<81x64xbf16, #tpu.memory_space<vmem>>, vector<7x64xbf16>
    %c42_724 = arith.constant 42 : index
    %c448_725 = arith.constant 448 : index
    %432 = vector.load %arg12[%c42_724, %c448_725] : memref<49x576xbf16, #tpu.memory_space<vmem>>, vector<7x64xbf16>
    tpu.vector_store %arg12[%c42_724, %c448_725], %431 {strides = array<i32>} : memref<49x576xbf16, #tpu.memory_space<vmem>>, vector<7x64xbf16>,
    %c74 = arith.constant 74 : index
    %c0_726 = arith.constant 0 : index
    %433 = vector.load %arg11[%c74, %c0_726] : memref<81x64xbf16, #tpu.memory_space<vmem>>, vector<7x64xbf16>
    %c42_727 = arith.constant 42 : index
    %c512_728 = arith.constant 512 : index
    %434 = vector.load %arg12[%c42_727, %c512_728] : memref<49x576xbf16, #tpu.memory_space<vmem>>, vector<7x64xbf16>
    tpu.vector_store %arg12[%c42_727, %c512_728], %433 {strides = array<i32>} : memref<49x576xbf16, #tpu.memory_space<vmem>>, vector<7x64xbf16>,
    %c0_729 = arith.constant 0 : index
    %c0_730 = arith.constant 0 : index
    %435 = vector.load %arg12[%c0_729, %c0_730] : memref<49x576xbf16, #tpu.memory_space<vmem>>, vector<49x576xbf16>
    %c0_731 = arith.constant 0 : index
    %c0_732 = arith.constant 0 : index
    %436 = vector.load %arg6[%c0_731, %c0_732] : memref<576x64xbf16, #tpu.memory_space<vmem>>, vector<576x64xbf16>
    %cst_733 = arith.constant dense<0.000000e+00> : vector<49x64xf32>
    %437 = tpu.matmul %435, %436, %cst_733 {dimension_numbers = #tpu.dot_dimension_numbers<[1], [0], [0], [1], [0, 0, 1, 1], [], []>} : vector<49x576xbf16>, vector<576x64xbf16>, vector<49x64xf32> -> vector<49x64xf32>
    %c0_734 = arith.constant 0 : index
    %c0_735 = arith.constant 0 : index
    %438 = vector.load %arg7[%c0_734, %c0_735] : memref<1x64xf32, #tpu.memory_space<vmem>>, vector<1x64xf32>
    %439 = vector.broadcast %438 : vector<1x64xf32> to vector<49x64xf32>
    %440 = arith.addf %437, %439 : vector<49x64xf32>
    %cst_736 = arith.constant 0.000000e+00 : f32
    %441 = vector.broadcast %cst_736 : f32 to vector<49x64xf32>
    %442 = arith.maximumf %440, %441 : vector<49x64xf32>
    %443 = arith.truncf %442 : vector<49x64xf32> to vector<49x64xbf16>
    %c0_737 = arith.constant 0 : index
    %c0_738 = arith.constant 0 : index
    %c0_739 = arith.constant 0 : index
    %444 = vector.load %arg8[%c0_737, %c0_738, %c0_739] : memref<1x56x64xbf16, #tpu.memory_space<vmem>>, vector<1x49x64xbf16>
    %445 = vector.shape_cast %444 : vector<1x49x64xbf16> to vector<49x64xbf16>
    %446 = vector.shape_cast %443 : vector<49x64xbf16> to vector<1x49x64xbf16>
    tpu.vector_store %arg8[%c0_737, %c0_738, %c0_739], %446 {strides = array<i32>} : memref<1x56x64xbf16, #tpu.memory_space<vmem>>, vector<1x49x64xbf16>,
    %cst_740 = arith.constant 0.000000e+00 : bf16
    %447 = vector.broadcast %cst_740 : bf16 to vector<7x64xbf16>
    %c0_741 = arith.constant 0 : index
    %c49 = arith.constant 49 : index
    %c0_742 = arith.constant 0 : index
    %448 = vector.load %arg8[%c0_741, %c49, %c0_742] : memref<1x56x64xbf16, #tpu.memory_space<vmem>>, vector<1x7x64xbf16>
    %449 = vector.shape_cast %448 : vector<1x7x64xbf16> to vector<7x64xbf16>
    %450 = vector.shape_cast %447 : vector<7x64xbf16> to vector<1x7x64xbf16>
    tpu.vector_store %arg8[%c0_741, %c49, %c0_742], %450 {strides = array<i32>} : memref<1x56x64xbf16, #tpu.memory_space<vmem>>, vector<1x7x64xbf16>,
    return
  }
  func.func @transform_0(%arg0: i32) -> (i32, i32, i32) {
    %c0_i32 = arith.constant 0 : i32
    %c0_i32_0 = arith.constant 0 : i32
    %c0_i32_1 = arith.constant 0 : i32
    return %arg0, %c0_i32, %c0_i32_0 : i32, i32, i32
  }
  func.func @transform_1(%arg0: i32) -> (i32, i32) {
    %c0_i32 = arith.constant 0 : i32
    %c0_i32_0 = arith.constant 0 : i32
    %c0_i32_1 = arith.constant 0 : i32
    return %c0_i32, %c0_i32_0 : i32, i32
  }
  func.func @transform_2(%arg0: i32) -> (i32, i32) {
    %c0_i32 = arith.constant 0 : i32
    %c0_i32_0 = arith.constant 0 : i32
    %c0_i32_1 = arith.constant 0 : i32
    return %c0_i32, %c0_i32_0 : i32, i32
  }
  func.func @transform_3(%arg0: i32) -> (i32, i32) {
    %c0_i32 = arith.constant 0 : i32
    %c0_i32_0 = arith.constant 0 : i32
    %c0_i32_1 = arith.constant 0 : i32
    return %c0_i32, %c0_i32_0 : i32, i32
  }
  func.func @transform_4(%arg0: i32) -> (i32, i32) {
    %c0_i32 = arith.constant 0 : i32
    %c0_i32_0 = arith.constant 0 : i32
    %c0_i32_1 = arith.constant 0 : i32
    return %c0_i32, %c0_i32_0 : i32, i32
  }
  func.func @transform_5(%arg0: i32) -> (i32, i32) {
    %c0_i32 = arith.constant 0 : i32
    %c0_i32_0 = arith.constant 0 : i32
    %c0_i32_1 = arith.constant 0 : i32
    return %c0_i32, %c0_i32_0 : i32, i32
  }
  func.func @transform_6(%arg0: i32) -> (i32, i32) {
    %c0_i32 = arith.constant 0 : i32
    %c0_i32_0 = arith.constant 0 : i32
    %c0_i32_1 = arith.constant 0 : i32
    return %c0_i32, %c0_i32_0 : i32, i32
  }
  func.func @transform_7(%arg0: i32) -> (i32, i32, i32) {
    %c0_i32 = arith.constant 0 : i32
    %c0_i32_0 = arith.constant 0 : i32
    %c0_i32_1 = arith.constant 0 : i32
    return %arg0, %c0_i32, %c0_i32_0 : i32, i32, i32
  }
}

</mosaic_0001>

<llo_original>
// kernel: mario_forward.3
$region0: #{mario_forward.3}
  #allocation0 [shape = 'u32[]', space=smem, size = 0x4, offset = 0x4, fixed_abs, tag = 'smem constant byte address 0x4 - core index']
  #allocation1 [shape = 'u32[144,128]{1,0:T(1,128)}', space=vmem, size = 0x12000, scoped, tag = 'internal scratch']
  #allocation2 [shape = 'f32[2,512]{1,0:T(2,128)}', space=vmem, size = 0x1000, scoped, tag = 'scratch operand']
  %s0 = inlined_call_operand.vmem [shape: bf16[2,3584], index: 0, kind: input, shape index: {}]
  %s1 = inlined_call_operand.vmem [shape: bf16[3584,512], index: 1, kind: input, shape index: {}]
  %s2 = inlined_call_operand.vmem [shape: f32[1,512], index: 2, kind: input, shape index: {}]
  %s3 = inlined_call_operand.vmem [shape: bf16[512,128], index: 3, kind: input, shape index: {}]
  %s4 = inlined_call_operand.vmem [shape: f32[1,128], index: 4, kind: input, shape index: {}]
  %s5 = inlined_call_operand.hbm [shape: f32[2,128], index: 5, kind: output, shape index: {}]
  %s6 = sld [smem:[#allocation0]]
  $region61: #{mario_forward.3} parent=0
    _
  %s8 = ssub.s32 1, %s6
  %s9 = scalar_select 0, %s8, %s6
  $region1: #{mario_forward.3} parent=0
    #allocation3 [shape = 'u8[1024]{0}', space=vmem, size = 0x400, scoped, tag = 'output window, operand 0, single buffered']
    #allocation4 [shape = 's32[2]{0}', space=sflag, size = 0x8, scoped, tag = 'scoped memory for mario_forward.3']
    %10 = vsyncpa [#allocation4], 0
    loop: start=0, step=1, limit=9
    $region2: #{mario_forward.3} parent=1 // loop_pre_header
      _
    $region3: #{mario_forward.3} parent=1 // loop_header
      %s12 = sphi 0, %s16
      %p13 = scmp.ge.s32.totalorder %s12, 9
      %s22 = sphi 0, %s24
      %s25 = sphi 0, %s22
      %s26 = sphi 0, %s25
      %s42 = sphi 0, %s26
      %s48 = sphi 0, %s50
      %s51 = sphi 0, %s48
      %s52 = sphi 0, %s51
      %s68 = sphi 0, %s52
      %s72 = sphi 0, %s72
      %s74 = sphi 0, %s72
      %s75 = sphi 0, %s74
      %s89 = sphi 0, %s75
      %s93 = sphi 0, %s93
      %s95 = sphi 0, %s93
      %s96 = sphi 0, %s95
      %s110 = sphi 0, %s96
      %s114 = sphi 0, %s114
      %s116 = sphi 0, %s114
      %s117 = sphi 0, %s116
      %s131 = sphi 0, %s117
      %s135 = sphi 0, %s135
      %s137 = sphi 0, %s135
      %s138 = sphi 0, %s137
      %s152 = sphi 0, %s138
    $region4: #{mario_forward.3} parent=1 // loop_header_branch
      %15 = sbr.rel (%p13) target = $region8
    $region5: #{mario_forward.3} parent=1 // loop_body
      %s17 = ssub.s32 %s12, 1
      %s18 = ssub.s32 %s12, 2
      %s19 = sadd.s32 %s12, 1
      %s20 = ssub.s32 %s12, %s19
      %p21 = scmp.eq.s32.totalorder %s20, 0
      %s23 = sadd.s32 %s22, 1
      %s24 = scalar_select %p21, %s22, %s23
      %p27 = pneg %p21
      %p28 = scmp.eq.s32.totalorder %s12, 6
      %p29 = por %p27, %p28
      %p30 = scmp.ne.s32.totalorder %s22, %s25
      %p31 = scmp.eq.s32.totalorder %s12, 0
      %p32 = por %p30, %p31
      %p33 = scmp.ne.s32.totalorder %s22, %s25
      %p34 = scmp.eq.s32.totalorder %s17, 6
      %p35 = por %p33, %p34
      %p36 = scmp.ne.s32.totalorder %s25, %s26
      %p37 = scmp.eq.s32.totalorder %s17, 0
      %p38 = por %p36, %p37
      %p39 = scmp.ne.s32.totalorder %s25, %s26
      %p40 = scmp.eq.s32.totalorder %s18, 6
      %p41 = por %p39, %p40
      %p43 = scmp.ne.s32.totalorder %s26, %s42
      %p44 = scmp.eq.s32.totalorder %s18, 0
      %p45 = por %p43, %p44
      %s46 = ssub.s32 %s12, %s19
      %p47 = scmp.eq.s32.totalorder %s46, 0
      %s49 = sadd.s32 %s48, 1
      %s50 = scalar_select %p47, %s48, %s49
      %p53 = pneg %p47
      %p54 = scmp.eq.s32.totalorder %s12, 6
      %p55 = por %p53, %p54
      %p56 = scmp.ne.s32.totalorder %s48, %s51
      %p57 = scmp.eq.s32.totalorder %s12, 0
      %p58 = por %p56, %p57
      %p59 = scmp.ne.s32.totalorder %s48, %s51
      %p60 = scmp.eq.s32.totalorder %s17, 6
      %p61 = por %p59, %p60
      %p62 = scmp.ne.s32.totalorder %s51, %s52
      %p63 = scmp.eq.s32.totalorder %s17, 0
      %p64 = por %p62, %p63
      %p65 = scmp.ne.s32.totalorder %s51, %s52
      %p66 = scmp.eq.s32.totalorder %s18, 6
      %p67 = por %p65, %p66
      %p69 = scmp.ne.s32.totalorder %s52, %s68
      %p70 = scmp.eq.s32.totalorder %s18, 0
      %p71 = por %p69, %p70
      %s73 = sadd.s32 %s72, 1
      %p76 = scmp.eq.s32.totalorder %s12, 6
      %p77 = scmp.ne.s32.totalorder %s72, %s74
      %p78 = scmp.eq.s32.totalorder %s12, 0
      %p79 = por %p77, %p78
      %p80 = scmp.ne.s32.totalorder %s72, %s74
      %p81 = scmp.eq.s32.totalorder %s17, 6
      %p82 = por %p80, %p81
      %p83 = scmp.ne.s32.totalorder %s74, %s75
      %p84 = scmp.eq.s32.totalorder %s17, 0
      %p85 = por %p83, %p84
      %p86 = scmp.ne.s32.totalorder %s74, %s75
      %p87 = scmp.eq.s32.totalorder %s18, 6
      %p88 = por %p86, %p87
      %p90 = scmp.ne.s32.totalorder %s75, %s89
      %p91 = scmp.eq.s32.totalorder %s18, 0
      %p92 = por %p90, %p91
      %s94 = sadd.s32 %s93, 1
      %p97 = scmp.eq.s32.totalorder %s12, 6
      %p98 = scmp.ne.s32.totalorder %s93, %s95
      %p99 = scmp.eq.s32.totalorder %s12, 0
      %p100 = por %p98, %p99
      %p101 = scmp.ne.s32.totalorder %s93, %s95
      %p102 = scmp.eq.s32.totalorder %s17, 6
      %p103 = por %p101, %p102
      %p104 = scmp.ne.s32.totalorder %s95, %s96
      %p105 = scmp.eq.s32.totalorder %s17, 0
      %p106 = por %p104, %p105
      %p107 = scmp.ne.s32.totalorder %s95, %s96
      %p108 = scmp.eq.s32.totalorder %s18, 6
      %p109 = por %p107, %p108
      %p111 = scmp.ne.s32.totalorder %s96, %s110
      %p112 = scmp.eq.s32.totalorder %s18, 0
      %p113 = por %p111, %p112
      %s115 = sadd.s32 %s114, 1
      %p118 = scmp.eq.s32.totalorder %s12, 6
      %p119 = scmp.ne.s32.totalorder %s114, %s116
      %p120 = scmp.eq.s32.totalorder %s12, 0
      %p121 = por %p119, %p120
      %p122 = scmp.ne.s32.totalorder %s114, %s116
      %p123 = scmp.eq.s32.totalorder %s17, 6
      %p124 = por %p122, %p123
      %p125 = scmp.ne.s32.totalorder %s116, %s117
      %p126 = scmp.eq.s32.totalorder %s17, 0
      %p127 = por %p125, %p126
      %p128 = scmp.ne.s32.totalorder %s116, %s117
      %p129 = scmp.eq.s32.totalorder %s18, 6
      %p130 = por %p128, %p129
      %p132 = scmp.ne.s32.totalorder %s117, %s131
      %p133 = scmp.eq.s32.totalorder %s18, 0
      %p134 = por %p132, %p133
      %s136 = sadd.s32 %s135, 1
      %p139 = scmp.eq.s32.totalorder %s12, 6
      %p140 = scmp.ne.s32.totalorder %s135, %s137
      %p141 = scmp.eq.s32.totalorder %s12, 0
      %p142 = por %p140, %p141
      %p143 = scmp.ne.s32.totalorder %s135, %s137
      %p144 = scmp.eq.s32.totalorder %s17, 6
      %p145 = por %p143, %p144
      %p146 = scmp.ne.s32.totalorder %s137, %s138
      %p147 = scmp.eq.s32.totalorder %s17, 0
      %p148 = por %p146, %p147
      %p149 = scmp.ne.s32.totalorder %s137, %s138
      %p150 = scmp.eq.s32.totalorder %s18, 6
      %p151 = por %p149, %p150
      %p153 = scmp.ne.s32.totalorder %s138, %s152
      %p154 = scmp.eq.s32.totalorder %s18, 0
      %p155 = por %p153, %p154
      %p156 = scmp.le.s32.totalorder 1, %s12
      %p157 = scmp.lt.s32.totalorder %s12, 8
      %p158 = pnand %p156, %p157
      %p159 = pneg %p158
      // Predicated region
      $region9: #{mario_forward.3} parent=5 // pred_check
        _
      $region10: #{mario_forward.3} parent=5 // pred_check_branch
        %161 = sbr.rel (%p158) target = $region12
      $region11: #{mario_forward.3} parent=5 // pred_region
        %s162 = ssub.s32 %s12, 1
        // Predicated region
        $region13: #{mario_forward.3} parent=11 // pred_check
          %p163 = pneg %p85
        $region14: #{mario_forward.3} parent=11 // pred_check_branch
          %165 = sbr.rel (%p163) target = $region16
        $region15: #{mario_forward.3} parent=11 // pred_region
          _
        $region16: #{mario_forward.3} parent=11 // pred_fallthru
          _
        // Predicated region
        $region17: #{mario_forward.3} parent=11 // pred_check
          %p166 = pneg %p106
        $region18: #{mario_forward.3} parent=11 // pred_check_branch
          %168 = sbr.rel (%p166) target = $region20
        $region19: #{mario_forward.3} parent=11 // pred_region
          _
        $region20: #{mario_forward.3} parent=11 // pred_fallthru
          _
        // Predicated region
        $region21: #{mario_forward.3} parent=11 // pred_check
          %p169 = pneg %p127
        $region22: #{mario_forward.3} parent=11 // pred_check_branch
          %171 = sbr.rel (%p169) target = $region24
        $region23: #{mario_forward.3} parent=11 // pred_region
          _
        $region24: #{mario_forward.3} parent=11 // pred_fallthru
          _
      $region12: #{mario_forward.3} parent=5 // pred_fallthru
        _
      %p172 = scmp.lt.s32.totalorder %s12, 7
      // Predicated region
      $region25: #{mario_forward.3} parent=5 // pred_check
        %p173 = pneg %p172
      $region26: #{mario_forward.3} parent=5 // pred_check_branch
        %175 = sbr.rel (%p173) target = $region28
      $region27: #{mario_forward.3} parent=5 // pred_region
        // Predicated region
        $region29: #{mario_forward.3} parent=27 // pred_check
          %p176 = pneg %p32
        $region30: #{mario_forward.3} parent=27 // pred_check_branch
          %178 = sbr.rel (%p176) target = $region32
        $region31: #{mario_forward.3} parent=27 // pred_region
          %s179 = smul.u32 4, %s12
          %p180 = scmp.lt.s32.totalorder %s179, 27
          %s181 = scalar_select %p180, %s179, 27
          %s182 = scalar_lea.vmem %s0, %s181
          %s183 = smul.u32 4, %s12
        $region32: #{mario_forward.3} parent=27 // pred_fallthru
          _
        // Predicated region
        $region33: #{mario_forward.3} parent=27 // pred_check
          %p184 = pneg %p58
        $region34: #{mario_forward.3} parent=27 // pred_check_branch
          %186 = sbr.rel (%p184) target = $region36
        $region35: #{mario_forward.3} parent=27 // pred_region
          %s187 = smul.u32 64, %s12
          %p188 = scmp.lt.s32.totalorder %s187, 447
          %s189 = scalar_select %p188, %s187, 447
          %s190 = smul.addr %s189, 4
          %s191 = smul.addr %s190, 4
          %s192 = scalar_lea.vmem %s1, %s191
          %s193 = smul.u32 64, %s12
        $region36: #{mario_forward.3} parent=27 // pred_fallthru
          _
      $region28: #{mario_forward.3} parent=5 // pred_fallthru
        _
      %p194 = scmp.le.s32.totalorder 1, %s12
      %p195 = scmp.lt.s32.totalorder %s12, 8
      %p196 = pnand %p194, %p195
      %p197 = pneg %p196
      // Predicated region
      $region37: #{mario_forward.3} parent=5 // pred_check
        _
      $region38: #{mario_forward.3} parent=5 // pred_check_branch
        %199 = sbr.rel (%p196) target = $region40
      $region39: #{mario_forward.3} parent=5 // pred_region
        %s200 = ssub.s32 %s12, 1
        %s201 = smul.u32 4, %s17
        %p202 = scmp.lt.s32.totalorder %s201, 27
        %s203 = scalar_select %p202, %s201, 27
        %s204 = scalar_lea.vmem %s0, %s203
        %p205 = pneg %p38
        %p206 = pneg %p35
        %s207 = smul.u32 64, %s17
        %p208 = scmp.lt.s32.totalorder %s207, 447
        %s209 = scalar_select %p208, %s207, 447
        %s210 = smul.addr %s209, 4
        %s211 = smul.addr %s210, 4
        %s212 = scalar_lea.vmem %s1, %s211
        %p213 = pneg %p64
        %p214 = pneg %p61
        %p215 = pneg %p85
        %p216 = pneg %p82
        %p217 = pneg %p106
        %p218 = pneg %p103
        %p219 = pneg %p127
        %p220 = pneg %p124
        %p221 = pneg %p148
        %p222 = pneg %p145
        %s223 = smul.u32 4, %s17
        %p224 = scmp.lt.s32.totalorder %s223, 27
        %s225 = scalar_select %p224, %s223, 27
        %s226 = scalar_lea.vmem %s0, %s225
        %s227 = smul.u32 4, %s17
        %s228 = smul.u32 64, %s17
        %p229 = scmp.lt.s32.totalorder %s228, 447
        %s230 = scalar_select %p229, %s228, 447
        %s231 = smul.addr %s230, 4
        %s232 = smul.addr %s231, 4
        %s233 = scalar_lea.vmem %s1, %s232
        %s234 = smul.u32 64, %s17
        %p236 = scmp.eq.s32.totalorder %s17, 0
        // Predicated region
        $region41: #{mario_forward.3} parent=39 // pred_check
          %p237 = pneg %p236
        $region42: #{mario_forward.3} parent=39 // pred_check_branch
          %239 = sbr.rel (%p237) target = $region44
        $region43: #{mario_forward.3} parent=39 // pred_region
          %240 = vst [vmem:[#allocation2] sm:$0xff] 0.0
        $region44: #{mario_forward.3} parent=39 // pred_fallthru
          _
        %v241 = vld [vmem:[#allocation2] sm:$0xff]
        %v242 = vld [vmem:[%s226] sm:$0xf]
        %v243 = vld [vmem:[%s233] sm:$0xff]
        %v244 = vld [vmem:[%s233 + $0x8] sm:$0xff]
        %v245 = vld [vmem:[%s233 + $0x10] sm:$0xff]
        %v246 = vld [vmem:[%s233 + $0x18] sm:$0xff]
        %v247 = vld [vmem:[%s233 + $0x20] sm:$0xff]
        %v248 = vld [vmem:[%s233 + $0x28] sm:$0xff]
        %v249 = vld [vmem:[%s233 + $0x30] sm:$0xff]
        %v250 = vld [vmem:[%s233 + $0x38] sm:$0xff]
        %v251 = vld [vmem:[%s233 + $0x40] sm:$0xff]
        %v252 = vld [vmem:[%s233 + $0x48] sm:$0xff]
        %v253 = vld [vmem:[%s233 + $0x50] sm:$0xff]
        %v254 = vld [vmem:[%s233 + $0x58] sm:$0xff]
        %v255 = vld [vmem:[%s233 + $0x60] sm:$0xff]
        %v256 = vld [vmem:[%s233 + $0x68] sm:$0xff]
        %v257 = vld [vmem:[%s233 + $0x70] sm:$0xff]
        %v258 = vld [vmem:[%s233 + $0x78] sm:$0xff]
        %v259 = vld [vmem:[%s233 + $0x80] sm:$0xff]
        %v260 = vld [vmem:[%s233 + $0x88] sm:$0xff]
        %v261 = vld [vmem:[%s233 + $0x90] sm:$0xff]
        %v262 = vld [vmem:[%s233 + $0x98] sm:$0xff]
        %v263 = vld [vmem:[%s233 + $0xa0] sm:$0xff]
        %v264 = vld [vmem:[%s233 + $0xa8] sm:$0xff]
        %v265 = vld [vmem:[%s233 + $0xb0] sm:$0xff]
        %v266 = vld [vmem:[%s233 + $0xb8] sm:$0xff]
        %v267 = vld [vmem:[%s233 + $0xc0] sm:$0xff]
        %v268 = vld [vmem:[%s233 + $0xc8] sm:$0xff]
        %v269 = vld [vmem:[%s233 + $0xd0] sm:$0xff]
        %v270 = vld [vmem:[%s233 + $0xd8] sm:$0xff]
        %v271 = vld [vmem:[%s233 + $0xe0] sm:$0xff]
        %v272 = vld [vmem:[%s233 + $0xe8] sm:$0xff]
        %v273 = vld [vmem:[%s233 + $0xf0] sm:$0xff]
        %v274 = vld [vmem:[%s233 + $0xf8] sm:$0xff]
        %v275 = vld [vmem:[%s233 + $0x100] sm:$0xff]
        %v276 = vld [vmem:[%s233 + $0x108] sm:$0xff]
        %v277 = vld [vmem:[%s233 + $0x110] sm:$0xff]
        %v278 = vld [vmem:[%s233 + $0x118] sm:$0xff]
        %v279 = vld [vmem:[%s233 + $0x120] sm:$0xff]
        %v280 = vld [vmem:[%s233 + $0x128] sm:$0xff]
        %v281 = vld [vmem:[%s233 + $0x130] sm:$0xff]
        %v282 = vld [vmem:[%s233 + $0x138] sm:$0xff]
        %v283 = vld [vmem:[%s233 + $0x140] sm:$0xff]
        %v284 = vld [vmem:[%s233 + $0x148] sm:$0xff]
        %v285 = vld [vmem:[%s233 + $0x150] sm:$0xff]
        %v286 = vld [vmem:[%s233 + $0x158] sm:$0xff]
        %v287 = vld [vmem:[%s233 + $0x160] sm:$0xff]
        %v288 = vld [vmem:[%s233 + $0x168] sm:$0xff]
        %v289 = vld [vmem:[%s233 + $0x170] sm:$0xff]
        %v290 = vld [vmem:[%s233 + $0x178] sm:$0xff]
        %v291 = vld [vmem:[%s233 + $0x180] sm:$0xff]
        %v292 = vld [vmem:[%s233 + $0x188] sm:$0xff]
        %v293 = vld [vmem:[%s233 + $0x190] sm:$0xff]
        %v294 = vld [vmem:[%s233 + $0x198] sm:$0xff]
        %v295 = vld [vmem:[%s233 + $0x1a0] sm:$0xff]
        %v296 = vld [vmem:[%s233 + $0x1a8] sm:$0xff]
        %v297 = vld [vmem:[%s233 + $0x1b0] sm:$0xff]
        %v298 = vld [vmem:[%s233 + $0x1b8] sm:$0xff]
        %v299 = vld [vmem:[%s233 + $0x1c0] sm:$0xff]
        %v300 = vld [vmem:[%s233 + $0x1c8] sm:$0xff]
        %v301 = vld [vmem:[%s233 + $0x1d0] sm:$0xff]
        %v302 = vld [vmem:[%s233 + $0x1d8] sm:$0xff]
        %v303 = vld [vmem:[%s233 + $0x1e0] sm:$0xff]
        %v304 = vld [vmem:[%s233 + $0x1e8] sm:$0xff]
        %v305 = vld [vmem:[%s233 + $0x1f0] sm:$0xff]
        %v306 = vld [vmem:[%s233 + $0x1f8] sm:$0xff]
        %v307 = vld [vmem:[%s233 + $0x200] sm:$0xff]
        %v308 = vld [vmem:[%s233 + $0x208] sm:$0xff]
        %v309 = vld [vmem:[%s233 + $0x210] sm:$0xff]
        %v310 = vld [vmem:[%s233 + $0x218] sm:$0xff]
        %v311 = vld [vmem:[%s233 + $0x220] sm:$0xff]
        %v312 = vld [vmem:[%s233 + $0x228] sm:$0xff]
        %v313 = vld [vmem:[%s233 + $0x230] sm:$0xff]
        %v314 = vld [vmem:[%s233 + $0x238] sm:$0xff]
        %v315 = vld [vmem:[%s233 + $0x240] sm:$0xff]
        %v316 = vld [vmem:[%s233 + $0x248] sm:$0xff]
        %v317 = vld [vmem:[%s233 + $0x250] sm:$0xff]
        %v318 = vld [vmem:[%s233 + $0x258] sm:$0xff]
        %v319 = vld [vmem:[%s233 + $0x260] sm:$0xff]
        %v320 = vld [vmem:[%s233 + $0x268] sm:$0xff]
        %v321 = vld [vmem:[%s233 + $0x270] sm:$0xff]
        %v322 = vld [vmem:[%s233 + $0x278] sm:$0xff]
        %v323 = vld [vmem:[%s233 + $0x280] sm:$0xff]
        %v324 = vld [vmem:[%s233 + $0x288] sm:$0xff]
        %v325 = vld [vmem:[%s233 + $0x290] sm:$0xff]
        %v326 = vld [vmem:[%s233 + $0x298] sm:$0xff]
        %v327 = vld [vmem:[%s233 + $0x2a0] sm:$0xff]
        %v328 = vld [vmem:[%s233 + $0x2a8] sm:$0xff]
        %v329 = vld [vmem:[%s233 + $0x2b0] sm:$0xff]
        %v330 = vld [vmem:[%s233 + $0x2b8] sm:$0xff]
        %v331 = vld [vmem:[%s233 + $0x2c0] sm:$0xff]
        %v332 = vld [vmem:[%s233 + $0x2c8] sm:$0xff]
        %v333 = vld [vmem:[%s233 + $0x2d0] sm:$0xff]
        %v334 = vld [vmem:[%s233 + $0x2d8] sm:$0xff]
        %v335 = vld [vmem:[%s233 + $0x2e0] sm:$0xff]
        %v336 = vld [vmem:[%s233 + $0x2e8] sm:$0xff]
        %v337 = vld [vmem:[%s233 + $0x2f0] sm:$0xff]
        %v338 = vld [vmem:[%s233 + $0x2f8] sm:$0xff]
        %v339 = vld [vmem:[%s233 + $0x300] sm:$0xff]
        %v340 = vld [vmem:[%s233 + $0x308] sm:$0xff]
        %v341 = vld [vmem:[%s233 + $0x310] sm:$0xff]
        %v342 = vld [vmem:[%s233 + $0x318] sm:$0xff]
        %v343 = vld [vmem:[%s233 + $0x320] sm:$0xff]
        %v344 = vld [vmem:[%s233 + $0x328] sm:$0xff]
        %v345 = vld [vmem:[%s233 + $0x330] sm:$0xff]
        %v346 = vld [vmem:[%s233 + $0x338] sm:$0xff]
        %v347 = vld [vmem:[%s233 + $0x340] sm:$0xff]
        %v348 = vld [vmem:[%s233 + $0x348] sm:$0xff]
        %v349 = vld [vmem:[%s233 + $0x350] sm:$0xff]
        %v350 = vld [vmem:[%s233 + $0x358] sm:$0xff]
        %v351 = vld [vmem:[%s233 + $0x360] sm:$0xff]
        %v352 = vld [vmem:[%s233 + $0x368] sm:$0xff]
        %v353 = vld [vmem:[%s233 + $0x370] sm:$0xff]
        %v354 = vld [vmem:[%s233 + $0x378] sm:$0xff]
        %v355 = vld [vmem:[%s233 + $0x380] sm:$0xff]
        %v356 = vld [vmem:[%s233 + $0x388] sm:$0xff]
        %v357 = vld [vmem:[%s233 + $0x390] sm:$0xff]
        %v358 = vld [vmem:[%s233 + $0x398] sm:$0xff]
        %v359 = vld [vmem:[%s233 + $0x3a0] sm:$0xff]
        %v360 = vld [vmem:[%s233 + $0x3a8] sm:$0xff]
        %v361 = vld [vmem:[%s233 + $0x3b0] sm:$0xff]
        %v362 = vld [vmem:[%s233 + $0x3b8] sm:$0xff]
        %v363 = vld [vmem:[%s233 + $0x3c0] sm:$0xff]
        %v364 = vld [vmem:[%s233 + $0x3c8] sm:$0xff]
        %v365 = vld [vmem:[%s233 + $0x3d0] sm:$0xff]
        %v366 = vld [vmem:[%s233 + $0x3d8] sm:$0xff]
        %v367 = vld [vmem:[%s233 + $0x3e0] sm:$0xff]
        %v368 = vld [vmem:[%s233 + $0x3e8] sm:$0xff]
        %v369 = vld [vmem:[%s233 + $0x3f0] sm:$0xff]
        %v370 = vld [vmem:[%s233 + $0x3f8] sm:$0xff]
        %v373 = vunpack.c.l.s4 1966171168
        %v374 = vunpack.c.0.s8 %v373
        %v375 = vlaneseq
        %v376 = vshrl.u32 %v375, 7
        %v377 = vsub.s32 %v374, %v376
        %v378 = vrot.slane %v242, %v377
        %v379 = vcombine.high %v378, %v378
        %v381 = vunpack.c.l.s4 1966171168
        %v382 = vunpack.c.0.s8 %v381
        %v383 = vlaneseq
        %v384 = vshrl.u32 %v383, 7
        %v385 = vsub.s32 %v382, %v384
        %v386 = vrot.slane %v378, %v385
        %v388 = vunpack.c.l.s4 1966171168
        %v389 = vunpack.c.0.s8 %v388
        %v390 = vlaneseq
        %v391 = vshrl.u32 %v390, 7
        %v392 = vsub.s32 %v389, %v391
        %v393 = vrot.slane %v379, %v392
        %v394 = vcombine.high %v386, %v386
        %v395 = vcombine.high %v393, %v393
        %v528 = vunpack.c.l.b16 %v243
        %v529 = vunpack.c.h.b16 %v243
        %v530 = vunpack.c.l.b16 %v244
        %v531 = vunpack.c.h.b16 %v244
        %v532 = vunpack.c.l.b16 %v245
        %v533 = vunpack.c.h.b16 %v245
        %v534 = vunpack.c.l.b16 %v246
        %v535 = vunpack.c.h.b16 %v246
        %v536 = vunpack.c.l.b16 %v247
        %v537 = vunpack.c.h.b16 %v247
        %v538 = vunpack.c.l.b16 %v248
        %v539 = vunpack.c.h.b16 %v248
        %v540 = vunpack.c.l.b16 %v249
        %v541 = vunpack.c.h.b16 %v249
        %v542 = vunpack.c.l.b16 %v250
        %v543 = vunpack.c.h.b16 %v250
        %v544 = vunpack.c.l.b16 %v251
        %v545 = vunpack.c.h.b16 %v251
        %v546 = vunpack.c.l.b16 %v252
        %v547 = vunpack.c.h.b16 %v252
        %v548 = vunpack.c.l.b16 %v253
        %v549 = vunpack.c.h.b16 %v253
        %v550 = vunpack.c.l.b16 %v254
        %v551 = vunpack.c.h.b16 %v254
        %v552 = vunpack.c.l.b16 %v255
        %v553 = vunpack.c.h.b16 %v255
        %v554 = vunpack.c.l.b16 %v256
        %v555 = vunpack.c.h.b16 %v256
        %v556 = vunpack.c.l.b16 %v257
        %v557 = vunpack.c.h.b16 %v257
        %v558 = vunpack.c.l.b16 %v258
        %v559 = vunpack.c.h.b16 %v258
        %v560 = vunpack.c.l.b16 %v259
        %v561 = vunpack.c.h.b16 %v259
        %v562 = vunpack.c.l.b16 %v260
        %v563 = vunpack.c.h.b16 %v260
        %v564 = vunpack.c.l.b16 %v261
        %v565 = vunpack.c.h.b16 %v261
        %v566 = vunpack.c.l.b16 %v262
        %v567 = vunpack.c.h.b16 %v262
        %v568 = vunpack.c.l.b16 %v263
        %v569 = vunpack.c.h.b16 %v263
        %v570 = vunpack.c.l.b16 %v264
        %v571 = vunpack.c.h.b16 %v264
        %v572 = vunpack.c.l.b16 %v265
        %v573 = vunpack.c.h.b16 %v265
        %v574 = vunpack.c.l.b16 %v266
        %v575 = vunpack.c.h.b16 %v266
        %v576 = vunpack.c.l.b16 %v267
        %v577 = vunpack.c.h.b16 %v267
        %v578 = vunpack.c.l.b16 %v268
        %v579 = vunpack.c.h.b16 %v268
        %v580 = vunpack.c.l.b16 %v269
        %v581 = vunpack.c.h.b16 %v269
        %v582 = vunpack.c.l.b16 %v270
        %v583 = vunpack.c.h.b16 %v270
        %v584 = vunpack.c.l.b16 %v271
        %v585 = vunpack.c.h.b16 %v271
        %v586 = vunpack.c.l.b16 %v272
        %v587 = vunpack.c.h.b16 %v272
        %v588 = vunpack.c.l.b16 %v273
        %v589 = vunpack.c.h.b16 %v273
        %v590 = vunpack.c.l.b16 %v274
        %v591 = vunpack.c.h.b16 %v274
        %v592 = vunpack.c.l.b16 %v275
        %v593 = vunpack.c.h.b16 %v275
        %v594 = vunpack.c.l.b16 %v276
        %v595 = vunpack.c.h.b16 %v276
        %v596 = vunpack.c.l.b16 %v277
        %v597 = vunpack.c.h.b16 %v277
        %v598 = vunpack.c.l.b16 %v278
        %v599 = vunpack.c.h.b16 %v278
        %v600 = vunpack.c.l.b16 %v279
        %v601 = vunpack.c.h.b16 %v279
        %v602 = vunpack.c.l.b16 %v280
        %v603 = vunpack.c.h.b16 %v280
        %v604 = vunpack.c.l.b16 %v281
        %v605 = vunpack.c.h.b16 %v281
        %v606 = vunpack.c.l.b16 %v282
        %v607 = vunpack.c.h.b16 %v282
        %v608 = vunpack.c.l.b16 %v283
        %v609 = vunpack.c.h.b16 %v283
        %v610 = vunpack.c.l.b16 %v284
        %v611 = vunpack.c.h.b16 %v284
        %v612 = vunpack.c.l.b16 %v285
        %v613 = vunpack.c.h.b16 %v285
        %v614 = vunpack.c.l.b16 %v286
        %v615 = vunpack.c.h.b16 %v286
        %v616 = vunpack.c.l.b16 %v287
        %v617 = vunpack.c.h.b16 %v287
        %v618 = vunpack.c.l.b16 %v288
        %v619 = vunpack.c.h.b16 %v288
        %v620 = vunpack.c.l.b16 %v289
        %v621 = vunpack.c.h.b16 %v289
        %v622 = vunpack.c.l.b16 %v290
        %v623 = vunpack.c.h.b16 %v290
        %v624 = vunpack.c.l.b16 %v291
        %v625 = vunpack.c.h.b16 %v291
        %v626 = vunpack.c.l.b16 %v292
        %v627 = vunpack.c.h.b16 %v292
        %v628 = vunpack.c.l.b16 %v293
        %v629 = vunpack.c.h.b16 %v293
        %v630 = vunpack.c.l.b16 %v294
        %v631 = vunpack.c.h.b16 %v294
        %v632 = vunpack.c.l.b16 %v295
        %v633 = vunpack.c.h.b16 %v295
        %v634 = vunpack.c.l.b16 %v296
        %v635 = vunpack.c.h.b16 %v296
        %v636 = vunpack.c.l.b16 %v297
        %v637 = vunpack.c.h.b16 %v297
        %v638 = vunpack.c.l.b16 %v298
        %v639 = vunpack.c.h.b16 %v298
        %v640 = vunpack.c.l.b16 %v299
        %v641 = vunpack.c.h.b16 %v299
        %v642 = vunpack.c.l.b16 %v300
        %v643 = vunpack.c.h.b16 %v300
        %v644 = vunpack.c.l.b16 %v301
        %v645 = vunpack.c.h.b16 %v301
        %v646 = vunpack.c.l.b16 %v302
        %v647 = vunpack.c.h.b16 %v302
        %v648 = vunpack.c.l.b16 %v303
        %v649 = vunpack.c.h.b16 %v303
        %v650 = vunpack.c.l.b16 %v304
        %v651 = vunpack.c.h.b16 %v304
        %v652 = vunpack.c.l.b16 %v305
        %v653 = vunpack.c.h.b16 %v305
        %v654 = vunpack.c.l.b16 %v306
        %v655 = vunpack.c.h.b16 %v306
        %v656 = vunpack.c.l.b16 %v307
        %v657 = vunpack.c.h.b16 %v307
        %v658 = vunpack.c.l.b16 %v308
        %v659 = vunpack.c.h.b16 %v308
        %v660 = vunpack.c.l.b16 %v309
        %v661 = vunpack.c.h.b16 %v309
        %v662 = vunpack.c.l.b16 %v310
        %v663 = vunpack.c.h.b16 %v310
        %v664 = vunpack.c.l.b16 %v311
        %v665 = vunpack.c.h.b16 %v311
        %v666 = vunpack.c.l.b16 %v312
        %v667 = vunpack.c.h.b16 %v312
        %v668 = vunpack.c.l.b16 %v313
        %v669 = vunpack.c.h.b16 %v313
        %v670 = vunpack.c.l.b16 %v314
        %v671 = vunpack.c.h.b16 %v314
        %v672 = vunpack.c.l.b16 %v315
        %v673 = vunpack.c.h.b16 %v315
        %v674 = vunpack.c.l.b16 %v316
        %v675 = vunpack.c.h.b16 %v316
        %v676 = vunpack.c.l.b16 %v317
        %v677 = vunpack.c.h.b16 %v317
        %v678 = vunpack.c.l.b16 %v318
        %v679 = vunpack.c.h.b16 %v318
        %v680 = vunpack.c.l.b16 %v319
        %v681 = vunpack.c.h.b16 %v319
        %v682 = vunpack.c.l.b16 %v320
        %v683 = vunpack.c.h.b16 %v320
        %v684 = vunpack.c.l.b16 %v321
        %v685 = vunpack.c.h.b16 %v321
        %v686 = vunpack.c.l.b16 %v322
        %v687 = vunpack.c.h.b16 %v322
        %v688 = vunpack.c.l.b16 %v323
        %v689 = vunpack.c.h.b16 %v323
        %v690 = vunpack.c.l.b16 %v324
        %v691 = vunpack.c.h.b16 %v324
        %v692 = vunpack.c.l.b16 %v325
        %v693 = vunpack.c.h.b16 %v325
        %v694 = vunpack.c.l.b16 %v326
        %v695 = vunpack.c.h.b16 %v326
        %v696 = vunpack.c.l.b16 %v327
        %v697 = vunpack.c.h.b16 %v327
        %v698 = vunpack.c.l.b16 %v328
        %v699 = vunpack.c.h.b16 %v328
        %v700 = vunpack.c.l.b16 %v329
        %v701 = vunpack.c.h.b16 %v329
        %v702 = vunpack.c.l.b16 %v330
        %v703 = vunpack.c.h.b16 %v330
        %v704 = vunpack.c.l.b16 %v331
        %v705 = vunpack.c.h.b16 %v331
        %v706 = vunpack.c.l.b16 %v332
        %v707 = vunpack.c.h.b16 %v332
        %v708 = vunpack.c.l.b16 %v333
        %v709 = vunpack.c.h.b16 %v333
        %v710 = vunpack.c.l.b16 %v334
        %v711 = vunpack.c.h.b16 %v334
        %v712 = vunpack.c.l.b16 %v335
        %v713 = vunpack.c.h.b16 %v335
        %v714 = vunpack.c.l.b16 %v336
        %v715 = vunpack.c.h.b16 %v336
        %v716 = vunpack.c.l.b16 %v337
        %v717 = vunpack.c.h.b16 %v337
        %v718 = vunpack.c.l.b16 %v338
        %v719 = vunpack.c.h.b16 %v338
        %v720 = vunpack.c.l.b16 %v339
        %v721 = vunpack.c.h.b16 %v339
        %v722 = vunpack.c.l.b16 %v340
        %v723 = vunpack.c.h.b16 %v340
        %v724 = vunpack.c.l.b16 %v341
        %v725 = vunpack.c.h.b16 %v341
        %v726 = vunpack.c.l.b16 %v342
        %v727 = vunpack.c.h.b16 %v342
        %v728 = vunpack.c.l.b16 %v343
        %v729 = vunpack.c.h.b16 %v343
        %v730 = vunpack.c.l.b16 %v344
        %v731 = vunpack.c.h.b16 %v344
        %v732 = vunpack.c.l.b16 %v345
        %v733 = vunpack.c.h.b16 %v345
        %v734 = vunpack.c.l.b16 %v346
        %v735 = vunpack.c.h.b16 %v346
        %v736 = vunpack.c.l.b16 %v347
        %v737 = vunpack.c.h.b16 %v347
        %v738 = vunpack.c.l.b16 %v348
        %v739 = vunpack.c.h.b16 %v348
        %v740 = vunpack.c.l.b16 %v349
        %v741 = vunpack.c.h.b16 %v349
        %v742 = vunpack.c.l.b16 %v350
        %v743 = vunpack.c.h.b16 %v350
        %v744 = vunpack.c.l.b16 %v351
        %v745 = vunpack.c.h.b16 %v351
        %v746 = vunpack.c.l.b16 %v352
        %v747 = vunpack.c.h.b16 %v352
        %v748 = vunpack.c.l.b16 %v353
        %v749 = vunpack.c.h.b16 %v353
        %v750 = vunpack.c.l.b16 %v354
        %v751 = vunpack.c.h.b16 %v354
        %v752 = vunpack.c.l.b16 %v355
        %v753 = vunpack.c.h.b16 %v355
        %v754 = vunpack.c.l.b16 %v356
        %v755 = vunpack.c.h.b16 %v356
        %v756 = vunpack.c.l.b16 %v357
        %v757 = vunpack.c.h.b16 %v357
        %v758 = vunpack.c.l.b16 %v358
        %v759 = vunpack.c.h.b16 %v358
        %v760 = vunpack.c.l.b16 %v359
        %v761 = vunpack.c.h.b16 %v359
        %v762 = vunpack.c.l.b16 %v360
        %v763 = vunpack.c.h.b16 %v360
        %v764 = vunpack.c.l.b16 %v361
        %v765 = vunpack.c.h.b16 %v361
        %v766 = vunpack.c.l.b16 %v362
        %v767 = vunpack.c.h.b16 %v362
        %v768 = vunpack.c.l.b16 %v363
        %v769 = vunpack.c.h.b16 %v363
        %v770 = vunpack.c.l.b16 %v364
        %v771 = vunpack.c.h.b16 %v364
        %v772 = vunpack.c.l.b16 %v365
        %v773 = vunpack.c.h.b16 %v365
        %v774 = vunpack.c.l.b16 %v366
        %v775 = vunpack.c.h.b16 %v366
        %v776 = vunpack.c.l.b16 %v367
        %v777 = vunpack.c.h.b16 %v367
        %v778 = vunpack.c.l.b16 %v368
        %v779 = vunpack.c.h.b16 %v368
        %v780 = vunpack.c.l.b16 %v369
        %v781 = vunpack.c.h.b16 %v369
        %v782 = vunpack.c.l.b16 %v370
        %v783 = vunpack.c.h.b16 %v370
        %v784 = vpack.c.b16 %v532, %v528
        %v785 = vpack.c.b16 %v533, %v529
        %v786 = vpack.c.b16 %v534, %v530
        %v787 = vpack.c.b16 %v535, %v531
        %v788 = vpack.c.b16 %v540, %v536
        %v789 = vpack.c.b16 %v541, %v537
        %v790 = vpack.c.b16 %v542, %v538
        %v791 = vpack.c.b16 %v543, %v539
        %v792 = vpack.c.b16 %v548, %v544
        %v793 = vpack.c.b16 %v549, %v545
        %v794 = vpack.c.b16 %v550, %v546
        %v795 = vpack.c.b16 %v551, %v547
        %v796 = vpack.c.b16 %v556, %v552
        %v797 = vpack.c.b16 %v557, %v553
        %v798 = vpack.c.b16 %v558, %v554
        %v799 = vpack.c.b16 %v559, %v555
        %v800 = vpack.c.b16 %v564, %v560
        %v801 = vpack.c.b16 %v565, %v561
        %v802 = vpack.c.b16 %v566, %v562
        %v803 = vpack.c.b16 %v567, %v563
        %v804 = vpack.c.b16 %v572, %v568
        %v805 = vpack.c.b16 %v573, %v569
        %v806 = vpack.c.b16 %v574, %v570
        %v807 = vpack.c.b16 %v575, %v571
        %v808 = vpack.c.b16 %v580, %v576
        %v809 = vpack.c.b16 %v581, %v577
        %v810 = vpack.c.b16 %v582, %v578
        %v811 = vpack.c.b16 %v583, %v579
        %v812 = vpack.c.b16 %v588, %v584
        %v813 = vpack.c.b16 %v589, %v585
        %v814 = vpack.c.b16 %v590, %v586
        %v815 = vpack.c.b16 %v591, %v587
        %v816 = vpack.c.b16 %v596, %v592
        %v817 = vpack.c.b16 %v597, %v593
        %v818 = vpack.c.b16 %v598, %v594
        %v819 = vpack.c.b16 %v599, %v595
        %v820 = vpack.c.b16 %v604, %v600
        %v821 = vpack.c.b16 %v605, %v601
        %v822 = vpack.c.b16 %v606, %v602
        %v823 = vpack.c.b16 %v607, %v603
        %v824 = vpack.c.b16 %v612, %v608
        %v825 = vpack.c.b16 %v613, %v609
        %v826 = vpack.c.b16 %v614, %v610
        %v827 = vpack.c.b16 %v615, %v611
        %v828 = vpack.c.b16 %v620, %v616
        %v829 = vpack.c.b16 %v621, %v617
        %v830 = vpack.c.b16 %v622, %v618
        %v831 = vpack.c.b16 %v623, %v619
        %v832 = vpack.c.b16 %v628, %v624
        %v833 = vpack.c.b16 %v629, %v625
        %v834 = vpack.c.b16 %v630, %v626
        %v835 = vpack.c.b16 %v631, %v627
        %v836 = vpack.c.b16 %v636, %v632
        %v837 = vpack.c.b16 %v637, %v633
        %v838 = vpack.c.b16 %v638, %v634
        %v839 = vpack.c.b16 %v639, %v635
        %v840 = vpack.c.b16 %v644, %v640
        %v841 = vpack.c.b16 %v645, %v641
        %v842 = vpack.c.b16 %v646, %v642
        %v843 = vpack.c.b16 %v647, %v643
        %v844 = vpack.c.b16 %v652, %v648
        %v845 = vpack.c.b16 %v653, %v649
        %v846 = vpack.c.b16 %v654, %v650
        %v847 = vpack.c.b16 %v655, %v651
        %v848 = vpack.c.b16 %v660, %v656
        %v849 = vpack.c.b16 %v661, %v657
        %v850 = vpack.c.b16 %v662, %v658
        %v851 = vpack.c.b16 %v663, %v659
        %v852 = vpack.c.b16 %v668, %v664
        %v853 = vpack.c.b16 %v669, %v665
        %v854 = vpack.c.b16 %v670, %v666
        %v855 = vpack.c.b16 %v671, %v667
        %v856 = vpack.c.b16 %v676, %v672
        %v857 = vpack.c.b16 %v677, %v673
        %v858 = vpack.c.b16 %v678, %v674
        %v859 = vpack.c.b16 %v679, %v675
        %v860 = vpack.c.b16 %v684, %v680
        %v861 = vpack.c.b16 %v685, %v681
        %v862 = vpack.c.b16 %v686, %v682
        %v863 = vpack.c.b16 %v687, %v683
        %v864 = vpack.c.b16 %v692, %v688
        %v865 = vpack.c.b16 %v693, %v689
        %v866 = vpack.c.b16 %v694, %v690
        %v867 = vpack.c.b16 %v695, %v691
        %v868 = vpack.c.b16 %v700, %v696
        %v869 = vpack.c.b16 %v701, %v697
        %v870 = vpack.c.b16 %v702, %v698
        %v871 = vpack.c.b16 %v703, %v699
        %v872 = vpack.c.b16 %v708, %v704
        %v873 = vpack.c.b16 %v709, %v705
        %v874 = vpack.c.b16 %v710, %v706
        %v875 = vpack.c.b16 %v711, %v707
        %v876 = vpack.c.b16 %v716, %v712
        %v877 = vpack.c.b16 %v717, %v713
        %v878 = vpack.c.b16 %v718, %v714
        %v879 = vpack.c.b16 %v719, %v715
        %v880 = vpack.c.b16 %v724, %v720
        %v881 = vpack.c.b16 %v725, %v721
        %v882 = vpack.c.b16 %v726, %v722
        %v883 = vpack.c.b16 %v727, %v723
        %v884 = vpack.c.b16 %v732, %v728
        %v885 = vpack.c.b16 %v733, %v729
        %v886 = vpack.c.b16 %v734, %v730
        %v887 = vpack.c.b16 %v735, %v731
        %v888 = vpack.c.b16 %v740, %v736
        %v889 = vpack.c.b16 %v741, %v737
        %v890 = vpack.c.b16 %v742, %v738
        %v891 = vpack.c.b16 %v743, %v739
        %v892 = vpack.c.b16 %v748, %v744
        %v893 = vpack.c.b16 %v749, %v745
        %v894 = vpack.c.b16 %v750, %v746
        %v895 = vpack.c.b16 %v751, %v747
        %v896 = vpack.c.b16 %v756, %v752
        %v897 = vpack.c.b16 %v757, %v753
        %v898 = vpack.c.b16 %v758, %v754
        %v899 = vpack.c.b16 %v759, %v755
        %v900 = vpack.c.b16 %v764, %v760
        %v901 = vpack.c.b16 %v765, %v761
        %v902 = vpack.c.b16 %v766, %v762
        %v903 = vpack.c.b16 %v767, %v763
        %v904 = vpack.c.b16 %v772, %v768
        %v905 = vpack.c.b16 %v773, %v769
        %v906 = vpack.c.b16 %v774, %v770
        %v907 = vpack.c.b16 %v775, %v771
        %v908 = vpack.c.b16 %v780, %v776
        %v909 = vpack.c.b16 %v781, %v777
        %v910 = vpack.c.b16 %v782, %v778
        %v911 = vpack.c.b16 %v783, %v779
        %1040 = vmatprep.subr.bf16.mxu0 %v785
        %1041 = vmatpush1.bf16.msra.mxu0 %v784
        %1042 = vmatprep.subr.bf16.mxu0 %v789
        %1043 = vmatpush1.bf16.msra.mxu0 %v788
        %1044 = vmatprep.subr.bf16.mxu0 %v793
        %1045 = vmatpush1.bf16.msra.mxu0 %v792
        %1046 = vmatprep.subr.bf16.mxu0 %v797
        %1047 = vmatpush1.bf16.msra.mxu0 %v796
        %1048 = vmatprep.subr.bf16.mxu0 %v801
        %1049 = vmatpush1.bf16.msra.mxu0 %v800
        %1050 = vmatprep.subr.bf16.mxu0 %v805
        %1051 = vmatpush1.bf16.msra.mxu0 %v804
        %1052 = vmatprep.subr.bf16.mxu0 %v809
        %1053 = vmatpush1.bf16.msra.mxu0 %v808
        %1054 = vmatprep.subr.bf16.mxu0 %v813
        %1055 = vmatpush1.bf16.msra.mxu0 %v812
        %1056 = vmatprep.subr.bf16.mxu0 %v817
        %1057 = vmatpush1.bf16.msra.mxu0 %v816
        %1058 = vmatprep.subr.bf16.mxu0 %v821
        %1059 = vmatpush1.bf16.msra.mxu0 %v820
        %1060 = vmatprep.subr.bf16.mxu0 %v825
        %1061 = vmatpush1.bf16.msra.mxu0 %v824
        %1062 = vmatprep.subr.bf16.mxu0 %v829
        %1063 = vmatpush1.bf16.msra.mxu0 %v828
        %1064 = vmatprep.subr.bf16.mxu0 %v833
        %1065 = vmatpush1.bf16.msra.mxu0 %v832
        %1066 = vmatprep.subr.bf16.mxu0 %v837
        %1067 = vmatpush1.bf16.msra.mxu0 %v836
        %1068 = vmatprep.subr.bf16.mxu0 %v841
        %1069 = vmatpush1.bf16.msra.mxu0 %v840
        %1070 = vmatprep.subr.bf16.mxu0 %v845
        %1071 = vmatpush1.bf16.msra.mxu0 %v844
        %1072 = vmatprep.mubr.bf16.mxu0 %v393
        %1073 = vmatmul.mubr.bf16.gmra.mrb[0].mxu0 %v386
        %v1074 = vpop.f32.mrb[0].mxu0
        %v1075 = vadd.f32 0.0, %v1074
        %v1076 = vpop.f32.mrb[0].mxu0
        %v1077 = vadd.f32 0.0, %v1076
        %v1078 = vpop.f32.mrb[0].mxu0
        %v1079 = vpop.f32.mrb[0].mxu0
        %1080 = vdwg.mxu0
        %1081 = vmatprep.subr.bf16.mxu0 %v849
        %1082 = vmatpush1.bf16.msra.mxu0 %v848
        %1083 = vmatprep.subr.bf16.mxu0 %v853
        %1084 = vmatpush1.bf16.msra.mxu0 %v852
        %1085 = vmatprep.subr.bf16.mxu0 %v857
        %1086 = vmatpush1.bf16.msra.mxu0 %v856
        %1087 = vmatprep.subr.bf16.mxu0 %v861
        %1088 = vmatpush1.bf16.msra.mxu0 %v860
        %1089 = vmatprep.subr.bf16.mxu0 %v865
        %1090 = vmatpush1.bf16.msra.mxu0 %v864
        %1091 = vmatprep.subr.bf16.mxu0 %v869
        %1092 = vmatpush1.bf16.msra.mxu0 %v868
        %1093 = vmatprep.subr.bf16.mxu0 %v873
        %1094 = vmatpush1.bf16.msra.mxu0 %v872
        %1095 = vmatprep.subr.bf16.mxu0 %v877
        %1096 = vmatpush1.bf16.msra.mxu0 %v876
        %1097 = vmatprep.subr.bf16.mxu0 %v881
        %1098 = vmatpush1.bf16.msra.mxu0 %v880
        %1099 = vmatprep.subr.bf16.mxu0 %v885
        %1100 = vmatpush1.bf16.msra.mxu0 %v884
        %1101 = vmatprep.subr.bf16.mxu0 %v889
        %1102 = vmatpush1.bf16.msra.mxu0 %v888
        %1103 = vmatprep.subr.bf16.mxu0 %v893
        %1104 = vmatpush1.bf16.msra.mxu0 %v892
        %1105 = vmatprep.subr.bf16.mxu0 %v897
        %1106 = vmatpush1.bf16.msra.mxu0 %v896
        %1107 = vmatprep.subr.bf16.mxu0 %v901
        %1108 = vmatpush1.bf16.msra.mxu0 %v900
        %1109 = vmatprep.subr.bf16.mxu0 %v905
        %1110 = vmatpush1.bf16.msra.mxu0 %v904
        %1111 = vmatprep.subr.bf16.mxu0 %v909
        %1112 = vmatpush1.bf16.msra.mxu0 %v908
        %1113 = vmatprep.mubr.bf16.mxu0 %v395
        %1114 = vmatmul.mubr.bf16.gmra.mrb[0].mxu0 %v394
        %v1115 = vpop.f32.mrb[0].mxu0
        %v1116 = vadd.f32 %v1075, %v1115
        %v1117 = vpop.f32.mrb[0].mxu0
        %v1118 = vadd.f32 %v1077, %v1117
        %v1119 = vpop.f32.mrb[0].mxu0
        %v1120 = vpop.f32.mrb[0].mxu0
        %1121 = vdwg.mxu0
        %1122 = vmatprep.subr.bf16.mxu0 %v787
        %1123 = vmatpush1.bf16.msra.mxu0 %v786
        %1124 = vmatprep.subr.bf16.mxu0 %v791
        %1125 = vmatpush1.bf16.msra.mxu0 %v790
        %1126 = vmatprep.subr.bf16.mxu0 %v795
        %1127 = vmatpush1.bf16.msra.mxu0 %v794
        %1128 = vmatprep.subr.bf16.mxu0 %v799
        %1129 = vmatpush1.bf16.msra.mxu0 %v798
        %1130 = vmatprep.subr.bf16.mxu0 %v803
        %1131 = vmatpush1.bf16.msra.mxu0 %v802
        %1132 = vmatprep.subr.bf16.mxu0 %v807
        %1133 = vmatpush1.bf16.msra.mxu0 %v806
        %1134 = vmatprep.subr.bf16.mxu0 %v811
        %1135 = vmatpush1.bf16.msra.mxu0 %v810
        %1136 = vmatprep.subr.bf16.mxu0 %v815
        %1137 = vmatpush1.bf16.msra.mxu0 %v814
        %1138 = vmatprep.subr.bf16.mxu0 %v819
        %1139 = vmatpush1.bf16.msra.mxu0 %v818
        %1140 = vmatprep.subr.bf16.mxu0 %v823
        %1141 = vmatpush1.bf16.msra.mxu0 %v822
        %1142 = vmatprep.subr.bf16.mxu0 %v827
        %1143 = vmatpush1.bf16.msra.mxu0 %v826
        %1144 = vmatprep.subr.bf16.mxu0 %v831
        %1145 = vmatpush1.bf16.msra.mxu0 %v830
        %1146 = vmatprep.subr.bf16.mxu0 %v835
        %1147 = vmatpush1.bf16.msra.mxu0 %v834
        %1148 = vmatprep.subr.bf16.mxu0 %v839
        %1149 = vmatpush1.bf16.msra.mxu0 %v838
        %1150 = vmatprep.subr.bf16.mxu0 %v843
        %1151 = vmatpush1.bf16.msra.mxu0 %v842
        %1152 = vmatprep.subr.bf16.mxu0 %v847
        %1153 = vmatpush1.bf16.msra.mxu0 %v846
        %1154 = vmatprep.mubr.bf16.mxu0 %v393
        %1155 = vmatmul.mubr.bf16.gmra.mrb[0].mxu0 %v386
        %v1156 = vpop.f32.mrb[0].mxu0
        %v1157 = vadd.f32 0.0, %v1156
        %v1158 = vpop.f32.mrb[0].mxu0
        %v1159 = vadd.f32 0.0, %v1158
        %v1160 = vpop.f32.mrb[0].mxu0
        %v1161 = vpop.f32.mrb[0].mxu0
        %1162 = vdwg.mxu0
        %1163 = vmatprep.subr.bf16.mxu0 %v851
        %1164 = vmatpush1.bf16.msra.mxu0 %v850
        %1165 = vmatprep.subr.bf16.mxu0 %v855
        %1166 = vmatpush1.bf16.msra.mxu0 %v854
        %1167 = vmatprep.subr.bf16.mxu0 %v859
        %1168 = vmatpush1.bf16.msra.mxu0 %v858
        %1169 = vmatprep.subr.bf16.mxu0 %v863
        %1170 = vmatpush1.bf16.msra.mxu0 %v862
        %1171 = vmatprep.subr.bf16.mxu0 %v867
        %1172 = vmatpush1.bf16.msra.mxu0 %v866
        %1173 = vmatprep.subr.bf16.mxu0 %v871
        %1174 = vmatpush1.bf16.msra.mxu0 %v870
        %1175 = vmatprep.subr.bf16.mxu0 %v875
        %1176 = vmatpush1.bf16.msra.mxu0 %v874
        %1177 = vmatprep.subr.bf16.mxu0 %v879
        %1178 = vmatpush1.bf16.msra.mxu0 %v878
        %1179 = vmatprep.subr.bf16.mxu0 %v883
        %1180 = vmatpush1.bf16.msra.mxu0 %v882
        %1181 = vmatprep.subr.bf16.mxu0 %v887
        %1182 = vmatpush1.bf16.msra.mxu0 %v886
        %1183 = vmatprep.subr.bf16.mxu0 %v891
        %1184 = vmatpush1.bf16.msra.mxu0 %v890
        %1185 = vmatprep.subr.bf16.mxu0 %v895
        %1186 = vmatpush1.bf16.msra.mxu0 %v894
        %1187 = vmatprep.subr.bf16.mxu0 %v899
        %1188 = vmatpush1.bf16.msra.mxu0 %v898
        %1189 = vmatprep.subr.bf16.mxu0 %v903
        %1190 = vmatpush1.bf16.msra.mxu0 %v902
        %1191 = vmatprep.subr.bf16.mxu0 %v907
        %1192 = vmatpush1.bf16.msra.mxu0 %v906
        %1193 = vmatprep.subr.bf16.mxu0 %v911
        %1194 = vmatpush1.bf16.msra.mxu0 %v910
        %1195 = vmatprep.mubr.bf16.mxu0 %v395
        %1196 = vmatmul.mubr.bf16.gmra.mrb[0].mxu0 %v394
        %v1197 = vpop.f32.mrb[0].mxu0
        %v1198 = vadd.f32 %v1157, %v1197
        %v1199 = vpop.f32.mrb[0].mxu0
        %v1200 = vadd.f32 %v1159, %v1199
        %v1201 = vpop.f32.mrb[0].mxu0
        %v1202 = vpop.f32.mrb[0].mxu0
        %1203 = vdwg.mxu0
        %v1208 = vcombine.low %v1116, %v1118
        %v1209 = vcombine.low %v1198, %v1200
        %v1211 = vunpack.c.l.s4 1983009808
        %v1212 = vunpack.c.0.s8 %v1211
        %v1213 = vlaneseq
        %v1214 = vshrl.u32 %v1213, 7
        %v1215 = vsub.s32 %v1212, %v1214
        %v1216 = vrot.slane %v1208, %v1215
        %v1218 = vunpack.c.l.s4 1983009808
        %v1219 = vunpack.c.0.s8 %v1218
        %v1220 = vlaneseq
        %v1221 = vshrl.u32 %v1220, 7
        %v1222 = vsub.s32 %v1219, %v1221
        %v1223 = vrot.slane %v1209, %v1222
        %v1224 = vcombine.low %v1216, %v1223
        %v1226 = vadd.f32 %v241, %v1224
        %1227 = vst [vmem:[#allocation2] sm:$0xff] %v1226
        %p1228 = scmp.eq.s32.totalorder %s17, 6
        // Predicated region
        $region45: #{mario_forward.3} parent=39 // pred_check
          %p1229 = pneg %p1228
        $region46: #{mario_forward.3} parent=39 // pred_check_branch
          %1231 = sbr.rel (%p1229) target = $region48
        $region47: #{mario_forward.3} parent=39 // pred_region
          %v1232 = vld [vmem:[#allocation2] sm:$0xff]
          %v1233 = vld [vmem:[%s2] sm:$0xf]
          %v1235 = vlaneseq
          %v1236 = vshrl.u32 %v1235, 7
          %v1237 = vsub.s32 0, %v1236
          %v1238 = vrot.slane %v1233, %v1237
          %v1239 = vlaneseq
          %v1240 = vshrl.u32 %v1239, 7
          %v1241 = vsub.s32 1, %v1240
          %v1242 = vrot.slane %v1233, %v1241
          %v1243 = vlaneseq
          %v1244 = vshrl.u32 %v1243, 7
          %v1245 = vsub.s32 2, %v1244
          %v1246 = vrot.slane %v1233, %v1245
          %v1247 = vlaneseq
          %v1248 = vshrl.u32 %v1247, 7
          %v1249 = vsub.s32 3, %v1248
          %v1250 = vrot.slane %v1233, %v1249
          %v1251 = vcombine.low %v1238, %v1242
          %v1252 = vcombine.low %v1246, %v1250
          %v1254 = vunpack.c.l.s4 1983009808
          %v1255 = vunpack.c.0.s8 %v1254
          %v1256 = vlaneseq
          %v1257 = vshrl.u32 %v1256, 7
          %v1258 = vsub.s32 %v1255, %v1257
          %v1259 = vrot.slane %v1251, %v1258
          %v1261 = vunpack.c.l.s4 1983009808
          %v1262 = vunpack.c.0.s8 %v1261
          %v1263 = vlaneseq
          %v1264 = vshrl.u32 %v1263, 7
          %v1265 = vsub.s32 %v1262, %v1264
          %v1266 = vrot.slane %v1252, %v1265
          %v1267 = vcombine.low %v1259, %v1266
          %v1269 = vadd.f32 %v1232, %v1267
          %v1270 = vmax.f32 %v1269, 0.0
          %v1272 = vcombine.high %v1270, %v1270
          %v1274 = vunpack.c.l.s4 1983009808
          %v1275 = vunpack.c.0.s8 %v1274
          %v1276 = vlaneseq
          %v1277 = vshrl.u32 %v1276, 7
          %v1278 = vsub.s32 %v1275, %v1277
          %v1279 = vrot.slane %v1270, %v1278
          %v1281 = vunpack.c.l.s4 1983009808
          %v1282 = vunpack.c.0.s8 %v1281
          %v1283 = vlaneseq
          %v1284 = vshrl.u32 %v1283, 7
          %v1285 = vsub.s32 %v1282, %v1284
          %v1286 = vrot.slane %v1272, %v1285
          %v1287 = vcombine.high %v1279, %v1279
          %v1288 = vcombine.high %v1286, %v1286
          %v1293 = vpack.c.bf16 %v1279, %v1279
          %v1294 = vpack.c.bf16 %v1287, %v1287
          %v1295 = vpack.c.bf16 %v1286, %v1286
          %v1296 = vpack.c.bf16 %v1288, %v1288
          %v1297 = vld [vmem:[%s3] sm:$0xf]
          %v1298 = vld [vmem:[%s3 + $0x4] sm:$0xf]
          %v1299 = vld [vmem:[%s3 + $0x8] sm:$0xf]
          %v1300 = vld [vmem:[%s3 + $0xc] sm:$0xf]
          %v1301 = vld [vmem:[%s3 + $0x10] sm:$0xf]
          %v1302 = vld [vmem:[%s3 + $0x14] sm:$0xf]
          %v1303 = vld [vmem:[%s3 + $0x18] sm:$0xf]
          %v1304 = vld [vmem:[%s3 + $0x1c] sm:$0xf]
          %v1305 = vld [vmem:[%s3 + $0x20] sm:$0xf]
          %v1306 = vld [vmem:[%s3 + $0x24] sm:$0xf]
          %v1307 = vld [vmem:[%s3 + $0x28] sm:$0xf]
          %v1308 = vld [vmem:[%s3 + $0x2c] sm:$0xf]
          %v1309 = vld [vmem:[%s3 + $0x30] sm:$0xf]
          %v1310 = vld [vmem:[%s3 + $0x34] sm:$0xf]
          %v1311 = vld [vmem:[%s3 + $0x38] sm:$0xf]
          %v1312 = vld [vmem:[%s3 + $0x3c] sm:$0xf]
          %v1313 = vld [vmem:[%s3 + $0x40] sm:$0xf]
          %v1314 = vld [vmem:[%s3 + $0x44] sm:$0xf]
          %v1315 = vld [vmem:[%s3 + $0x48] sm:$0xf]
          %v1316 = vld [vmem:[%s3 + $0x4c] sm:$0xf]
          %v1317 = vld [vmem:[%s3 + $0x50] sm:$0xf]
          %v1318 = vld [vmem:[%s3 + $0x54] sm:$0xf]
          %v1319 = vld [vmem:[%s3 + $0x58] sm:$0xf]
          %v1320 = vld [vmem:[%s3 + $0x5c] sm:$0xf]
          %v1321 = vld [vmem:[%s3 + $0x60] sm:$0xf]
          %v1322 = vld [vmem:[%s3 + $0x64] sm:$0xf]
          %v1323 = vld [vmem:[%s3 + $0x68] sm:$0xf]
          %v1324 = vld [vmem:[%s3 + $0x6c] sm:$0xf]
          %v1325 = vld [vmem:[%s3 + $0x70] sm:$0xf]
          %v1326 = vld [vmem:[%s3 + $0x74] sm:$0xf]
          %v1327 = vld [vmem:[%s3 + $0x78] sm:$0xf]
          %v1328 = vld [vmem:[%s3 + $0x7c] sm:$0xf]
          %v1329 = vld [vmem:[%s3 + $0x80] sm:$0xf]
          %v1330 = vld [vmem:[%s3 + $0x84] sm:$0xf]
          %v1331 = vld [vmem:[%s3 + $0x88] sm:$0xf]
          %v1332 = vld [vmem:[%s3 + $0x8c] sm:$0xf]
          %v1333 = vld [vmem:[%s3 + $0x90] sm:$0xf]
          %v1334 = vld [vmem:[%s3 + $0x94] sm:$0xf]
          %v1335 = vld [vmem:[%s3 + $0x98] sm:$0xf]
          %v1336 = vld [vmem:[%s3 + $0x9c] sm:$0xf]
          %v1337 = vld [vmem:[%s3 + $0xa0] sm:$0xf]
          %v1338 = vld [vmem:[%s3 + $0xa4] sm:$0xf]
          %v1339 = vld [vmem:[%s3 + $0xa8] sm:$0xf]
          %v1340 = vld [vmem:[%s3 + $0xac] sm:$0xf]
          %v1341 = vld [vmem:[%s3 + $0xb0] sm:$0xf]
          %v1342 = vld [vmem:[%s3 + $0xb4] sm:$0xf]
          %v1343 = vld [vmem:[%s3 + $0xb8] sm:$0xf]
          %v1344 = vld [vmem:[%s3 + $0xbc] sm:$0xf]
          %v1345 = vld [vmem:[%s3 + $0xc0] sm:$0xf]
          %v1346 = vld [vmem:[%s3 + $0xc4] sm:$0xf]
          %v1347 = vld [vmem:[%s3 + $0xc8] sm:$0xf]
          %v1348 = vld [vmem:[%s3 + $0xcc] sm:$0xf]
          %v1349 = vld [vmem:[%s3 + $0xd0] sm:$0xf]
          %v1350 = vld [vmem:[%s3 + $0xd4] sm:$0xf]
          %v1351 = vld [vmem:[%s3 + $0xd8] sm:$0xf]
          %v1352 = vld [vmem:[%s3 + $0xdc] sm:$0xf]
          %v1353 = vld [vmem:[%s3 + $0xe0] sm:$0xf]
          %v1354 = vld [vmem:[%s3 + $0xe4] sm:$0xf]
          %v1355 = vld [vmem:[%s3 + $0xe8] sm:$0xf]
          %v1356 = vld [vmem:[%s3 + $0xec] sm:$0xf]
          %v1357 = vld [vmem:[%s3 + $0xf0] sm:$0xf]
          %v1358 = vld [vmem:[%s3 + $0xf4] sm:$0xf]
          %v1359 = vld [vmem:[%s3 + $0xf8] sm:$0xf]
          %v1360 = vld [vmem:[%s3 + $0xfc] sm:$0xf]
          %v1361 = vld [vmem:[%s4] sm:$0x1]
          %v1363 = vlaneseq
          %v1364 = vshrl.u32 %v1363, 7
          %v1365 = vsub.s32 0, %v1364
          %v1366 = vrot.slane %v1361, %v1365
          %v1432 = vunpack.c.l.b16 %v1297
          %v1433 = vunpack.c.l.b16 %v1298
          %v1434 = vunpack.c.l.b16 %v1299
          %v1435 = vunpack.c.l.b16 %v1300
          %v1436 = vunpack.c.l.b16 %v1301
          %v1437 = vunpack.c.l.b16 %v1302
          %v1438 = vunpack.c.l.b16 %v1303
          %v1439 = vunpack.c.l.b16 %v1304
          %v1440 = vunpack.c.l.b16 %v1305
          %v1441 = vunpack.c.l.b16 %v1306
          %v1442 = vunpack.c.l.b16 %v1307
          %v1443 = vunpack.c.l.b16 %v1308
          %v1444 = vunpack.c.l.b16 %v1309
          %v1445 = vunpack.c.l.b16 %v1310
          %v1446 = vunpack.c.l.b16 %v1311
          %v1447 = vunpack.c.l.b16 %v1312
          %v1448 = vunpack.c.l.b16 %v1313
          %v1449 = vunpack.c.l.b16 %v1314
          %v1450 = vunpack.c.l.b16 %v1315
          %v1451 = vunpack.c.l.b16 %v1316
          %v1452 = vunpack.c.l.b16 %v1317
          %v1453 = vunpack.c.l.b16 %v1318
          %v1454 = vunpack.c.l.b16 %v1319
          %v1455 = vunpack.c.l.b16 %v1320
          %v1456 = vunpack.c.l.b16 %v1321
          %v1457 = vunpack.c.l.b16 %v1322
          %v1458 = vunpack.c.l.b16 %v1323
          %v1459 = vunpack.c.l.b16 %v1324
          %v1460 = vunpack.c.l.b16 %v1325
          %v1461 = vunpack.c.l.b16 %v1326
          %v1462 = vunpack.c.l.b16 %v1327
          %v1463 = vunpack.c.l.b16 %v1328
          %v1464 = vunpack.c.l.b16 %v1329
          %v1465 = vunpack.c.l.b16 %v1330
          %v1466 = vunpack.c.l.b16 %v1331
          %v1467 = vunpack.c.l.b16 %v1332
          %v1468 = vunpack.c.l.b16 %v1333
          %v1469 = vunpack.c.l.b16 %v1334
          %v1470 = vunpack.c.l.b16 %v1335
          %v1471 = vunpack.c.l.b16 %v1336
          %v1472 = vunpack.c.l.b16 %v1337
          %v1473 = vunpack.c.l.b16 %v1338
          %v1474 = vunpack.c.l.b16 %v1339
          %v1475 = vunpack.c.l.b16 %v1340
          %v1476 = vunpack.c.l.b16 %v1341
          %v1477 = vunpack.c.l.b16 %v1342
          %v1478 = vunpack.c.l.b16 %v1343
          %v1479 = vunpack.c.l.b16 %v1344
          %v1480 = vunpack.c.l.b16 %v1345
          %v1481 = vunpack.c.l.b16 %v1346
          %v1482 = vunpack.c.l.b16 %v1347
          %v1483 = vunpack.c.l.b16 %v1348
          %v1484 = vunpack.c.l.b16 %v1349
          %v1485 = vunpack.c.l.b16 %v1350
          %v1486 = vunpack.c.l.b16 %v1351
          %v1487 = vunpack.c.l.b16 %v1352
          %v1488 = vunpack.c.l.b16 %v1353
          %v1489 = vunpack.c.l.b16 %v1354
          %v1490 = vunpack.c.l.b16 %v1355
          %v1491 = vunpack.c.l.b16 %v1356
          %v1492 = vunpack.c.l.b16 %v1357
          %v1493 = vunpack.c.l.b16 %v1358
          %v1494 = vunpack.c.l.b16 %v1359
          %v1495 = vunpack.c.l.b16 %v1360
          %v1496 = vpack.c.b16 %v1433, %v1432
          %v1497 = vpack.c.b16 %v1435, %v1434
          %v1498 = vpack.c.b16 %v1437, %v1436
          %v1499 = vpack.c.b16 %v1439, %v1438
          %v1500 = vpack.c.b16 %v1441, %v1440
          %v1501 = vpack.c.b16 %v1443, %v1442
          %v1502 = vpack.c.b16 %v1445, %v1444
          %v1503 = vpack.c.b16 %v1447, %v1446
          %v1504 = vpack.c.b16 %v1449, %v1448
          %v1505 = vpack.c.b16 %v1451, %v1450
          %v1506 = vpack.c.b16 %v1453, %v1452
          %v1507 = vpack.c.b16 %v1455, %v1454
          %v1508 = vpack.c.b16 %v1457, %v1456
          %v1509 = vpack.c.b16 %v1459, %v1458
          %v1510 = vpack.c.b16 %v1461, %v1460
          %v1511 = vpack.c.b16 %v1463, %v1462
          %v1512 = vpack.c.b16 %v1465, %v1464
          %v1513 = vpack.c.b16 %v1467, %v1466
          %v1514 = vpack.c.b16 %v1469, %v1468
          %v1515 = vpack.c.b16 %v1471, %v1470
          %v1516 = vpack.c.b16 %v1473, %v1472
          %v1517 = vpack.c.b16 %v1475, %v1474
          %v1518 = vpack.c.b16 %v1477, %v1476
          %v1519 = vpack.c.b16 %v1479, %v1478
          %v1520 = vpack.c.b16 %v1481, %v1480
          %v1521 = vpack.c.b16 %v1483, %v1482
          %v1522 = vpack.c.b16 %v1485, %v1484
          %v1523 = vpack.c.b16 %v1487, %v1486
          %v1524 = vpack.c.b16 %v1489, %v1488
          %v1525 = vpack.c.b16 %v1491, %v1490
          %v1526 = vpack.c.b16 %v1493, %v1492
          %v1527 = vpack.c.b16 %v1495, %v1494
          %1560 = vmatprep.subr.bf16.mxu0 0
          %1561 = vmatpush1.bf16.msra.mxu0 %v1496
          %1562 = vmatprep.subr.bf16.mxu0 0
          %1563 = vmatpush1.bf16.msra.mxu0 %v1497
          %1564 = vmatprep.subr.bf16.mxu0 0
          %1565 = vmatpush1.bf16.msra.mxu0 %v1498
          %1566 = vmatprep.subr.bf16.mxu0 0
          %1567 = vmatpush1.bf16.msra.mxu0 %v1499
          %1568 = vmatprep.subr.bf16.mxu0 0
          %1569 = vmatpush1.bf16.msra.mxu0 %v1500
          %1570 = vmatprep.subr.bf16.mxu0 0
          %1571 = vmatpush1.bf16.msra.mxu0 %v1501
          %1572 = vmatprep.subr.bf16.mxu0 0
          %1573 = vmatpush1.bf16.msra.mxu0 %v1502
          %1574 = vmatprep.subr.bf16.mxu0 0
          %1575 = vmatpush1.bf16.msra.mxu0 %v1503
          %1576 = vmatprep.subr.bf16.mxu0 0
          %1577 = vmatpush1.bf16.msra.mxu0 %v1504
          %1578 = vmatprep.subr.bf16.mxu0 0
          %1579 = vmatpush1.bf16.msra.mxu0 %v1505
          %1580 = vmatprep.subr.bf16.mxu0 0
          %1581 = vmatpush1.bf16.msra.mxu0 %v1506
          %1582 = vmatprep.subr.bf16.mxu0 0
          %1583 = vmatpush1.bf16.msra.mxu0 %v1507
          %1584 = vmatprep.subr.bf16.mxu0 0
          %1585 = vmatpush1.bf16.msra.mxu0 %v1508
          %1586 = vmatprep.subr.bf16.mxu0 0
          %1587 = vmatpush1.bf16.msra.mxu0 %v1509
          %1588 = vmatprep.subr.bf16.mxu0 0
          %1589 = vmatpush1.bf16.msra.mxu0 %v1510
          %1590 = vmatprep.subr.bf16.mxu0 0
          %1591 = vmatpush1.bf16.msra.mxu0 %v1511
          %1592 = vmatprep.mubr.bf16.mxu0 %v1294
          %1593 = vmatmul.mubr.bf16.gmra.mrb[0].mxu0 %v1293
          %v1594 = vpop.f32.mrb[0].mxu0
          %v1595 = vadd.f32 %v1366, %v1594
          %v1596 = vpop.f32.mrb[0].mxu0
          %v1597 = vpop.f32.mrb[0].mxu0
          %v1598 = vpop.f32.mrb[0].mxu0
          %1599 = vdwg.mxu0
          %1600 = vmatprep.subr.bf16.mxu0 0
          %1601 = vmatpush1.bf16.msra.mxu0 %v1512
          %1602 = vmatprep.subr.bf16.mxu0 0
          %1603 = vmatpush1.bf16.msra.mxu0 %v1513
          %1604 = vmatprep.subr.bf16.mxu0 0
          %1605 = vmatpush1.bf16.msra.mxu0 %v1514
          %1606 = vmatprep.subr.bf16.mxu0 0
          %1607 = vmatpush1.bf16.msra.mxu0 %v1515
          %1608 = vmatprep.subr.bf16.mxu0 0
          %1609 = vmatpush1.bf16.msra.mxu0 %v1516
          %1610 = vmatprep.subr.bf16.mxu0 0
          %1611 = vmatpush1.bf16.msra.mxu0 %v1517
          %1612 = vmatprep.subr.bf16.mxu0 0
          %1613 = vmatpush1.bf16.msra.mxu0 %v1518
          %1614 = vmatprep.subr.bf16.mxu0 0
          %1615 = vmatpush1.bf16.msra.mxu0 %v1519
          %1616 = vmatprep.subr.bf16.mxu0 0
          %1617 = vmatpush1.bf16.msra.mxu0 %v1520
          %1618 = vmatprep.subr.bf16.mxu0 0
          %1619 = vmatpush1.bf16.msra.mxu0 %v1521
          %1620 = vmatprep.subr.bf16.mxu0 0
          %1621 = vmatpush1.bf16.msra.mxu0 %v1522
          %1622 = vmatprep.subr.bf16.mxu0 0
          %1623 = vmatpush1.bf16.msra.mxu0 %v1523
          %1624 = vmatprep.subr.bf16.mxu0 0
          %1625 = vmatpush1.bf16.msra.mxu0 %v1524
          %1626 = vmatprep.subr.bf16.mxu0 0
          %1627 = vmatpush1.bf16.msra.mxu0 %v1525
          %1628 = vmatprep.subr.bf16.mxu0 0
          %1629 = vmatpush1.bf16.msra.mxu0 %v1526
          %1630 = vmatprep.subr.bf16.mxu0 0
          %1631 = vmatpush1.bf16.msra.mxu0 %v1527
          %1632 = vmatprep.mubr.bf16.mxu0 %v1296
          %1633 = vmatmul.mubr.bf16.gmra.mrb[0].mxu0 %v1295
          %v1634 = vpop.f32.mrb[0].mxu0
          %v1635 = vadd.f32 %v1595, %v1634
          %v1636 = vpop.f32.mrb[0].mxu0
          %v1637 = vpop.f32.mrb[0].mxu0
          %v1638 = vpop.f32.mrb[0].mxu0
          %1639 = vdwg.mxu0
          %1640 = vst [vmem:[#allocation3] sm:$0x3] %v1635
        $region48: #{mario_forward.3} parent=39 // pred_fallthru
          _
        // Predicated region
        $region49: #{mario_forward.3} parent=39 // pred_check
          %p1641 = pneg %p145
        $region50: #{mario_forward.3} parent=39 // pred_check_branch
          %1643 = sbr.rel (%p1641) target = $region52
        $region51: #{mario_forward.3} parent=39 // pred_region
          %s1645 = ssub.s32 32, 32
          %1646 = vsyncadd [#allocation4], %s1645
          %s1648 = sshll.u32 [#allocation3], 4
          %s1649 = int_to_ptr.vmem [resolvable:$true] %s1648
          %1651 = dma.vmem_to_hbm [thread:$0]  %s1649, 32, %s5, [#allocation4]
        $region52: #{mario_forward.3} parent=39 // pred_fallthru
          _
        // Predicated region
        $region53: #{mario_forward.3} parent=39 // pred_check
          %p1652 = pneg %p145
        $region54: #{mario_forward.3} parent=39 // pred_check_branch
          %1654 = sbr.rel (%p1652) target = $region56
        $region55: #{mario_forward.3} parent=39 // pred_region
          %1655 = dma.done [#allocation4], 32
        $region56: #{mario_forward.3} parent=39 // pred_fallthru
          _
      $region40: #{mario_forward.3} parent=5 // pred_fallthru
        _
      %p1656 = scmp.le.s32.totalorder 2, %s12
      // Predicated region
      $region57: #{mario_forward.3} parent=5 // pred_check
        %p1657 = pneg %p1656
      $region58: #{mario_forward.3} parent=5 // pred_check_branch
        %1659 = sbr.rel (%p1657) target = $region60
      $region59: #{mario_forward.3} parent=5 // pred_region
        %s1660 = ssub.s32 %s12, 2
      $region60: #{mario_forward.3} parent=5 // pred_fallthru
        _
    $region6: #{mario_forward.3} parent=1 // loop_footer
      %s16 = sadd.s32 1, %s12
    $region7: #{mario_forward.3} parent=1 // loop_footer_branch
      %11 = sbr.rel target = $region3
    $region8: #{mario_forward.3} parent=1 // loop_exit
      _
    %1661 = vsyncpa [#allocation4], 1
    %s1662 = scalar_lea.sflag [#allocation4], 1
    %1663 = vsyncpa %s1662, 1

// kernel: mario_forward.2
$region0: #{mario_forward.2}
  #allocation0 [shape = 'u32[]', space=smem, size = 0x4, offset = 0x4, fixed_abs, tag = 'smem constant byte address 0x4 - core index']
  #allocation1 [shape = 'u32[144,128]{1,0:T(1,128)}', space=vmem, size = 0x12000, scoped, tag = 'internal scratch']
  #allocation2 [shape = 'bf16[400,32]{1,0:T(16,128)(2,1)}', space=vmem, size = 0x19000, scoped, tag = 'scratch operand']
  #allocation3 [shape = 'bf16[81,512]{1,0:T(8,128)(2,1)}', space=vmem, size = 0x16000, scoped, tag = 'scratch operand']
  #allocation4 [shape = 'bf16[81,64]{1,0:T(8,128)(2,1)}', space=vmem, size = 0x5800, scoped, tag = 'scratch operand']
  #allocation5 [shape = 'bf16[49,576]{1,0:T(8,128)(2,1)}', space=vmem, size = 0x11800, scoped, tag = 'scratch operand']
  %s0 = inlined_call_operand.vmem [shape: bf16[2,400,256], index: 0, kind: input, shape index: {}]
  %s1 = inlined_call_operand.vmem [shape: bf16[256,32], index: 1, kind: input, shape index: {}]
  %s2 = inlined_call_operand.vmem [shape: f32[1,32], index: 2, kind: input, shape index: {}]
  %s3 = inlined_call_operand.vmem [shape: bf16[512,64], index: 3, kind: input, shape index: {}]
  %s4 = inlined_call_operand.vmem [shape: f32[1,64], index: 4, kind: input, shape index: {}]
  %s5 = inlined_call_operand.vmem [shape: bf16[576,64], index: 5, kind: input, shape index: {}]
  %s6 = inlined_call_operand.vmem [shape: f32[1,64], index: 6, kind: input, shape index: {}]
  %s7 = inlined_call_operand.vmem [shape: bf16[2,56,64], index: 7, kind: output, shape index: {}]
  %s8 = sld [smem:[#allocation0]]
  $region61: #{mario_forward.2} parent=0
    _
  %s10 = ssub.s32 1, %s8
  %s11 = scalar_select 0, %s10, %s8
  loop: start=0, step=1, limit=4
  $region2: #{mario_forward.2} parent=0 // loop_pre_header
    _
  $region3: #{mario_forward.2} parent=0 // loop_header
    %s13 = sphi 0, %s17
    %p14 = scmp.ge.s32.totalorder %s13, 4
    %s23 = sphi 0, %s25
    %s26 = sphi 0, %s23
    %s27 = sphi 0, %s26
    %s43 = sphi 0, %s27
    %s47 = sphi 0, %s47
    %s49 = sphi 0, %s47
    %s50 = sphi 0, %s49
    %s64 = sphi 0, %s50
    %s68 = sphi 0, %s68
    %s70 = sphi 0, %s68
    %s71 = sphi 0, %s70
    %s85 = sphi 0, %s71
    %s89 = sphi 0, %s89
    %s91 = sphi 0, %s89
    %s92 = sphi 0, %s91
    %s106 = sphi 0, %s92
    %s110 = sphi 0, %s110
    %s112 = sphi 0, %s110
    %s113 = sphi 0, %s112
    %s127 = sphi 0, %s113
    %s131 = sphi 0, %s131
    %s133 = sphi 0, %s131
    %s134 = sphi 0, %s133
    %s148 = sphi 0, %s134
    %s152 = sphi 0, %s152
    %s154 = sphi 0, %s152
    %s155 = sphi 0, %s154
    %s169 = sphi 0, %s155
    %s175 = sphi 0, %s177
    %s178 = sphi 0, %s175
    %s179 = sphi 0, %s178
    %s195 = sphi 0, %s179
  $region4: #{mario_forward.2} parent=0 // loop_header_branch
    %16 = sbr.rel (%p14) target = $region8
  $region5: #{mario_forward.2} parent=0 // loop_body
    %s18 = ssub.s32 %s13, 1
    %s19 = ssub.s32 %s13, 2
    %s20 = sadd.s32 %s13, 1
    %s21 = ssub.s32 %s13, %s20
    %p22 = scmp.eq.s32.totalorder %s21, 0
    %s24 = sadd.s32 %s23, 1
    %s25 = scalar_select %p22, %s23, %s24
    %p28 = pneg %p22
    %p29 = scmp.eq.s32.totalorder %s13, 1
    %p30 = por %p28, %p29
    %p31 = scmp.ne.s32.totalorder %s23, %s26
    %p32 = scmp.eq.s32.totalorder %s13, 0
    %p33 = por %p31, %p32
    %p34 = scmp.ne.s32.totalorder %s23, %s26
    %p35 = scmp.eq.s32.totalorder %s18, 1
    %p36 = por %p34, %p35
    %p37 = scmp.ne.s32.totalorder %s26, %s27
    %p38 = scmp.eq.s32.totalorder %s18, 0
    %p39 = por %p37, %p38
    %p40 = scmp.ne.s32.totalorder %s26, %s27
    %p41 = scmp.eq.s32.totalorder %s19, 1
    %p42 = por %p40, %p41
    %p44 = scmp.ne.s32.totalorder %s27, %s43
    %p45 = scmp.eq.s32.totalorder %s19, 0
    %p46 = por %p44, %p45
    %s48 = sadd.s32 %s47, 1
    %p51 = scmp.eq.s32.totalorder %s13, 1
    %p52 = scmp.ne.s32.totalorder %s47, %s49
    %p53 = scmp.eq.s32.totalorder %s13, 0
    %p54 = por %p52, %p53
    %p55 = scmp.ne.s32.totalorder %s47, %s49
    %p56 = scmp.eq.s32.totalorder %s18, 1
    %p57 = por %p55, %p56
    %p58 = scmp.ne.s32.totalorder %s49, %s50
    %p59 = scmp.eq.s32.totalorder %s18, 0
    %p60 = por %p58, %p59
    %p61 = scmp.ne.s32.totalorder %s49, %s50
    %p62 = scmp.eq.s32.totalorder %s19, 1
    %p63 = por %p61, %p62
    %p65 = scmp.ne.s32.totalorder %s50, %s64
    %p66 = scmp.eq.s32.totalorder %s19, 0
    %p67 = por %p65, %p66
    %s69 = sadd.s32 %s68, 1
    %p72 = scmp.eq.s32.totalorder %s13, 1
    %p73 = scmp.ne.s32.totalorder %s68, %s70
    %p74 = scmp.eq.s32.totalorder %s13, 0
    %p75 = por %p73, %p74
    %p76 = scmp.ne.s32.totalorder %s68, %s70
    %p77 = scmp.eq.s32.totalorder %s18, 1
    %p78 = por %p76, %p77
    %p79 = scmp.ne.s32.totalorder %s70, %s71
    %p80 = scmp.eq.s32.totalorder %s18, 0
    %p81 = por %p79, %p80
    %p82 = scmp.ne.s32.totalorder %s70, %s71
    %p83 = scmp.eq.s32.totalorder %s19, 1
    %p84 = por %p82, %p83
    %p86 = scmp.ne.s32.totalorder %s71, %s85
    %p87 = scmp.eq.s32.totalorder %s19, 0
    %p88 = por %p86, %p87
    %s90 = sadd.s32 %s89, 1
    %p93 = scmp.eq.s32.totalorder %s13, 1
    %p94 = scmp.ne.s32.totalorder %s89, %s91
    %p95 = scmp.eq.s32.totalorder %s13, 0
    %p96 = por %p94, %p95
    %p97 = scmp.ne.s32.totalorder %s89, %s91
    %p98 = scmp.eq.s32.totalorder %s18, 1
    %p99 = por %p97, %p98
    %p100 = scmp.ne.s32.totalorder %s91, %s92
    %p101 = scmp.eq.s32.totalorder %s18, 0
    %p102 = por %p100, %p101
    %p103 = scmp.ne.s32.totalorder %s91, %s92
    %p104 = scmp.eq.s32.totalorder %s19, 1
    %p105 = por %p103, %p104
    %p107 = scmp.ne.s32.totalorder %s92, %s106
    %p108 = scmp.eq.s32.totalorder %s19, 0
    %p109 = por %p107, %p108
    %s111 = sadd.s32 %s110, 1
    %p114 = scmp.eq.s32.totalorder %s13, 1
    %p115 = scmp.ne.s32.totalorder %s110, %s112
    %p116 = scmp.eq.s32.totalorder %s13, 0
    %p117 = por %p115, %p116
    %p118 = scmp.ne.s32.totalorder %s110, %s112
    %p119 = scmp.eq.s32.totalorder %s18, 1
    %p120 = por %p118, %p119
    %p121 = scmp.ne.s32.totalorder %s112, %s113
    %p122 = scmp.eq.s32.totalorder %s18, 0
    %p123 = por %p121, %p122
    %p124 = scmp.ne.s32.totalorder %s112, %s113
    %p125 = scmp.eq.s32.totalorder %s19, 1
    %p126 = por %p124, %p125
    %p128 = scmp.ne.s32.totalorder %s113, %s127
    %p129 = scmp.eq.s32.totalorder %s19, 0
    %p130 = por %p128, %p129
    %s132 = sadd.s32 %s131, 1
    %p135 = scmp.eq.s32.totalorder %s13, 1
    %p136 = scmp.ne.s32.totalorder %s131, %s133
    %p137 = scmp.eq.s32.totalorder %s13, 0
    %p138 = por %p136, %p137
    %p139 = scmp.ne.s32.totalorder %s131, %s133
    %p140 = scmp.eq.s32.totalorder %s18, 1
    %p141 = por %p139, %p140
    %p142 = scmp.ne.s32.totalorder %s133, %s134
    %p143 = scmp.eq.s32.totalorder %s18, 0
    %p144 = por %p142, %p143
    %p145 = scmp.ne.s32.totalorder %s133, %s134
    %p146 = scmp.eq.s32.totalorder %s19, 1
    %p147 = por %p145, %p146
    %p149 = scmp.ne.s32.totalorder %s134, %s148
    %p150 = scmp.eq.s32.totalorder %s19, 0
    %p151 = por %p149, %p150
    %s153 = sadd.s32 %s152, 1
    %p156 = scmp.eq.s32.totalorder %s13, 1
    %p157 = scmp.ne.s32.totalorder %s152, %s154
    %p158 = scmp.eq.s32.totalorder %s13, 0
    %p159 = por %p157, %p158
    %p160 = scmp.ne.s32.totalorder %s152, %s154
    %p161 = scmp.eq.s32.totalorder %s18, 1
    %p162 = por %p160, %p161
    %p163 = scmp.ne.s32.totalorder %s154, %s155
    %p164 = scmp.eq.s32.totalorder %s18, 0
    %p165 = por %p163, %p164
    %p166 = scmp.ne.s32.totalorder %s154, %s155
    %p167 = scmp.eq.s32.totalorder %s19, 1
    %p168 = por %p166, %p167
    %p170 = scmp.ne.s32.totalorder %s155, %s169
    %p171 = scmp.eq.s32.totalorder %s19, 0
    %p172 = por %p170, %p171
    %s173 = ssub.s32 %s13, %s20
    %p174 = scmp.eq.s32.totalorder %s173, 0
    %s176 = sadd.s32 %s175, 1
    %s177 = scalar_select %p174, %s175, %s176
    %p180 = pneg %p174
    %p181 = scmp.eq.s32.totalorder %s13, 1
    %p182 = por %p180, %p181
    %p183 = scmp.ne.s32.totalorder %s175, %s178
    %p184 = scmp.eq.s32.totalorder %s13, 0
    %p185 = por %p183, %p184
    %p186 = scmp.ne.s32.totalorder %s175, %s178
    %p187 = scmp.eq.s32.totalorder %s18, 1
    %p188 = por %p186, %p187
    %p189 = scmp.ne.s32.totalorder %s178, %s179
    %p190 = scmp.eq.s32.totalorder %s18, 0
    %p191 = por %p189, %p190
    %p192 = scmp.ne.s32.totalorder %s178, %s179
    %p193 = scmp.eq.s32.totalorder %s19, 1
    %p194 = por %p192, %p193
    %p196 = scmp.ne.s32.totalorder %s179, %s195
    %p197 = scmp.eq.s32.totalorder %s19, 0
    %p198 = por %p196, %p197
    %p199 = scmp.le.s32.totalorder 1, %s13
    %p200 = scmp.lt.s32.totalorder %s13, 3
    %p201 = pnand %p199, %p200
    %p202 = pneg %p201
    // Predicated region
    $region9: #{mario_forward.2} parent=5 // pred_check
      _
    $region10: #{mario_forward.2} parent=5 // pred_check_branch
      %204 = sbr.rel (%p201) target = $region12
    $region11: #{mario_forward.2} parent=5 // pred_region
      %s205 = ssub.s32 %s13, 1
      // Predicated region
      $region13: #{mario_forward.2} parent=11 // pred_check
        %p206 = pneg %p60
      $region14: #{mario_forward.2} parent=11 // pred_check_branch
        %208 = sbr.rel (%p206) target = $region16
      $region15: #{mario_forward.2} parent=11 // pred_region
        _
      $region16: #{mario_forward.2} parent=11 // pred_fallthru
        _
      // Predicated region
      $region17: #{mario_forward.2} parent=11 // pred_check
        %p209 = pneg %p81
      $region18: #{mario_forward.2} parent=11 // pred_check_branch
        %211 = sbr.rel (%p209) target = $region20
      $region19: #{mario_forward.2} parent=11 // pred_region
        _
      $region20: #{mario_forward.2} parent=11 // pred_fallthru
        _
      // Predicated region
      $region21: #{mario_forward.2} parent=11 // pred_check
        %p212 = pneg %p102
      $region22: #{mario_forward.2} parent=11 // pred_check_branch
        %214 = sbr.rel (%p212) target = $region24
      $region23: #{mario_forward.2} parent=11 // pred_region
        _
      $region24: #{mario_forward.2} parent=11 // pred_fallthru
        _
      // Predicated region
      $region25: #{mario_forward.2} parent=11 // pred_check
        %p215 = pneg %p123
      $region26: #{mario_forward.2} parent=11 // pred_check_branch
        %217 = sbr.rel (%p215) target = $region28
      $region27: #{mario_forward.2} parent=11 // pred_region
        _
      $region28: #{mario_forward.2} parent=11 // pred_fallthru
        _
      // Predicated region
      $region29: #{mario_forward.2} parent=11 // pred_check
        %p218 = pneg %p144
      $region30: #{mario_forward.2} parent=11 // pred_check_branch
        %220 = sbr.rel (%p218) target = $region32
      $region31: #{mario_forward.2} parent=11 // pred_region
        _
      $region32: #{mario_forward.2} parent=11 // pred_fallthru
        _
      // Predicated region
      $region33: #{mario_forward.2} parent=11 // pred_check
        %p221 = pneg %p165
      $region34: #{mario_forward.2} parent=11 // pred_check_branch
        %223 = sbr.rel (%p221) target = $region36
      $region35: #{mario_forward.2} parent=11 // pred_region
        _
      $region36: #{mario_forward.2} parent=11 // pred_fallthru
        _
    $region12: #{mario_forward.2} parent=5 // pred_fallthru
      _
    %p224 = scmp.lt.s32.totalorder %s13, 2
    // Predicated region
    $region37: #{mario_forward.2} parent=5 // pred_check
      %p225 = pneg %p224
    $region38: #{mario_forward.2} parent=5 // pred_check_branch
      %227 = sbr.rel (%p225) target = $region40
    $region39: #{mario_forward.2} parent=5 // pred_region
      // Predicated region
      $region41: #{mario_forward.2} parent=39 // pred_check
        %p228 = pneg %p33
      $region42: #{mario_forward.2} parent=39 // pred_check_branch
        %230 = sbr.rel (%p228) target = $region44
      $region43: #{mario_forward.2} parent=39 // pred_region
        %p231 = scmp.lt.s32.totalorder %s13, 1
        %s232 = scalar_select %p231, %s13, 1
        %s233 = smul.addr %s232, 100
        %s234 = smul.addr %s233, 4
        %s235 = scalar_lea.vmem %s0, %s234
      $region44: #{mario_forward.2} parent=39 // pred_fallthru
        _
    $region40: #{mario_forward.2} parent=5 // pred_fallthru
      _
    %p236 = scmp.le.s32.totalorder 1, %s13
    %p237 = scmp.lt.s32.totalorder %s13, 3
    %p238 = pnand %p236, %p237
    %p239 = pneg %p238
    // Predicated region
    $region45: #{mario_forward.2} parent=5 // pred_check
      _
    $region46: #{mario_forward.2} parent=5 // pred_check_branch
      %241 = sbr.rel (%p238) target = $region48
    $region47: #{mario_forward.2} parent=5 // pred_region
      %s242 = ssub.s32 %s13, 1
      %p243 = scmp.lt.s32.totalorder %s18, 1
      %s244 = scalar_select %p243, %s18, 1
      %s245 = smul.addr %s244, 100
      %s246 = smul.addr %s245, 4
      %s247 = scalar_lea.vmem %s0, %s246
      %p248 = pneg %p39
      %p249 = pneg %p36
      %p250 = pneg %p60
      %p251 = pneg %p57
      %p252 = pneg %p81
      %p253 = pneg %p78
      %p254 = pneg %p102
      %p255 = pneg %p99
      %p256 = pneg %p123
      %p257 = pneg %p120
      %p258 = pneg %p144
      %p259 = pneg %p141
      %p260 = pneg %p165
      %p261 = pneg %p162
      %p262 = pneg %p191
      %p263 = pneg %p188
      %p264 = scmp.lt.s32.totalorder %s18, 1
      %s265 = scalar_select %p264, %s18, 1
      %s266 = smul.addr %s265, 7
      %s267 = smul.addr %s266, 4
      %s268 = scalar_lea.vmem %s7, %s267
      %p269 = scmp.lt.s32.totalorder %s18, 1
      %s270 = scalar_select %p269, %s18, 1
      %s271 = smul.addr %s270, 100
      %s272 = smul.addr %s271, 4
      %s273 = scalar_lea.vmem %s0, %s272
      %p274 = scmp.lt.s32.totalorder %s18, 1
      %s275 = scalar_select %p274, %s18, 1
      %s276 = smul.addr %s275, 7
      %s277 = smul.addr %s276, 4
      %s278 = scalar_lea.vmem %s7, %s277
      %v280 = vld [vmem:[%s273] sm:$0xff]
      %v281 = vld [vmem:[%s273 + $0x8] sm:$0xff]
      %v282 = vld [vmem:[%s273 + $0x10] sm:$0xff]
      %v283 = vld [vmem:[%s273 + $0x18] sm:$0xff]
      %v284 = vld [vmem:[%s273 + $0x20] sm:$0xff]
      %v285 = vld [vmem:[%s273 + $0x28] sm:$0xff]
      %v286 = vld [vmem:[%s273 + $0x30] sm:$0xff]
      %v287 = vld [vmem:[%s273 + $0x38] sm:$0xff]
      %v288 = vld [vmem:[%s273 + $0x40] sm:$0xff]
      %v289 = vld [vmem:[%s273 + $0x48] sm:$0xff]
      %v290 = vld [vmem:[%s273 + $0x50] sm:$0xff]
      %v291 = vld [vmem:[%s273 + $0x58] sm:$0xff]
      %v292 = vld [vmem:[%s273 + $0x60] sm:$0xff]
      %v293 = vld [vmem:[%s273 + $0x68] sm:$0xff]
      %v294 = vld [vmem:[%s273 + $0x70] sm:$0xff]
      %v295 = vld [vmem:[%s273 + $0x78] sm:$0xff]
      %v296 = vld [vmem:[%s273 + $0x80] sm:$0xff]
      %v297 = vld [vmem:[%s273 + $0x88] sm:$0xff]
      %v298 = vld [vmem:[%s273 + $0x90] sm:$0xff]
      %v299 = vld [vmem:[%s273 + $0x98] sm:$0xff]
      %v300 = vld [vmem:[%s273 + $0xa0] sm:$0xff]
      %v301 = vld [vmem:[%s273 + $0xa8] sm:$0xff]
      %v302 = vld [vmem:[%s273 + $0xb0] sm:$0xff]
      %v303 = vld [vmem:[%s273 + $0xb8] sm:$0xff]
      %v304 = vld [vmem:[%s273 + $0xc0] sm:$0xff]
      %v305 = vld [vmem:[%s273 + $0xc8] sm:$0xff]
      %v306 = vld [vmem:[%s273 + $0xd0] sm:$0xff]
      %v307 = vld [vmem:[%s273 + $0xd8] sm:$0xff]
      %v308 = vld [vmem:[%s273 + $0xe0] sm:$0xff]
      %v309 = vld [vmem:[%s273 + $0xe8] sm:$0xff]
      %v310 = vld [vmem:[%s273 + $0xf0] sm:$0xff]
      %v311 = vld [vmem:[%s273 + $0xf8] sm:$0xff]
      %v312 = vld [vmem:[%s273 + $0x100] sm:$0xff]
      %v313 = vld [vmem:[%s273 + $0x108] sm:$0xff]
      %v314 = vld [vmem:[%s273 + $0x110] sm:$0xff]
      %v315 = vld [vmem:[%s273 + $0x118] sm:$0xff]
      %v316 = vld [vmem:[%s273 + $0x120] sm:$0xff]
      %v317 = vld [vmem:[%s273 + $0x128] sm:$0xff]
      %v318 = vld [vmem:[%s273 + $0x130] sm:$0xff]
      %v319 = vld [vmem:[%s273 + $0x138] sm:$0xff]
      %v320 = vld [vmem:[%s273 + $0x140] sm:$0xff]
      %v321 = vld [vmem:[%s273 + $0x148] sm:$0xff]
      %v322 = vld [vmem:[%s273 + $0x150] sm:$0xff]
      %v323 = vld [vmem:[%s273 + $0x158] sm:$0xff]
      %v324 = vld [vmem:[%s273 + $0x160] sm:$0xff]
      %v325 = vld [vmem:[%s273 + $0x168] sm:$0xff]
      %v326 = vld [vmem:[%s273 + $0x170] sm:$0xff]
      %v327 = vld [vmem:[%s273 + $0x178] sm:$0xff]
      %v328 = vld [vmem:[%s273 + $0x180] sm:$0xff]
      %v329 = vld [vmem:[%s273 + $0x188] sm:$0xff]
      %v330 = vld [vmem:[%s1] sm:$0xf]
      %v331 = vld [vmem:[%s1 + $0x4] sm:$0xf]
      %v332 = vld [vmem:[%s1 + $0x8] sm:$0xf]
      %v333 = vld [vmem:[%s1 + $0xc] sm:$0xf]
      %v334 = vld [vmem:[%s1 + $0x10] sm:$0xf]
      %v335 = vld [vmem:[%s1 + $0x14] sm:$0xf]
      %v336 = vld [vmem:[%s1 + $0x18] sm:$0xf]
      %v337 = vld [vmem:[%s1 + $0x1c] sm:$0xf]
      %v338 = vld [vmem:[%s1 + $0x20] sm:$0xf]
      %v339 = vld [vmem:[%s1 + $0x24] sm:$0xf]
      %v340 = vld [vmem:[%s1 + $0x28] sm:$0xf]
      %v341 = vld [vmem:[%s1 + $0x2c] sm:$0xf]
      %v342 = vld [vmem:[%s1 + $0x30] sm:$0xf]
      %v343 = vld [vmem:[%s1 + $0x34] sm:$0xf]
      %v344 = vld [vmem:[%s1 + $0x38] sm:$0xf]
      %v345 = vld [vmem:[%s1 + $0x3c] sm:$0xf]
      %v346 = vld [vmem:[%s1 + $0x40] sm:$0xf]
      %v347 = vld [vmem:[%s1 + $0x44] sm:$0xf]
      %v348 = vld [vmem:[%s1 + $0x48] sm:$0xf]
      %v349 = vld [vmem:[%s1 + $0x4c] sm:$0xf]
      %v350 = vld [vmem:[%s1 + $0x50] sm:$0xf]
      %v351 = vld [vmem:[%s1 + $0x54] sm:$0xf]
      %v352 = vld [vmem:[%s1 + $0x58] sm:$0xf]
      %v353 = vld [vmem:[%s1 + $0x5c] sm:$0xf]
      %v354 = vld [vmem:[%s1 + $0x60] sm:$0xf]
      %v355 = vld [vmem:[%s1 + $0x64] sm:$0xf]
      %v356 = vld [vmem:[%s1 + $0x68] sm:$0xf]
      %v357 = vld [vmem:[%s1 + $0x6c] sm:$0xf]
      %v358 = vld [vmem:[%s1 + $0x70] sm:$0xf]
      %v359 = vld [vmem:[%s1 + $0x74] sm:$0xf]
      %v360 = vld [vmem:[%s1 + $0x78] sm:$0xf]
      %v361 = vld [vmem:[%s1 + $0x7c] sm:$0xf]
      %v362 = vld [vmem:[%s2] sm:$0x1]
      %v364 = vlaneseq
      %v365 = vshrl.u32 %v364, 7
      %v366 = vsub.s32 0, %v365
      %v367 = vrot.slane %v362, %v366
      %v419 = vunpack.c.l.b16 %v280
      %v420 = vunpack.c.h.b16 %v280
      %v421 = vunpack.c.l.b16 %v281
      %v422 = vunpack.c.h.b16 %v281
      %v423 = vunpack.c.l.b16 %v282
      %v424 = vunpack.c.h.b16 %v282
      %v425 = vunpack.c.l.b16 %v283
      %v426 = vunpack.c.h.b16 %v283
      %v427 = vunpack.c.l.b16 %v284
      %v428 = vunpack.c.h.b16 %v284
      %v429 = vunpack.c.l.b16 %v285
      %v430 = vunpack.c.h.b16 %v285
      %v431 = vunpack.c.l.b16 %v286
      %v432 = vunpack.c.h.b16 %v286
      %v433 = vunpack.c.l.b16 %v287
      %v434 = vunpack.c.h.b16 %v287
      %v435 = vunpack.c.l.b16 %v288
      %v436 = vunpack.c.h.b16 %v288
      %v437 = vunpack.c.l.b16 %v289
      %v438 = vunpack.c.h.b16 %v289
      %v439 = vunpack.c.l.b16 %v290
      %v440 = vunpack.c.h.b16 %v290
      %v441 = vunpack.c.l.b16 %v291
      %v442 = vunpack.c.h.b16 %v291
      %v443 = vunpack.c.l.b16 %v292
      %v444 = vunpack.c.h.b16 %v292
      %v445 = vunpack.c.l.b16 %v293
      %v446 = vunpack.c.h.b16 %v293
      %v447 = vunpack.c.l.b16 %v294
      %v448 = vunpack.c.h.b16 %v294
      %v449 = vunpack.c.l.b16 %v295
      %v450 = vunpack.c.h.b16 %v295
      %v451 = vunpack.c.l.b16 %v296
      %v452 = vunpack.c.h.b16 %v296
      %v453 = vunpack.c.l.b16 %v297
      %v454 = vunpack.c.h.b16 %v297
      %v455 = vunpack.c.l.b16 %v298
      %v456 = vunpack.c.h.b16 %v298
      %v457 = vunpack.c.l.b16 %v299
      %v458 = vunpack.c.h.b16 %v299
      %v459 = vunpack.c.l.b16 %v300
      %v460 = vunpack.c.h.b16 %v300
      %v461 = vunpack.c.l.b16 %v301
      %v462 = vunpack.c.h.b16 %v301
      %v463 = vunpack.c.l.b16 %v302
      %v464 = vunpack.c.h.b16 %v302
      %v465 = vunpack.c.l.b16 %v303
      %v466 = vunpack.c.h.b16 %v303
      %v467 = vunpack.c.l.b16 %v304
      %v468 = vunpack.c.h.b16 %v304
      %v469 = vunpack.c.l.b16 %v305
      %v470 = vunpack.c.h.b16 %v305
      %v471 = vunpack.c.l.b16 %v306
      %v472 = vunpack.c.h.b16 %v306
      %v473 = vunpack.c.l.b16 %v307
      %v474 = vunpack.c.h.b16 %v307
      %v475 = vunpack.c.l.b16 %v308
      %v476 = vunpack.c.h.b16 %v308
      %v477 = vunpack.c.l.b16 %v309
      %v478 = vunpack.c.h.b16 %v309
      %v479 = vunpack.c.l.b16 %v310
      %v480 = vunpack.c.h.b16 %v310
      %v481 = vunpack.c.l.b16 %v311
      %v482 = vunpack.c.h.b16 %v311
      %v483 = vunpack.c.l.b16 %v312
      %v484 = vunpack.c.h.b16 %v312
      %v485 = vunpack.c.l.b16 %v313
      %v486 = vunpack.c.h.b16 %v313
      %v487 = vunpack.c.l.b16 %v314
      %v488 = vunpack.c.h.b16 %v314
      %v489 = vunpack.c.l.b16 %v315
      %v490 = vunpack.c.h.b16 %v315
      %v491 = vunpack.c.l.b16 %v316
      %v492 = vunpack.c.h.b16 %v316
      %v493 = vunpack.c.l.b16 %v317
      %v494 = vunpack.c.h.b16 %v317
      %v495 = vunpack.c.l.b16 %v318
      %v496 = vunpack.c.h.b16 %v318
      %v497 = vunpack.c.l.b16 %v319
      %v498 = vunpack.c.h.b16 %v319
      %v499 = vunpack.c.l.b16 %v320
      %v500 = vunpack.c.h.b16 %v320
      %v501 = vunpack.c.l.b16 %v321
      %v502 = vunpack.c.h.b16 %v321
      %v503 = vunpack.c.l.b16 %v322
      %v504 = vunpack.c.h.b16 %v322
      %v505 = vunpack.c.l.b16 %v323
      %v506 = vunpack.c.h.b16 %v323
      %v507 = vunpack.c.l.b16 %v324
      %v508 = vunpack.c.h.b16 %v324
      %v509 = vunpack.c.l.b16 %v325
      %v510 = vunpack.c.h.b16 %v325
      %v511 = vunpack.c.l.b16 %v326
      %v512 = vunpack.c.h.b16 %v326
      %v513 = vunpack.c.l.b16 %v327
      %v514 = vunpack.c.h.b16 %v327
      %v515 = vunpack.c.l.b16 %v328
      %v516 = vunpack.c.h.b16 %v328
      %v517 = vunpack.c.l.b16 %v329
      %v518 = vunpack.c.h.b16 %v329
      %v519 = vpack.c.b16 %v421, %v419
      %v520 = vpack.c.b16 %v422, %v420
      %v521 = vpack.c.b16 %v425, %v423
      %v522 = vpack.c.b16 %v426, %v424
      %v523 = vpack.c.b16 %v429, %v427
      %v524 = vpack.c.b16 %v430, %v428
      %v525 = vpack.c.b16 %v433, %v431
      %v526 = vpack.c.b16 %v434, %v432
      %v527 = vpack.c.b16 %v437, %v435
      %v528 = vpack.c.b16 %v438, %v436
      %v529 = vpack.c.b16 %v441, %v439
      %v530 = vpack.c.b16 %v442, %v440
      %v531 = vpack.c.b16 %v445, %v443
      %v532 = vpack.c.b16 %v446, %v444
      %v533 = vpack.c.b16 %v449, %v447
      %v534 = vpack.c.b16 %v450, %v448
      %v535 = vpack.c.b16 %v453, %v451
      %v536 = vpack.c.b16 %v454, %v452
      %v537 = vpack.c.b16 %v457, %v455
      %v538 = vpack.c.b16 %v458, %v456
      %v539 = vpack.c.b16 %v461, %v459
      %v540 = vpack.c.b16 %v462, %v460
      %v541 = vpack.c.b16 %v465, %v463
      %v542 = vpack.c.b16 %v466, %v464
      %v543 = vpack.c.b16 %v469, %v467
      %v544 = vpack.c.b16 %v470, %v468
      %v545 = vpack.c.b16 %v473, %v471
      %v546 = vpack.c.b16 %v474, %v472
      %v547 = vpack.c.b16 %v477, %v475
      %v548 = vpack.c.b16 %v478, %v476
      %v549 = vpack.c.b16 %v481, %v479
      %v550 = vpack.c.b16 %v482, %v480
      %v551 = vpack.c.b16 %v485, %v483
      %v552 = vpack.c.b16 %v486, %v484
      %v553 = vpack.c.b16 %v489, %v487
      %v554 = vpack.c.b16 %v490, %v488
      %v555 = vpack.c.b16 %v493, %v491
      %v556 = vpack.c.b16 %v494, %v492
      %v557 = vpack.c.b16 %v497, %v495
      %v558 = vpack.c.b16 %v498, %v496
      %v559 = vpack.c.b16 %v501, %v499
      %v560 = vpack.c.b16 %v502, %v500
      %v561 = vpack.c.b16 %v505, %v503
      %v562 = vpack.c.b16 %v506, %v504
      %v563 = vpack.c.b16 %v509, %v507
      %v564 = vpack.c.b16 %v510, %v508
      %v565 = vpack.c.b16 %v513, %v511
      %v566 = vpack.c.b16 %v514, %v512
      %v567 = vpack.c.b16 %v517, %v515
      %v568 = vpack.c.b16 %v518, %v516
      %v651 = vunpack.c.l.b16 %v330
      %v652 = vunpack.c.l.b16 %v331
      %v653 = vunpack.c.l.b16 %v332
      %v654 = vunpack.c.l.b16 %v333
      %v655 = vunpack.c.l.b16 %v334
      %v656 = vunpack.c.l.b16 %v335
      %v657 = vunpack.c.l.b16 %v336
      %v658 = vunpack.c.l.b16 %v337
      %v659 = vunpack.c.l.b16 %v338
      %v660 = vunpack.c.l.b16 %v339
      %v661 = vunpack.c.l.b16 %v340
      %v662 = vunpack.c.l.b16 %v341
      %v663 = vunpack.c.l.b16 %v342
      %v664 = vunpack.c.l.b16 %v343
      %v665 = vunpack.c.l.b16 %v344
      %v666 = vunpack.c.l.b16 %v345
      %v667 = vunpack.c.l.b16 %v346
      %v668 = vunpack.c.l.b16 %v347
      %v669 = vunpack.c.l.b16 %v348
      %v670 = vunpack.c.l.b16 %v349
      %v671 = vunpack.c.l.b16 %v350
      %v672 = vunpack.c.l.b16 %v351
      %v673 = vunpack.c.l.b16 %v352
      %v674 = vunpack.c.l.b16 %v353
      %v675 = vunpack.c.l.b16 %v354
      %v676 = vunpack.c.l.b16 %v355
      %v677 = vunpack.c.l.b16 %v356
      %v678 = vunpack.c.l.b16 %v357
      %v679 = vunpack.c.l.b16 %v358
      %v680 = vunpack.c.l.b16 %v359
      %v681 = vunpack.c.l.b16 %v360
      %v682 = vunpack.c.l.b16 %v361
      %v683 = vpack.c.b16 %v652, %v651
      %v684 = vpack.c.b16 %v654, %v653
      %v685 = vpack.c.b16 %v656, %v655
      %v686 = vpack.c.b16 %v658, %v657
      %v687 = vpack.c.b16 %v660, %v659
      %v688 = vpack.c.b16 %v662, %v661
      %v689 = vpack.c.b16 %v664, %v663
      %v690 = vpack.c.b16 %v666, %v665
      %v691 = vpack.c.b16 %v668, %v667
      %v692 = vpack.c.b16 %v670, %v669
      %v693 = vpack.c.b16 %v672, %v671
      %v694 = vpack.c.b16 %v674, %v673
      %v695 = vpack.c.b16 %v676, %v675
      %v696 = vpack.c.b16 %v678, %v677
      %v697 = vpack.c.b16 %v680, %v679
      %v698 = vpack.c.b16 %v682, %v681
      %715 = vmatprep.subr.bf16.mxu0 0
      %716 = vmatpush1.bf16.msra.mxu0 %v683
      %717 = vmatprep.subr.bf16.mxu0 0
      %718 = vmatpush1.bf16.msra.mxu0 %v684
      %719 = vmatprep.subr.bf16.mxu0 0
      %720 = vmatpush1.bf16.msra.mxu0 %v685
      %721 = vmatprep.subr.bf16.mxu0 0
      %722 = vmatpush1.bf16.msra.mxu0 %v686
      %723 = vmatprep.subr.bf16.mxu0 0
      %724 = vmatpush1.bf16.msra.mxu0 %v687
      %725 = vmatprep.subr.bf16.mxu0 0
      %726 = vmatpush1.bf16.msra.mxu0 %v688
      %727 = vmatprep.subr.bf16.mxu0 0
      %728 = vmatpush1.bf16.msra.mxu0 %v689
      %729 = vmatprep.subr.bf16.mxu0 0
      %730 = vmatpush1.bf16.msra.mxu0 %v690
      %731 = vmatprep.subr.bf16.mxu0 0
      %732 = vmatpush1.bf16.msra.mxu0 %v691
      %733 = vmatprep.subr.bf16.mxu0 0
      %734 = vmatpush1.bf16.msra.mxu0 %v692
      %735 = vmatprep.subr.bf16.mxu0 0
      %736 = vmatpush1.bf16.msra.mxu0 %v693
      %737 = vmatprep.subr.bf16.mxu0 0
      %738 = vmatpush1.bf16.msra.mxu0 %v694
      %739 = vmatprep.subr.bf16.mxu0 0
      %740 = vmatpush1.bf16.msra.mxu0 %v695
      %741 = vmatprep.subr.bf16.mxu0 0
      %742 = vmatpush1.bf16.msra.mxu0 %v696
      %743 = vmatprep.subr.bf16.mxu0 0
      %744 = vmatpush1.bf16.msra.mxu0 %v697
      %745 = vmatprep.subr.bf16.mxu0 0
      %746 = vmatpush1.bf16.msra.mxu0 %v698
      %747 = vmatprep.mubr.bf16.mxu0 %v520
      %748 = vmatmul.mubr.bf16.gmra.mrb[0].mxu0 %v519
      %v749 = vpop.f32.mrb[0].mxu0
      %v750 = vadd.f32 %v367, %v749
      %v751 = vpop.f32.mrb[0].mxu0
      %v752 = vpop.f32.mrb[0].mxu0
      %v753 = vadd.f32 %v367, %v752
      %v754 = vpop.f32.mrb[0].mxu0
      %755 = vmatprep.mubr.bf16.mxu0 %v522
      %756 = vmatmul.mubr.bf16.gmra.mrb[0].mxu0 %v521
      %v757 = vpop.f32.mrb[0].mxu0
      %v758 = vadd.f32 %v367, %v757
      %v759 = vpop.f32.mrb[0].mxu0
      %v760 = vpop.f32.mrb[0].mxu0
      %v761 = vadd.f32 %v367, %v760
      %v762 = vpop.f32.mrb[0].mxu0
      %763 = vmatprep.mubr.bf16.mxu0 %v524
      %764 = vmatmul.mubr.bf16.gmra.mrb[0].mxu0 %v523
      %v765 = vpop.f32.mrb[0].mxu0
      %v766 = vadd.f32 %v367, %v765
      %v767 = vpop.f32.mrb[0].mxu0
      %v768 = vpop.f32.mrb[0].mxu0
      %v769 = vadd.f32 %v367, %v768
      %v770 = vpop.f32.mrb[0].mxu0
      %771 = vmatprep.mubr.bf16.mxu0 %v526
      %772 = vmatmul.mubr.bf16.gmra.mrb[0].mxu0 %v525
      %v773 = vpop.f32.mrb[0].mxu0
      %v774 = vadd.f32 %v367, %v773
      %v775 = vpop.f32.mrb[0].mxu0
      %v776 = vpop.f32.mrb[0].mxu0
      %v777 = vadd.f32 %v367, %v776
      %v778 = vpop.f32.mrb[0].mxu0
      %779 = vmatprep.mubr.bf16.mxu0 %v528
      %780 = vmatmul.mubr.bf16.gmra.mrb[0].mxu0 %v527
      %v781 = vpop.f32.mrb[0].mxu0
      %v782 = vadd.f32 %v367, %v781
      %v783 = vpop.f32.mrb[0].mxu0
      %v784 = vpop.f32.mrb[0].mxu0
      %v785 = vadd.f32 %v367, %v784
      %v786 = vpop.f32.mrb[0].mxu0
      %787 = vmatprep.mubr.bf16.mxu0 %v530
      %788 = vmatmul.mubr.bf16.gmra.mrb[0].mxu0 %v529
      %v789 = vpop.f32.mrb[0].mxu0
      %v790 = vadd.f32 %v367, %v789
      %v791 = vpop.f32.mrb[0].mxu0
      %v792 = vpop.f32.mrb[0].mxu0
      %v793 = vadd.f32 %v367, %v792
      %v794 = vpop.f32.mrb[0].mxu0
      %795 = vmatprep.mubr.bf16.mxu0 %v532
      %796 = vmatmul.mubr.bf16.gmra.mrb[0].mxu0 %v531
      %v797 = vpop.f32.mrb[0].mxu0
      %v798 = vadd.f32 %v367, %v797
      %v799 = vpop.f32.mrb[0].mxu0
      %v800 = vpop.f32.mrb[0].mxu0
      %v801 = vadd.f32 %v367, %v800
      %v802 = vpop.f32.mrb[0].mxu0
      %803 = vmatprep.mubr.bf16.mxu0 %v534
      %804 = vmatmul.mubr.bf16.gmra.mrb[0].mxu0 %v533
      %v805 = vpop.f32.mrb[0].mxu0
      %v806 = vadd.f32 %v367, %v805
      %v807 = vpop.f32.mrb[0].mxu0
      %v808 = vpop.f32.mrb[0].mxu0
      %v809 = vadd.f32 %v367, %v808
      %v810 = vpop.f32.mrb[0].mxu0
      %811 = vmatprep.mubr.bf16.mxu0 %v536
      %812 = vmatmul.mubr.bf16.gmra.mrb[0].mxu0 %v535
      %v813 = vpop.f32.mrb[0].mxu0
      %v814 = vadd.f32 %v367, %v813
      %v815 = vpop.f32.mrb[0].mxu0
      %v816 = vpop.f32.mrb[0].mxu0
      %v817 = vadd.f32 %v367, %v816
      %v818 = vpop.f32.mrb[0].mxu0
      %819 = vmatprep.mubr.bf16.mxu0 %v538
      %820 = vmatmul.mubr.bf16.gmra.mrb[0].mxu0 %v537
      %v821 = vpop.f32.mrb[0].mxu0
      %v822 = vadd.f32 %v367, %v821
      %v823 = vpop.f32.mrb[0].mxu0
      %v824 = vpop.f32.mrb[0].mxu0
      %v825 = vadd.f32 %v367, %v824
      %v826 = vpop.f32.mrb[0].mxu0
      %827 = vmatprep.mubr.bf16.mxu0 %v540
      %828 = vmatmul.mubr.bf16.gmra.mrb[0].mxu0 %v539
      %v829 = vpop.f32.mrb[0].mxu0
      %v830 = vadd.f32 %v367, %v829
      %v831 = vpop.f32.mrb[0].mxu0
      %v832 = vpop.f32.mrb[0].mxu0
      %v833 = vadd.f32 %v367, %v832
      %v834 = vpop.f32.mrb[0].mxu0
      %835 = vmatprep.mubr.bf16.mxu0 %v542
      %836 = vmatmul.mubr.bf16.gmra.mrb[0].mxu0 %v541
      %v837 = vpop.f32.mrb[0].mxu0
      %v838 = vadd.f32 %v367, %v837
      %v839 = vpop.f32.mrb[0].mxu0
      %v840 = vpop.f32.mrb[0].mxu0
      %v841 = vadd.f32 %v367, %v840
      %v842 = vpop.f32.mrb[0].mxu0
      %843 = vmatprep.mubr.bf16.mxu0 %v544
      %844 = vmatmul.mubr.bf16.gmra.mrb[0].mxu0 %v543
      %v845 = vpop.f32.mrb[0].mxu0
      %v846 = vadd.f32 %v367, %v845
      %v847 = vpop.f32.mrb[0].mxu0
      %v848 = vpop.f32.mrb[0].mxu0
      %v849 = vadd.f32 %v367, %v848
      %v850 = vpop.f32.mrb[0].mxu0
      %851 = vmatprep.mubr.bf16.mxu0 %v546
      %852 = vmatmul.mubr.bf16.gmra.mrb[0].mxu0 %v545
      %v853 = vpop.f32.mrb[0].mxu0
      %v854 = vadd.f32 %v367, %v853
      %v855 = vpop.f32.mrb[0].mxu0
      %v856 = vpop.f32.mrb[0].mxu0
      %v857 = vadd.f32 %v367, %v856
      %v858 = vpop.f32.mrb[0].mxu0
      %859 = vmatprep.mubr.bf16.mxu0 %v548
      %860 = vmatmul.mubr.bf16.gmra.mrb[0].mxu0 %v547
      %v861 = vpop.f32.mrb[0].mxu0
      %v862 = vadd.f32 %v367, %v861
      %v863 = vpop.f32.mrb[0].mxu0
      %v864 = vpop.f32.mrb[0].mxu0
      %v865 = vadd.f32 %v367, %v864
      %v866 = vpop.f32.mrb[0].mxu0
      %867 = vmatprep.mubr.bf16.mxu0 %v550
      %868 = vmatmul.mubr.bf16.gmra.mrb[0].mxu0 %v549
      %v869 = vpop.f32.mrb[0].mxu0
      %v870 = vadd.f32 %v367, %v869
      %v871 = vpop.f32.mrb[0].mxu0
      %v872 = vpop.f32.mrb[0].mxu0
      %v873 = vadd.f32 %v367, %v872
      %v874 = vpop.f32.mrb[0].mxu0
      %875 = vmatprep.mubr.bf16.mxu0 %v552
      %876 = vmatmul.mubr.bf16.gmra.mrb[0].mxu0 %v551
      %v877 = vpop.f32.mrb[0].mxu0
      %v878 = vadd.f32 %v367, %v877
      %v879 = vpop.f32.mrb[0].mxu0
      %v880 = vpop.f32.mrb[0].mxu0
      %v881 = vadd.f32 %v367, %v880
      %v882 = vpop.f32.mrb[0].mxu0
      %883 = vmatprep.mubr.bf16.mxu0 %v554
      %884 = vmatmul.mubr.bf16.gmra.mrb[0].mxu0 %v553
      %v885 = vpop.f32.mrb[0].mxu0
      %v886 = vadd.f32 %v367, %v885
      %v887 = vpop.f32.mrb[0].mxu0
      %v888 = vpop.f32.mrb[0].mxu0
      %v889 = vadd.f32 %v367, %v888
      %v890 = vpop.f32.mrb[0].mxu0
      %891 = vmatprep.mubr.bf16.mxu0 %v556
      %892 = vmatmul.mubr.bf16.gmra.mrb[0].mxu0 %v555
      %v893 = vpop.f32.mrb[0].mxu0
      %v894 = vadd.f32 %v367, %v893
      %v895 = vpop.f32.mrb[0].mxu0
      %v896 = vpop.f32.mrb[0].mxu0
      %v897 = vadd.f32 %v367, %v896
      %v898 = vpop.f32.mrb[0].mxu0
      %899 = vmatprep.mubr.bf16.mxu0 %v558
      %900 = vmatmul.mubr.bf16.gmra.mrb[0].mxu0 %v557
      %v901 = vpop.f32.mrb[0].mxu0
      %v902 = vadd.f32 %v367, %v901
      %v903 = vpop.f32.mrb[0].mxu0
      %v904 = vpop.f32.mrb[0].mxu0
      %v905 = vadd.f32 %v367, %v904
      %v906 = vpop.f32.mrb[0].mxu0
      %907 = vmatprep.mubr.bf16.mxu0 %v560
      %908 = vmatmul.mubr.bf16.gmra.mrb[0].mxu0 %v559
      %v909 = vpop.f32.mrb[0].mxu0
      %v910 = vadd.f32 %v367, %v909
      %v911 = vpop.f32.mrb[0].mxu0
      %v912 = vpop.f32.mrb[0].mxu0
      %v913 = vadd.f32 %v367, %v912
      %v914 = vpop.f32.mrb[0].mxu0
      %915 = vmatprep.mubr.bf16.mxu0 %v562
      %916 = vmatmul.mubr.bf16.gmra.mrb[0].mxu0 %v561
      %v917 = vpop.f32.mrb[0].mxu0
      %v918 = vadd.f32 %v367, %v917
      %v919 = vpop.f32.mrb[0].mxu0
      %v920 = vpop.f32.mrb[0].mxu0
      %v921 = vadd.f32 %v367, %v920
      %v922 = vpop.f32.mrb[0].mxu0
      %923 = vmatprep.mubr.bf16.mxu0 %v564
      %924 = vmatmul.mubr.bf16.gmra.mrb[0].mxu0 %v563
      %v925 = vpop.f32.mrb[0].mxu0
      %v926 = vadd.f32 %v367, %v925
      %v927 = vpop.f32.mrb[0].mxu0
      %v928 = vpop.f32.mrb[0].mxu0
      %v929 = vadd.f32 %v367, %v928
      %v930 = vpop.f32.mrb[0].mxu0
      %931 = vmatprep.mubr.bf16.mxu0 %v566
      %932 = vmatmul.mubr.bf16.gmra.mrb[0].mxu0 %v565
      %v933 = vpop.f32.mrb[0].mxu0
      %v934 = vadd.f32 %v367, %v933
      %v935 = vpop.f32.mrb[0].mxu0
      %v936 = vpop.f32.mrb[0].mxu0
      %v937 = vadd.f32 %v367, %v936
      %v938 = vpop.f32.mrb[0].mxu0
      %939 = vmatprep.mubr.bf16.mxu0 %v568
      %940 = vmatmul.mubr.bf16.gmra.mrb[0].mxu0 %v567
      %v941 = vpop.f32.mrb[0].mxu0
      %v942 = vadd.f32 %v367, %v941
      %v943 = vpop.f32.mrb[0].mxu0
      %v944 = vpop.f32.mrb[0].mxu0
      %v945 = vadd.f32 %v367, %v944
      %v946 = vpop.f32.mrb[0].mxu0
      %947 = vdwg.mxu0
      %v948 = vmax.f32 %v750, 0.0
      %v949 = vmax.f32 %v753, 0.0
      %v950 = vmax.f32 %v758, 0.0
      %v951 = vmax.f32 %v761, 0.0
      %v952 = vmax.f32 %v766, 0.0
      %v953 = vmax.f32 %v769, 0.0
      %v954 = vmax.f32 %v774, 0.0
      %v955 = vmax.f32 %v777, 0.0
      %v956 = vmax.f32 %v782, 0.0
      %v957 = vmax.f32 %v785, 0.0
      %v958 = vmax.f32 %v790, 0.0
      %v959 = vmax.f32 %v793, 0.0
      %v960 = vmax.f32 %v798, 0.0
      %v961 = vmax.f32 %v801, 0.0
      %v962 = vmax.f32 %v806, 0.0
      %v963 = vmax.f32 %v809, 0.0
      %v964 = vmax.f32 %v814, 0.0
      %v965 = vmax.f32 %v817, 0.0
      %v966 = vmax.f32 %v822, 0.0
      %v967 = vmax.f32 %v825, 0.0
      %v968 = vmax.f32 %v830, 0.0
      %v969 = vmax.f32 %v833, 0.0
      %v970 = vmax.f32 %v838, 0.0
      %v971 = vmax.f32 %v841, 0.0
      %v972 = vmax.f32 %v846, 0.0
      %v973 = vmax.f32 %v849, 0.0
      %v974 = vmax.f32 %v854, 0.0
      %v975 = vmax.f32 %v857, 0.0
      %v976 = vmax.f32 %v862, 0.0
      %v977 = vmax.f32 %v865, 0.0
      %v978 = vmax.f32 %v870, 0.0
      %v979 = vmax.f32 %v873, 0.0
      %v980 = vmax.f32 %v878, 0.0
      %v981 = vmax.f32 %v881, 0.0
      %v982 = vmax.f32 %v886, 0.0
      %v983 = vmax.f32 %v889, 0.0
      %v984 = vmax.f32 %v894, 0.0
      %v985 = vmax.f32 %v897, 0.0
      %v986 = vmax.f32 %v902, 0.0
      %v987 = vmax.f32 %v905, 0.0
      %v988 = vmax.f32 %v910, 0.0
      %v989 = vmax.f32 %v913, 0.0
      %v990 = vmax.f32 %v918, 0.0
      %v991 = vmax.f32 %v921, 0.0
      %v992 = vmax.f32 %v926, 0.0
      %v993 = vmax.f32 %v929, 0.0
      %v994 = vmax.f32 %v934, 0.0
      %v995 = vmax.f32 %v937, 0.0
      %v996 = vmax.f32 %v942, 0.0
      %v997 = vmax.f32 %v945, 0.0
      %v998 = vpack.c.bf16 %v949, %v948
      %v999 = vpack.c.bf16 %v951, %v950
      %v1000 = vpack.c.bf16 %v953, %v952
      %v1001 = vpack.c.bf16 %v955, %v954
      %v1002 = vpack.c.bf16 %v957, %v956
      %v1003 = vpack.c.bf16 %v959, %v958
      %v1004 = vpack.c.bf16 %v961, %v960
      %v1005 = vpack.c.bf16 %v963, %v962
      %v1006 = vpack.c.bf16 %v965, %v964
      %v1007 = vpack.c.bf16 %v967, %v966
      %v1008 = vpack.c.bf16 %v969, %v968
      %v1009 = vpack.c.bf16 %v971, %v970
      %v1010 = vpack.c.bf16 %v973, %v972
      %v1011 = vpack.c.bf16 %v975, %v974
      %v1012 = vpack.c.bf16 %v977, %v976
      %v1013 = vpack.c.bf16 %v979, %v978
      %v1014 = vpack.c.bf16 %v981, %v980
      %v1015 = vpack.c.bf16 %v983, %v982
      %v1016 = vpack.c.bf16 %v985, %v984
      %v1017 = vpack.c.bf16 %v987, %v986
      %v1018 = vpack.c.bf16 %v989, %v988
      %v1019 = vpack.c.bf16 %v991, %v990
      %v1020 = vpack.c.bf16 %v993, %v992
      %v1021 = vpack.c.bf16 %v995, %v994
      %v1022 = vpack.c.bf16 %v997, %v996
      %vm1023 = vcmask 261120
      %1024 = vst.msk [vmem:[#allocation2] sm:$0xff] %vm1023, %v998
      %1025 = vst.msk [vmem:[#allocation2 + $0x8] sm:$0xff] %vm1023, %v999
      %1026 = vst.msk [vmem:[#allocation2 + $0x10] sm:$0xff] %vm1023, %v1000
      %1027 = vst.msk [vmem:[#allocation2 + $0x18] sm:$0xff] %vm1023, %v1001
      %1028 = vst.msk [vmem:[#allocation2 + $0x20] sm:$0xff] %vm1023, %v1002
      %1029 = vst.msk [vmem:[#allocation2 + $0x28] sm:$0xff] %vm1023, %v1003
      %1030 = vst.msk [vmem:[#allocation2 + $0x30] sm:$0xff] %vm1023, %v1004
      %1031 = vst.msk [vmem:[#allocation2 + $0x38] sm:$0xff] %vm1023, %v1005
      %1032 = vst.msk [vmem:[#allocation2 + $0x40] sm:$0xff] %vm1023, %v1006
      %1033 = vst.msk [vmem:[#allocation2 + $0x48] sm:$0xff] %vm1023, %v1007
      %1034 = vst.msk [vmem:[#allocation2 + $0x50] sm:$0xff] %vm1023, %v1008
      %1035 = vst.msk [vmem:[#allocation2 + $0x58] sm:$0xff] %vm1023, %v1009
      %1036 = vst.msk [vmem:[#allocation2 + $0x60] sm:$0xff] %vm1023, %v1010
      %1037 = vst.msk [vmem:[#allocation2 + $0x68] sm:$0xff] %vm1023, %v1011
      %1038 = vst.msk [vmem:[#allocation2 + $0x70] sm:$0xff] %vm1023, %v1012
      %1039 = vst.msk [vmem:[#allocation2 + $0x78] sm:$0xff] %vm1023, %v1013
      %1040 = vst.msk [vmem:[#allocation2 + $0x80] sm:$0xff] %vm1023, %v1014
      %1041 = vst.msk [vmem:[#allocation2 + $0x88] sm:$0xff] %vm1023, %v1015
      %1042 = vst.msk [vmem:[#allocation2 + $0x90] sm:$0xff] %vm1023, %v1016
      %1043 = vst.msk [vmem:[#allocation2 + $0x98] sm:$0xff] %vm1023, %v1017
      %1044 = vst.msk [vmem:[#allocation2 + $0xa0] sm:$0xff] %vm1023, %v1018
      %1045 = vst.msk [vmem:[#allocation2 + $0xa8] sm:$0xff] %vm1023, %v1019
      %1046 = vst.msk [vmem:[#allocation2 + $0xb0] sm:$0xff] %vm1023, %v1020
      %1047 = vst.msk [vmem:[#allocation2 + $0xb8] sm:$0xff] %vm1023, %v1021
      %1048 = vst.msk [vmem:[#allocation2 + $0xc0] sm:$0xff] %vm1023, %v1022
      %v1049 = vld [vmem:[#allocation2] sm:$0x1f]
      %v1051 = vunpack.c.l.b16 %v1049
      %v1052 = vunpack.c.h.b16 %v1049
      %v1053 = vpack.c.b16 %v1051, %v1051
      %v1054 = vpack.c.b16 %v1052, %v1052
      %vm1057 = vcmask 257024
      %1058 = vst.msk [vmem:[#allocation3] sm:$0xf] %vm1057, %v1053
      %vm1059 = vcmask 253952
      %vm1060 = vsmask.f32 256
      %vm1061 = vmand %vm1059, %vm1060
      %v1062 = vld [vmem:[#allocation3 + $0x10] sm:$0x1]
      %v1063 = vsel %vm1061, %v1054, %v1062
      %1064 = vst [vmem:[#allocation3 + $0x10] sm:$0x1] %v1063
      %v1065 = vld [vmem:[#allocation2] sm:$0xe0]
      %v1066 = vld [vmem:[#allocation2 + $0x8] sm:$0x3]
      %v1069 = vunpack.c.h.b16 %v1065
      %v1070 = vunpack.c.l.b16 %v1066
      %v1071 = vpack.c.b16 %v1069, %v1069
      %v1072 = vpack.c.b16 %v1070, %v1070
      %vm1073 = vcmask 1042432
      %vm1074 = vcmask 1046532
      %vm1075 = vmor %vm1073, %vm1074
      %v1076 = vrot.slane %v1071, 5
      %v1077 = vrot.slane %v1076, 4
      %v1078 = vrot.slane %v1072, 5
      %v1079 = vsel %vm1075, %v1077, %v1078
      %v1080 = vrot.slane %v1078, 4
      %1081 = vrot.lane.b32.xlu0 %v1079, 32
      %v1082 = vpop.permute.xlu0 %1081
      %1083 = vrot.lane.b32.xlu0 %v1080, 32
      %v1084 = vpop.permute.xlu0 %1083
      %vm1087 = vcmask 519424
      %1088 = vst.msk [vmem:[#allocation3] sm:$0xf] %vm1087, %v1082
      %vm1089 = vcmask 516352
      %vm1090 = vmand %vm1089, %vm1060
      %v1091 = vld [vmem:[#allocation3 + $0x10] sm:$0x1]
      %v1092 = vsel %vm1090, %v1084, %v1091
      %1093 = vst [vmem:[#allocation3 + $0x10] sm:$0x1] %v1092
      %v1094 = vld [vmem:[#allocation2] sm:$0x1f]
      %v1096 = vunpack.c.l.b16 %v1094
      %v1097 = vunpack.c.h.b16 %v1094
      %v1098 = vpack.c.b16 %v1096, %v1096
      %v1099 = vpack.c.b16 %v1097, %v1097
      %vm1100 = vsmask.f32 3328
      %vm1101 = vsmask.f32 7440
      %vm1102 = vmor %vm1100, %vm1101
      %v1104 = vshrl.u32 %v1098, 16
      %v1106 = vrot.slane %v1104, 4
      %v1107 = vshll.u32 %v1098, 16
      %v1109 = vrot.slane %v1107, 5
      %v1110 = vor.u32 %v1106, %v1109
      %v1111 = vrot.slane %v1110, 4
      %v1113 = vshll.u32 %v1099, 16
      %v1115 = vrot.slane %v1113, 5
      %v1116 = vsel %vm1102, %v1111, %v1115
      %v1117 = vshrl.u32 %v1099, 16
      %v1119 = vrot.slane %v1117, 4
      %v1120 = vrot.slane %v1119, 4
      %1121 = vrot.lane.b32.xlu0 %v1116, 64
      %v1122 = vpop.permute.xlu0 %1121
      %1123 = vrot.lane.b32.xlu0 %v1120, 64
      %v1124 = vpop.permute.xlu0 %1123
      %vm1127 = vcmask 781824
      %1128 = vst.msk [vmem:[#allocation3] sm:$0xf] %vm1127, %v1122
      %vm1129 = vcmask 778752
      %vm1130 = vmand %vm1129, %vm1060
      %v1131 = vld [vmem:[#allocation3 + $0x10] sm:$0x1]
      %v1132 = vsel %vm1130, %v1124, %v1131
      %1133 = vst [vmem:[#allocation3 + $0x10] sm:$0x1] %v1132
      %v1134 = vld [vmem:[#allocation2] sm:$0xe0]
      %v1135 = vld [vmem:[#allocation2 + $0x8] sm:$0x3]
      %v1138 = vunpack.c.h.b16 %v1134
      %v1139 = vunpack.c.l.b16 %v1135
      %v1140 = vpack.c.b16 %v1138, %v1138
      %v1141 = vpack.c.b16 %v1139, %v1139
      %vm1142 = vsmask.f32 2304
      %vm1143 = vsmask.f32 6416
      %vm1144 = vmor %vm1142, %vm1143
      %v1146 = vshrl.u32 %v1140, 16
      %v1148 = vrot.slane %v1146, 5
      %v1149 = vshll.u32 %v1140, 16
      %v1151 = vrot.slane %v1149, 6
      %v1152 = vor.u32 %v1148, %v1151
      %v1153 = vrot.slane %v1152, 4
      %v1155 = vshrl.u32 %v1141, 16
      %v1157 = vrot.slane %v1155, 5
      %v1158 = vshll.u32 %v1141, 16
      %v1160 = vrot.slane %v1158, 6
      %v1161 = vor.u32 %v1157, %v1160
      %v1162 = vsel %vm1144, %v1153, %v1161
      %v1163 = vrot.slane %v1157, 4
      %1164 = vrot.lane.b32.xlu0 %v1162, 96
      %v1165 = vpop.permute.xlu0 %1164
      %1166 = vrot.lane.b32.xlu0 %v1163, 96
      %v1167 = vpop.permute.xlu0 %1166
      %vm1170 = vcmask 1044224
      %1171 = vst.msk [vmem:[#allocation3] sm:$0xf] %vm1170, %v1165
      %vm1172 = vcmask 1041152
      %vm1173 = vmand %vm1172, %vm1060
      %v1174 = vld [vmem:[#allocation3 + $0x10] sm:$0x1]
      %v1175 = vsel %vm1173, %v1167, %v1174
      %1176 = vst [vmem:[#allocation3 + $0x10] sm:$0x1] %v1175
      %v1177 = vld [vmem:[#allocation2 + $0x8] sm:$0x7c]
      %v1179 = vunpack.c.l.b16 %v1177
      %v1180 = vunpack.c.h.b16 %v1177
      %v1181 = vpack.c.b16 %v1179, %v1179
      %v1182 = vpack.c.b16 %v1180, %v1180
      %vm1183 = vcmask 1041408
      %vm1184 = vcmask 1045508
      %vm1185 = vmor %vm1183, %vm1184
      %v1186 = vrot.slane %v1181, 6
      %v1187 = vrot.slane %v1186, 4
      %v1188 = vrot.slane %v1182, 6
      %v1189 = vsel %vm1185, %v1187, %v1188
      %v1190 = vrot.slane %v1188, 4
      %1193 = vst.msk [vmem:[#allocation3 + $0x4] sm:$0xf] %vm1057, %v1189
      %v1194 = vld [vmem:[#allocation3 + $0x14] sm:$0x1]
      %v1195 = vsel %vm1061, %v1190, %v1194
      %1196 = vst [vmem:[#allocation3 + $0x14] sm:$0x1] %v1195
      %v1197 = vld [vmem:[#allocation2 + $0x8] sm:$0x80]
      %v1198 = vld [vmem:[#allocation2 + $0x10] sm:$0xf]
      %v1201 = vunpack.c.h.b16 %v1197
      %v1202 = vunpack.c.l.b16 %v1198
      %v1203 = vpack.c.b16 %v1201, %v1201
      %v1204 = vpack.c.b16 %v1202, %v1202
      %vm1205 = vcmask 1040384
      %vm1206 = vcmask 1044484
      %vm1207 = vmor %vm1205, %vm1206
      %v1208 = vrot.slane %v1203, 7
      %v1209 = vrot.slane %v1208, 4
      %v1210 = vrot.slane %v1204, 7
      %v1211 = vsel %vm1207, %v1209, %v1210
      %v1212 = vrot.slane %v1210, 4
      %1213 = vrot.lane.b32.xlu0 %v1211, 32
      %v1214 = vpop.permute.xlu0 %1213
      %1215 = vrot.lane.b32.xlu0 %v1212, 32
      %v1216 = vpop.permute.xlu0 %1215
      %1219 = vst.msk [vmem:[#allocation3 + $0x4] sm:$0xf] %vm1087, %v1214
      %v1220 = vld [vmem:[#allocation3 + $0x14] sm:$0x1]
      %v1221 = vsel %vm1090, %v1216, %v1220
      %1222 = vst [vmem:[#allocation3 + $0x14] sm:$0x1] %v1221
      %v1223 = vld [vmem:[#allocation2 + $0x8] sm:$0x7c]
      %v1225 = vunpack.c.l.b16 %v1223
      %v1226 = vunpack.c.h.b16 %v1223
      %v1227 = vpack.c.b16 %v1225, %v1225
      %v1228 = vpack.c.b16 %v1226, %v1226
      %vm1229 = vsmask.f32 1280
      %vm1230 = vsmask.f32 5392
      %vm1231 = vmor %vm1229, %vm1230
      %v1233 = vshrl.u32 %v1227, 16
      %v1235 = vrot.slane %v1233, 6
      %v1236 = vshll.u32 %v1227, 16
      %v1238 = vrot.slane %v1236, 7
      %v1239 = vor.u32 %v1235, %v1238
      %v1240 = vrot.slane %v1239, 4
      %v1242 = vshrl.u32 %v1228, 16
      %v1244 = vrot.slane %v1242, 6
      %v1245 = vshll.u32 %v1228, 16
      %v1247 = vrot.slane %v1245, 7
      %v1248 = vor.u32 %v1244, %v1247
      %v1249 = vsel %vm1231, %v1240, %v1248
      %v1250 = vrot.slane %v1244, 4
      %1251 = vrot.lane.b32.xlu0 %v1249, 64
      %v1252 = vpop.permute.xlu0 %1251
      %1253 = vrot.lane.b32.xlu0 %v1250, 64
      %v1254 = vpop.permute.xlu0 %1253
      %1257 = vst.msk [vmem:[#allocation3 + $0x4] sm:$0xf] %vm1127, %v1252
      %v1258 = vld [vmem:[#allocation3 + $0x14] sm:$0x1]
      %v1259 = vsel %vm1130, %v1254, %v1258
      %1260 = vst [vmem:[#allocation3 + $0x14] sm:$0x1] %v1259
      %v1261 = vld [vmem:[#allocation2 + $0x8] sm:$0x80]
      %v1262 = vld [vmem:[#allocation2 + $0x10] sm:$0xf]
      %v1265 = vunpack.c.h.b16 %v1261
      %v1266 = vunpack.c.l.b16 %v1262
      %v1267 = vpack.c.b16 %v1265, %v1265
      %v1268 = vpack.c.b16 %v1266, %v1266
      %vm1269 = vsmask.f32 4368
      %vm1270 = vmor %vm1060, %vm1269
      %v1272 = vshrl.u32 %v1267, 16
      %v1274 = vrot.slane %v1272, 7
      %v1275 = vrot.slane %v1274, 4
      %v1277 = vshrl.u32 %v1268, 16
      %v1279 = vrot.slane %v1277, 7
      %v1280 = vshll.u32 %v1268, 16
      %v1282 = vor.u32 %v1279, %v1280
      %v1283 = vsel %vm1270, %v1275, %v1282
      %v1284 = vrot.slane %v1279, 4
      %1285 = vrot.lane.b32.xlu0 %v1283, 96
      %v1286 = vpop.permute.xlu0 %1285
      %1287 = vrot.lane.b32.xlu0 %v1284, 96
      %v1288 = vpop.permute.xlu0 %1287
      %1291 = vst.msk [vmem:[#allocation3 + $0x4] sm:$0xf] %vm1170, %v1286
      %v1292 = vld [vmem:[#allocation3 + $0x14] sm:$0x1]
      %v1293 = vsel %vm1173, %v1288, %v1292
      %1294 = vst [vmem:[#allocation3 + $0x14] sm:$0x1] %v1293
      %v1295 = vld [vmem:[#allocation2 + $0x10] sm:$0xf0]
      %v1296 = vld [vmem:[#allocation2 + $0x18] sm:$0x1]
      %v1299 = vunpack.c.h.b16 %v1295
      %v1300 = vunpack.c.l.b16 %v1296
      %v1301 = vpack.c.b16 %v1299, %v1299
      %v1302 = vpack.c.b16 %v1300, %v1300
      %1305 = vst.msk [vmem:[#allocation3 + $0x8] sm:$0xf] %vm1057, %v1301
      %v1306 = vld [vmem:[#allocation3 + $0x18] sm:$0x1]
      %v1307 = vsel %vm1061, %v1302, %v1306
      %1308 = vst [vmem:[#allocation3 + $0x18] sm:$0x1] %v1307
      %v1309 = vld [vmem:[#allocation2 + $0x18] sm:$0x3e]
      %v1311 = vunpack.c.l.b16 %v1309
      %v1312 = vunpack.c.h.b16 %v1309
      %v1313 = vpack.c.b16 %v1311, %v1311
      %v1314 = vpack.c.b16 %v1312, %v1312
      %v1315 = vrot.slane %v1313, 5
      %v1316 = vrot.slane %v1315, 4
      %v1317 = vrot.slane %v1314, 5
      %v1318 = vsel %vm1075, %v1316, %v1317
      %v1319 = vrot.slane %v1317, 4
      %1320 = vrot.lane.b32.xlu0 %v1318, 32
      %v1321 = vpop.permute.xlu0 %1320
      %1322 = vrot.lane.b32.xlu0 %v1319, 32
      %v1323 = vpop.permute.xlu0 %1322
      %1326 = vst.msk [vmem:[#allocation3 + $0x8] sm:$0xf] %vm1087, %v1321
      %v1327 = vld [vmem:[#allocation3 + $0x18] sm:$0x1]
      %v1328 = vsel %vm1090, %v1323, %v1327
      %1329 = vst [vmem:[#allocation3 + $0x18] sm:$0x1] %v1328
      %v1330 = vld [vmem:[#allocation2 + $0x10] sm:$0xf0]
      %v1331 = vld [vmem:[#allocation2 + $0x18] sm:$0x1]
      %v1334 = vunpack.c.h.b16 %v1330
      %v1335 = vunpack.c.l.b16 %v1331
      %v1336 = vpack.c.b16 %v1334, %v1334
      %v1337 = vpack.c.b16 %v1335, %v1335
      %v1339 = vshrl.u32 %v1336, 16
      %v1341 = vrot.slane %v1339, 4
      %v1342 = vshll.u32 %v1336, 16
      %v1344 = vrot.slane %v1342, 5
      %v1345 = vor.u32 %v1341, %v1344
      %v1346 = vrot.slane %v1345, 4
      %v1348 = vshll.u32 %v1337, 16
      %v1350 = vrot.slane %v1348, 5
      %v1351 = vsel %vm1102, %v1346, %v1350
      %v1352 = vshrl.u32 %v1337, 16
      %v1354 = vrot.slane %v1352, 4
      %v1355 = vrot.slane %v1354, 4
      %1356 = vrot.lane.b32.xlu0 %v1351, 64
      %v1357 = vpop.permute.xlu0 %1356
      %1358 = vrot.lane.b32.xlu0 %v1355, 64
      %v1359 = vpop.permute.xlu0 %1358
      %1362 = vst.msk [vmem:[#allocation3 + $0x8] sm:$0xf] %vm1127, %v1357
      %v1363 = vld [vmem:[#allocation3 + $0x18] sm:$0x1]
      %v1364 = vsel %vm1130, %v1359, %v1363
      %1365 = vst [vmem:[#allocation3 + $0x18] sm:$0x1] %v1364
      %v1366 = vld [vmem:[#allocation2 + $0x18] sm:$0x3e]
      %v1368 = vunpack.c.l.b16 %v1366
      %v1369 = vunpack.c.h.b16 %v1366
      %v1370 = vpack.c.b16 %v1368, %v1368
      %v1371 = vpack.c.b16 %v1369, %v1369
      %v1373 = vshrl.u32 %v1370, 16
      %v1375 = vrot.slane %v1373, 5
      %v1376 = vshll.u32 %v1370, 16
      %v1378 = vrot.slane %v1376, 6
      %v1379 = vor.u32 %v1375, %v1378
      %v1380 = vrot.slane %v1379, 4
      %v1382 = vshrl.u32 %v1371, 16
      %v1384 = vrot.slane %v1382, 5
      %v1385 = vshll.u32 %v1371, 16
      %v1387 = vrot.slane %v1385, 6
      %v1388 = vor.u32 %v1384, %v1387
      %v1389 = vsel %vm1144, %v1380, %v1388
      %v1390 = vrot.slane %v1384, 4
      %1391 = vrot.lane.b32.xlu0 %v1389, 96
      %v1392 = vpop.permute.xlu0 %1391
      %1393 = vrot.lane.b32.xlu0 %v1390, 96
      %v1394 = vpop.permute.xlu0 %1393
      %1397 = vst.msk [vmem:[#allocation3 + $0x8] sm:$0xf] %vm1170, %v1392
      %v1398 = vld [vmem:[#allocation3 + $0x18] sm:$0x1]
      %v1399 = vsel %vm1173, %v1394, %v1398
      %1400 = vst [vmem:[#allocation3 + $0x18] sm:$0x1] %v1399
      %v1401 = vld [vmem:[#allocation2 + $0x18] sm:$0xc0]
      %v1402 = vld [vmem:[#allocation2 + $0x20] sm:$0x7]
      %v1405 = vunpack.c.h.b16 %v1401
      %v1406 = vunpack.c.l.b16 %v1402
      %v1407 = vpack.c.b16 %v1405, %v1405
      %v1408 = vpack.c.b16 %v1406, %v1406
      %v1409 = vrot.slane %v1407, 6
      %v1410 = vrot.slane %v1409, 4
      %v1411 = vrot.slane %v1408, 6
      %v1412 = vsel %vm1185, %v1410, %v1411
      %v1413 = vrot.slane %v1411, 4
      %1416 = vst.msk [vmem:[#allocation3 + $0xc] sm:$0xf] %vm1057, %v1412
      %v1417 = vld [vmem:[#allocation3 + $0x1c] sm:$0x1]
      %v1418 = vsel %vm1061, %v1413, %v1417
      %1419 = vst [vmem:[#allocation3 + $0x1c] sm:$0x1] %v1418
      %v1420 = vld [vmem:[#allocation2 + $0x20] sm:$0xf8]
      %v1422 = vunpack.c.l.b16 %v1420
      %v1423 = vunpack.c.h.b16 %v1420
      %v1424 = vpack.c.b16 %v1422, %v1422
      %v1425 = vpack.c.b16 %v1423, %v1423
      %v1426 = vrot.slane %v1424, 7
      %v1427 = vrot.slane %v1426, 4
      %v1428 = vrot.slane %v1425, 7
      %v1429 = vsel %vm1207, %v1427, %v1428
      %v1430 = vrot.slane %v1428, 4
      %1431 = vrot.lane.b32.xlu0 %v1429, 32
      %v1432 = vpop.permute.xlu0 %1431
      %1433 = vrot.lane.b32.xlu0 %v1430, 32
      %v1434 = vpop.permute.xlu0 %1433
      %1437 = vst.msk [vmem:[#allocation3 + $0xc] sm:$0xf] %vm1087, %v1432
      %v1438 = vld [vmem:[#allocation3 + $0x1c] sm:$0x1]
      %v1439 = vsel %vm1090, %v1434, %v1438
      %1440 = vst [vmem:[#allocation3 + $0x1c] sm:$0x1] %v1439
      %v1441 = vld [vmem:[#allocation2 + $0x18] sm:$0xc0]
      %v1442 = vld [vmem:[#allocation2 + $0x20] sm:$0x7]
      %v1445 = vunpack.c.h.b16 %v1441
      %v1446 = vunpack.c.l.b16 %v1442
      %v1447 = vpack.c.b16 %v1445, %v1445
      %v1448 = vpack.c.b16 %v1446, %v1446
      %v1450 = vshrl.u32 %v1447, 16
      %v1452 = vrot.slane %v1450, 6
      %v1453 = vshll.u32 %v1447, 16
      %v1455 = vrot.slane %v1453, 7
      %v1456 = vor.u32 %v1452, %v1455
      %v1457 = vrot.slane %v1456, 4
      %v1459 = vshrl.u32 %v1448, 16
      %v1461 = vrot.slane %v1459, 6
      %v1462 = vshll.u32 %v1448, 16
      %v1464 = vrot.slane %v1462, 7
      %v1465 = vor.u32 %v1461, %v1464
      %v1466 = vsel %vm1231, %v1457, %v1465
      %v1467 = vrot.slane %v1461, 4
      %1468 = vrot.lane.b32.xlu0 %v1466, 64
      %v1469 = vpop.permute.xlu0 %1468
      %1470 = vrot.lane.b32.xlu0 %v1467, 64
      %v1471 = vpop.permute.xlu0 %1470
      %1474 = vst.msk [vmem:[#allocation3 + $0xc] sm:$0xf] %vm1127, %v1469
      %v1475 = vld [vmem:[#allocation3 + $0x1c] sm:$0x1]
      %v1476 = vsel %vm1130, %v1471, %v1475
      %1477 = vst [vmem:[#allocation3 + $0x1c] sm:$0x1] %v1476
      %v1478 = vld [vmem:[#allocation2 + $0x20] sm:$0xf8]
      %v1480 = vunpack.c.l.b16 %v1478
      %v1481 = vunpack.c.h.b16 %v1478
      %v1482 = vpack.c.b16 %v1480, %v1480
      %v1483 = vpack.c.b16 %v1481, %v1481
      %v1485 = vshrl.u32 %v1482, 16
      %v1487 = vrot.slane %v1485, 7
      %v1488 = vrot.slane %v1487, 4
      %v1490 = vshrl.u32 %v1483, 16
      %v1492 = vrot.slane %v1490, 7
      %v1493 = vshll.u32 %v1483, 16
      %v1495 = vor.u32 %v1492, %v1493
      %v1496 = vsel %vm1270, %v1488, %v1495
      %v1497 = vrot.slane %v1492, 4
      %1498 = vrot.lane.b32.xlu0 %v1496, 96
      %v1499 = vpop.permute.xlu0 %1498
      %1500 = vrot.lane.b32.xlu0 %v1497, 96
      %v1501 = vpop.permute.xlu0 %1500
      %1504 = vst.msk [vmem:[#allocation3 + $0xc] sm:$0xf] %vm1170, %v1499
      %v1505 = vld [vmem:[#allocation3 + $0x1c] sm:$0x1]
      %v1506 = vsel %vm1173, %v1501, %v1505
      %1507 = vst [vmem:[#allocation3 + $0x1c] sm:$0x1] %v1506
      %v1508 = vld [vmem:[#allocation2 + $0x10] sm:$0xf0]
      %v1509 = vld [vmem:[#allocation2 + $0x18] sm:$0x1]
      %v1512 = vunpack.c.h.b16 %v1508
      %v1513 = vunpack.c.l.b16 %v1509
      %v1514 = vpack.c.b16 %v1512, %v1512
      %v1515 = vpack.c.b16 %v1513, %v1513
      %v1517 = vshrl.u32 %v1514, 16
      %v1519 = vrot.slane %v1517, 7
      %v1520 = vshll.u32 %v1514, 16
      %v1522 = vor.u32 %v1519, %v1520
      %v1523 = vrot.slane %v1519, 4
      %v1525 = vshll.u32 %v1515, 16
      %v1527 = vsel %vm1270, %v1523, %v1525
      %vm1530 = vcmask 257024
      %vm1531 = vsmask.f32 7938
      %vm1532 = vmand %vm1530, %vm1531
      %v1533 = vld [vmem:[#allocation3 + $0x10] sm:$0xf]
      %v1534 = vsel %vm1532, %v1522, %v1533
      %1535 = vst [vmem:[#allocation3 + $0x10] sm:$0xf] %v1534
      %vm1536 = vcmask 253952
      %1537 = vst.msk [vmem:[#allocation3 + $0x20] sm:$0x1] %vm1536, %v1527
      %v1538 = vld [vmem:[#allocation2 + $0x18] sm:$0x3e]
      %v1540 = vunpack.c.l.b16 %v1538
      %v1541 = vunpack.c.h.b16 %v1538
      %v1542 = vpack.c.b16 %v1540, %v1540
      %v1543 = vpack.c.b16 %v1541, %v1541
      %v1545 = vshrl.u32 %v1542, 16
      %v1547 = vrot.slane %v1545, 4
      %v1548 = vshll.u32 %v1542, 16
      %v1550 = vrot.slane %v1548, 5
      %v1551 = vor.u32 %v1547, %v1550
      %v1552 = vrot.slane %v1551, 4
      %v1554 = vshll.u32 %v1543, 16
      %v1556 = vrot.slane %v1554, 5
      %v1557 = vsel %vm1102, %v1552, %v1556
      %v1558 = vshrl.u32 %v1543, 16
      %v1560 = vrot.slane %v1558, 4
      %v1561 = vor.u32 %v1560, %v1556
      %v1562 = vrot.slane %v1561, 4
      %1563 = vrot.lane.b32.xlu0 %v1557, 32
      %v1564 = vpop.permute.xlu0 %1563
      %1565 = vrot.lane.b32.xlu0 %v1562, 32
      %v1566 = vpop.permute.xlu0 %1565
      %vm1569 = vcmask 519424
      %vm1570 = vmand %vm1569, %vm1531
      %v1571 = vld [vmem:[#allocation3 + $0x10] sm:$0xf]
      %v1572 = vsel %vm1570, %v1564, %v1571
      %1573 = vst [vmem:[#allocation3 + $0x10] sm:$0xf] %v1572
      %vm1574 = vcmask 516352
      %1575 = vst.msk [vmem:[#allocation3 + $0x20] sm:$0x1] %vm1574, %v1566
      %v1576 = vld [vmem:[#allocation2 + $0x10] sm:$0xf0]
      %v1577 = vld [vmem:[#allocation2 + $0x18] sm:$0x1]
      %v1580 = vunpack.c.h.b16 %v1576
      %v1581 = vunpack.c.l.b16 %v1577
      %v1582 = vpack.c.b16 %v1580, %v1580
      %v1583 = vpack.c.b16 %v1581, %v1581
      %1584 = vrot.lane.b32.xlu0 %v1582, 64
      %v1585 = vpop.permute.xlu0 %1584
      %1586 = vrot.lane.b32.xlu0 %v1583, 64
      %v1587 = vpop.permute.xlu0 %1586
      %vm1590 = vcmask 781824
      %vm1591 = vmand %vm1590, %vm1531
      %v1592 = vld [vmem:[#allocation3 + $0x10] sm:$0xf]
      %v1593 = vsel %vm1591, %v1585, %v1592
      %1594 = vst [vmem:[#allocation3 + $0x10] sm:$0xf] %v1593
      %vm1595 = vcmask 778752
      %1596 = vst.msk [vmem:[#allocation3 + $0x20] sm:$0x1] %vm1595, %v1587
      %v1597 = vld [vmem:[#allocation2 + $0x18] sm:$0x3e]
      %v1599 = vunpack.c.l.b16 %v1597
      %v1600 = vunpack.c.h.b16 %v1597
      %v1601 = vpack.c.b16 %v1599, %v1599
      %v1602 = vpack.c.b16 %v1600, %v1600
      %v1603 = vrot.slane %v1601, 5
      %v1604 = vrot.slane %v1603, 4
      %v1605 = vrot.slane %v1602, 5
      %v1606 = vsel %vm1075, %v1604, %v1605
      %v1607 = vrot.slane %v1605, 4
      %1608 = vrot.lane.b32.xlu0 %v1606, 96
      %v1609 = vpop.permute.xlu0 %1608
      %1610 = vrot.lane.b32.xlu0 %v1607, 96
      %v1611 = vpop.permute.xlu0 %1610
      %vm1614 = vcmask 1044224
      %vm1615 = vmand %vm1614, %vm1531
      %v1616 = vld [vmem:[#allocation3 + $0x10] sm:$0xf]
      %v1617 = vsel %vm1615, %v1609, %v1616
      %1618 = vst [vmem:[#allocation3 + $0x10] sm:$0xf] %v1617
      %vm1619 = vcmask 1041152
      %1620 = vst.msk [vmem:[#allocation3 + $0x20] sm:$0x1] %vm1619, %v1611
      %v1621 = vld [vmem:[#allocation2 + $0x18] sm:$0xc0]
      %v1622 = vld [vmem:[#allocation2 + $0x20] sm:$0x7]
      %v1625 = vunpack.c.h.b16 %v1621
      %v1626 = vunpack.c.l.b16 %v1622
      %v1627 = vpack.c.b16 %v1625, %v1625
      %v1628 = vpack.c.b16 %v1626, %v1626
      %v1630 = vshrl.u32 %v1627, 16
      %v1632 = vrot.slane %v1630, 5
      %v1633 = vshll.u32 %v1627, 16
      %v1635 = vrot.slane %v1633, 6
      %v1636 = vor.u32 %v1632, %v1635
      %v1637 = vrot.slane %v1636, 4
      %v1639 = vshrl.u32 %v1628, 16
      %v1641 = vrot.slane %v1639, 5
      %v1642 = vshll.u32 %v1628, 16
      %v1644 = vrot.slane %v1642, 6
      %v1645 = vor.u32 %v1641, %v1644
      %v1646 = vsel %vm1144, %v1637, %v1645
      %v1647 = vrot.slane %v1645, 4
      %v1650 = vld [vmem:[#allocation3 + $0x14] sm:$0xf]
      %v1651 = vsel %vm1532, %v1646, %v1650
      %1652 = vst [vmem:[#allocation3 + $0x14] sm:$0xf] %v1651
      %1653 = vst.msk [vmem:[#allocation3 + $0x24] sm:$0x1] %vm1536, %v1647
      %v1654 = vld [vmem:[#allocation2 + $0x20] sm:$0xf8]
      %v1656 = vunpack.c.l.b16 %v1654
      %v1657 = vunpack.c.h.b16 %v1654
      %v1658 = vpack.c.b16 %v1656, %v1656
      %v1659 = vpack.c.b16 %v1657, %v1657
      %v1661 = vshrl.u32 %v1658, 16
      %v1663 = vrot.slane %v1661, 6
      %v1664 = vshll.u32 %v1658, 16
      %v1666 = vrot.slane %v1664, 7
      %v1667 = vor.u32 %v1663, %v1666
      %v1668 = vrot.slane %v1667, 4
      %v1670 = vshrl.u32 %v1659, 16
      %v1672 = vrot.slane %v1670, 6
      %v1673 = vshll.u32 %v1659, 16
      %v1675 = vrot.slane %v1673, 7
      %v1676 = vor.u32 %v1672, %v1675
      %v1677 = vsel %vm1231, %v1668, %v1676
      %v1678 = vrot.slane %v1676, 4
      %1679 = vrot.lane.b32.xlu0 %v1677, 32
      %v1680 = vpop.permute.xlu0 %1679
      %1681 = vrot.lane.b32.xlu0 %v1678, 32
      %v1682 = vpop.permute.xlu0 %1681
      %v1685 = vld [vmem:[#allocation3 + $0x14] sm:$0xf]
      %v1686 = vsel %vm1570, %v1680, %v1685
      %1687 = vst [vmem:[#allocation3 + $0x14] sm:$0xf] %v1686
      %1688 = vst.msk [vmem:[#allocation3 + $0x24] sm:$0x1] %vm1574, %v1682
      %v1689 = vld [vmem:[#allocation2 + $0x18] sm:$0xc0]
      %v1690 = vld [vmem:[#allocation2 + $0x20] sm:$0x7]
      %v1693 = vunpack.c.h.b16 %v1689
      %v1694 = vunpack.c.l.b16 %v1690
      %v1695 = vpack.c.b16 %v1693, %v1693
      %v1696 = vpack.c.b16 %v1694, %v1694
      %v1697 = vrot.slane %v1695, 6
      %v1698 = vrot.slane %v1697, 4
      %v1699 = vrot.slane %v1696, 6
      %v1700 = vsel %vm1185, %v1698, %v1699
      %v1701 = vrot.slane %v1699, 4
      %1702 = vrot.lane.b32.xlu0 %v1700, 64
      %v1703 = vpop.permute.xlu0 %1702
      %1704 = vrot.lane.b32.xlu0 %v1701, 64
      %v1705 = vpop.permute.xlu0 %1704
      %v1708 = vld [vmem:[#allocation3 + $0x14] sm:$0xf]
      %v1709 = vsel %vm1591, %v1703, %v1708
      %1710 = vst [vmem:[#allocation3 + $0x14] sm:$0xf] %v1709
      %1711 = vst.msk [vmem:[#allocation3 + $0x24] sm:$0x1] %vm1595, %v1705
      %v1712 = vld [vmem:[#allocation2 + $0x20] sm:$0xf8]
      %v1714 = vunpack.c.l.b16 %v1712
      %v1715 = vunpack.c.h.b16 %v1712
      %v1716 = vpack.c.b16 %v1714, %v1714
      %v1717 = vpack.c.b16 %v1715, %v1715
      %v1718 = vrot.slane %v1716, 7
      %v1719 = vrot.slane %v1718, 4
      %v1720 = vrot.slane %v1717, 7
      %v1721 = vsel %vm1207, %v1719, %v1720
      %v1722 = vrot.slane %v1720, 4
      %1723 = vrot.lane.b32.xlu0 %v1721, 96
      %v1724 = vpop.permute.xlu0 %1723
      %1725 = vrot.lane.b32.xlu0 %v1722, 96
      %v1726 = vpop.permute.xlu0 %1725
      %v1729 = vld [vmem:[#allocation3 + $0x14] sm:$0xf]
      %v1730 = vsel %vm1615, %v1724, %v1729
      %1731 = vst [vmem:[#allocation3 + $0x14] sm:$0xf] %v1730
      %1732 = vst.msk [vmem:[#allocation3 + $0x24] sm:$0x1] %vm1619, %v1726
      %v1733 = vld [vmem:[#allocation2 + $0x28] sm:$0x1f]
      %v1735 = vunpack.c.l.b16 %v1733
      %v1736 = vunpack.c.h.b16 %v1733
      %v1737 = vpack.c.b16 %v1735, %v1735
      %v1738 = vpack.c.b16 %v1736, %v1736
      %v1740 = vshrl.u32 %v1737, 16
      %v1742 = vrot.slane %v1740, 7
      %v1743 = vshll.u32 %v1737, 16
      %v1745 = vor.u32 %v1742, %v1743
      %v1746 = vrot.slane %v1742, 4
      %v1748 = vshll.u32 %v1738, 16
      %v1750 = vsel %vm1270, %v1746, %v1748
      %v1753 = vld [vmem:[#allocation3 + $0x18] sm:$0xf]
      %v1754 = vsel %vm1532, %v1745, %v1753
      %1755 = vst [vmem:[#allocation3 + $0x18] sm:$0xf] %v1754
      %1756 = vst.msk [vmem:[#allocation3 + $0x28] sm:$0x1] %vm1536, %v1750
      %v1757 = vld [vmem:[#allocation2 + $0x28] sm:$0xe0]
      %v1758 = vld [vmem:[#allocation2 + $0x30] sm:$0x3]
      %v1761 = vunpack.c.h.b16 %v1757
      %v1762 = vunpack.c.l.b16 %v1758
      %v1763 = vpack.c.b16 %v1761, %v1761
      %v1764 = vpack.c.b16 %v1762, %v1762
      %v1766 = vshrl.u32 %v1763, 16
      %v1768 = vrot.slane %v1766, 4
      %v1769 = vshll.u32 %v1763, 16
      %v1771 = vrot.slane %v1769, 5
      %v1772 = vor.u32 %v1768, %v1771
      %v1773 = vrot.slane %v1772, 4
      %v1775 = vshll.u32 %v1764, 16
      %v1777 = vrot.slane %v1775, 5
      %v1778 = vsel %vm1102, %v1773, %v1777
      %v1779 = vshrl.u32 %v1764, 16
      %v1781 = vrot.slane %v1779, 4
      %v1782 = vor.u32 %v1781, %v1777
      %v1783 = vrot.slane %v1782, 4
      %1784 = vrot.lane.b32.xlu0 %v1778, 32
      %v1785 = vpop.permute.xlu0 %1784
      %1786 = vrot.lane.b32.xlu0 %v1783, 32
      %v1787 = vpop.permute.xlu0 %1786
      %v1790 = vld [vmem:[#allocation3 + $0x18] sm:$0xf]
      %v1791 = vsel %vm1570, %v1785, %v1790
      %1792 = vst [vmem:[#allocation3 + $0x18] sm:$0xf] %v1791
      %1793 = vst.msk [vmem:[#allocation3 + $0x28] sm:$0x1] %vm1574, %v1787
      %v1794 = vld [vmem:[#allocation2 + $0x28] sm:$0x1f]
      %v1796 = vunpack.c.l.b16 %v1794
      %v1797 = vunpack.c.h.b16 %v1794
      %v1798 = vpack.c.b16 %v1796, %v1796
      %v1799 = vpack.c.b16 %v1797, %v1797
      %1800 = vrot.lane.b32.xlu0 %v1798, 64
      %v1801 = vpop.permute.xlu0 %1800
      %1802 = vrot.lane.b32.xlu0 %v1799, 64
      %v1803 = vpop.permute.xlu0 %1802
      %v1806 = vld [vmem:[#allocation3 + $0x18] sm:$0xf]
      %v1807 = vsel %vm1591, %v1801, %v1806
      %1808 = vst [vmem:[#allocation3 + $0x18] sm:$0xf] %v1807
      %1809 = vst.msk [vmem:[#allocation3 + $0x28] sm:$0x1] %vm1595, %v1803
      %v1810 = vld [vmem:[#allocation2 + $0x28] sm:$0xe0]
      %v1811 = vld [vmem:[#allocation2 + $0x30] sm:$0x3]
      %v1814 = vunpack.c.h.b16 %v1810
      %v1815 = vunpack.c.l.b16 %v1811
      %v1816 = vpack.c.b16 %v1814, %v1814
      %v1817 = vpack.c.b16 %v1815, %v1815
      %v1818 = vrot.slane %v1816, 5
      %v1819 = vrot.slane %v1818, 4
      %v1820 = vrot.slane %v1817, 5
      %v1821 = vsel %vm1075, %v1819, %v1820
      %v1822 = vrot.slane %v1820, 4
      %1823 = vrot.lane.b32.xlu0 %v1821, 96
      %v1824 = vpop.permute.xlu0 %1823
      %1825 = vrot.lane.b32.xlu0 %v1822, 96
      %v1826 = vpop.permute.xlu0 %1825
      %v1829 = vld [vmem:[#allocation3 + $0x18] sm:$0xf]
      %v1830 = vsel %vm1615, %v1824, %v1829
      %1831 = vst [vmem:[#allocation3 + $0x18] sm:$0xf] %v1830
      %1832 = vst.msk [vmem:[#allocation3 + $0x28] sm:$0x1] %vm1619, %v1826
      %v1833 = vld [vmem:[#allocation2 + $0x30] sm:$0x7c]
      %v1835 = vunpack.c.l.b16 %v1833
      %v1836 = vunpack.c.h.b16 %v1833
      %v1837 = vpack.c.b16 %v1835, %v1835
      %v1838 = vpack.c.b16 %v1836, %v1836
      %v1840 = vshrl.u32 %v1837, 16
      %v1842 = vrot.slane %v1840, 5
      %v1843 = vshll.u32 %v1837, 16
      %v1845 = vrot.slane %v1843, 6
      %v1846 = vor.u32 %v1842, %v1845
      %v1847 = vrot.slane %v1846, 4
      %v1849 = vshrl.u32 %v1838, 16
      %v1851 = vrot.slane %v1849, 5
      %v1852 = vshll.u32 %v1838, 16
      %v1854 = vrot.slane %v1852, 6
      %v1855 = vor.u32 %v1851, %v1854
      %v1856 = vsel %vm1144, %v1847, %v1855
      %v1857 = vrot.slane %v1855, 4
      %v1860 = vld [vmem:[#allocation3 + $0x1c] sm:$0xf]
      %v1861 = vsel %vm1532, %v1856, %v1860
      %1862 = vst [vmem:[#allocation3 + $0x1c] sm:$0xf] %v1861
      %1863 = vst.msk [vmem:[#allocation3 + $0x2c] sm:$0x1] %vm1536, %v1857
      %v1864 = vld [vmem:[#allocation2 + $0x30] sm:$0x80]
      %v1865 = vld [vmem:[#allocation2 + $0x38] sm:$0xf]
      %v1868 = vunpack.c.h.b16 %v1864
      %v1869 = vunpack.c.l.b16 %v1865
      %v1870 = vpack.c.b16 %v1868, %v1868
      %v1871 = vpack.c.b16 %v1869, %v1869
      %v1873 = vshrl.u32 %v1870, 16
      %v1875 = vrot.slane %v1873, 6
      %v1876 = vshll.u32 %v1870, 16
      %v1878 = vrot.slane %v1876, 7
      %v1879 = vor.u32 %v1875, %v1878
      %v1880 = vrot.slane %v1879, 4
      %v1882 = vshrl.u32 %v1871, 16
      %v1884 = vrot.slane %v1882, 6
      %v1885 = vshll.u32 %v1871, 16
      %v1887 = vrot.slane %v1885, 7
      %v1888 = vor.u32 %v1884, %v1887
      %v1889 = vsel %vm1231, %v1880, %v1888
      %v1890 = vrot.slane %v1888, 4
      %1891 = vrot.lane.b32.xlu0 %v1889, 32
      %v1892 = vpop.permute.xlu0 %1891
      %1893 = vrot.lane.b32.xlu0 %v1890, 32
      %v1894 = vpop.permute.xlu0 %1893
      %v1897 = vld [vmem:[#allocation3 + $0x1c] sm:$0xf]
      %v1898 = vsel %vm1570, %v1892, %v1897
      %1899 = vst [vmem:[#allocation3 + $0x1c] sm:$0xf] %v1898
      %1900 = vst.msk [vmem:[#allocation3 + $0x2c] sm:$0x1] %vm1574, %v1894
      %v1901 = vld [vmem:[#allocation2 + $0x30] sm:$0x7c]
      %v1903 = vunpack.c.l.b16 %v1901
      %v1904 = vunpack.c.h.b16 %v1901
      %v1905 = vpack.c.b16 %v1903, %v1903
      %v1906 = vpack.c.b16 %v1904, %v1904
      %v1907 = vrot.slane %v1905, 6
      %v1908 = vrot.slane %v1907, 4
      %v1909 = vrot.slane %v1906, 6
      %v1910 = vsel %vm1185, %v1908, %v1909
      %v1911 = vrot.slane %v1909, 4
      %1912 = vrot.lane.b32.xlu0 %v1910, 64
      %v1913 = vpop.permute.xlu0 %1912
      %1914 = vrot.lane.b32.xlu0 %v1911, 64
      %v1915 = vpop.permute.xlu0 %1914
      %v1918 = vld [vmem:[#allocation3 + $0x1c] sm:$0xf]
      %v1919 = vsel %vm1591, %v1913, %v1918
      %1920 = vst [vmem:[#allocation3 + $0x1c] sm:$0xf] %v1919
      %1921 = vst.msk [vmem:[#allocation3 + $0x2c] sm:$0x1] %vm1595, %v1915
      %v1922 = vld [vmem:[#allocation2 + $0x30] sm:$0x80]
      %v1923 = vld [vmem:[#allocation2 + $0x38] sm:$0xf]
      %v1926 = vunpack.c.h.b16 %v1922
      %v1927 = vunpack.c.l.b16 %v1923
      %v1928 = vpack.c.b16 %v1926, %v1926
      %v1929 = vpack.c.b16 %v1927, %v1927
      %v1930 = vrot.slane %v1928, 7
      %v1931 = vrot.slane %v1930, 4
      %v1932 = vrot.slane %v1929, 7
      %v1933 = vsel %vm1207, %v1931, %v1932
      %v1934 = vrot.slane %v1932, 4
      %1935 = vrot.lane.b32.xlu0 %v1933, 96
      %v1936 = vpop.permute.xlu0 %1935
      %1937 = vrot.lane.b32.xlu0 %v1934, 96
      %v1938 = vpop.permute.xlu0 %1937
      %v1941 = vld [vmem:[#allocation3 + $0x1c] sm:$0xf]
      %v1942 = vsel %vm1615, %v1936, %v1941
      %1943 = vst [vmem:[#allocation3 + $0x1c] sm:$0xf] %v1942
      %1944 = vst.msk [vmem:[#allocation3 + $0x2c] sm:$0x1] %vm1619, %v1938
      %v1945 = vld [vmem:[#allocation2 + $0x28] sm:$0x1f]
      %v1947 = vunpack.c.l.b16 %v1945
      %v1948 = vunpack.c.h.b16 %v1945
      %v1949 = vpack.c.b16 %v1947, %v1947
      %v1950 = vpack.c.b16 %v1948, %v1948
      %v1951 = vrot.slane %v1949, 7
      %v1952 = vrot.slane %v1951, 4
      %v1953 = vrot.slane %v1950, 7
      %v1954 = vsel %vm1207, %v1952, %v1953
      %vm1957 = vcmask 257025
      %1958 = vst.msk [vmem:[#allocation3 + $0x20] sm:$0xe] %vm1957, %v1951
      %vm1959 = vcmask 254976
      %vm1960 = vmand %vm1959, %vm1229
      %v1961 = vld [vmem:[#allocation3 + $0x30] sm:$0x3]
      %v1962 = vsel %vm1960, %v1954, %v1961
      %1963 = vst [vmem:[#allocation3 + $0x30] sm:$0x3] %v1962
      %v1964 = vld [vmem:[#allocation2 + $0x28] sm:$0xe0]
      %v1965 = vld [vmem:[#allocation2 + $0x30] sm:$0x3]
      %v1968 = vunpack.c.h.b16 %v1964
      %v1969 = vunpack.c.l.b16 %v1965
      %v1970 = vpack.c.b16 %v1968, %v1968
      %v1971 = vpack.c.b16 %v1969, %v1969
      %1972 = vrot.lane.b32.xlu0 %v1970, 32
      %v1973 = vpop.permute.xlu0 %1972
      %1974 = vrot.lane.b32.xlu0 %v1971, 32
      %v1975 = vpop.permute.xlu0 %1974
      %vm1978 = vcmask 519425
      %1979 = vst.msk [vmem:[#allocation3 + $0x20] sm:$0xe] %vm1978, %v1973
      %vm1980 = vcmask 517376
      %vm1981 = vmand %vm1980, %vm1229
      %v1982 = vld [vmem:[#allocation3 + $0x30] sm:$0x3]
      %v1983 = vsel %vm1981, %v1975, %v1982
      %1984 = vst [vmem:[#allocation3 + $0x30] sm:$0x3] %v1983
      %v1985 = vld [vmem:[#allocation2 + $0x28] sm:$0x1f]
      %v1987 = vunpack.c.l.b16 %v1985
      %v1988 = vunpack.c.h.b16 %v1985
      %v1989 = vpack.c.b16 %v1987, %v1987
      %v1990 = vpack.c.b16 %v1988, %v1988
      %v1992 = vshrl.u32 %v1989, 16
      %v1994 = vrot.slane %v1992, 7
      %v1995 = vshll.u32 %v1989, 16
      %v1997 = vor.u32 %v1994, %v1995
      %v1998 = vrot.slane %v1994, 4
      %v2000 = vshrl.u32 %v1990, 16
      %v2002 = vrot.slane %v2000, 7
      %v2003 = vshll.u32 %v1990, 16
      %v2005 = vor.u32 %v2002, %v2003
      %v2006 = vsel %vm1270, %v1998, %v2005
      %2007 = vrot.lane.b32.xlu0 %v1997, 64
      %v2008 = vpop.permute.xlu0 %2007
      %2009 = vrot.lane.b32.xlu0 %v2006, 64
      %v2010 = vpop.permute.xlu0 %2009
      %vm2013 = vcmask 781825
      %2014 = vst.msk [vmem:[#allocation3 + $0x20] sm:$0xe] %vm2013, %v2008
      %vm2015 = vcmask 779776
      %vm2016 = vmand %vm2015, %vm1229
      %v2017 = vld [vmem:[#allocation3 + $0x30] sm:$0x3]
      %v2018 = vsel %vm2016, %v2010, %v2017
      %2019 = vst [vmem:[#allocation3 + $0x30] sm:$0x3] %v2018
      %v2020 = vld [vmem:[#allocation2 + $0x28] sm:$0xe0]
      %v2021 = vld [vmem:[#allocation2 + $0x30] sm:$0x3]
      %v2024 = vunpack.c.h.b16 %v2020
      %v2025 = vunpack.c.l.b16 %v2021
      %v2026 = vpack.c.b16 %v2024, %v2024
      %v2027 = vpack.c.b16 %v2025, %v2025
      %v2029 = vshrl.u32 %v2026, 16
      %v2031 = vrot.slane %v2029, 4
      %v2032 = vshll.u32 %v2026, 16
      %v2034 = vrot.slane %v2032, 5
      %v2035 = vor.u32 %v2031, %v2034
      %v2036 = vrot.slane %v2035, 4
      %v2038 = vshll.u32 %v2027, 16
      %v2040 = vrot.slane %v2038, 5
      %v2041 = vsel %vm1102, %v2036, %v2040
      %v2042 = vshrl.u32 %v2027, 16
      %v2044 = vrot.slane %v2042, 4
      %v2045 = vor.u32 %v2044, %v2040
      %v2046 = vrot.slane %v2045, 4
      %2047 = vrot.lane.b32.xlu0 %v2041, 96
      %v2048 = vpop.permute.xlu0 %2047
      %2049 = vrot.lane.b32.xlu0 %v2046, 96
      %v2050 = vpop.permute.xlu0 %2049
      %vm2053 = vcmask 1044225
      %2054 = vst.msk [vmem:[#allocation3 + $0x20] sm:$0xe] %vm2053, %v2048
      %vm2055 = vcmask 1042176
      %vm2056 = vmand %vm2055, %vm1229
      %v2057 = vld [vmem:[#allocation3 + $0x30] sm:$0x3]
      %v2058 = vsel %vm2056, %v2050, %v2057
      %2059 = vst [vmem:[#allocation3 + $0x30] sm:$0x3] %v2058
      %v2060 = vld [vmem:[#allocation2 + $0x30] sm:$0x7c]
      %v2062 = vunpack.c.l.b16 %v2060
      %v2063 = vunpack.c.h.b16 %v2060
      %v2064 = vpack.c.b16 %v2062, %v2062
      %v2065 = vpack.c.b16 %v2063, %v2063
      %v2066 = vrot.slane %v2064, 5
      %v2067 = vrot.slane %v2066, 4
      %v2068 = vrot.slane %v2065, 5
      %v2069 = vsel %vm1075, %v2067, %v2068
      %v2070 = vrot.slane %v2068, 4
      %2073 = vst.msk [vmem:[#allocation3 + $0x24] sm:$0xe] %vm1957, %v2069
      %v2074 = vld [vmem:[#allocation3 + $0x34] sm:$0x3]
      %v2075 = vsel %vm1960, %v2070, %v2074
      %2076 = vst [vmem:[#allocation3 + $0x34] sm:$0x3] %v2075
      %v2077 = vld [vmem:[#allocation2 + $0x30] sm:$0x80]
      %v2078 = vld [vmem:[#allocation2 + $0x38] sm:$0xf]
      %v2081 = vunpack.c.h.b16 %v2077
      %v2082 = vunpack.c.l.b16 %v2078
      %v2083 = vpack.c.b16 %v2081, %v2081
      %v2084 = vpack.c.b16 %v2082, %v2082
      %v2085 = vrot.slane %v2083, 6
      %v2086 = vrot.slane %v2085, 4
      %v2087 = vrot.slane %v2084, 6
      %v2088 = vsel %vm1185, %v2086, %v2087
      %v2089 = vrot.slane %v2087, 4
      %2090 = vrot.lane.b32.xlu0 %v2088, 32
      %v2091 = vpop.permute.xlu0 %2090
      %2092 = vrot.lane.b32.xlu0 %v2089, 32
      %v2093 = vpop.permute.xlu0 %2092
      %2096 = vst.msk [vmem:[#allocation3 + $0x24] sm:$0xe] %vm1978, %v2091
      %v2097 = vld [vmem:[#allocation3 + $0x34] sm:$0x3]
      %v2098 = vsel %vm1981, %v2093, %v2097
      %2099 = vst [vmem:[#allocation3 + $0x34] sm:$0x3] %v2098
      %v2100 = vld [vmem:[#allocation2 + $0x30] sm:$0x7c]
      %v2102 = vunpack.c.l.b16 %v2100
      %v2103 = vunpack.c.h.b16 %v2100
      %v2104 = vpack.c.b16 %v2102, %v2102
      %v2105 = vpack.c.b16 %v2103, %v2103
      %v2107 = vshrl.u32 %v2104, 16
      %v2109 = vrot.slane %v2107, 5
      %v2110 = vshll.u32 %v2104, 16
      %v2112 = vrot.slane %v2110, 6
      %v2113 = vor.u32 %v2109, %v2112
      %v2114 = vrot.slane %v2113, 4
      %v2116 = vshrl.u32 %v2105, 16
      %v2118 = vrot.slane %v2116, 5
      %v2119 = vshll.u32 %v2105, 16
      %v2121 = vrot.slane %v2119, 6
      %v2122 = vor.u32 %v2118, %v2121
      %v2123 = vsel %vm1144, %v2114, %v2122
      %v2124 = vrot.slane %v2122, 4
      %2125 = vrot.lane.b32.xlu0 %v2123, 64
      %v2126 = vpop.permute.xlu0 %2125
      %2127 = vrot.lane.b32.xlu0 %v2124, 64
      %v2128 = vpop.permute.xlu0 %2127
      %2131 = vst.msk [vmem:[#allocation3 + $0x24] sm:$0xe] %vm2013, %v2126
      %v2132 = vld [vmem:[#allocation3 + $0x34] sm:$0x3]
      %v2133 = vsel %vm2016, %v2128, %v2132
      %2134 = vst [vmem:[#allocation3 + $0x34] sm:$0x3] %v2133
      %v2135 = vld [vmem:[#allocation2 + $0x30] sm:$0x80]
      %v2136 = vld [vmem:[#allocation2 + $0x38] sm:$0xf]
      %v2139 = vunpack.c.h.b16 %v2135
      %v2140 = vunpack.c.l.b16 %v2136
      %v2141 = vpack.c.b16 %v2139, %v2139
      %v2142 = vpack.c.b16 %v2140, %v2140
      %v2144 = vshrl.u32 %v2141, 16
      %v2146 = vrot.slane %v2144, 6
      %v2147 = vrot.slane %v2146, 4
      %v2149 = vshrl.u32 %v2142, 16
      %v2151 = vrot.slane %v2149, 6
      %v2152 = vshll.u32 %v2142, 16
      %v2154 = vrot.slane %v2152, 7
      %v2155 = vor.u32 %v2151, %v2154
      %v2156 = vsel %vm1231, %v2147, %v2155
      %v2157 = vrot.slane %v2155, 4
      %2158 = vrot.lane.b32.xlu0 %v2156, 96
      %v2159 = vpop.permute.xlu0 %2158
      %2160 = vrot.lane.b32.xlu0 %v2157, 96
      %v2161 = vpop.permute.xlu0 %2160
      %2164 = vst.msk [vmem:[#allocation3 + $0x24] sm:$0xe] %vm2053, %v2159
      %v2165 = vld [vmem:[#allocation3 + $0x34] sm:$0x3]
      %v2166 = vsel %vm2056, %v2161, %v2165
      %2167 = vst [vmem:[#allocation3 + $0x34] sm:$0x3] %v2166
      %v2168 = vld [vmem:[#allocation2 + $0x38] sm:$0xf0]
      %v2169 = vld [vmem:[#allocation2 + $0x40] sm:$0x1]
      %v2172 = vunpack.c.h.b16 %v2168
      %v2173 = vunpack.c.l.b16 %v2169
      %v2174 = vpack.c.b16 %v2172, %v2172
      %v2175 = vpack.c.b16 %v2173, %v2173
      %v2176 = vrot.slane %v2174, 7
      %v2177 = vrot.slane %v2176, 4
      %v2178 = vrot.slane %v2175, 7
      %v2179 = vsel %vm1207, %v2177, %v2178
      %2182 = vst.msk [vmem:[#allocation3 + $0x28] sm:$0xe] %vm1957, %v2176
      %v2183 = vld [vmem:[#allocation3 + $0x38] sm:$0x3]
      %v2184 = vsel %vm1960, %v2179, %v2183
      %2185 = vst [vmem:[#allocation3 + $0x38] sm:$0x3] %v2184
      %v2186 = vld [vmem:[#allocation2 + $0x40] sm:$0x3e]
      %v2188 = vunpack.c.l.b16 %v2186
      %v2189 = vunpack.c.h.b16 %v2186
      %v2190 = vpack.c.b16 %v2188, %v2188
      %v2191 = vpack.c.b16 %v2189, %v2189
      %2192 = vrot.lane.b32.xlu0 %v2190, 32
      %v2193 = vpop.permute.xlu0 %2192
      %2194 = vrot.lane.b32.xlu0 %v2191, 32
      %v2195 = vpop.permute.xlu0 %2194
      %2198 = vst.msk [vmem:[#allocation3 + $0x28] sm:$0xe] %vm1978, %v2193
      %v2199 = vld [vmem:[#allocation3 + $0x38] sm:$0x3]
      %v2200 = vsel %vm1981, %v2195, %v2199
      %2201 = vst [vmem:[#allocation3 + $0x38] sm:$0x3] %v2200
      %v2202 = vld [vmem:[#allocation2 + $0x38] sm:$0xf0]
      %v2203 = vld [vmem:[#allocation2 + $0x40] sm:$0x1]
      %v2206 = vunpack.c.h.b16 %v2202
      %v2207 = vunpack.c.l.b16 %v2203
      %v2208 = vpack.c.b16 %v2206, %v2206
      %v2209 = vpack.c.b16 %v2207, %v2207
      %v2211 = vshrl.u32 %v2208, 16
      %v2213 = vrot.slane %v2211, 7
      %v2214 = vshll.u32 %v2208, 16
      %v2216 = vor.u32 %v2213, %v2214
      %v2217 = vrot.slane %v2213, 4
      %v2219 = vshrl.u32 %v2209, 16
      %v2221 = vrot.slane %v2219, 7
      %v2222 = vshll.u32 %v2209, 16
      %v2224 = vor.u32 %v2221, %v2222
      %v2225 = vsel %vm1270, %v2217, %v2224
      %2226 = vrot.lane.b32.xlu0 %v2216, 64
      %v2227 = vpop.permute.xlu0 %2226
      %2228 = vrot.lane.b32.xlu0 %v2225, 64
      %v2229 = vpop.permute.xlu0 %2228
      %2232 = vst.msk [vmem:[#allocation3 + $0x28] sm:$0xe] %vm2013, %v2227
      %v2233 = vld [vmem:[#allocation3 + $0x38] sm:$0x3]
      %v2234 = vsel %vm2016, %v2229, %v2233
      %2235 = vst [vmem:[#allocation3 + $0x38] sm:$0x3] %v2234
      %v2236 = vld [vmem:[#allocation2 + $0x40] sm:$0x3e]
      %v2238 = vunpack.c.l.b16 %v2236
      %v2239 = vunpack.c.h.b16 %v2236
      %v2240 = vpack.c.b16 %v2238, %v2238
      %v2241 = vpack.c.b16 %v2239, %v2239
      %v2243 = vshrl.u32 %v2240, 16
      %v2245 = vrot.slane %v2243, 4
      %v2246 = vshll.u32 %v2240, 16
      %v2248 = vrot.slane %v2246, 5
      %v2249 = vor.u32 %v2245, %v2248
      %v2250 = vrot.slane %v2249, 4
      %v2252 = vshll.u32 %v2241, 16
      %v2254 = vrot.slane %v2252, 5
      %v2255 = vsel %vm1102, %v2250, %v2254
      %v2256 = vshrl.u32 %v2241, 16
      %v2258 = vrot.slane %v2256, 4
      %v2259 = vor.u32 %v2258, %v2254
      %v2260 = vrot.slane %v2259, 4
      %2261 = vrot.lane.b32.xlu0 %v2255, 96
      %v2262 = vpop.permute.xlu0 %2261
      %2263 = vrot.lane.b32.xlu0 %v2260, 96
      %v2264 = vpop.permute.xlu0 %2263
      %2267 = vst.msk [vmem:[#allocation3 + $0x28] sm:$0xe] %vm2053, %v2262
      %v2268 = vld [vmem:[#allocation3 + $0x38] sm:$0x3]
      %v2269 = vsel %vm2056, %v2264, %v2268
      %2270 = vst [vmem:[#allocation3 + $0x38] sm:$0x3] %v2269
      %v2271 = vld [vmem:[#allocation2 + $0x40] sm:$0xc0]
      %v2272 = vld [vmem:[#allocation2 + $0x48] sm:$0x7]
      %v2275 = vunpack.c.h.b16 %v2271
      %v2276 = vunpack.c.l.b16 %v2272
      %v2277 = vpack.c.b16 %v2275, %v2275
      %v2278 = vpack.c.b16 %v2276, %v2276
      %v2279 = vrot.slane %v2277, 5
      %v2280 = vrot.slane %v2279, 4
      %v2281 = vrot.slane %v2278, 5
      %v2282 = vsel %vm1075, %v2280, %v2281
      %v2283 = vrot.slane %v2281, 4
      %2286 = vst.msk [vmem:[#allocation3 + $0x2c] sm:$0xe] %vm1957, %v2282
      %v2287 = vld [vmem:[#allocation3 + $0x3c] sm:$0x3]
      %v2288 = vsel %vm1960, %v2283, %v2287
      %2289 = vst [vmem:[#allocation3 + $0x3c] sm:$0x3] %v2288
      %v2290 = vld [vmem:[#allocation2 + $0x48] sm:$0xf8]
      %v2292 = vunpack.c.l.b16 %v2290
      %v2293 = vunpack.c.h.b16 %v2290
      %v2294 = vpack.c.b16 %v2292, %v2292
      %v2295 = vpack.c.b16 %v2293, %v2293
      %v2296 = vrot.slane %v2294, 6
      %v2297 = vrot.slane %v2296, 4
      %v2298 = vrot.slane %v2295, 6
      %v2299 = vsel %vm1185, %v2297, %v2298
      %v2300 = vrot.slane %v2298, 4
      %2301 = vrot.lane.b32.xlu0 %v2299, 32
      %v2302 = vpop.permute.xlu0 %2301
      %2303 = vrot.lane.b32.xlu0 %v2300, 32
      %v2304 = vpop.permute.xlu0 %2303
      %2307 = vst.msk [vmem:[#allocation3 + $0x2c] sm:$0xe] %vm1978, %v2302
      %v2308 = vld [vmem:[#allocation3 + $0x3c] sm:$0x3]
      %v2309 = vsel %vm1981, %v2304, %v2308
      %2310 = vst [vmem:[#allocation3 + $0x3c] sm:$0x3] %v2309
      %v2311 = vld [vmem:[#allocation2 + $0x40] sm:$0xc0]
      %v2312 = vld [vmem:[#allocation2 + $0x48] sm:$0x7]
      %v2315 = vunpack.c.h.b16 %v2311
      %v2316 = vunpack.c.l.b16 %v2312
      %v2317 = vpack.c.b16 %v2315, %v2315
      %v2318 = vpack.c.b16 %v2316, %v2316
      %v2320 = vshrl.u32 %v2317, 16
      %v2322 = vrot.slane %v2320, 5
      %v2323 = vshll.u32 %v2317, 16
      %v2325 = vrot.slane %v2323, 6
      %v2326 = vor.u32 %v2322, %v2325
      %v2327 = vrot.slane %v2326, 4
      %v2329 = vshrl.u32 %v2318, 16
      %v2331 = vrot.slane %v2329, 5
      %v2332 = vshll.u32 %v2318, 16
      %v2334 = vrot.slane %v2332, 6
      %v2335 = vor.u32 %v2331, %v2334
      %v2336 = vsel %vm1144, %v2327, %v2335
      %v2337 = vrot.slane %v2335, 4
      %2338 = vrot.lane.b32.xlu0 %v2336, 64
      %v2339 = vpop.permute.xlu0 %2338
      %2340 = vrot.lane.b32.xlu0 %v2337, 64
      %v2341 = vpop.permute.xlu0 %2340
      %2344 = vst.msk [vmem:[#allocation3 + $0x2c] sm:$0xe] %vm2013, %v2339
      %v2345 = vld [vmem:[#allocation3 + $0x3c] sm:$0x3]
      %v2346 = vsel %vm2016, %v2341, %v2345
      %2347 = vst [vmem:[#allocation3 + $0x3c] sm:$0x3] %v2346
      %v2348 = vld [vmem:[#allocation2 + $0x48] sm:$0xf8]
      %v2350 = vunpack.c.l.b16 %v2348
      %v2351 = vunpack.c.h.b16 %v2348
      %v2352 = vpack.c.b16 %v2350, %v2350
      %v2353 = vpack.c.b16 %v2351, %v2351
      %v2355 = vshrl.u32 %v2352, 16
      %v2357 = vrot.slane %v2355, 6
      %v2358 = vrot.slane %v2357, 4
      %v2360 = vshrl.u32 %v2353, 16
      %v2362 = vrot.slane %v2360, 6
      %v2363 = vshll.u32 %v2353, 16
      %v2365 = vrot.slane %v2363, 7
      %v2366 = vor.u32 %v2362, %v2365
      %v2367 = vsel %vm1231, %v2358, %v2366
      %v2368 = vrot.slane %v2366, 4
      %2369 = vrot.lane.b32.xlu0 %v2367, 96
      %v2370 = vpop.permute.xlu0 %2369
      %2371 = vrot.lane.b32.xlu0 %v2368, 96
      %v2372 = vpop.permute.xlu0 %2371
      %2375 = vst.msk [vmem:[#allocation3 + $0x2c] sm:$0xe] %vm2053, %v2370
      %v2376 = vld [vmem:[#allocation3 + $0x3c] sm:$0x3]
      %v2377 = vsel %vm2056, %v2372, %v2376
      %2378 = vst [vmem:[#allocation3 + $0x3c] sm:$0x3] %v2377
      %v2379 = vld [vmem:[#allocation2 + $0x38] sm:$0xf0]
      %v2380 = vld [vmem:[#allocation2 + $0x40] sm:$0x1]
      %v2383 = vunpack.c.h.b16 %v2379
      %v2384 = vunpack.c.l.b16 %v2380
      %v2385 = vpack.c.b16 %v2383, %v2383
      %v2386 = vpack.c.b16 %v2384, %v2384
      %v2388 = vshrl.u32 %v2385, 16
      %v2390 = vrot.slane %v2388, 6
      %v2391 = vshll.u32 %v2385, 16
      %v2393 = vrot.slane %v2391, 7
      %v2394 = vor.u32 %v2390, %v2393
      %v2395 = vrot.slane %v2394, 4
      %v2397 = vshll.u32 %v2386, 16
      %v2399 = vrot.slane %v2397, 7
      %v2400 = vsel %vm1231, %v2395, %v2399
      %vm2403 = vcmask 257025
      %vm2404 = vsmask.f32 7942
      %vm2405 = vmand %vm2403, %vm2404
      %v2406 = vld [vmem:[#allocation3 + $0x30] sm:$0xe]
      %v2407 = vsel %vm2405, %v2394, %v2406
      %2408 = vst [vmem:[#allocation3 + $0x30] sm:$0xe] %v2407
      %vm2409 = vcmask 254976
      %2410 = vst.msk [vmem:[#allocation3 + $0x40] sm:$0x3] %vm2409, %v2400
      %v2411 = vld [vmem:[#allocation2 + $0x40] sm:$0x3e]
      %v2413 = vunpack.c.l.b16 %v2411
      %v2414 = vunpack.c.h.b16 %v2411
      %v2415 = vpack.c.b16 %v2413, %v2413
      %v2416 = vpack.c.b16 %v2414, %v2414
      %v2418 = vshrl.u32 %v2415, 16
      %v2420 = vrot.slane %v2418, 7
      %v2421 = vshll.u32 %v2415, 16
      %v2423 = vor.u32 %v2420, %v2421
      %v2424 = vrot.slane %v2420, 4
      %v2426 = vshrl.u32 %v2416, 16
      %v2428 = vrot.slane %v2426, 7
      %v2429 = vshll.u32 %v2416, 16
      %v2431 = vor.u32 %v2428, %v2429
      %v2432 = vsel %vm1270, %v2424, %v2431
      %2433 = vrot.lane.b32.xlu0 %v2423, 32
      %v2434 = vpop.permute.xlu0 %2433
      %2435 = vrot.lane.b32.xlu0 %v2432, 32
      %v2436 = vpop.permute.xlu0 %2435
      %vm2439 = vcmask 519425
      %vm2440 = vmand %vm2439, %vm2404
      %v2441 = vld [vmem:[#allocation3 + $0x30] sm:$0xe]
      %v2442 = vsel %vm2440, %v2434, %v2441
      %2443 = vst [vmem:[#allocation3 + $0x30] sm:$0xe] %v2442
      %vm2444 = vcmask 517376
      %2445 = vst.msk [vmem:[#allocation3 + $0x40] sm:$0x3] %vm2444, %v2436
      %v2446 = vld [vmem:[#allocation2 + $0x38] sm:$0xf0]
      %v2447 = vld [vmem:[#allocation2 + $0x40] sm:$0x1]
      %v2450 = vunpack.c.h.b16 %v2446
      %v2451 = vunpack.c.l.b16 %v2447
      %v2452 = vpack.c.b16 %v2450, %v2450
      %v2453 = vpack.c.b16 %v2451, %v2451
      %v2454 = vrot.slane %v2452, 7
      %v2455 = vrot.slane %v2454, 4
      %v2456 = vrot.slane %v2453, 7
      %v2457 = vsel %vm1207, %v2455, %v2456
      %2458 = vrot.lane.b32.xlu0 %v2454, 64
      %v2459 = vpop.permute.xlu0 %2458
      %2460 = vrot.lane.b32.xlu0 %v2457, 64
      %v2461 = vpop.permute.xlu0 %2460
      %vm2464 = vcmask 781825
      %vm2465 = vmand %vm2464, %vm2404
      %v2466 = vld [vmem:[#allocation3 + $0x30] sm:$0xe]
      %v2467 = vsel %vm2465, %v2459, %v2466
      %2468 = vst [vmem:[#allocation3 + $0x30] sm:$0xe] %v2467
      %vm2469 = vcmask 779776
      %2470 = vst.msk [vmem:[#allocation3 + $0x40] sm:$0x3] %vm2469, %v2461
      %v2471 = vld [vmem:[#allocation2 + $0x40] sm:$0x3e]
      %v2473 = vunpack.c.l.b16 %v2471
      %v2474 = vunpack.c.h.b16 %v2471
      %v2475 = vpack.c.b16 %v2473, %v2473
      %v2476 = vpack.c.b16 %v2474, %v2474
      %2477 = vrot.lane.b32.xlu0 %v2475, 96
      %v2478 = vpop.permute.xlu0 %2477
      %2479 = vrot.lane.b32.xlu0 %v2476, 96
      %v2480 = vpop.permute.xlu0 %2479
      %vm2483 = vcmask 1044225
      %vm2484 = vmand %vm2483, %vm2404
      %v2485 = vld [vmem:[#allocation3 + $0x30] sm:$0xe]
      %v2486 = vsel %vm2484, %v2478, %v2485
      %2487 = vst [vmem:[#allocation3 + $0x30] sm:$0xe] %v2486
      %vm2488 = vcmask 1042176
      %2489 = vst.msk [vmem:[#allocation3 + $0x40] sm:$0x3] %vm2488, %v2480
      %v2490 = vld [vmem:[#allocation2 + $0x40] sm:$0xc0]
      %v2491 = vld [vmem:[#allocation2 + $0x48] sm:$0x7]
      %v2494 = vunpack.c.h.b16 %v2490
      %v2495 = vunpack.c.l.b16 %v2491
      %v2496 = vpack.c.b16 %v2494, %v2494
      %v2497 = vpack.c.b16 %v2495, %v2495
      %v2499 = vshrl.u32 %v2496, 16
      %v2501 = vrot.slane %v2499, 4
      %v2502 = vshll.u32 %v2496, 16
      %v2504 = vrot.slane %v2502, 5
      %v2505 = vor.u32 %v2501, %v2504
      %v2506 = vrot.slane %v2505, 4
      %v2508 = vshll.u32 %v2497, 16
      %v2510 = vrot.slane %v2508, 5
      %v2511 = vsel %vm1102, %v2506, %v2510
      %v2512 = vshrl.u32 %v2497, 16
      %v2514 = vrot.slane %v2512, 4
      %v2515 = vor.u32 %v2514, %v2510
      %v2516 = vrot.slane %v2515, 4
      %v2519 = vld [vmem:[#allocation3 + $0x34] sm:$0xe]
      %v2520 = vsel %vm2405, %v2511, %v2519
      %2521 = vst [vmem:[#allocation3 + $0x34] sm:$0xe] %v2520
      %2522 = vst.msk [vmem:[#allocation3 + $0x44] sm:$0x3] %vm2409, %v2516
      %v2523 = vld [vmem:[#allocation2 + $0x48] sm:$0xf8]
      %v2525 = vunpack.c.l.b16 %v2523
      %v2526 = vunpack.c.h.b16 %v2523
      %v2527 = vpack.c.b16 %v2525, %v2525
      %v2528 = vpack.c.b16 %v2526, %v2526
      %v2530 = vshrl.u32 %v2527, 16
      %v2532 = vrot.slane %v2530, 5
      %v2533 = vshll.u32 %v2527, 16
      %v2535 = vrot.slane %v2533, 6
      %v2536 = vor.u32 %v2532, %v2535
      %v2537 = vrot.slane %v2536, 4
      %v2539 = vshrl.u32 %v2528, 16
      %v2541 = vrot.slane %v2539, 5
      %v2542 = vshll.u32 %v2528, 16
      %v2544 = vrot.slane %v2542, 6
      %v2545 = vor.u32 %v2541, %v2544
      %v2546 = vsel %vm1144, %v2537, %v2545
      %v2547 = vrot.slane %v2545, 4
      %2548 = vrot.lane.b32.xlu0 %v2546, 32
      %v2549 = vpop.permute.xlu0 %2548
      %2550 = vrot.lane.b32.xlu0 %v2547, 32
      %v2551 = vpop.permute.xlu0 %2550
      %v2554 = vld [vmem:[#allocation3 + $0x34] sm:$0xe]
      %v2555 = vsel %vm2440, %v2549, %v2554
      %2556 = vst [vmem:[#allocation3 + $0x34] sm:$0xe] %v2555
      %2557 = vst.msk [vmem:[#allocation3 + $0x44] sm:$0x3] %vm2444, %v2551
      %v2558 = vld [vmem:[#allocation2 + $0x40] sm:$0xc0]
      %v2559 = vld [vmem:[#allocation2 + $0x48] sm:$0x7]
      %v2562 = vunpack.c.h.b16 %v2558
      %v2563 = vunpack.c.l.b16 %v2559
      %v2564 = vpack.c.b16 %v2562, %v2562
      %v2565 = vpack.c.b16 %v2563, %v2563
      %v2566 = vrot.slane %v2564, 5
      %v2567 = vrot.slane %v2566, 4
      %v2568 = vrot.slane %v2565, 5
      %v2569 = vsel %vm1075, %v2567, %v2568
      %v2570 = vrot.slane %v2568, 4
      %2571 = vrot.lane.b32.xlu0 %v2569, 64
      %v2572 = vpop.permute.xlu0 %2571
      %2573 = vrot.lane.b32.xlu0 %v2570, 64
      %v2574 = vpop.permute.xlu0 %2573
      %v2577 = vld [vmem:[#allocation3 + $0x34] sm:$0xe]
      %v2578 = vsel %vm2465, %v2572, %v2577
      %2579 = vst [vmem:[#allocation3 + $0x34] sm:$0xe] %v2578
      %2580 = vst.msk [vmem:[#allocation3 + $0x44] sm:$0x3] %vm2469, %v2574
      %v2581 = vld [vmem:[#allocation2 + $0x48] sm:$0xf8]
      %v2583 = vunpack.c.l.b16 %v2581
      %v2584 = vunpack.c.h.b16 %v2581
      %v2585 = vpack.c.b16 %v2583, %v2583
      %v2586 = vpack.c.b16 %v2584, %v2584
      %v2587 = vrot.slane %v2585, 6
      %v2588 = vrot.slane %v2587, 4
      %v2589 = vrot.slane %v2586, 6
      %v2590 = vsel %vm1185, %v2588, %v2589
      %v2591 = vrot.slane %v2589, 4
      %2592 = vrot.lane.b32.xlu0 %v2590, 96
      %v2593 = vpop.permute.xlu0 %2592
      %2594 = vrot.lane.b32.xlu0 %v2591, 96
      %v2595 = vpop.permute.xlu0 %2594
      %v2598 = vld [vmem:[#allocation3 + $0x34] sm:$0xe]
      %v2599 = vsel %vm2484, %v2593, %v2598
      %2600 = vst [vmem:[#allocation3 + $0x34] sm:$0xe] %v2599
      %2601 = vst.msk [vmem:[#allocation3 + $0x44] sm:$0x3] %vm2488, %v2595
      %v2602 = vld [vmem:[#allocation2 + $0x50] sm:$0x1f]
      %v2604 = vunpack.c.l.b16 %v2602
      %v2605 = vunpack.c.h.b16 %v2602
      %v2606 = vpack.c.b16 %v2604, %v2604
      %v2607 = vpack.c.b16 %v2605, %v2605
      %v2609 = vshrl.u32 %v2606, 16
      %v2611 = vrot.slane %v2609, 6
      %v2612 = vshll.u32 %v2606, 16
      %v2614 = vrot.slane %v2612, 7
      %v2615 = vor.u32 %v2611, %v2614
      %v2616 = vrot.slane %v2615, 4
      %v2618 = vshll.u32 %v2607, 16
      %v2620 = vrot.slane %v2618, 7
      %v2621 = vsel %vm1231, %v2616, %v2620
      %v2624 = vld [vmem:[#allocation3 + $0x38] sm:$0xe]
      %v2625 = vsel %vm2405, %v2615, %v2624
      %2626 = vst [vmem:[#allocation3 + $0x38] sm:$0xe] %v2625
      %2627 = vst.msk [vmem:[#allocation3 + $0x48] sm:$0x3] %vm2409, %v2621
      %v2628 = vld [vmem:[#allocation2 + $0x50] sm:$0xe0]
      %v2629 = vld [vmem:[#allocation2 + $0x58] sm:$0x3]
      %v2632 = vunpack.c.h.b16 %v2628
      %v2633 = vunpack.c.l.b16 %v2629
      %v2634 = vpack.c.b16 %v2632, %v2632
      %v2635 = vpack.c.b16 %v2633, %v2633
      %v2637 = vshrl.u32 %v2634, 16
      %v2639 = vrot.slane %v2637, 7
      %v2640 = vshll.u32 %v2634, 16
      %v2642 = vor.u32 %v2639, %v2640
      %v2643 = vrot.slane %v2639, 4
      %v2645 = vshrl.u32 %v2635, 16
      %v2647 = vrot.slane %v2645, 7
      %v2648 = vshll.u32 %v2635, 16
      %v2650 = vor.u32 %v2647, %v2648
      %v2651 = vsel %vm1270, %v2643, %v2650
      %2652 = vrot.lane.b32.xlu0 %v2642, 32
      %v2653 = vpop.permute.xlu0 %2652
      %2654 = vrot.lane.b32.xlu0 %v2651, 32
      %v2655 = vpop.permute.xlu0 %2654
      %v2658 = vld [vmem:[#allocation3 + $0x38] sm:$0xe]
      %v2659 = vsel %vm2440, %v2653, %v2658
      %2660 = vst [vmem:[#allocation3 + $0x38] sm:$0xe] %v2659
      %2661 = vst.msk [vmem:[#allocation3 + $0x48] sm:$0x3] %vm2444, %v2655
      %v2662 = vld [vmem:[#allocation2 + $0x50] sm:$0x1f]
      %v2664 = vunpack.c.l.b16 %v2662
      %v2665 = vunpack.c.h.b16 %v2662
      %v2666 = vpack.c.b16 %v2664, %v2664
      %v2667 = vpack.c.b16 %v2665, %v2665
      %v2668 = vrot.slane %v2666, 7
      %v2669 = vrot.slane %v2668, 4
      %v2670 = vrot.slane %v2667, 7
      %v2671 = vsel %vm1207, %v2669, %v2670
      %2672 = vrot.lane.b32.xlu0 %v2668, 64
      %v2673 = vpop.permute.xlu0 %2672
      %2674 = vrot.lane.b32.xlu0 %v2671, 64
      %v2675 = vpop.permute.xlu0 %2674
      %v2678 = vld [vmem:[#allocation3 + $0x38] sm:$0xe]
      %v2679 = vsel %vm2465, %v2673, %v2678
      %2680 = vst [vmem:[#allocation3 + $0x38] sm:$0xe] %v2679
      %2681 = vst.msk [vmem:[#allocation3 + $0x48] sm:$0x3] %vm2469, %v2675
      %v2682 = vld [vmem:[#allocation2 + $0x50] sm:$0xe0]
      %v2683 = vld [vmem:[#allocation2 + $0x58] sm:$0x3]
      %v2686 = vunpack.c.h.b16 %v2682
      %v2687 = vunpack.c.l.b16 %v2683
      %v2688 = vpack.c.b16 %v2686, %v2686
      %v2689 = vpack.c.b16 %v2687, %v2687
      %2690 = vrot.lane.b32.xlu0 %v2688, 96
      %v2691 = vpop.permute.xlu0 %2690
      %2692 = vrot.lane.b32.xlu0 %v2689, 96
      %v2693 = vpop.permute.xlu0 %2692
      %v2696 = vld [vmem:[#allocation3 + $0x38] sm:$0xe]
      %v2697 = vsel %vm2484, %v2691, %v2696
      %2698 = vst [vmem:[#allocation3 + $0x38] sm:$0xe] %v2697
      %2699 = vst.msk [vmem:[#allocation3 + $0x48] sm:$0x3] %vm2488, %v2693
      %v2700 = vld [vmem:[#allocation2 + $0x58] sm:$0x7c]
      %v2702 = vunpack.c.l.b16 %v2700
      %v2703 = vunpack.c.h.b16 %v2700
      %v2704 = vpack.c.b16 %v2702, %v2702
      %v2705 = vpack.c.b16 %v2703, %v2703
      %v2707 = vshrl.u32 %v2704, 16
      %v2709 = vrot.slane %v2707, 4
      %v2710 = vshll.u32 %v2704, 16
      %v2712 = vrot.slane %v2710, 5
      %v2713 = vor.u32 %v2709, %v2712
      %v2714 = vrot.slane %v2713, 4
      %v2716 = vshll.u32 %v2705, 16
      %v2718 = vrot.slane %v2716, 5
      %v2719 = vsel %vm1102, %v2714, %v2718
      %v2720 = vshrl.u32 %v2705, 16
      %v2722 = vrot.slane %v2720, 4
      %v2723 = vor.u32 %v2722, %v2718
      %v2724 = vrot.slane %v2723, 4
      %v2727 = vld [vmem:[#allocation3 + $0x3c] sm:$0xe]
      %v2728 = vsel %vm2405, %v2719, %v2727
      %2729 = vst [vmem:[#allocation3 + $0x3c] sm:$0xe] %v2728
      %2730 = vst.msk [vmem:[#allocation3 + $0x4c] sm:$0x3] %vm2409, %v2724
      %v2731 = vld [vmem:[#allocation2 + $0x58] sm:$0x80]
      %v2732 = vld [vmem:[#allocation2 + $0x60] sm:$0xf]
      %v2735 = vunpack.c.h.b16 %v2731
      %v2736 = vunpack.c.l.b16 %v2732
      %v2737 = vpack.c.b16 %v2735, %v2735
      %v2738 = vpack.c.b16 %v2736, %v2736
      %v2740 = vshrl.u32 %v2737, 16
      %v2742 = vrot.slane %v2740, 5
      %v2743 = vshll.u32 %v2737, 16
      %v2745 = vrot.slane %v2743, 6
      %v2746 = vor.u32 %v2742, %v2745
      %v2747 = vrot.slane %v2746, 4
      %v2749 = vshrl.u32 %v2738, 16
      %v2751 = vrot.slane %v2749, 5
      %v2752 = vshll.u32 %v2738, 16
      %v2754 = vrot.slane %v2752, 6
      %v2755 = vor.u32 %v2751, %v2754
      %v2756 = vsel %vm1144, %v2747, %v2755
      %v2757 = vrot.slane %v2755, 4
      %2758 = vrot.lane.b32.xlu0 %v2756, 32
      %v2759 = vpop.permute.xlu0 %2758
      %2760 = vrot.lane.b32.xlu0 %v2757, 32
      %v2761 = vpop.permute.xlu0 %2760
      %v2764 = vld [vmem:[#allocation3 + $0x3c] sm:$0xe]
      %v2765 = vsel %vm2440, %v2759, %v2764
      %2766 = vst [vmem:[#allocation3 + $0x3c] sm:$0xe] %v2765
      %2767 = vst.msk [vmem:[#allocation3 + $0x4c] sm:$0x3] %vm2444, %v2761
      %v2768 = vld [vmem:[#allocation2 + $0x58] sm:$0x7c]
      %v2770 = vunpack.c.l.b16 %v2768
      %v2771 = vunpack.c.h.b16 %v2768
      %v2772 = vpack.c.b16 %v2770, %v2770
      %v2773 = vpack.c.b16 %v2771, %v2771
      %v2774 = vrot.slane %v2772, 5
      %v2775 = vrot.slane %v2774, 4
      %v2776 = vrot.slane %v2773, 5
      %v2777 = vsel %vm1075, %v2775, %v2776
      %v2778 = vrot.slane %v2776, 4
      %2779 = vrot.lane.b32.xlu0 %v2777, 64
      %v2780 = vpop.permute.xlu0 %2779
      %2781 = vrot.lane.b32.xlu0 %v2778, 64
      %v2782 = vpop.permute.xlu0 %2781
      %v2785 = vld [vmem:[#allocation3 + $0x3c] sm:$0xe]
      %v2786 = vsel %vm2465, %v2780, %v2785
      %2787 = vst [vmem:[#allocation3 + $0x3c] sm:$0xe] %v2786
      %2788 = vst.msk [vmem:[#allocation3 + $0x4c] sm:$0x3] %vm2469, %v2782
      %v2789 = vld [vmem:[#allocation2 + $0x58] sm:$0x80]
      %v2790 = vld [vmem:[#allocation2 + $0x60] sm:$0xf]
      %v2793 = vunpack.c.h.b16 %v2789
      %v2794 = vunpack.c.l.b16 %v2790
      %v2795 = vpack.c.b16 %v2793, %v2793
      %v2796 = vpack.c.b16 %v2794, %v2794
      %v2797 = vrot.slane %v2795, 6
      %v2798 = vrot.slane %v2797, 4
      %v2799 = vrot.slane %v2796, 6
      %v2800 = vsel %vm1185, %v2798, %v2799
      %v2801 = vrot.slane %v2799, 4
      %2802 = vrot.lane.b32.xlu0 %v2800, 96
      %v2803 = vpop.permute.xlu0 %2802
      %2804 = vrot.lane.b32.xlu0 %v2801, 96
      %v2805 = vpop.permute.xlu0 %2804
      %v2808 = vld [vmem:[#allocation3 + $0x3c] sm:$0xe]
      %v2809 = vsel %vm2484, %v2803, %v2808
      %2810 = vst [vmem:[#allocation3 + $0x3c] sm:$0xe] %v2809
      %2811 = vst.msk [vmem:[#allocation3 + $0x4c] sm:$0x3] %vm2488, %v2805
      %v2812 = vld [vmem:[#allocation2 + $0x50] sm:$0x1f]
      %v2814 = vunpack.c.l.b16 %v2812
      %v2815 = vunpack.c.h.b16 %v2812
      %v2816 = vpack.c.b16 %v2814, %v2814
      %v2817 = vpack.c.b16 %v2815, %v2815
      %v2818 = vrot.slane %v2816, 6
      %v2819 = vrot.slane %v2818, 4
      %v2820 = vrot.slane %v2817, 6
      %v2821 = vsel %vm1185, %v2819, %v2820
      %vm2824 = vcmask 257026
      %2825 = vst.msk [vmem:[#allocation3 + $0x40] sm:$0xc] %vm2824, %v2818
      %vm2826 = vcmask 256000
      %vm2827 = vmand %vm2826, %vm1142
      %v2828 = vld [vmem:[#allocation3 + $0x50] sm:$0x7]
      %v2829 = vsel %vm2827, %v2821, %v2828
      %2830 = vst [vmem:[#allocation3 + $0x50] sm:$0x7] %v2829
      %v2831 = vld [vmem:[#allocation2 + $0x50] sm:$0xe0]
      %v2832 = vld [vmem:[#allocation2 + $0x58] sm:$0x3]
      %v2835 = vunpack.c.h.b16 %v2831
      %v2836 = vunpack.c.l.b16 %v2832
      %v2837 = vpack.c.b16 %v2835, %v2835
      %v2838 = vpack.c.b16 %v2836, %v2836
      %v2839 = vrot.slane %v2837, 7
      %v2840 = vrot.slane %v2839, 4
      %v2841 = vrot.slane %v2838, 7
      %v2842 = vsel %vm1207, %v2840, %v2841
      %2843 = vrot.lane.b32.xlu0 %v2839, 32
      %v2844 = vpop.permute.xlu0 %2843
      %2845 = vrot.lane.b32.xlu0 %v2842, 32
      %v2846 = vpop.permute.xlu0 %2845
      %vm2849 = vcmask 519426
      %2850 = vst.msk [vmem:[#allocation3 + $0x40] sm:$0xc] %vm2849, %v2844
      %vm2851 = vcmask 518400
      %vm2852 = vmand %vm2851, %vm1142
      %v2853 = vld [vmem:[#allocation3 + $0x50] sm:$0x7]
      %v2854 = vsel %vm2852, %v2846, %v2853
      %2855 = vst [vmem:[#allocation3 + $0x50] sm:$0x7] %v2854
      %v2856 = vld [vmem:[#allocation2 + $0x50] sm:$0x1f]
      %v2858 = vunpack.c.l.b16 %v2856
      %v2859 = vunpack.c.h.b16 %v2856
      %v2860 = vpack.c.b16 %v2858, %v2858
      %v2861 = vpack.c.b16 %v2859, %v2859
      %v2863 = vshrl.u32 %v2860, 16
      %v2865 = vrot.slane %v2863, 6
      %v2866 = vshll.u32 %v2860, 16
      %v2868 = vrot.slane %v2866, 7
      %v2869 = vor.u32 %v2865, %v2868
      %v2870 = vrot.slane %v2869, 4
      %v2872 = vshrl.u32 %v2861, 16
      %v2874 = vrot.slane %v2872, 6
      %v2875 = vshll.u32 %v2861, 16
      %v2877 = vrot.slane %v2875, 7
      %v2878 = vor.u32 %v2874, %v2877
      %v2879 = vsel %vm1231, %v2870, %v2878
      %2880 = vrot.lane.b32.xlu0 %v2869, 64
      %v2881 = vpop.permute.xlu0 %2880
      %2882 = vrot.lane.b32.xlu0 %v2879, 64
      %v2883 = vpop.permute.xlu0 %2882
      %vm2886 = vcmask 781826
      %2887 = vst.msk [vmem:[#allocation3 + $0x40] sm:$0xc] %vm2886, %v2881
      %vm2888 = vcmask 780800
      %vm2889 = vmand %vm2888, %vm1142
      %v2890 = vld [vmem:[#allocation3 + $0x50] sm:$0x7]
      %v2891 = vsel %vm2889, %v2883, %v2890
      %2892 = vst [vmem:[#allocation3 + $0x50] sm:$0x7] %v2891
      %v2893 = vld [vmem:[#allocation2 + $0x50] sm:$0xe0]
      %v2894 = vld [vmem:[#allocation2 + $0x58] sm:$0x3]
      %v2897 = vunpack.c.h.b16 %v2893
      %v2898 = vunpack.c.l.b16 %v2894
      %v2899 = vpack.c.b16 %v2897, %v2897
      %v2900 = vpack.c.b16 %v2898, %v2898
      %v2902 = vshrl.u32 %v2899, 16
      %v2904 = vrot.slane %v2902, 7
      %v2905 = vshll.u32 %v2899, 16
      %v2907 = vor.u32 %v2904, %v2905
      %v2908 = vrot.slane %v2904, 4
      %v2910 = vshrl.u32 %v2900, 16
      %v2912 = vrot.slane %v2910, 7
      %v2913 = vshll.u32 %v2900, 16
      %v2915 = vor.u32 %v2912, %v2913
      %v2916 = vsel %vm1270, %v2908, %v2915
      %2917 = vrot.lane.b32.xlu0 %v2907, 96
      %v2918 = vpop.permute.xlu0 %2917
      %2919 = vrot.lane.b32.xlu0 %v2916, 96
      %v2920 = vpop.permute.xlu0 %2919
      %vm2923 = vcmask 1044226
      %2924 = vst.msk [vmem:[#allocation3 + $0x40] sm:$0xc] %vm2923, %v2918
      %vm2925 = vcmask 1043200
      %vm2926 = vmand %vm2925, %vm1142
      %v2927 = vld [vmem:[#allocation3 + $0x50] sm:$0x7]
      %v2928 = vsel %vm2926, %v2920, %v2927
      %2929 = vst [vmem:[#allocation3 + $0x50] sm:$0x7] %v2928
      %v2930 = vld [vmem:[#allocation2 + $0x58] sm:$0x7c]
      %v2932 = vunpack.c.l.b16 %v2930
      %v2933 = vunpack.c.h.b16 %v2930
      %v2934 = vpack.c.b16 %v2932, %v2932
      %v2935 = vpack.c.b16 %v2933, %v2933
      %2938 = vst.msk [vmem:[#allocation3 + $0x44] sm:$0xc] %vm2824, %v2934
      %v2939 = vld [vmem:[#allocation3 + $0x54] sm:$0x7]
      %v2940 = vsel %vm2827, %v2935, %v2939
      %2941 = vst [vmem:[#allocation3 + $0x54] sm:$0x7] %v2940
      %v2942 = vld [vmem:[#allocation2 + $0x58] sm:$0x80]
      %v2943 = vld [vmem:[#allocation2 + $0x60] sm:$0xf]
      %v2946 = vunpack.c.h.b16 %v2942
      %v2947 = vunpack.c.l.b16 %v2943
      %v2948 = vpack.c.b16 %v2946, %v2946
      %v2949 = vpack.c.b16 %v2947, %v2947
      %v2950 = vrot.slane %v2948, 5
      %v2951 = vrot.slane %v2950, 4
      %v2952 = vrot.slane %v2949, 5
      %v2953 = vsel %vm1075, %v2951, %v2952
      %v2954 = vrot.slane %v2952, 4
      %2955 = vrot.lane.b32.xlu0 %v2953, 32
      %v2956 = vpop.permute.xlu0 %2955
      %2957 = vrot.lane.b32.xlu0 %v2954, 32
      %v2958 = vpop.permute.xlu0 %2957
      %2961 = vst.msk [vmem:[#allocation3 + $0x44] sm:$0xc] %vm2849, %v2956
      %v2962 = vld [vmem:[#allocation3 + $0x54] sm:$0x7]
      %v2963 = vsel %vm2852, %v2958, %v2962
      %2964 = vst [vmem:[#allocation3 + $0x54] sm:$0x7] %v2963
      %v2965 = vld [vmem:[#allocation2 + $0x58] sm:$0x7c]
      %v2967 = vunpack.c.l.b16 %v2965
      %v2968 = vunpack.c.h.b16 %v2965
      %v2969 = vpack.c.b16 %v2967, %v2967
      %v2970 = vpack.c.b16 %v2968, %v2968
      %v2972 = vshrl.u32 %v2969, 16
      %v2974 = vrot.slane %v2972, 4
      %v2975 = vshll.u32 %v2969, 16
      %v2977 = vrot.slane %v2975, 5
      %v2978 = vor.u32 %v2974, %v2977
      %v2979 = vrot.slane %v2978, 4
      %v2981 = vshll.u32 %v2970, 16
      %v2983 = vrot.slane %v2981, 5
      %v2984 = vsel %vm1102, %v2979, %v2983
      %v2985 = vshrl.u32 %v2970, 16
      %v2987 = vrot.slane %v2985, 4
      %v2988 = vor.u32 %v2987, %v2983
      %v2989 = vrot.slane %v2988, 4
      %2990 = vrot.lane.b32.xlu0 %v2984, 64
      %v2991 = vpop.permute.xlu0 %2990
      %2992 = vrot.lane.b32.xlu0 %v2989, 64
      %v2993 = vpop.permute.xlu0 %2992
      %2996 = vst.msk [vmem:[#allocation3 + $0x44] sm:$0xc] %vm2886, %v2991
      %v2997 = vld [vmem:[#allocation3 + $0x54] sm:$0x7]
      %v2998 = vsel %vm2889, %v2993, %v2997
      %2999 = vst [vmem:[#allocation3 + $0x54] sm:$0x7] %v2998
      %v3000 = vld [vmem:[#allocation2 + $0x58] sm:$0x80]
      %v3001 = vld [vmem:[#allocation2 + $0x60] sm:$0xf]
      %v3004 = vunpack.c.h.b16 %v3000
      %v3005 = vunpack.c.l.b16 %v3001
      %v3006 = vpack.c.b16 %v3004, %v3004
      %v3007 = vpack.c.b16 %v3005, %v3005
      %v3009 = vshrl.u32 %v3006, 16
      %v3011 = vrot.slane %v3009, 5
      %v3012 = vrot.slane %v3011, 4
      %v3014 = vshrl.u32 %v3007, 16
      %v3016 = vrot.slane %v3014, 5
      %v3017 = vshll.u32 %v3007, 16
      %v3019 = vrot.slane %v3017, 6
      %v3020 = vor.u32 %v3016, %v3019
      %v3021 = vsel %vm1144, %v3012, %v3020
      %v3022 = vrot.slane %v3020, 4
      %3023 = vrot.lane.b32.xlu0 %v3021, 96
      %v3024 = vpop.permute.xlu0 %3023
      %3025 = vrot.lane.b32.xlu0 %v3022, 96
      %v3026 = vpop.permute.xlu0 %3025
      %3029 = vst.msk [vmem:[#allocation3 + $0x44] sm:$0xc] %vm2923, %v3024
      %v3030 = vld [vmem:[#allocation3 + $0x54] sm:$0x7]
      %v3031 = vsel %vm2926, %v3026, %v3030
      %3032 = vst [vmem:[#allocation3 + $0x54] sm:$0x7] %v3031
      %v3033 = vld [vmem:[#allocation2 + $0x60] sm:$0xf0]
      %v3034 = vld [vmem:[#allocation2 + $0x68] sm:$0x1]
      %v3037 = vunpack.c.h.b16 %v3033
      %v3038 = vunpack.c.l.b16 %v3034
      %v3039 = vpack.c.b16 %v3037, %v3037
      %v3040 = vpack.c.b16 %v3038, %v3038
      %v3041 = vrot.slane %v3039, 6
      %v3042 = vrot.slane %v3041, 4
      %v3043 = vrot.slane %v3040, 6
      %v3044 = vsel %vm1185, %v3042, %v3043
      %3047 = vst.msk [vmem:[#allocation3 + $0x48] sm:$0xc] %vm2824, %v3041
      %v3048 = vld [vmem:[#allocation3 + $0x58] sm:$0x7]
      %v3049 = vsel %vm2827, %v3044, %v3048
      %3050 = vst [vmem:[#allocation3 + $0x58] sm:$0x7] %v3049
      %v3051 = vld [vmem:[#allocation2 + $0x68] sm:$0x3e]
      %v3053 = vunpack.c.l.b16 %v3051
      %v3054 = vunpack.c.h.b16 %v3051
      %v3055 = vpack.c.b16 %v3053, %v3053
      %v3056 = vpack.c.b16 %v3054, %v3054
      %v3057 = vrot.slane %v3055, 7
      %v3058 = vrot.slane %v3057, 4
      %v3059 = vrot.slane %v3056, 7
      %v3060 = vsel %vm1207, %v3058, %v3059
      %3061 = vrot.lane.b32.xlu0 %v3057, 32
      %v3062 = vpop.permute.xlu0 %3061
      %3063 = vrot.lane.b32.xlu0 %v3060, 32
      %v3064 = vpop.permute.xlu0 %3063
      %3067 = vst.msk [vmem:[#allocation3 + $0x48] sm:$0xc] %vm2849, %v3062
      %v3068 = vld [vmem:[#allocation3 + $0x58] sm:$0x7]
      %v3069 = vsel %vm2852, %v3064, %v3068
      %3070 = vst [vmem:[#allocation3 + $0x58] sm:$0x7] %v3069
      %v3071 = vld [vmem:[#allocation2 + $0x60] sm:$0xf0]
      %v3072 = vld [vmem:[#allocation2 + $0x68] sm:$0x1]
      %v3075 = vunpack.c.h.b16 %v3071
      %v3076 = vunpack.c.l.b16 %v3072
      %v3077 = vpack.c.b16 %v3075, %v3075
      %v3078 = vpack.c.b16 %v3076, %v3076
      %v3080 = vshrl.u32 %v3077, 16
      %v3082 = vrot.slane %v3080, 6
      %v3083 = vshll.u32 %v3077, 16
      %v3085 = vrot.slane %v3083, 7
      %v3086 = vor.u32 %v3082, %v3085
      %v3087 = vrot.slane %v3086, 4
      %v3089 = vshrl.u32 %v3078, 16
      %v3091 = vrot.slane %v3089, 6
      %v3092 = vshll.u32 %v3078, 16
      %v3094 = vrot.slane %v3092, 7
      %v3095 = vor.u32 %v3091, %v3094
      %v3096 = vsel %vm1231, %v3087, %v3095
      %3097 = vrot.lane.b32.xlu0 %v3086, 64
      %v3098 = vpop.permute.xlu0 %3097
      %3099 = vrot.lane.b32.xlu0 %v3096, 64
      %v3100 = vpop.permute.xlu0 %3099
      %3103 = vst.msk [vmem:[#allocation3 + $0x48] sm:$0xc] %vm2886, %v3098
      %v3104 = vld [vmem:[#allocation3 + $0x58] sm:$0x7]
      %v3105 = vsel %vm2889, %v3100, %v3104
      %3106 = vst [vmem:[#allocation3 + $0x58] sm:$0x7] %v3105
      %v3107 = vld [vmem:[#allocation2 + $0x68] sm:$0x3e]
      %v3109 = vunpack.c.l.b16 %v3107
      %v3110 = vunpack.c.h.b16 %v3107
      %v3111 = vpack.c.b16 %v3109, %v3109
      %v3112 = vpack.c.b16 %v3110, %v3110
      %v3114 = vshrl.u32 %v3111, 16
      %v3116 = vrot.slane %v3114, 7
      %v3117 = vshll.u32 %v3111, 16
      %v3119 = vor.u32 %v3116, %v3117
      %v3120 = vrot.slane %v3116, 4
      %v3122 = vshrl.u32 %v3112, 16
      %v3124 = vrot.slane %v3122, 7
      %v3125 = vshll.u32 %v3112, 16
      %v3127 = vor.u32 %v3124, %v3125
      %v3128 = vsel %vm1270, %v3120, %v3127
      %3129 = vrot.lane.b32.xlu0 %v3119, 96
      %v3130 = vpop.permute.xlu0 %3129
      %3131 = vrot.lane.b32.xlu0 %v3128, 96
      %v3132 = vpop.permute.xlu0 %3131
      %3135 = vst.msk [vmem:[#allocation3 + $0x48] sm:$0xc] %vm2923, %v3130
      %v3136 = vld [vmem:[#allocation3 + $0x58] sm:$0x7]
      %v3137 = vsel %vm2926, %v3132, %v3136
      %3138 = vst [vmem:[#allocation3 + $0x58] sm:$0x7] %v3137
      %v3139 = vld [vmem:[#allocation2 + $0x68] sm:$0xc0]
      %v3140 = vld [vmem:[#allocation2 + $0x70] sm:$0x7]
      %v3143 = vunpack.c.h.b16 %v3139
      %v3144 = vunpack.c.l.b16 %v3140
      %v3145 = vpack.c.b16 %v3143, %v3143
      %v3146 = vpack.c.b16 %v3144, %v3144
      %3149 = vst.msk [vmem:[#allocation3 + $0x4c] sm:$0xc] %vm2824, %v3145
      %v3150 = vld [vmem:[#allocation3 + $0x5c] sm:$0x7]
      %v3151 = vsel %vm2827, %v3146, %v3150
      %3152 = vst [vmem:[#allocation3 + $0x5c] sm:$0x7] %v3151
      %v3153 = vld [vmem:[#allocation2 + $0x70] sm:$0xf8]
      %v3155 = vunpack.c.l.b16 %v3153
      %v3156 = vunpack.c.h.b16 %v3153
      %v3157 = vpack.c.b16 %v3155, %v3155
      %v3158 = vpack.c.b16 %v3156, %v3156
      %v3159 = vrot.slane %v3157, 5
      %v3160 = vrot.slane %v3159, 4
      %v3161 = vrot.slane %v3158, 5
      %v3162 = vsel %vm1075, %v3160, %v3161
      %v3163 = vrot.slane %v3161, 4
      %3164 = vrot.lane.b32.xlu0 %v3162, 32
      %v3165 = vpop.permute.xlu0 %3164
      %3166 = vrot.lane.b32.xlu0 %v3163, 32
      %v3167 = vpop.permute.xlu0 %3166
      %3170 = vst.msk [vmem:[#allocation3 + $0x4c] sm:$0xc] %vm2849, %v3165
      %v3171 = vld [vmem:[#allocation3 + $0x5c] sm:$0x7]
      %v3172 = vsel %vm2852, %v3167, %v3171
      %3173 = vst [vmem:[#allocation3 + $0x5c] sm:$0x7] %v3172
      %v3174 = vld [vmem:[#allocation2 + $0x68] sm:$0xc0]
      %v3175 = vld [vmem:[#allocation2 + $0x70] sm:$0x7]
      %v3178 = vunpack.c.h.b16 %v3174
      %v3179 = vunpack.c.l.b16 %v3175
      %v3180 = vpack.c.b16 %v3178, %v3178
      %v3181 = vpack.c.b16 %v3179, %v3179
      %v3183 = vshrl.u32 %v3180, 16
      %v3185 = vrot.slane %v3183, 4
      %v3186 = vshll.u32 %v3180, 16
      %v3188 = vrot.slane %v3186, 5
      %v3189 = vor.u32 %v3185, %v3188
      %v3190 = vrot.slane %v3189, 4
      %v3192 = vshll.u32 %v3181, 16
      %v3194 = vrot.slane %v3192, 5
      %v3195 = vsel %vm1102, %v3190, %v3194
      %v3196 = vshrl.u32 %v3181, 16
      %v3198 = vrot.slane %v3196, 4
      %v3199 = vor.u32 %v3198, %v3194
      %v3200 = vrot.slane %v3199, 4
      %3201 = vrot.lane.b32.xlu0 %v3195, 64
      %v3202 = vpop.permute.xlu0 %3201
      %3203 = vrot.lane.b32.xlu0 %v3200, 64
      %v3204 = vpop.permute.xlu0 %3203
      %3207 = vst.msk [vmem:[#allocation3 + $0x4c] sm:$0xc] %vm2886, %v3202
      %v3208 = vld [vmem:[#allocation3 + $0x5c] sm:$0x7]
      %v3209 = vsel %vm2889, %v3204, %v3208
      %3210 = vst [vmem:[#allocation3 + $0x5c] sm:$0x7] %v3209
      %v3211 = vld [vmem:[#allocation2 + $0x70] sm:$0xf8]
      %v3213 = vunpack.c.l.b16 %v3211
      %v3214 = vunpack.c.h.b16 %v3211
      %v3215 = vpack.c.b16 %v3213, %v3213
      %v3216 = vpack.c.b16 %v3214, %v3214
      %v3218 = vshrl.u32 %v3215, 16
      %v3220 = vrot.slane %v3218, 5
      %v3221 = vrot.slane %v3220, 4
      %v3223 = vshrl.u32 %v3216, 16
      %v3225 = vrot.slane %v3223, 5
      %v3226 = vshll.u32 %v3216, 16
      %v3228 = vrot.slane %v3226, 6
      %v3229 = vor.u32 %v3225, %v3228
      %v3230 = vsel %vm1144, %v3221, %v3229
      %v3231 = vrot.slane %v3229, 4
      %3232 = vrot.lane.b32.xlu0 %v3230, 96
      %v3233 = vpop.permute.xlu0 %3232
      %3234 = vrot.lane.b32.xlu0 %v3231, 96
      %v3235 = vpop.permute.xlu0 %3234
      %3238 = vst.msk [vmem:[#allocation3 + $0x4c] sm:$0xc] %vm2923, %v3233
      %v3239 = vld [vmem:[#allocation3 + $0x5c] sm:$0x7]
      %v3240 = vsel %vm2926, %v3235, %v3239
      %3241 = vst [vmem:[#allocation3 + $0x5c] sm:$0x7] %v3240
      %v3242 = vld [vmem:[#allocation2 + $0x60] sm:$0xf0]
      %v3243 = vld [vmem:[#allocation2 + $0x68] sm:$0x1]
      %v3246 = vunpack.c.h.b16 %v3242
      %v3247 = vunpack.c.l.b16 %v3243
      %v3248 = vpack.c.b16 %v3246, %v3246
      %v3249 = vpack.c.b16 %v3247, %v3247
      %v3251 = vshrl.u32 %v3248, 16
      %v3253 = vrot.slane %v3251, 5
      %v3254 = vshll.u32 %v3248, 16
      %v3256 = vrot.slane %v3254, 6
      %v3257 = vor.u32 %v3253, %v3256
      %v3258 = vrot.slane %v3257, 4
      %v3260 = vshll.u32 %v3249, 16
      %v3262 = vrot.slane %v3260, 6
      %v3263 = vsel %vm1144, %v3258, %v3262
      %vm3266 = vcmask 257026
      %vm3267 = vsmask.f32 7946
      %vm3268 = vmand %vm3266, %vm3267
      %v3269 = vld [vmem:[#allocation3 + $0x50] sm:$0xc]
      %v3270 = vsel %vm3268, %v3257, %v3269
      %3271 = vst [vmem:[#allocation3 + $0x50] sm:$0xc] %v3270
      %vm3272 = vcmask 256000
      %3273 = vst.msk [vmem:[#allocation3 + $0x60] sm:$0x7] %vm3272, %v3263
      %v3274 = vld [vmem:[#allocation2 + $0x68] sm:$0x3e]
      %v3276 = vunpack.c.l.b16 %v3274
      %v3277 = vunpack.c.h.b16 %v3274
      %v3278 = vpack.c.b16 %v3276, %v3276
      %v3279 = vpack.c.b16 %v3277, %v3277
      %v3281 = vshrl.u32 %v3278, 16
      %v3283 = vrot.slane %v3281, 6
      %v3284 = vshll.u32 %v3278, 16
      %v3286 = vrot.slane %v3284, 7
      %v3287 = vor.u32 %v3283, %v3286
      %v3288 = vrot.slane %v3287, 4
      %v3290 = vshrl.u32 %v3279, 16
      %v3292 = vrot.slane %v3290, 6
      %v3293 = vshll.u32 %v3279, 16
      %v3295 = vrot.slane %v3293, 7
      %v3296 = vor.u32 %v3292, %v3295
      %v3297 = vsel %vm1231, %v3288, %v3296
      %3298 = vrot.lane.b32.xlu0 %v3287, 32
      %v3299 = vpop.permute.xlu0 %3298
      %3300 = vrot.lane.b32.xlu0 %v3297, 32
      %v3301 = vpop.permute.xlu0 %3300
      %vm3304 = vcmask 519426
      %vm3305 = vmand %vm3304, %vm3267
      %v3306 = vld [vmem:[#allocation3 + $0x50] sm:$0xc]
      %v3307 = vsel %vm3305, %v3299, %v3306
      %3308 = vst [vmem:[#allocation3 + $0x50] sm:$0xc] %v3307
      %vm3309 = vcmask 518400
      %3310 = vst.msk [vmem:[#allocation3 + $0x60] sm:$0x7] %vm3309, %v3301
      %v3311 = vld [vmem:[#allocation2 + $0x60] sm:$0xf0]
      %v3312 = vld [vmem:[#allocation2 + $0x68] sm:$0x1]
      %v3315 = vunpack.c.h.b16 %v3311
      %v3316 = vunpack.c.l.b16 %v3312
      %v3317 = vpack.c.b16 %v3315, %v3315
      %v3318 = vpack.c.b16 %v3316, %v3316
      %v3319 = vrot.slane %v3317, 6
      %v3320 = vrot.slane %v3319, 4
      %v3321 = vrot.slane %v3318, 6
      %v3322 = vsel %vm1185, %v3320, %v3321
      %3323 = vrot.lane.b32.xlu0 %v3319, 64
      %v3324 = vpop.permute.xlu0 %3323
      %3325 = vrot.lane.b32.xlu0 %v3322, 64
      %v3326 = vpop.permute.xlu0 %3325
      %vm3329 = vcmask 781826
      %vm3330 = vmand %vm3329, %vm3267
      %v3331 = vld [vmem:[#allocation3 + $0x50] sm:$0xc]
      %v3332 = vsel %vm3330, %v3324, %v3331
      %3333 = vst [vmem:[#allocation3 + $0x50] sm:$0xc] %v3332
      %vm3334 = vcmask 780800
      %3335 = vst.msk [vmem:[#allocation3 + $0x60] sm:$0x7] %vm3334, %v3326
      %v3336 = vld [vmem:[#allocation2 + $0x68] sm:$0x3e]
      %v3338 = vunpack.c.l.b16 %v3336
      %v3339 = vunpack.c.h.b16 %v3336
      %v3340 = vpack.c.b16 %v3338, %v3338
      %v3341 = vpack.c.b16 %v3339, %v3339
      %v3342 = vrot.slane %v3340, 7
      %v3343 = vrot.slane %v3342, 4
      %v3344 = vrot.slane %v3341, 7
      %v3345 = vsel %vm1207, %v3343, %v3344
      %3346 = vrot.lane.b32.xlu0 %v3342, 96
      %v3347 = vpop.permute.xlu0 %3346
      %3348 = vrot.lane.b32.xlu0 %v3345, 96
      %v3349 = vpop.permute.xlu0 %3348
      %vm3352 = vcmask 1044226
      %vm3353 = vmand %vm3352, %vm3267
      %v3354 = vld [vmem:[#allocation3 + $0x50] sm:$0xc]
      %v3355 = vsel %vm3353, %v3347, %v3354
      %3356 = vst [vmem:[#allocation3 + $0x50] sm:$0xc] %v3355
      %vm3357 = vcmask 1043200
      %3358 = vst.msk [vmem:[#allocation3 + $0x60] sm:$0x7] %vm3357, %v3349
      %v3359 = vld [vmem:[#allocation2 + $0x68] sm:$0xc0]
      %v3360 = vld [vmem:[#allocation2 + $0x70] sm:$0x7]
      %v3363 = vunpack.c.h.b16 %v3359
      %v3364 = vunpack.c.l.b16 %v3360
      %v3365 = vpack.c.b16 %v3363, %v3363
      %v3366 = vpack.c.b16 %v3364, %v3364
      %v3368 = vshrl.u32 %v3365, 16
      %v3370 = vrot.slane %v3368, 7
      %v3371 = vshll.u32 %v3365, 16
      %v3373 = vor.u32 %v3370, %v3371
      %v3374 = vrot.slane %v3370, 4
      %v3376 = vshrl.u32 %v3366, 16
      %v3378 = vrot.slane %v3376, 7
      %v3379 = vshll.u32 %v3366, 16
      %v3381 = vor.u32 %v3378, %v3379
      %v3382 = vsel %vm1270, %v3374, %v3381
      %v3385 = vld [vmem:[#allocation3 + $0x54] sm:$0xc]
      %v3386 = vsel %vm3268, %v3373, %v3385
      %3387 = vst [vmem:[#allocation3 + $0x54] sm:$0xc] %v3386
      %3388 = vst.msk [vmem:[#allocation3 + $0x64] sm:$0x7] %vm3272, %v3382
      %v3389 = vld [vmem:[#allocation2 + $0x70] sm:$0xf8]
      %v3391 = vunpack.c.l.b16 %v3389
      %v3392 = vunpack.c.h.b16 %v3389
      %v3393 = vpack.c.b16 %v3391, %v3391
      %v3394 = vpack.c.b16 %v3392, %v3392
      %v3396 = vshrl.u32 %v3393, 16
      %v3398 = vrot.slane %v3396, 4
      %v3399 = vshll.u32 %v3393, 16
      %v3401 = vrot.slane %v3399, 5
      %v3402 = vor.u32 %v3398, %v3401
      %v3403 = vrot.slane %v3402, 4
      %v3405 = vshll.u32 %v3394, 16
      %v3407 = vrot.slane %v3405, 5
      %v3408 = vsel %vm1102, %v3403, %v3407
      %v3409 = vshrl.u32 %v3394, 16
      %v3411 = vrot.slane %v3409, 4
      %v3412 = vor.u32 %v3411, %v3407
      %v3413 = vrot.slane %v3412, 4
      %3414 = vrot.lane.b32.xlu0 %v3408, 32
      %v3415 = vpop.permute.xlu0 %3414
      %3416 = vrot.lane.b32.xlu0 %v3413, 32
      %v3417 = vpop.permute.xlu0 %3416
      %v3420 = vld [vmem:[#allocation3 + $0x54] sm:$0xc]
      %v3421 = vsel %vm3305, %v3415, %v3420
      %3422 = vst [vmem:[#allocation3 + $0x54] sm:$0xc] %v3421
      %3423 = vst.msk [vmem:[#allocation3 + $0x64] sm:$0x7] %vm3309, %v3417
      %v3424 = vld [vmem:[#allocation2 + $0x68] sm:$0xc0]
      %v3425 = vld [vmem:[#allocation2 + $0x70] sm:$0x7]
      %v3428 = vunpack.c.h.b16 %v3424
      %v3429 = vunpack.c.l.b16 %v3425
      %v3430 = vpack.c.b16 %v3428, %v3428
      %v3431 = vpack.c.b16 %v3429, %v3429
      %3432 = vrot.lane.b32.xlu0 %v3430, 64
      %v3433 = vpop.permute.xlu0 %3432
      %3434 = vrot.lane.b32.xlu0 %v3431, 64
      %v3435 = vpop.permute.xlu0 %3434
      %v3438 = vld [vmem:[#allocation3 + $0x54] sm:$0xc]
      %v3439 = vsel %vm3330, %v3433, %v3438
      %3440 = vst [vmem:[#allocation3 + $0x54] sm:$0xc] %v3439
      %3441 = vst.msk [vmem:[#allocation3 + $0x64] sm:$0x7] %vm3334, %v3435
      %v3442 = vld [vmem:[#allocation2 + $0x70] sm:$0xf8]
      %v3444 = vunpack.c.l.b16 %v3442
      %v3445 = vunpack.c.h.b16 %v3442
      %v3446 = vpack.c.b16 %v3444, %v3444
      %v3447 = vpack.c.b16 %v3445, %v3445
      %v3448 = vrot.slane %v3446, 5
      %v3449 = vrot.slane %v3448, 4
      %v3450 = vrot.slane %v3447, 5
      %v3451 = vsel %vm1075, %v3449, %v3450
      %v3452 = vrot.slane %v3450, 4
      %3453 = vrot.lane.b32.xlu0 %v3451, 96
      %v3454 = vpop.permute.xlu0 %3453
      %3455 = vrot.lane.b32.xlu0 %v3452, 96
      %v3456 = vpop.permute.xlu0 %3455
      %v3459 = vld [vmem:[#allocation3 + $0x54] sm:$0xc]
      %v3460 = vsel %vm3353, %v3454, %v3459
      %3461 = vst [vmem:[#allocation3 + $0x54] sm:$0xc] %v3460
      %3462 = vst.msk [vmem:[#allocation3 + $0x64] sm:$0x7] %vm3357, %v3456
      %v3463 = vld [vmem:[#allocation2 + $0x78] sm:$0x1f]
      %v3465 = vunpack.c.l.b16 %v3463
      %v3466 = vunpack.c.h.b16 %v3463
      %v3467 = vpack.c.b16 %v3465, %v3465
      %v3468 = vpack.c.b16 %v3466, %v3466
      %v3470 = vshrl.u32 %v3467, 16
      %v3472 = vrot.slane %v3470, 5
      %v3473 = vshll.u32 %v3467, 16
      %v3475 = vrot.slane %v3473, 6
      %v3476 = vor.u32 %v3472, %v3475
      %v3477 = vrot.slane %v3476, 4
      %v3479 = vshll.u32 %v3468, 16
      %v3481 = vrot.slane %v3479, 6
      %v3482 = vsel %vm1144, %v3477, %v3481
      %v3485 = vld [vmem:[#allocation3 + $0x58] sm:$0xc]
      %v3486 = vsel %vm3268, %v3476, %v3485
      %3487 = vst [vmem:[#allocation3 + $0x58] sm:$0xc] %v3486
      %3488 = vst.msk [vmem:[#allocation3 + $0x68] sm:$0x7] %vm3272, %v3482
      %v3489 = vld [vmem:[#allocation2 + $0x78] sm:$0xe0]
      %v3490 = vld [vmem:[#allocation2 + $0x80] sm:$0x3]
      %v3493 = vunpack.c.h.b16 %v3489
      %v3494 = vunpack.c.l.b16 %v3490
      %v3495 = vpack.c.b16 %v3493, %v3493
      %v3496 = vpack.c.b16 %v3494, %v3494
      %v3498 = vshrl.u32 %v3495, 16
      %v3500 = vrot.slane %v3498, 6
      %v3501 = vshll.u32 %v3495, 16
      %v3503 = vrot.slane %v3501, 7
      %v3504 = vor.u32 %v3500, %v3503
      %v3505 = vrot.slane %v3504, 4
      %v3507 = vshrl.u32 %v3496, 16
      %v3509 = vrot.slane %v3507, 6
      %v3510 = vshll.u32 %v3496, 16
      %v3512 = vrot.slane %v3510, 7
      %v3513 = vor.u32 %v3509, %v3512
      %v3514 = vsel %vm1231, %v3505, %v3513
      %3515 = vrot.lane.b32.xlu0 %v3504, 32
      %v3516 = vpop.permute.xlu0 %3515
      %3517 = vrot.lane.b32.xlu0 %v3514, 32
      %v3518 = vpop.permute.xlu0 %3517
      %v3521 = vld [vmem:[#allocation3 + $0x58] sm:$0xc]
      %v3522 = vsel %vm3305, %v3516, %v3521
      %3523 = vst [vmem:[#allocation3 + $0x58] sm:$0xc] %v3522
      %3524 = vst.msk [vmem:[#allocation3 + $0x68] sm:$0x7] %vm3309, %v3518
      %v3525 = vld [vmem:[#allocation2 + $0x78] sm:$0x1f]
      %v3527 = vunpack.c.l.b16 %v3525
      %v3528 = vunpack.c.h.b16 %v3525
      %v3529 = vpack.c.b16 %v3527, %v3527
      %v3530 = vpack.c.b16 %v3528, %v3528
      %v3531 = vrot.slane %v3529, 6
      %v3532 = vrot.slane %v3531, 4
      %v3533 = vrot.slane %v3530, 6
      %v3534 = vsel %vm1185, %v3532, %v3533
      %3535 = vrot.lane.b32.xlu0 %v3531, 64
      %v3536 = vpop.permute.xlu0 %3535
      %3537 = vrot.lane.b32.xlu0 %v3534, 64
      %v3538 = vpop.permute.xlu0 %3537
      %v3541 = vld [vmem:[#allocation3 + $0x58] sm:$0xc]
      %v3542 = vsel %vm3330, %v3536, %v3541
      %3543 = vst [vmem:[#allocation3 + $0x58] sm:$0xc] %v3542
      %3544 = vst.msk [vmem:[#allocation3 + $0x68] sm:$0x7] %vm3334, %v3538
      %v3545 = vld [vmem:[#allocation2 + $0x78] sm:$0xe0]
      %v3546 = vld [vmem:[#allocation2 + $0x80] sm:$0x3]
      %v3549 = vunpack.c.h.b16 %v3545
      %v3550 = vunpack.c.l.b16 %v3546
      %v3551 = vpack.c.b16 %v3549, %v3549
      %v3552 = vpack.c.b16 %v3550, %v3550
      %v3553 = vrot.slane %v3551, 7
      %v3554 = vrot.slane %v3553, 4
      %v3555 = vrot.slane %v3552, 7
      %v3556 = vsel %vm1207, %v3554, %v3555
      %3557 = vrot.lane.b32.xlu0 %v3553, 96
      %v3558 = vpop.permute.xlu0 %3557
      %3559 = vrot.lane.b32.xlu0 %v3556, 96
      %v3560 = vpop.permute.xlu0 %3559
      %v3563 = vld [vmem:[#allocation3 + $0x58] sm:$0xc]
      %v3564 = vsel %vm3353, %v3558, %v3563
      %3565 = vst [vmem:[#allocation3 + $0x58] sm:$0xc] %v3564
      %3566 = vst.msk [vmem:[#allocation3 + $0x68] sm:$0x7] %vm3357, %v3560
      %v3567 = vld [vmem:[#allocation2 + $0x80] sm:$0x7c]
      %v3569 = vunpack.c.l.b16 %v3567
      %v3570 = vunpack.c.h.b16 %v3567
      %v3571 = vpack.c.b16 %v3569, %v3569
      %v3572 = vpack.c.b16 %v3570, %v3570
      %v3574 = vshrl.u32 %v3571, 16
      %v3576 = vrot.slane %v3574, 7
      %v3577 = vshll.u32 %v3571, 16
      %v3579 = vor.u32 %v3576, %v3577
      %v3580 = vrot.slane %v3576, 4
      %v3582 = vshrl.u32 %v3572, 16
      %v3584 = vrot.slane %v3582, 7
      %v3585 = vshll.u32 %v3572, 16
      %v3587 = vor.u32 %v3584, %v3585
      %v3588 = vsel %vm1270, %v3580, %v3587
      %v3591 = vld [vmem:[#allocation3 + $0x5c] sm:$0xc]
      %v3592 = vsel %vm3268, %v3579, %v3591
      %3593 = vst [vmem:[#allocation3 + $0x5c] sm:$0xc] %v3592
      %3594 = vst.msk [vmem:[#allocation3 + $0x6c] sm:$0x7] %vm3272, %v3588
      %v3595 = vld [vmem:[#allocation2 + $0x80] sm:$0x80]
      %v3596 = vld [vmem:[#allocation2 + $0x88] sm:$0xf]
      %v3599 = vunpack.c.h.b16 %v3595
      %v3600 = vunpack.c.l.b16 %v3596
      %v3601 = vpack.c.b16 %v3599, %v3599
      %v3602 = vpack.c.b16 %v3600, %v3600
      %v3604 = vshrl.u32 %v3601, 16
      %v3606 = vrot.slane %v3604, 4
      %v3607 = vshll.u32 %v3601, 16
      %v3609 = vrot.slane %v3607, 5
      %v3610 = vor.u32 %v3606, %v3609
      %v3611 = vrot.slane %v3610, 4
      %v3613 = vshll.u32 %v3602, 16
      %v3615 = vrot.slane %v3613, 5
      %v3616 = vsel %vm1102, %v3611, %v3615
      %v3617 = vshrl.u32 %v3602, 16
      %v3619 = vrot.slane %v3617, 4
      %v3620 = vor.u32 %v3619, %v3615
      %v3621 = vrot.slane %v3620, 4
      %3622 = vrot.lane.b32.xlu0 %v3616, 32
      %v3623 = vpop.permute.xlu0 %3622
      %3624 = vrot.lane.b32.xlu0 %v3621, 32
      %v3625 = vpop.permute.xlu0 %3624
      %v3628 = vld [vmem:[#allocation3 + $0x5c] sm:$0xc]
      %v3629 = vsel %vm3305, %v3623, %v3628
      %3630 = vst [vmem:[#allocation3 + $0x5c] sm:$0xc] %v3629
      %3631 = vst.msk [vmem:[#allocation3 + $0x6c] sm:$0x7] %vm3309, %v3625
      %v3632 = vld [vmem:[#allocation2 + $0x80] sm:$0x7c]
      %v3634 = vunpack.c.l.b16 %v3632
      %v3635 = vunpack.c.h.b16 %v3632
      %v3636 = vpack.c.b16 %v3634, %v3634
      %v3637 = vpack.c.b16 %v3635, %v3635
      %3638 = vrot.lane.b32.xlu0 %v3636, 64
      %v3639 = vpop.permute.xlu0 %3638
      %3640 = vrot.lane.b32.xlu0 %v3637, 64
      %v3641 = vpop.permute.xlu0 %3640
      %v3644 = vld [vmem:[#allocation3 + $0x5c] sm:$0xc]
      %v3645 = vsel %vm3330, %v3639, %v3644
      %3646 = vst [vmem:[#allocation3 + $0x5c] sm:$0xc] %v3645
      %3647 = vst.msk [vmem:[#allocation3 + $0x6c] sm:$0x7] %vm3334, %v3641
      %v3648 = vld [vmem:[#allocation2 + $0x80] sm:$0x80]
      %v3649 = vld [vmem:[#allocation2 + $0x88] sm:$0xf]
      %v3652 = vunpack.c.h.b16 %v3648
      %v3653 = vunpack.c.l.b16 %v3649
      %v3654 = vpack.c.b16 %v3652, %v3652
      %v3655 = vpack.c.b16 %v3653, %v3653
      %v3656 = vrot.slane %v3654, 5
      %v3657 = vrot.slane %v3656, 4
      %v3658 = vrot.slane %v3655, 5
      %v3659 = vsel %vm1075, %v3657, %v3658
      %v3660 = vrot.slane %v3658, 4
      %3661 = vrot.lane.b32.xlu0 %v3659, 96
      %v3662 = vpop.permute.xlu0 %3661
      %3663 = vrot.lane.b32.xlu0 %v3660, 96
      %v3664 = vpop.permute.xlu0 %3663
      %v3667 = vld [vmem:[#allocation3 + $0x5c] sm:$0xc]
      %v3668 = vsel %vm3353, %v3662, %v3667
      %3669 = vst [vmem:[#allocation3 + $0x5c] sm:$0xc] %v3668
      %3670 = vst.msk [vmem:[#allocation3 + $0x6c] sm:$0x7] %vm3357, %v3664
      %v3671 = vld [vmem:[#allocation2 + $0x78] sm:$0x1f]
      %v3673 = vunpack.c.l.b16 %v3671
      %v3674 = vunpack.c.h.b16 %v3671
      %v3675 = vpack.c.b16 %v3673, %v3673
      %v3676 = vpack.c.b16 %v3674, %v3674
      %v3677 = vrot.slane %v3675, 5
      %v3678 = vrot.slane %v3677, 4
      %v3679 = vrot.slane %v3676, 5
      %v3680 = vsel %vm1075, %v3678, %v3679
      %vm3683 = vcmask 257027
      %3684 = vst.msk [vmem:[#allocation3 + $0x60] sm:$0x8] %vm3683, %v3677
      %vm3685 = vmand %vm1530, %vm1100
      %v3686 = vld [vmem:[#allocation3 + $0x70] sm:$0xf]
      %v3687 = vsel %vm3685, %v3680, %v3686
      %3688 = vst [vmem:[#allocation3 + $0x70] sm:$0xf] %v3687
      %v3689 = vld [vmem:[#allocation2 + $0x78] sm:$0xe0]
      %v3690 = vld [vmem:[#allocation2 + $0x80] sm:$0x3]
      %v3693 = vunpack.c.h.b16 %v3689
      %v3694 = vunpack.c.l.b16 %v3690
      %v3695 = vpack.c.b16 %v3693, %v3693
      %v3696 = vpack.c.b16 %v3694, %v3694
      %v3697 = vrot.slane %v3695, 6
      %v3698 = vrot.slane %v3697, 4
      %v3699 = vrot.slane %v3696, 6
      %v3700 = vsel %vm1185, %v3698, %v3699
      %3701 = vrot.lane.b32.xlu0 %v3697, 32
      %v3702 = vpop.permute.xlu0 %3701
      %3703 = vrot.lane.b32.xlu0 %v3700, 32
      %v3704 = vpop.permute.xlu0 %3703
      %vm3707 = vcmask 519427
      %3708 = vst.msk [vmem:[#allocation3 + $0x60] sm:$0x8] %vm3707, %v3702
      %vm3709 = vmand %vm1569, %vm1100
      %v3710 = vld [vmem:[#allocation3 + $0x70] sm:$0xf]
      %v3711 = vsel %vm3709, %v3704, %v3710
      %3712 = vst [vmem:[#allocation3 + $0x70] sm:$0xf] %v3711
      %v3713 = vld [vmem:[#allocation2 + $0x78] sm:$0x1f]
      %v3715 = vunpack.c.l.b16 %v3713
      %v3716 = vunpack.c.h.b16 %v3713
      %v3717 = vpack.c.b16 %v3715, %v3715
      %v3718 = vpack.c.b16 %v3716, %v3716
      %v3720 = vshrl.u32 %v3717, 16
      %v3722 = vrot.slane %v3720, 5
      %v3723 = vshll.u32 %v3717, 16
      %v3725 = vrot.slane %v3723, 6
      %v3726 = vor.u32 %v3722, %v3725
      %v3727 = vrot.slane %v3726, 4
      %v3729 = vshrl.u32 %v3718, 16
      %v3731 = vrot.slane %v3729, 5
      %v3732 = vshll.u32 %v3718, 16
      %v3734 = vrot.slane %v3732, 6
      %v3735 = vor.u32 %v3731, %v3734
      %v3736 = vsel %vm1144, %v3727, %v3735
      %3737 = vrot.lane.b32.xlu0 %v3726, 64
      %v3738 = vpop.permute.xlu0 %3737
      %3739 = vrot.lane.b32.xlu0 %v3736, 64
      %v3740 = vpop.permute.xlu0 %3739
      %vm3743 = vcmask 781827
      %3744 = vst.msk [vmem:[#allocation3 + $0x60] sm:$0x8] %vm3743, %v3738
      %vm3745 = vmand %vm1590, %vm1100
      %v3746 = vld [vmem:[#allocation3 + $0x70] sm:$0xf]
      %v3747 = vsel %vm3745, %v3740, %v3746
      %3748 = vst [vmem:[#allocation3 + $0x70] sm:$0xf] %v3747
      %v3749 = vld [vmem:[#allocation2 + $0x78] sm:$0xe0]
      %v3750 = vld [vmem:[#allocation2 + $0x80] sm:$0x3]
      %v3753 = vunpack.c.h.b16 %v3749
      %v3754 = vunpack.c.l.b16 %v3750
      %v3755 = vpack.c.b16 %v3753, %v3753
      %v3756 = vpack.c.b16 %v3754, %v3754
      %v3758 = vshrl.u32 %v3755, 16
      %v3760 = vrot.slane %v3758, 6
      %v3761 = vshll.u32 %v3755, 16
      %v3763 = vrot.slane %v3761, 7
      %v3764 = vor.u32 %v3760, %v3763
      %v3765 = vrot.slane %v3764, 4
      %v3767 = vshrl.u32 %v3756, 16
      %v3769 = vrot.slane %v3767, 6
      %v3770 = vshll.u32 %v3756, 16
      %v3772 = vrot.slane %v3770, 7
      %v3773 = vor.u32 %v3769, %v3772
      %v3774 = vsel %vm1231, %v3765, %v3773
      %3775 = vrot.lane.b32.xlu0 %v3764, 96
      %v3776 = vpop.permute.xlu0 %3775
      %3777 = vrot.lane.b32.xlu0 %v3774, 96
      %v3778 = vpop.permute.xlu0 %3777
      %vm3781 = vcmask 1044227
      %3782 = vst.msk [vmem:[#allocation3 + $0x60] sm:$0x8] %vm3781, %v3776
      %vm3783 = vmand %vm1614, %vm1100
      %v3784 = vld [vmem:[#allocation3 + $0x70] sm:$0xf]
      %v3785 = vsel %vm3783, %v3778, %v3784
      %3786 = vst [vmem:[#allocation3 + $0x70] sm:$0xf] %v3785
      %v3787 = vld [vmem:[#allocation2 + $0x80] sm:$0x7c]
      %v3789 = vunpack.c.l.b16 %v3787
      %v3790 = vunpack.c.h.b16 %v3787
      %v3791 = vpack.c.b16 %v3789, %v3789
      %v3792 = vpack.c.b16 %v3790, %v3790
      %v3793 = vrot.slane %v3791, 7
      %v3794 = vrot.slane %v3793, 4
      %v3795 = vrot.slane %v3792, 7
      %v3796 = vsel %vm1207, %v3794, %v3795
      %3799 = vst.msk [vmem:[#allocation3 + $0x64] sm:$0x8] %vm3683, %v3793
      %v3800 = vld [vmem:[#allocation3 + $0x74] sm:$0xf]
      %v3801 = vsel %vm3685, %v3796, %v3800
      %3802 = vst [vmem:[#allocation3 + $0x74] sm:$0xf] %v3801
      %v3803 = vld [vmem:[#allocation2 + $0x80] sm:$0x80]
      %v3804 = vld [vmem:[#allocation2 + $0x88] sm:$0xf]
      %v3807 = vunpack.c.h.b16 %v3803
      %v3808 = vunpack.c.l.b16 %v3804
      %v3809 = vpack.c.b16 %v3807, %v3807
      %v3810 = vpack.c.b16 %v3808, %v3808
      %3811 = vrot.lane.b32.xlu0 %v3809, 32
      %v3812 = vpop.permute.xlu0 %3811
      %3813 = vrot.lane.b32.xlu0 %v3810, 32
      %v3814 = vpop.permute.xlu0 %3813
      %3817 = vst.msk [vmem:[#allocation3 + $0x64] sm:$0x8] %vm3707, %v3812
      %v3818 = vld [vmem:[#allocation3 + $0x74] sm:$0xf]
      %v3819 = vsel %vm3709, %v3814, %v3818
      %3820 = vst [vmem:[#allocation3 + $0x74] sm:$0xf] %v3819
      %v3821 = vld [vmem:[#allocation2 + $0x80] sm:$0x7c]
      %v3823 = vunpack.c.l.b16 %v3821
      %v3824 = vunpack.c.h.b16 %v3821
      %v3825 = vpack.c.b16 %v3823, %v3823
      %v3826 = vpack.c.b16 %v3824, %v3824
      %v3828 = vshrl.u32 %v3825, 16
      %v3830 = vrot.slane %v3828, 7
      %v3831 = vshll.u32 %v3825, 16
      %v3833 = vor.u32 %v3830, %v3831
      %v3834 = vrot.slane %v3830, 4
      %v3836 = vshrl.u32 %v3826, 16
      %v3838 = vrot.slane %v3836, 7
      %v3839 = vshll.u32 %v3826, 16
      %v3841 = vor.u32 %v3838, %v3839
      %v3842 = vsel %vm1270, %v3834, %v3841
      %3843 = vrot.lane.b32.xlu0 %v3833, 64
      %v3844 = vpop.permute.xlu0 %3843
      %3845 = vrot.lane.b32.xlu0 %v3842, 64
      %v3846 = vpop.permute.xlu0 %3845
      %3849 = vst.msk [vmem:[#allocation3 + $0x64] sm:$0x8] %vm3743, %v3844
      %v3850 = vld [vmem:[#allocation3 + $0x74] sm:$0xf]
      %v3851 = vsel %vm3745, %v3846, %v3850
      %3852 = vst [vmem:[#allocation3 + $0x74] sm:$0xf] %v3851
      %v3853 = vld [vmem:[#allocation2 + $0x80] sm:$0x80]
      %v3854 = vld [vmem:[#allocation2 + $0x88] sm:$0xf]
      %v3857 = vunpack.c.h.b16 %v3853
      %v3858 = vunpack.c.l.b16 %v3854
      %v3859 = vpack.c.b16 %v3857, %v3857
      %v3860 = vpack.c.b16 %v3858, %v3858
      %v3862 = vshrl.u32 %v3859, 16
      %v3864 = vrot.slane %v3862, 4
      %v3865 = vrot.slane %v3864, 4
      %v3867 = vshll.u32 %v3860, 16
      %v3869 = vrot.slane %v3867, 5
      %v3870 = vsel %vm1102, %v3865, %v3869
      %v3871 = vshrl.u32 %v3860, 16
      %v3873 = vrot.slane %v3871, 4
      %v3874 = vor.u32 %v3873, %v3869
      %v3875 = vrot.slane %v3874, 4
      %3876 = vrot.lane.b32.xlu0 %v3870, 96
      %v3877 = vpop.permute.xlu0 %3876
      %3878 = vrot.lane.b32.xlu0 %v3875, 96
      %v3879 = vpop.permute.xlu0 %3878
      %3882 = vst.msk [vmem:[#allocation3 + $0x64] sm:$0x8] %vm3781, %v3877
      %v3883 = vld [vmem:[#allocation3 + $0x74] sm:$0xf]
      %v3884 = vsel %vm3783, %v3879, %v3883
      %3885 = vst [vmem:[#allocation3 + $0x74] sm:$0xf] %v3884
      %v3886 = vld [vmem:[#allocation2 + $0x88] sm:$0xf0]
      %v3887 = vld [vmem:[#allocation2 + $0x90] sm:$0x1]
      %v3890 = vunpack.c.h.b16 %v3886
      %v3891 = vunpack.c.l.b16 %v3887
      %v3892 = vpack.c.b16 %v3890, %v3890
      %v3893 = vpack.c.b16 %v3891, %v3891
      %v3894 = vrot.slane %v3892, 5
      %v3895 = vrot.slane %v3894, 4
      %v3896 = vrot.slane %v3893, 5
      %v3897 = vsel %vm1075, %v3895, %v3896
      %3900 = vst.msk [vmem:[#allocation3 + $0x68] sm:$0x8] %vm3683, %v3894
      %v3901 = vld [vmem:[#allocation3 + $0x78] sm:$0xf]
      %v3902 = vsel %vm3685, %v3897, %v3901
      %3903 = vst [vmem:[#allocation3 + $0x78] sm:$0xf] %v3902
      %v3904 = vld [vmem:[#allocation2 + $0x90] sm:$0x3e]
      %v3906 = vunpack.c.l.b16 %v3904
      %v3907 = vunpack.c.h.b16 %v3904
      %v3908 = vpack.c.b16 %v3906, %v3906
      %v3909 = vpack.c.b16 %v3907, %v3907
      %v3910 = vrot.slane %v3908, 6
      %v3911 = vrot.slane %v3910, 4
      %v3912 = vrot.slane %v3909, 6
      %v3913 = vsel %vm1185, %v3911, %v3912
      %3914 = vrot.lane.b32.xlu0 %v3910, 32
      %v3915 = vpop.permute.xlu0 %3914
      %3916 = vrot.lane.b32.xlu0 %v3913, 32
      %v3917 = vpop.permute.xlu0 %3916
      %3920 = vst.msk [vmem:[#allocation3 + $0x68] sm:$0x8] %vm3707, %v3915
      %v3921 = vld [vmem:[#allocation3 + $0x78] sm:$0xf]
      %v3922 = vsel %vm3709, %v3917, %v3921
      %3923 = vst [vmem:[#allocation3 + $0x78] sm:$0xf] %v3922
      %v3924 = vld [vmem:[#allocation2 + $0x88] sm:$0xf0]
      %v3925 = vld [vmem:[#allocation2 + $0x90] sm:$0x1]
      %v3928 = vunpack.c.h.b16 %v3924
      %v3929 = vunpack.c.l.b16 %v3925
      %v3930 = vpack.c.b16 %v3928, %v3928
      %v3931 = vpack.c.b16 %v3929, %v3929
      %v3933 = vshrl.u32 %v3930, 16
      %v3935 = vrot.slane %v3933, 5
      %v3936 = vshll.u32 %v3930, 16
      %v3938 = vrot.slane %v3936, 6
      %v3939 = vor.u32 %v3935, %v3938
      %v3940 = vrot.slane %v3939, 4
      %v3942 = vshrl.u32 %v3931, 16
      %v3944 = vrot.slane %v3942, 5
      %v3945 = vshll.u32 %v3931, 16
      %v3947 = vrot.slane %v3945, 6
      %v3948 = vor.u32 %v3944, %v3947
      %v3949 = vsel %vm1144, %v3940, %v3948
      %3950 = vrot.lane.b32.xlu0 %v3939, 64
      %v3951 = vpop.permute.xlu0 %3950
      %3952 = vrot.lane.b32.xlu0 %v3949, 64
      %v3953 = vpop.permute.xlu0 %3952
      %3956 = vst.msk [vmem:[#allocation3 + $0x68] sm:$0x8] %vm3743, %v3951
      %v3957 = vld [vmem:[#allocation3 + $0x78] sm:$0xf]
      %v3958 = vsel %vm3745, %v3953, %v3957
      %3959 = vst [vmem:[#allocation3 + $0x78] sm:$0xf] %v3958
      %v3960 = vld [vmem:[#allocation2 + $0x90] sm:$0x3e]
      %v3962 = vunpack.c.l.b16 %v3960
      %v3963 = vunpack.c.h.b16 %v3960
      %v3964 = vpack.c.b16 %v3962, %v3962
      %v3965 = vpack.c.b16 %v3963, %v3963
      %v3967 = vshrl.u32 %v3964, 16
      %v3969 = vrot.slane %v3967, 6
      %v3970 = vshll.u32 %v3964, 16
      %v3972 = vrot.slane %v3970, 7
      %v3973 = vor.u32 %v3969, %v3972
      %v3974 = vrot.slane %v3973, 4
      %v3976 = vshrl.u32 %v3965, 16
      %v3978 = vrot.slane %v3976, 6
      %v3979 = vshll.u32 %v3965, 16
      %v3981 = vrot.slane %v3979, 7
      %v3982 = vor.u32 %v3978, %v3981
      %v3983 = vsel %vm1231, %v3974, %v3982
      %3984 = vrot.lane.b32.xlu0 %v3973, 96
      %v3985 = vpop.permute.xlu0 %3984
      %3986 = vrot.lane.b32.xlu0 %v3983, 96
      %v3987 = vpop.permute.xlu0 %3986
      %3990 = vst.msk [vmem:[#allocation3 + $0x68] sm:$0x8] %vm3781, %v3985
      %v3991 = vld [vmem:[#allocation3 + $0x78] sm:$0xf]
      %v3992 = vsel %vm3783, %v3987, %v3991
      %3993 = vst [vmem:[#allocation3 + $0x78] sm:$0xf] %v3992
      %v3994 = vld [vmem:[#allocation2 + $0x90] sm:$0xc0]
      %v3995 = vld [vmem:[#allocation2 + $0x98] sm:$0x7]
      %v3998 = vunpack.c.h.b16 %v3994
      %v3999 = vunpack.c.l.b16 %v3995
      %v4000 = vpack.c.b16 %v3998, %v3998
      %v4001 = vpack.c.b16 %v3999, %v3999
      %v4002 = vrot.slane %v4000, 7
      %v4003 = vrot.slane %v4002, 4
      %v4004 = vrot.slane %v4001, 7
      %v4005 = vsel %vm1207, %v4003, %v4004
      %4008 = vst.msk [vmem:[#allocation3 + $0x6c] sm:$0x8] %vm3683, %v4002
      %v4009 = vld [vmem:[#allocation3 + $0x7c] sm:$0xf]
      %v4010 = vsel %vm3685, %v4005, %v4009
      %4011 = vst [vmem:[#allocation3 + $0x7c] sm:$0xf] %v4010
      %v4012 = vld [vmem:[#allocation2 + $0x98] sm:$0xf8]
      %v4014 = vunpack.c.l.b16 %v4012
      %v4015 = vunpack.c.h.b16 %v4012
      %v4016 = vpack.c.b16 %v4014, %v4014
      %v4017 = vpack.c.b16 %v4015, %v4015
      %4018 = vrot.lane.b32.xlu0 %v4016, 32
      %v4019 = vpop.permute.xlu0 %4018
      %4020 = vrot.lane.b32.xlu0 %v4017, 32
      %v4021 = vpop.permute.xlu0 %4020
      %4024 = vst.msk [vmem:[#allocation3 + $0x6c] sm:$0x8] %vm3707, %v4019
      %v4025 = vld [vmem:[#allocation3 + $0x7c] sm:$0xf]
      %v4026 = vsel %vm3709, %v4021, %v4025
      %4027 = vst [vmem:[#allocation3 + $0x7c] sm:$0xf] %v4026
      %v4028 = vld [vmem:[#allocation2 + $0x90] sm:$0xc0]
      %v4029 = vld [vmem:[#allocation2 + $0x98] sm:$0x7]
      %v4032 = vunpack.c.h.b16 %v4028
      %v4033 = vunpack.c.l.b16 %v4029
      %v4034 = vpack.c.b16 %v4032, %v4032
      %v4035 = vpack.c.b16 %v4033, %v4033
      %v4037 = vshrl.u32 %v4034, 16
      %v4039 = vrot.slane %v4037, 7
      %v4040 = vshll.u32 %v4034, 16
      %v4042 = vor.u32 %v4039, %v4040
      %v4043 = vrot.slane %v4039, 4
      %v4045 = vshrl.u32 %v4035, 16
      %v4047 = vrot.slane %v4045, 7
      %v4048 = vshll.u32 %v4035, 16
      %v4050 = vor.u32 %v4047, %v4048
      %v4051 = vsel %vm1270, %v4043, %v4050
      %4052 = vrot.lane.b32.xlu0 %v4042, 64
      %v4053 = vpop.permute.xlu0 %4052
      %4054 = vrot.lane.b32.xlu0 %v4051, 64
      %v4055 = vpop.permute.xlu0 %4054
      %4058 = vst.msk [vmem:[#allocation3 + $0x6c] sm:$0x8] %vm3743, %v4053
      %v4059 = vld [vmem:[#allocation3 + $0x7c] sm:$0xf]
      %v4060 = vsel %vm3745, %v4055, %v4059
      %4061 = vst [vmem:[#allocation3 + $0x7c] sm:$0xf] %v4060
      %v4062 = vld [vmem:[#allocation2 + $0x98] sm:$0xf8]
      %v4064 = vunpack.c.l.b16 %v4062
      %v4065 = vunpack.c.h.b16 %v4062
      %v4066 = vpack.c.b16 %v4064, %v4064
      %v4067 = vpack.c.b16 %v4065, %v4065
      %v4069 = vshrl.u32 %v4066, 16
      %v4071 = vrot.slane %v4069, 4
      %v4072 = vrot.slane %v4071, 4
      %v4074 = vshll.u32 %v4067, 16
      %v4076 = vrot.slane %v4074, 5
      %v4077 = vsel %vm1102, %v4072, %v4076
      %v4078 = vshrl.u32 %v4067, 16
      %v4080 = vrot.slane %v4078, 4
      %v4081 = vor.u32 %v4080, %v4076
      %v4082 = vrot.slane %v4081, 4
      %4083 = vrot.lane.b32.xlu0 %v4077, 96
      %v4084 = vpop.permute.xlu0 %4083
      %4085 = vrot.lane.b32.xlu0 %v4082, 96
      %v4086 = vpop.permute.xlu0 %4085
      %4089 = vst.msk [vmem:[#allocation3 + $0x6c] sm:$0x8] %vm3781, %v4084
      %v4090 = vld [vmem:[#allocation3 + $0x7c] sm:$0xf]
      %v4091 = vsel %vm3783, %v4086, %v4090
      %4092 = vst [vmem:[#allocation3 + $0x7c] sm:$0xf] %v4091
      %v4093 = vld [vmem:[#allocation2 + $0x88] sm:$0xf0]
      %v4094 = vld [vmem:[#allocation2 + $0x90] sm:$0x1]
      %v4097 = vunpack.c.h.b16 %v4093
      %v4098 = vunpack.c.l.b16 %v4094
      %v4099 = vpack.c.b16 %v4097, %v4097
      %v4100 = vpack.c.b16 %v4098, %v4098
      %v4102 = vshll.u32 %v4099, 16
      %v4104 = vrot.slane %v4102, 5
      %v4105 = vshrl.u32 %v4099, 16
      %v4107 = vrot.slane %v4105, 4
      %v4108 = vor.u32 %v4107, %v4104
      %v4109 = vrot.slane %v4108, 4
      %v4111 = vshll.u32 %v4100, 16
      %v4113 = vrot.slane %v4111, 5
      %v4114 = vsel %vm1102, %v4109, %v4113
      %vm4117 = vcmask 257027
      %vm4118 = vsmask.f32 7950
      %vm4119 = vmand %vm4117, %vm4118
      %v4120 = vld [vmem:[#allocation3 + $0x70] sm:$0x8]
      %v4121 = vsel %vm4119, %v4104, %v4120
      %4122 = vst [vmem:[#allocation3 + $0x70] sm:$0x8] %v4121
      %4123 = vst.msk [vmem:[#allocation3 + $0x80] sm:$0xf] %vm1057, %v4114
      %v4124 = vld [vmem:[#allocation2 + $0x90] sm:$0x3e]
      %v4126 = vunpack.c.l.b16 %v4124
      %v4127 = vunpack.c.h.b16 %v4124
      %v4128 = vpack.c.b16 %v4126, %v4126
      %v4129 = vpack.c.b16 %v4127, %v4127
      %v4131 = vshll.u32 %v4128, 16
      %v4133 = vrot.slane %v4131, 6
      %v4134 = vshrl.u32 %v4128, 16
      %v4136 = vrot.slane %v4134, 5
      %v4137 = vor.u32 %v4136, %v4133
      %v4138 = vrot.slane %v4137, 4
      %v4140 = vshrl.u32 %v4129, 16
      %v4142 = vrot.slane %v4140, 5
      %v4143 = vshll.u32 %v4129, 16
      %v4145 = vrot.slane %v4143, 6
      %v4146 = vor.u32 %v4142, %v4145
      %v4147 = vsel %vm1144, %v4138, %v4146
      %4148 = vrot.lane.b32.xlu0 %v4133, 32
      %v4149 = vpop.permute.xlu0 %4148
      %4150 = vrot.lane.b32.xlu0 %v4147, 32
      %v4151 = vpop.permute.xlu0 %4150
      %vm4154 = vcmask 519427
      %vm4155 = vmand %vm4154, %vm4118
      %v4156 = vld [vmem:[#allocation3 + $0x70] sm:$0x8]
      %v4157 = vsel %vm4155, %v4149, %v4156
      %4158 = vst [vmem:[#allocation3 + $0x70] sm:$0x8] %v4157
      %4159 = vst.msk [vmem:[#allocation3 + $0x80] sm:$0xf] %vm1087, %v4151
      %v4160 = vld [vmem:[#allocation2 + $0x88] sm:$0xf0]
      %v4161 = vld [vmem:[#allocation2 + $0x90] sm:$0x1]
      %v4164 = vunpack.c.h.b16 %v4160
      %v4165 = vunpack.c.l.b16 %v4161
      %v4166 = vpack.c.b16 %v4164, %v4164
      %v4167 = vpack.c.b16 %v4165, %v4165
      %v4168 = vrot.slane %v4166, 5
      %v4169 = vrot.slane %v4168, 4
      %v4170 = vrot.slane %v4167, 5
      %v4171 = vsel %vm1075, %v4169, %v4170
      %4172 = vrot.lane.b32.xlu0 %v4168, 64
      %v4173 = vpop.permute.xlu0 %4172
      %4174 = vrot.lane.b32.xlu0 %v4171, 64
      %v4175 = vpop.permute.xlu0 %4174
      %vm4178 = vcmask 781827
      %vm4179 = vmand %vm4178, %vm4118
      %v4180 = vld [vmem:[#allocation3 + $0x70] sm:$0x8]
      %v4181 = vsel %vm4179, %v4173, %v4180
      %4182 = vst [vmem:[#allocation3 + $0x70] sm:$0x8] %v4181
      %4183 = vst.msk [vmem:[#allocation3 + $0x80] sm:$0xf] %vm1127, %v4175
      %v4184 = vld [vmem:[#allocation2 + $0x90] sm:$0x3e]
      %v4186 = vunpack.c.l.b16 %v4184
      %v4187 = vunpack.c.h.b16 %v4184
      %v4188 = vpack.c.b16 %v4186, %v4186
      %v4189 = vpack.c.b16 %v4187, %v4187
      %v4190 = vrot.slane %v4188, 6
      %v4191 = vrot.slane %v4190, 4
      %v4192 = vrot.slane %v4189, 6
      %v4193 = vsel %vm1185, %v4191, %v4192
      %4194 = vrot.lane.b32.xlu0 %v4190, 96
      %v4195 = vpop.permute.xlu0 %4194
      %4196 = vrot.lane.b32.xlu0 %v4193, 96
      %v4197 = vpop.permute.xlu0 %4196
      %vm4200 = vcmask 1044227
      %vm4201 = vmand %vm4200, %vm4118
      %v4202 = vld [vmem:[#allocation3 + $0x70] sm:$0x8]
      %v4203 = vsel %vm4201, %v4195, %v4202
      %4204 = vst [vmem:[#allocation3 + $0x70] sm:$0x8] %v4203
      %4205 = vst.msk [vmem:[#allocation3 + $0x80] sm:$0xf] %vm1170, %v4197
      %v4206 = vld [vmem:[#allocation2 + $0x90] sm:$0xc0]
      %v4207 = vld [vmem:[#allocation2 + $0x98] sm:$0x7]
      %v4210 = vunpack.c.h.b16 %v4206
      %v4211 = vunpack.c.l.b16 %v4207
      %v4212 = vpack.c.b16 %v4210, %v4210
      %v4213 = vpack.c.b16 %v4211, %v4211
      %v4215 = vshll.u32 %v4212, 16
      %v4217 = vrot.slane %v4215, 7
      %v4218 = vshrl.u32 %v4212, 16
      %v4220 = vrot.slane %v4218, 6
      %v4221 = vor.u32 %v4220, %v4217
      %v4222 = vrot.slane %v4221, 4
      %v4224 = vshrl.u32 %v4213, 16
      %v4226 = vrot.slane %v4224, 6
      %v4227 = vshll.u32 %v4213, 16
      %v4229 = vrot.slane %v4227, 7
      %v4230 = vor.u32 %v4226, %v4229
      %v4231 = vsel %vm1231, %v4222, %v4230
      %v4234 = vld [vmem:[#allocation3 + $0x74] sm:$0x8]
      %v4235 = vsel %vm4119, %v4217, %v4234
      %4236 = vst [vmem:[#allocation3 + $0x74] sm:$0x8] %v4235
      %4237 = vst.msk [vmem:[#allocation3 + $0x84] sm:$0xf] %vm1057, %v4231
      %v4238 = vld [vmem:[#allocation2 + $0x98] sm:$0xf8]
      %v4240 = vunpack.c.l.b16 %v4238
      %v4241 = vunpack.c.h.b16 %v4238
      %v4242 = vpack.c.b16 %v4240, %v4240
      %v4243 = vpack.c.b16 %v4241, %v4241
      %v4245 = vshll.u32 %v4242, 16
      %v4247 = vshrl.u32 %v4242, 16
      %v4249 = vrot.slane %v4247, 7
      %v4250 = vrot.slane %v4249, 4
      %v4252 = vshrl.u32 %v4243, 16
      %v4254 = vrot.slane %v4252, 7
      %v4255 = vshll.u32 %v4243, 16
      %v4257 = vor.u32 %v4254, %v4255
      %v4258 = vsel %vm1270, %v4250, %v4257
      %4259 = vrot.lane.b32.xlu0 %v4245, 32
      %v4260 = vpop.permute.xlu0 %4259
      %4261 = vrot.lane.b32.xlu0 %v4258, 32
      %v4262 = vpop.permute.xlu0 %4261
      %v4265 = vld [vmem:[#allocation3 + $0x74] sm:$0x8]
      %v4266 = vsel %vm4155, %v4260, %v4265
      %4267 = vst [vmem:[#allocation3 + $0x74] sm:$0x8] %v4266
      %4268 = vst.msk [vmem:[#allocation3 + $0x84] sm:$0xf] %vm1087, %v4262
      %v4269 = vld [vmem:[#allocation2 + $0x90] sm:$0xc0]
      %v4270 = vld [vmem:[#allocation2 + $0x98] sm:$0x7]
      %v4273 = vunpack.c.h.b16 %v4269
      %v4274 = vunpack.c.l.b16 %v4270
      %v4275 = vpack.c.b16 %v4273, %v4273
      %v4276 = vpack.c.b16 %v4274, %v4274
      %v4277 = vrot.slane %v4275, 7
      %v4278 = vrot.slane %v4277, 4
      %v4279 = vrot.slane %v4276, 7
      %v4280 = vsel %vm1207, %v4278, %v4279
      %4281 = vrot.lane.b32.xlu0 %v4277, 64
      %v4282 = vpop.permute.xlu0 %4281
      %4283 = vrot.lane.b32.xlu0 %v4280, 64
      %v4284 = vpop.permute.xlu0 %4283
      %v4287 = vld [vmem:[#allocation3 + $0x74] sm:$0x8]
      %v4288 = vsel %vm4179, %v4282, %v4287
      %4289 = vst [vmem:[#allocation3 + $0x74] sm:$0x8] %v4288
      %4290 = vst.msk [vmem:[#allocation3 + $0x84] sm:$0xf] %vm1127, %v4284
      %v4291 = vld [vmem:[#allocation2 + $0x98] sm:$0xf8]
      %v4293 = vunpack.c.l.b16 %v4291
      %v4294 = vunpack.c.h.b16 %v4291
      %v4295 = vpack.c.b16 %v4293, %v4293
      %v4296 = vpack.c.b16 %v4294, %v4294
      %4297 = vrot.lane.b32.xlu0 %v4295, 96
      %v4298 = vpop.permute.xlu0 %4297
      %4299 = vrot.lane.b32.xlu0 %v4296, 96
      %v4300 = vpop.permute.xlu0 %4299
      %v4303 = vld [vmem:[#allocation3 + $0x74] sm:$0x8]
      %v4304 = vsel %vm4201, %v4298, %v4303
      %4305 = vst [vmem:[#allocation3 + $0x74] sm:$0x8] %v4304
      %4306 = vst.msk [vmem:[#allocation3 + $0x84] sm:$0xf] %vm1170, %v4300
      %v4307 = vld [vmem:[#allocation2 + $0xa0] sm:$0x1f]
      %v4309 = vunpack.c.l.b16 %v4307
      %v4310 = vunpack.c.h.b16 %v4307
      %v4311 = vpack.c.b16 %v4309, %v4309
      %v4312 = vpack.c.b16 %v4310, %v4310
      %v4314 = vshll.u32 %v4311, 16
      %v4316 = vrot.slane %v4314, 5
      %v4317 = vshrl.u32 %v4311, 16
      %v4319 = vrot.slane %v4317, 4
      %v4320 = vor.u32 %v4319, %v4316
      %v4321 = vrot.slane %v4320, 4
      %v4323 = vshll.u32 %v4312, 16
      %v4325 = vrot.slane %v4323, 5
      %v4326 = vsel %vm1102, %v4321, %v4325
      %v4329 = vld [vmem:[#allocation3 + $0x78] sm:$0x8]
      %v4330 = vsel %vm4119, %v4316, %v4329
      %4331 = vst [vmem:[#allocation3 + $0x78] sm:$0x8] %v4330
      %4332 = vst.msk [vmem:[#allocation3 + $0x88] sm:$0xf] %vm1057, %v4326
      %v4333 = vld [vmem:[#allocation2 + $0xa0] sm:$0xe0]
      %v4334 = vld [vmem:[#allocation2 + $0xa8] sm:$0x3]
      %v4337 = vunpack.c.h.b16 %v4333
      %v4338 = vunpack.c.l.b16 %v4334
      %v4339 = vpack.c.b16 %v4337, %v4337
      %v4340 = vpack.c.b16 %v4338, %v4338
      %v4342 = vshll.u32 %v4339, 16
      %v4344 = vrot.slane %v4342, 6
      %v4345 = vshrl.u32 %v4339, 16
      %v4347 = vrot.slane %v4345, 5
      %v4348 = vor.u32 %v4347, %v4344
      %v4349 = vrot.slane %v4348, 4
      %v4351 = vshrl.u32 %v4340, 16
      %v4353 = vrot.slane %v4351, 5
      %v4354 = vshll.u32 %v4340, 16
      %v4356 = vrot.slane %v4354, 6
      %v4357 = vor.u32 %v4353, %v4356
      %v4358 = vsel %vm1144, %v4349, %v4357
      %4359 = vrot.lane.b32.xlu0 %v4344, 32
      %v4360 = vpop.permute.xlu0 %4359
      %4361 = vrot.lane.b32.xlu0 %v4358, 32
      %v4362 = vpop.permute.xlu0 %4361
      %v4365 = vld [vmem:[#allocation3 + $0x78] sm:$0x8]
      %v4366 = vsel %vm4155, %v4360, %v4365
      %4367 = vst [vmem:[#allocation3 + $0x78] sm:$0x8] %v4366
      %4368 = vst.msk [vmem:[#allocation3 + $0x88] sm:$0xf] %vm1087, %v4362
      %v4369 = vld [vmem:[#allocation2 + $0xa0] sm:$0x1f]
      %v4371 = vunpack.c.l.b16 %v4369
      %v4372 = vunpack.c.h.b16 %v4369
      %v4373 = vpack.c.b16 %v4371, %v4371
      %v4374 = vpack.c.b16 %v4372, %v4372
      %v4375 = vrot.slane %v4373, 5
      %v4376 = vrot.slane %v4375, 4
      %v4377 = vrot.slane %v4374, 5
      %v4378 = vsel %vm1075, %v4376, %v4377
      %4379 = vrot.lane.b32.xlu0 %v4375, 64
      %v4380 = vpop.permute.xlu0 %4379
      %4381 = vrot.lane.b32.xlu0 %v4378, 64
      %v4382 = vpop.permute.xlu0 %4381
      %v4385 = vld [vmem:[#allocation3 + $0x78] sm:$0x8]
      %v4386 = vsel %vm4179, %v4380, %v4385
      %4387 = vst [vmem:[#allocation3 + $0x78] sm:$0x8] %v4386
      %4388 = vst.msk [vmem:[#allocation3 + $0x88] sm:$0xf] %vm1127, %v4382
      %v4389 = vld [vmem:[#allocation2 + $0xa0] sm:$0xe0]
      %v4390 = vld [vmem:[#allocation2 + $0xa8] sm:$0x3]
      %v4393 = vunpack.c.h.b16 %v4389
      %v4394 = vunpack.c.l.b16 %v4390
      %v4395 = vpack.c.b16 %v4393, %v4393
      %v4396 = vpack.c.b16 %v4394, %v4394
      %v4397 = vrot.slane %v4395, 6
      %v4398 = vrot.slane %v4397, 4
      %v4399 = vrot.slane %v4396, 6
      %v4400 = vsel %vm1185, %v4398, %v4399
      %4401 = vrot.lane.b32.xlu0 %v4397, 96
      %v4402 = vpop.permute.xlu0 %4401
      %4403 = vrot.lane.b32.xlu0 %v4400, 96
      %v4404 = vpop.permute.xlu0 %4403
      %v4407 = vld [vmem:[#allocation3 + $0x78] sm:$0x8]
      %v4408 = vsel %vm4201, %v4402, %v4407
      %4409 = vst [vmem:[#allocation3 + $0x78] sm:$0x8] %v4408
      %4410 = vst.msk [vmem:[#allocation3 + $0x88] sm:$0xf] %vm1170, %v4404
      %v4411 = vld [vmem:[#allocation2 + $0xa8] sm:$0x7c]
      %v4413 = vunpack.c.l.b16 %v4411
      %v4414 = vunpack.c.h.b16 %v4411
      %v4415 = vpack.c.b16 %v4413, %v4413
      %v4416 = vpack.c.b16 %v4414, %v4414
      %v4418 = vshll.u32 %v4415, 16
      %v4420 = vrot.slane %v4418, 7
      %v4421 = vshrl.u32 %v4415, 16
      %v4423 = vrot.slane %v4421, 6
      %v4424 = vor.u32 %v4423, %v4420
      %v4425 = vrot.slane %v4424, 4
      %v4427 = vshrl.u32 %v4416, 16
      %v4429 = vrot.slane %v4427, 6
      %v4430 = vshll.u32 %v4416, 16
      %v4432 = vrot.slane %v4430, 7
      %v4433 = vor.u32 %v4429, %v4432
      %v4434 = vsel %vm1231, %v4425, %v4433
      %v4437 = vld [vmem:[#allocation3 + $0x7c] sm:$0x8]
      %v4438 = vsel %vm4119, %v4420, %v4437
      %4439 = vst [vmem:[#allocation3 + $0x7c] sm:$0x8] %v4438
      %4440 = vst.msk [vmem:[#allocation3 + $0x8c] sm:$0xf] %vm1057, %v4434
      %v4441 = vld [vmem:[#allocation2 + $0xa8] sm:$0x80]
      %v4442 = vld [vmem:[#allocation2 + $0xb0] sm:$0xf]
      %v4445 = vunpack.c.h.b16 %v4441
      %v4446 = vunpack.c.l.b16 %v4442
      %v4447 = vpack.c.b16 %v4445, %v4445
      %v4448 = vpack.c.b16 %v4446, %v4446
      %v4450 = vshll.u32 %v4447, 16
      %v4452 = vshrl.u32 %v4447, 16
      %v4454 = vrot.slane %v4452, 7
      %v4455 = vrot.slane %v4454, 4
      %v4457 = vshrl.u32 %v4448, 16
      %v4459 = vrot.slane %v4457, 7
      %v4460 = vshll.u32 %v4448, 16
      %v4462 = vor.u32 %v4459, %v4460
      %v4463 = vsel %vm1270, %v4455, %v4462
      %4464 = vrot.lane.b32.xlu0 %v4450, 32
      %v4465 = vpop.permute.xlu0 %4464
      %4466 = vrot.lane.b32.xlu0 %v4463, 32
      %v4467 = vpop.permute.xlu0 %4466
      %v4470 = vld [vmem:[#allocation3 + $0x7c] sm:$0x8]
      %v4471 = vsel %vm4155, %v4465, %v4470
      %4472 = vst [vmem:[#allocation3 + $0x7c] sm:$0x8] %v4471
      %4473 = vst.msk [vmem:[#allocation3 + $0x8c] sm:$0xf] %vm1087, %v4467
      %v4474 = vld [vmem:[#allocation2 + $0xa8] sm:$0x7c]
      %v4476 = vunpack.c.l.b16 %v4474
      %v4477 = vunpack.c.h.b16 %v4474
      %v4478 = vpack.c.b16 %v4476, %v4476
      %v4479 = vpack.c.b16 %v4477, %v4477
      %v4480 = vrot.slane %v4478, 7
      %v4481 = vrot.slane %v4480, 4
      %v4482 = vrot.slane %v4479, 7
      %v4483 = vsel %vm1207, %v4481, %v4482
      %4484 = vrot.lane.b32.xlu0 %v4480, 64
      %v4485 = vpop.permute.xlu0 %4484
      %4486 = vrot.lane.b32.xlu0 %v4483, 64
      %v4487 = vpop.permute.xlu0 %4486
      %v4490 = vld [vmem:[#allocation3 + $0x7c] sm:$0x8]
      %v4491 = vsel %vm4179, %v4485, %v4490
      %4492 = vst [vmem:[#allocation3 + $0x7c] sm:$0x8] %v4491
      %4493 = vst.msk [vmem:[#allocation3 + $0x8c] sm:$0xf] %vm1127, %v4487
      %v4494 = vld [vmem:[#allocation2 + $0xa8] sm:$0x80]
      %v4495 = vld [vmem:[#allocation2 + $0xb0] sm:$0xf]
      %v4498 = vunpack.c.h.b16 %v4494
      %v4499 = vunpack.c.l.b16 %v4495
      %v4500 = vpack.c.b16 %v4498, %v4498
      %v4501 = vpack.c.b16 %v4499, %v4499
      %4502 = vrot.lane.b32.xlu0 %v4500, 96
      %v4503 = vpop.permute.xlu0 %4502
      %4504 = vrot.lane.b32.xlu0 %v4501, 96
      %v4505 = vpop.permute.xlu0 %4504
      %v4508 = vld [vmem:[#allocation3 + $0x7c] sm:$0x8]
      %v4509 = vsel %vm4201, %v4503, %v4508
      %4510 = vst [vmem:[#allocation3 + $0x7c] sm:$0x8] %v4509
      %4511 = vst.msk [vmem:[#allocation3 + $0x8c] sm:$0xf] %vm1170, %v4505
      %v4512 = vld [vmem:[#allocation2 + $0xa0] sm:$0x1f]
      %v4514 = vunpack.c.l.b16 %v4512
      %v4515 = vunpack.c.h.b16 %v4512
      %v4516 = vpack.c.b16 %v4514, %v4514
      %v4517 = vpack.c.b16 %v4515, %v4515
      %4520 = vst.msk [vmem:[#allocation3 + $0x90] sm:$0xf] %vm1057, %v4516
      %v4521 = vld [vmem:[#allocation3 + $0xa0] sm:$0x1]
      %v4522 = vsel %vm1061, %v4517, %v4521
      %4523 = vst [vmem:[#allocation3 + $0xa0] sm:$0x1] %v4522
      %v4524 = vld [vmem:[#allocation2 + $0xa0] sm:$0xe0]
      %v4525 = vld [vmem:[#allocation2 + $0xa8] sm:$0x3]
      %v4528 = vunpack.c.h.b16 %v4524
      %v4529 = vunpack.c.l.b16 %v4525
      %v4530 = vpack.c.b16 %v4528, %v4528
      %v4531 = vpack.c.b16 %v4529, %v4529
      %v4532 = vrot.slane %v4530, 5
      %v4533 = vrot.slane %v4532, 4
      %v4534 = vrot.slane %v4531, 5
      %v4535 = vsel %vm1075, %v4533, %v4534
      %v4536 = vrot.slane %v4534, 4
      %4537 = vrot.lane.b32.xlu0 %v4535, 32
      %v4538 = vpop.permute.xlu0 %4537
      %4539 = vrot.lane.b32.xlu0 %v4536, 32
      %v4540 = vpop.permute.xlu0 %4539
      %4543 = vst.msk [vmem:[#allocation3 + $0x90] sm:$0xf] %vm1087, %v4538
      %v4544 = vld [vmem:[#allocation3 + $0xa0] sm:$0x1]
      %v4545 = vsel %vm1090, %v4540, %v4544
      %4546 = vst [vmem:[#allocation3 + $0xa0] sm:$0x1] %v4545
      %v4547 = vld [vmem:[#allocation2 + $0xa0] sm:$0x1f]
      %v4549 = vunpack.c.l.b16 %v4547
      %v4550 = vunpack.c.h.b16 %v4547
      %v4551 = vpack.c.b16 %v4549, %v4549
      %v4552 = vpack.c.b16 %v4550, %v4550
      %v4554 = vshrl.u32 %v4551, 16
      %v4556 = vrot.slane %v4554, 4
      %v4557 = vshll.u32 %v4551, 16
      %v4559 = vrot.slane %v4557, 5
      %v4560 = vor.u32 %v4556, %v4559
      %v4561 = vrot.slane %v4560, 4
      %v4563 = vshll.u32 %v4552, 16
      %v4565 = vrot.slane %v4563, 5
      %v4566 = vsel %vm1102, %v4561, %v4565
      %v4567 = vshrl.u32 %v4552, 16
      %v4569 = vrot.slane %v4567, 4
      %v4570 = vrot.slane %v4569, 4
      %4571 = vrot.lane.b32.xlu0 %v4566, 64
      %v4572 = vpop.permute.xlu0 %4571
      %4573 = vrot.lane.b32.xlu0 %v4570, 64
      %v4574 = vpop.permute.xlu0 %4573
      %4577 = vst.msk [vmem:[#allocation3 + $0x90] sm:$0xf] %vm1127, %v4572
      %v4578 = vld [vmem:[#allocation3 + $0xa0] sm:$0x1]
      %v4579 = vsel %vm1130, %v4574, %v4578
      %4580 = vst [vmem:[#allocation3 + $0xa0] sm:$0x1] %v4579
      %v4581 = vld [vmem:[#allocation2 + $0xa0] sm:$0xe0]
      %v4582 = vld [vmem:[#allocation2 + $0xa8] sm:$0x3]
      %v4585 = vunpack.c.h.b16 %v4581
      %v4586 = vunpack.c.l.b16 %v4582
      %v4587 = vpack.c.b16 %v4585, %v4585
      %v4588 = vpack.c.b16 %v4586, %v4586
      %v4590 = vshrl.u32 %v4587, 16
      %v4592 = vrot.slane %v4590, 5
      %v4593 = vshll.u32 %v4587, 16
      %v4595 = vrot.slane %v4593, 6
      %v4596 = vor.u32 %v4592, %v4595
      %v4597 = vrot.slane %v4596, 4
      %v4599 = vshrl.u32 %v4588, 16
      %v4601 = vrot.slane %v4599, 5
      %v4602 = vshll.u32 %v4588, 16
      %v4604 = vrot.slane %v4602, 6
      %v4605 = vor.u32 %v4601, %v4604
      %v4606 = vsel %vm1144, %v4597, %v4605
      %v4607 = vrot.slane %v4601, 4
      %4608 = vrot.lane.b32.xlu0 %v4606, 96
      %v4609 = vpop.permute.xlu0 %4608
      %4610 = vrot.lane.b32.xlu0 %v4607, 96
      %v4611 = vpop.permute.xlu0 %4610
      %4614 = vst.msk [vmem:[#allocation3 + $0x90] sm:$0xf] %vm1170, %v4609
      %v4615 = vld [vmem:[#allocation3 + $0xa0] sm:$0x1]
      %v4616 = vsel %vm1173, %v4611, %v4615
      %4617 = vst [vmem:[#allocation3 + $0xa0] sm:$0x1] %v4616
      %v4618 = vld [vmem:[#allocation2 + $0xa8] sm:$0x7c]
      %v4620 = vunpack.c.l.b16 %v4618
      %v4621 = vunpack.c.h.b16 %v4618
      %v4622 = vpack.c.b16 %v4620, %v4620
      %v4623 = vpack.c.b16 %v4621, %v4621
      %v4624 = vrot.slane %v4622, 6
      %v4625 = vrot.slane %v4624, 4
      %v4626 = vrot.slane %v4623, 6
      %v4627 = vsel %vm1185, %v4625, %v4626
      %v4628 = vrot.slane %v4626, 4
      %4631 = vst.msk [vmem:[#allocation3 + $0x94] sm:$0xf] %vm1057, %v4627
      %v4632 = vld [vmem:[#allocation3 + $0xa4] sm:$0x1]
      %v4633 = vsel %vm1061, %v4628, %v4632
      %4634 = vst [vmem:[#allocation3 + $0xa4] sm:$0x1] %v4633
      %v4635 = vld [vmem:[#allocation2 + $0xa8] sm:$0x80]
      %v4636 = vld [vmem:[#allocation2 + $0xb0] sm:$0xf]
      %v4639 = vunpack.c.h.b16 %v4635
      %v4640 = vunpack.c.l.b16 %v4636
      %v4641 = vpack.c.b16 %v4639, %v4639
      %v4642 = vpack.c.b16 %v4640, %v4640
      %v4643 = vrot.slane %v4641, 7
      %v4644 = vrot.slane %v4643, 4
      %v4645 = vrot.slane %v4642, 7
      %v4646 = vsel %vm1207, %v4644, %v4645
      %v4647 = vrot.slane %v4645, 4
      %4648 = vrot.lane.b32.xlu0 %v4646, 32
      %v4649 = vpop.permute.xlu0 %4648
      %4650 = vrot.lane.b32.xlu0 %v4647, 32
      %v4651 = vpop.permute.xlu0 %4650
      %4654 = vst.msk [vmem:[#allocation3 + $0x94] sm:$0xf] %vm1087, %v4649
      %v4655 = vld [vmem:[#allocation3 + $0xa4] sm:$0x1]
      %v4656 = vsel %vm1090, %v4651, %v4655
      %4657 = vst [vmem:[#allocation3 + $0xa4] sm:$0x1] %v4656
      %v4658 = vld [vmem:[#allocation2 + $0xa8] sm:$0x7c]
      %v4660 = vunpack.c.l.b16 %v4658
      %v4661 = vunpack.c.h.b16 %v4658
      %v4662 = vpack.c.b16 %v4660, %v4660
      %v4663 = vpack.c.b16 %v4661, %v4661
      %v4665 = vshrl.u32 %v4662, 16
      %v4667 = vrot.slane %v4665, 6
      %v4668 = vshll.u32 %v4662, 16
      %v4670 = vrot.slane %v4668, 7
      %v4671 = vor.u32 %v4667, %v4670
      %v4672 = vrot.slane %v4671, 4
      %v4674 = vshrl.u32 %v4663, 16
      %v4676 = vrot.slane %v4674, 6
      %v4677 = vshll.u32 %v4663, 16
      %v4679 = vrot.slane %v4677, 7
      %v4680 = vor.u32 %v4676, %v4679
      %v4681 = vsel %vm1231, %v4672, %v4680
      %v4682 = vrot.slane %v4676, 4
      %4683 = vrot.lane.b32.xlu0 %v4681, 64
      %v4684 = vpop.permute.xlu0 %4683
      %4685 = vrot.lane.b32.xlu0 %v4682, 64
      %v4686 = vpop.permute.xlu0 %4685
      %4689 = vst.msk [vmem:[#allocation3 + $0x94] sm:$0xf] %vm1127, %v4684
      %v4690 = vld [vmem:[#allocation3 + $0xa4] sm:$0x1]
      %v4691 = vsel %vm1130, %v4686, %v4690
      %4692 = vst [vmem:[#allocation3 + $0xa4] sm:$0x1] %v4691
      %v4693 = vld [vmem:[#allocation2 + $0xa8] sm:$0x80]
      %v4694 = vld [vmem:[#allocation2 + $0xb0] sm:$0xf]
      %v4697 = vunpack.c.h.b16 %v4693
      %v4698 = vunpack.c.l.b16 %v4694
      %v4699 = vpack.c.b16 %v4697, %v4697
      %v4700 = vpack.c.b16 %v4698, %v4698
      %v4702 = vshrl.u32 %v4699, 16
      %v4704 = vrot.slane %v4702, 7
      %v4705 = vrot.slane %v4704, 4
      %v4707 = vshrl.u32 %v4700, 16
      %v4709 = vrot.slane %v4707, 7
      %v4710 = vshll.u32 %v4700, 16
      %v4712 = vor.u32 %v4709, %v4710
      %v4713 = vsel %vm1270, %v4705, %v4712
      %v4714 = vrot.slane %v4709, 4
      %4715 = vrot.lane.b32.xlu0 %v4713, 96
      %v4716 = vpop.permute.xlu0 %4715
      %4717 = vrot.lane.b32.xlu0 %v4714, 96
      %v4718 = vpop.permute.xlu0 %4717
      %4721 = vst.msk [vmem:[#allocation3 + $0x94] sm:$0xf] %vm1170, %v4716
      %v4722 = vld [vmem:[#allocation3 + $0xa4] sm:$0x1]
      %v4723 = vsel %vm1173, %v4718, %v4722
      %4724 = vst [vmem:[#allocation3 + $0xa4] sm:$0x1] %v4723
      %v4725 = vld [vmem:[#allocation2 + $0xb0] sm:$0xf0]
      %v4726 = vld [vmem:[#allocation2 + $0xb8] sm:$0x1]
      %v4729 = vunpack.c.h.b16 %v4725
      %v4730 = vunpack.c.l.b16 %v4726
      %v4731 = vpack.c.b16 %v4729, %v4729
      %v4732 = vpack.c.b16 %v4730, %v4730
      %4735 = vst.msk [vmem:[#allocation3 + $0x98] sm:$0xf] %vm1057, %v4731
      %v4736 = vld [vmem:[#allocation3 + $0xa8] sm:$0x1]
      %v4737 = vsel %vm1061, %v4732, %v4736
      %4738 = vst [vmem:[#allocation3 + $0xa8] sm:$0x1] %v4737
      %v4739 = vld [vmem:[#allocation2 + $0xb8] sm:$0x3e]
      %v4741 = vunpack.c.l.b16 %v4739
      %v4742 = vunpack.c.h.b16 %v4739
      %v4743 = vpack.c.b16 %v4741, %v4741
      %v4744 = vpack.c.b16 %v4742, %v4742
      %v4745 = vrot.slane %v4743, 5
      %v4746 = vrot.slane %v4745, 4
      %v4747 = vrot.slane %v4744, 5
      %v4748 = vsel %vm1075, %v4746, %v4747
      %v4749 = vrot.slane %v4747, 4
      %4750 = vrot.lane.b32.xlu0 %v4748, 32
      %v4751 = vpop.permute.xlu0 %4750
      %4752 = vrot.lane.b32.xlu0 %v4749, 32
      %v4753 = vpop.permute.xlu0 %4752
      %4756 = vst.msk [vmem:[#allocation3 + $0x98] sm:$0xf] %vm1087, %v4751
      %v4757 = vld [vmem:[#allocation3 + $0xa8] sm:$0x1]
      %v4758 = vsel %vm1090, %v4753, %v4757
      %4759 = vst [vmem:[#allocation3 + $0xa8] sm:$0x1] %v4758
      %v4760 = vld [vmem:[#allocation2 + $0xb0] sm:$0xf0]
      %v4761 = vld [vmem:[#allocation2 + $0xb8] sm:$0x1]
      %v4764 = vunpack.c.h.b16 %v4760
      %v4765 = vunpack.c.l.b16 %v4761
      %v4766 = vpack.c.b16 %v4764, %v4764
      %v4767 = vpack.c.b16 %v4765, %v4765
      %v4769 = vshrl.u32 %v4766, 16
      %v4771 = vrot.slane %v4769, 4
      %v4772 = vshll.u32 %v4766, 16
      %v4774 = vrot.slane %v4772, 5
      %v4775 = vor.u32 %v4771, %v4774
      %v4776 = vrot.slane %v4775, 4
      %v4778 = vshll.u32 %v4767, 16
      %v4780 = vrot.slane %v4778, 5
      %v4781 = vsel %vm1102, %v4776, %v4780
      %v4782 = vshrl.u32 %v4767, 16
      %v4784 = vrot.slane %v4782, 4
      %v4785 = vrot.slane %v4784, 4
      %4786 = vrot.lane.b32.xlu0 %v4781, 64
      %v4787 = vpop.permute.xlu0 %4786
      %4788 = vrot.lane.b32.xlu0 %v4785, 64
      %v4789 = vpop.permute.xlu0 %4788
      %4792 = vst.msk [vmem:[#allocation3 + $0x98] sm:$0xf] %vm1127, %v4787
      %v4793 = vld [vmem:[#allocation3 + $0xa8] sm:$0x1]
      %v4794 = vsel %vm1130, %v4789, %v4793
      %4795 = vst [vmem:[#allocation3 + $0xa8] sm:$0x1] %v4794
      %v4796 = vld [vmem:[#allocation2 + $0xb8] sm:$0x3e]
      %v4798 = vunpack.c.l.b16 %v4796
      %v4799 = vunpack.c.h.b16 %v4796
      %v4800 = vpack.c.b16 %v4798, %v4798
      %v4801 = vpack.c.b16 %v4799, %v4799
      %v4803 = vshrl.u32 %v4800, 16
      %v4805 = vrot.slane %v4803, 5
      %v4806 = vshll.u32 %v4800, 16
      %v4808 = vrot.slane %v4806, 6
      %v4809 = vor.u32 %v4805, %v4808
      %v4810 = vrot.slane %v4809, 4
      %v4812 = vshrl.u32 %v4801, 16
      %v4814 = vrot.slane %v4812, 5
      %v4815 = vshll.u32 %v4801, 16
      %v4817 = vrot.slane %v4815, 6
      %v4818 = vor.u32 %v4814, %v4817
      %v4819 = vsel %vm1144, %v4810, %v4818
      %v4820 = vrot.slane %v4814, 4
      %4821 = vrot.lane.b32.xlu0 %v4819, 96
      %v4822 = vpop.permute.xlu0 %4821
      %4823 = vrot.lane.b32.xlu0 %v4820, 96
      %v4824 = vpop.permute.xlu0 %4823
      %4827 = vst.msk [vmem:[#allocation3 + $0x98] sm:$0xf] %vm1170, %v4822
      %v4828 = vld [vmem:[#allocation3 + $0xa8] sm:$0x1]
      %v4829 = vsel %vm1173, %v4824, %v4828
      %4830 = vst [vmem:[#allocation3 + $0xa8] sm:$0x1] %v4829
      %v4831 = vld [vmem:[#allocation2 + $0xb8] sm:$0xc0]
      %v4832 = vld [vmem:[#allocation2 + $0xc0] sm:$0x7]
      %v4835 = vunpack.c.h.b16 %v4831
      %v4836 = vunpack.c.l.b16 %v4832
      %v4837 = vpack.c.b16 %v4835, %v4835
      %v4838 = vpack.c.b16 %v4836, %v4836
      %v4839 = vrot.slane %v4837, 6
      %v4840 = vrot.slane %v4839, 4
      %v4841 = vrot.slane %v4838, 6
      %v4842 = vsel %vm1185, %v4840, %v4841
      %v4843 = vrot.slane %v4841, 4
      %4846 = vst.msk [vmem:[#allocation3 + $0x9c] sm:$0xf] %vm1057, %v4842
      %v4847 = vld [vmem:[#allocation3 + $0xac] sm:$0x1]
      %v4848 = vsel %vm1061, %v4843, %v4847
      %4849 = vst [vmem:[#allocation3 + $0xac] sm:$0x1] %v4848
      %v4850 = vld [vmem:[#allocation2 + $0xc0] sm:$0xf8]
      %v4852 = vunpack.c.l.b16 %v4850
      %v4853 = vunpack.c.h.b16 %v4850
      %v4854 = vpack.c.b16 %v4852, %v4852
      %v4855 = vpack.c.b16 %v4853, %v4853
      %v4856 = vrot.slane %v4854, 7
      %v4857 = vrot.slane %v4856, 4
      %v4858 = vrot.slane %v4855, 7
      %v4859 = vsel %vm1207, %v4857, %v4858
      %v4860 = vrot.slane %v4858, 4
      %4861 = vrot.lane.b32.xlu0 %v4859, 32
      %v4862 = vpop.permute.xlu0 %4861
      %4863 = vrot.lane.b32.xlu0 %v4860, 32
      %v4864 = vpop.permute.xlu0 %4863
      %4867 = vst.msk [vmem:[#allocation3 + $0x9c] sm:$0xf] %vm1087, %v4862
      %v4868 = vld [vmem:[#allocation3 + $0xac] sm:$0x1]
      %v4869 = vsel %vm1090, %v4864, %v4868
      %4870 = vst [vmem:[#allocation3 + $0xac] sm:$0x1] %v4869
      %v4871 = vld [vmem:[#allocation2 + $0xb8] sm:$0xc0]
      %v4872 = vld [vmem:[#allocation2 + $0xc0] sm:$0x7]
      %v4875 = vunpack.c.h.b16 %v4871
      %v4876 = vunpack.c.l.b16 %v4872
      %v4877 = vpack.c.b16 %v4875, %v4875
      %v4878 = vpack.c.b16 %v4876, %v4876
      %v4880 = vshrl.u32 %v4877, 16
      %v4882 = vrot.slane %v4880, 6
      %v4883 = vshll.u32 %v4877, 16
      %v4885 = vrot.slane %v4883, 7
      %v4886 = vor.u32 %v4882, %v4885
      %v4887 = vrot.slane %v4886, 4
      %v4889 = vshrl.u32 %v4878, 16
      %v4891 = vrot.slane %v4889, 6
      %v4892 = vshll.u32 %v4878, 16
      %v4894 = vrot.slane %v4892, 7
      %v4895 = vor.u32 %v4891, %v4894
      %v4896 = vsel %vm1231, %v4887, %v4895
      %v4897 = vrot.slane %v4891, 4
      %4898 = vrot.lane.b32.xlu0 %v4896, 64
      %v4899 = vpop.permute.xlu0 %4898
      %4900 = vrot.lane.b32.xlu0 %v4897, 64
      %v4901 = vpop.permute.xlu0 %4900
      %4904 = vst.msk [vmem:[#allocation3 + $0x9c] sm:$0xf] %vm1127, %v4899
      %v4905 = vld [vmem:[#allocation3 + $0xac] sm:$0x1]
      %v4906 = vsel %vm1130, %v4901, %v4905
      %4907 = vst [vmem:[#allocation3 + $0xac] sm:$0x1] %v4906
      %v4908 = vld [vmem:[#allocation2 + $0xc0] sm:$0xf8]
      %v4910 = vunpack.c.l.b16 %v4908
      %v4911 = vunpack.c.h.b16 %v4908
      %v4912 = vpack.c.b16 %v4910, %v4910
      %v4913 = vpack.c.b16 %v4911, %v4911
      %v4915 = vshrl.u32 %v4912, 16
      %v4917 = vrot.slane %v4915, 7
      %v4918 = vrot.slane %v4917, 4
      %v4920 = vshrl.u32 %v4913, 16
      %v4922 = vrot.slane %v4920, 7
      %v4923 = vshll.u32 %v4913, 16
      %v4925 = vor.u32 %v4922, %v4923
      %v4926 = vsel %vm1270, %v4918, %v4925
      %v4927 = vrot.slane %v4922, 4
      %4928 = vrot.lane.b32.xlu0 %v4926, 96
      %v4929 = vpop.permute.xlu0 %4928
      %4930 = vrot.lane.b32.xlu0 %v4927, 96
      %v4931 = vpop.permute.xlu0 %4930
      %4934 = vst.msk [vmem:[#allocation3 + $0x9c] sm:$0xf] %vm1170, %v4929
      %v4935 = vld [vmem:[#allocation3 + $0xac] sm:$0x1]
      %v4936 = vsel %vm1173, %v4931, %v4935
      %4937 = vst [vmem:[#allocation3 + $0xac] sm:$0x1] %v4936
      %v4938 = vld [vmem:[#allocation3] sm:$0xff]
      %v4939 = vld [vmem:[#allocation3 + $0x8] sm:$0xff]
      %v4940 = vld [vmem:[#allocation3 + $0x10] sm:$0xff]
      %v4941 = vld [vmem:[#allocation3 + $0x18] sm:$0xff]
      %v4942 = vld [vmem:[#allocation3 + $0x20] sm:$0xff]
      %v4943 = vld [vmem:[#allocation3 + $0x28] sm:$0xff]
      %v4944 = vld [vmem:[#allocation3 + $0x30] sm:$0xff]
      %v4945 = vld [vmem:[#allocation3 + $0x38] sm:$0xff]
      %v4946 = vld [vmem:[#allocation3 + $0x40] sm:$0xff]
      %v4947 = vld [vmem:[#allocation3 + $0x48] sm:$0xff]
      %v4948 = vld [vmem:[#allocation3 + $0x50] sm:$0xff]
      %v4949 = vld [vmem:[#allocation3 + $0x58] sm:$0xff]
      %v4950 = vld [vmem:[#allocation3 + $0x60] sm:$0xff]
      %v4951 = vld [vmem:[#allocation3 + $0x68] sm:$0xff]
      %v4952 = vld [vmem:[#allocation3 + $0x70] sm:$0xff]
      %v4953 = vld [vmem:[#allocation3 + $0x78] sm:$0xff]
      %v4954 = vld [vmem:[#allocation3 + $0x80] sm:$0xff]
      %v4955 = vld [vmem:[#allocation3 + $0x88] sm:$0xff]
      %v4956 = vld [vmem:[#allocation3 + $0x90] sm:$0xff]
      %v4957 = vld [vmem:[#allocation3 + $0x98] sm:$0xff]
      %v4958 = vld [vmem:[#allocation3 + $0xa0] sm:$0x11]
      %v4959 = vld [vmem:[#allocation3 + $0xa8] sm:$0x11]
      %v4960 = vld [vmem:[%s3] sm:$0xf]
      %v4961 = vld [vmem:[%s3 + $0x4] sm:$0xf]
      %v4962 = vld [vmem:[%s3 + $0x8] sm:$0xf]
      %v4963 = vld [vmem:[%s3 + $0xc] sm:$0xf]
      %v4964 = vld [vmem:[%s3 + $0x10] sm:$0xf]
      %v4965 = vld [vmem:[%s3 + $0x14] sm:$0xf]
      %v4966 = vld [vmem:[%s3 + $0x18] sm:$0xf]
      %v4967 = vld [vmem:[%s3 + $0x1c] sm:$0xf]
      %v4968 = vld [vmem:[%s3 + $0x20] sm:$0xf]
      %v4969 = vld [vmem:[%s3 + $0x24] sm:$0xf]
      %v4970 = vld [vmem:[%s3 + $0x28] sm:$0xf]
      %v4971 = vld [vmem:[%s3 + $0x2c] sm:$0xf]
      %v4972 = vld [vmem:[%s3 + $0x30] sm:$0xf]
      %v4973 = vld [vmem:[%s3 + $0x34] sm:$0xf]
      %v4974 = vld [vmem:[%s3 + $0x38] sm:$0xf]
      %v4975 = vld [vmem:[%s3 + $0x3c] sm:$0xf]
      %v4976 = vld [vmem:[%s3 + $0x40] sm:$0xf]
      %v4977 = vld [vmem:[%s3 + $0x44] sm:$0xf]
      %v4978 = vld [vmem:[%s3 + $0x48] sm:$0xf]
      %v4979 = vld [vmem:[%s3 + $0x4c] sm:$0xf]
      %v4980 = vld [vmem:[%s3 + $0x50] sm:$0xf]
      %v4981 = vld [vmem:[%s3 + $0x54] sm:$0xf]
      %v4982 = vld [vmem:[%s3 + $0x58] sm:$0xf]
      %v4983 = vld [vmem:[%s3 + $0x5c] sm:$0xf]
      %v4984 = vld [vmem:[%s3 + $0x60] sm:$0xf]
      %v4985 = vld [vmem:[%s3 + $0x64] sm:$0xf]
      %v4986 = vld [vmem:[%s3 + $0x68] sm:$0xf]
      %v4987 = vld [vmem:[%s3 + $0x6c] sm:$0xf]
      %v4988 = vld [vmem:[%s3 + $0x70] sm:$0xf]
      %v4989 = vld [vmem:[%s3 + $0x74] sm:$0xf]
      %v4990 = vld [vmem:[%s3 + $0x78] sm:$0xf]
      %v4991 = vld [vmem:[%s3 + $0x7c] sm:$0xf]
      %v4992 = vld [vmem:[%s3 + $0x80] sm:$0xf]
      %v4993 = vld [vmem:[%s3 + $0x84] sm:$0xf]
      %v4994 = vld [vmem:[%s3 + $0x88] sm:$0xf]
      %v4995 = vld [vmem:[%s3 + $0x8c] sm:$0xf]
      %v4996 = vld [vmem:[%s3 + $0x90] sm:$0xf]
      %v4997 = vld [vmem:[%s3 + $0x94] sm:$0xf]
      %v4998 = vld [vmem:[%s3 + $0x98] sm:$0xf]
      %v4999 = vld [vmem:[%s3 + $0x9c] sm:$0xf]
      %v5000 = vld [vmem:[%s3 + $0xa0] sm:$0xf]
      %v5001 = vld [vmem:[%s3 + $0xa4] sm:$0xf]
      %v5002 = vld [vmem:[%s3 + $0xa8] sm:$0xf]
      %v5003 = vld [vmem:[%s3 + $0xac] sm:$0xf]
      %v5004 = vld [vmem:[%s3 + $0xb0] sm:$0xf]
      %v5005 = vld [vmem:[%s3 + $0xb4] sm:$0xf]
      %v5006 = vld [vmem:[%s3 + $0xb8] sm:$0xf]
      %v5007 = vld [vmem:[%s3 + $0xbc] sm:$0xf]
      %v5008 = vld [vmem:[%s3 + $0xc0] sm:$0xf]
      %v5009 = vld [vmem:[%s3 + $0xc4] sm:$0xf]
      %v5010 = vld [vmem:[%s3 + $0xc8] sm:$0xf]
      %v5011 = vld [vmem:[%s3 + $0xcc] sm:$0xf]
      %v5012 = vld [vmem:[%s3 + $0xd0] sm:$0xf]
      %v5013 = vld [vmem:[%s3 + $0xd4] sm:$0xf]
      %v5014 = vld [vmem:[%s3 + $0xd8] sm:$0xf]
      %v5015 = vld [vmem:[%s3 + $0xdc] sm:$0xf]
      %v5016 = vld [vmem:[%s3 + $0xe0] sm:$0xf]
      %v5017 = vld [vmem:[%s3 + $0xe4] sm:$0xf]
      %v5018 = vld [vmem:[%s3 + $0xe8] sm:$0xf]
      %v5019 = vld [vmem:[%s3 + $0xec] sm:$0xf]
      %v5020 = vld [vmem:[%s3 + $0xf0] sm:$0xf]
      %v5021 = vld [vmem:[%s3 + $0xf4] sm:$0xf]
      %v5022 = vld [vmem:[%s3 + $0xf8] sm:$0xf]
      %v5023 = vld [vmem:[%s3 + $0xfc] sm:$0xf]
      %v5024 = vld [vmem:[%s4] sm:$0x1]
      %v5026 = vlaneseq
      %v5027 = vshrl.u32 %v5026, 7
      %v5028 = vsub.s32 0, %v5027
      %v5029 = vrot.slane %v5024, %v5028
      %v5053 = vunpack.c.l.b16 %v4938
      %v5054 = vunpack.c.h.b16 %v4938
      %v5055 = vunpack.c.l.b16 %v4939
      %v5056 = vunpack.c.h.b16 %v4939
      %v5057 = vunpack.c.l.b16 %v4940
      %v5058 = vunpack.c.h.b16 %v4940
      %v5059 = vunpack.c.l.b16 %v4941
      %v5060 = vunpack.c.h.b16 %v4941
      %v5061 = vunpack.c.l.b16 %v4942
      %v5062 = vunpack.c.h.b16 %v4942
      %v5063 = vunpack.c.l.b16 %v4943
      %v5064 = vunpack.c.h.b16 %v4943
      %v5065 = vunpack.c.l.b16 %v4944
      %v5066 = vunpack.c.h.b16 %v4944
      %v5067 = vunpack.c.l.b16 %v4945
      %v5068 = vunpack.c.h.b16 %v4945
      %v5069 = vunpack.c.l.b16 %v4946
      %v5070 = vunpack.c.h.b16 %v4946
      %v5071 = vunpack.c.l.b16 %v4947
      %v5072 = vunpack.c.h.b16 %v4947
      %v5073 = vunpack.c.l.b16 %v4948
      %v5074 = vunpack.c.h.b16 %v4948
      %v5075 = vunpack.c.l.b16 %v4949
      %v5076 = vunpack.c.h.b16 %v4949
      %v5077 = vunpack.c.l.b16 %v4950
      %v5078 = vunpack.c.h.b16 %v4950
      %v5079 = vunpack.c.l.b16 %v4951
      %v5080 = vunpack.c.h.b16 %v4951
      %v5081 = vunpack.c.l.b16 %v4952
      %v5082 = vunpack.c.h.b16 %v4952
      %v5083 = vunpack.c.l.b16 %v4953
      %v5084 = vunpack.c.h.b16 %v4953
      %v5085 = vunpack.c.l.b16 %v4954
      %v5086 = vunpack.c.h.b16 %v4954
      %v5087 = vunpack.c.l.b16 %v4955
      %v5088 = vunpack.c.h.b16 %v4955
      %v5089 = vunpack.c.l.b16 %v4956
      %v5090 = vunpack.c.h.b16 %v4956
      %v5091 = vunpack.c.l.b16 %v4957
      %v5092 = vunpack.c.h.b16 %v4957
      %v5093 = vunpack.c.l.b16 %v4958
      %v5094 = vunpack.c.h.b16 %v4958
      %v5095 = vunpack.c.l.b16 %v4959
      %v5096 = vunpack.c.h.b16 %v4959
      %v5097 = vpack.c.b16 %v5057, %v5053
      %v5098 = vpack.c.b16 %v5058, %v5054
      %v5099 = vpack.c.b16 %v5059, %v5055
      %v5100 = vpack.c.b16 %v5060, %v5056
      %v5101 = vpack.c.b16 %v5065, %v5061
      %v5102 = vpack.c.b16 %v5066, %v5062
      %v5103 = vpack.c.b16 %v5067, %v5063
      %v5104 = vpack.c.b16 %v5068, %v5064
      %v5105 = vpack.c.b16 %v5073, %v5069
      %v5106 = vpack.c.b16 %v5074, %v5070
      %v5107 = vpack.c.b16 %v5075, %v5071
      %v5108 = vpack.c.b16 %v5076, %v5072
      %v5109 = vpack.c.b16 %v5081, %v5077
      %v5110 = vpack.c.b16 %v5082, %v5078
      %v5111 = vpack.c.b16 %v5083, %v5079
      %v5112 = vpack.c.b16 %v5084, %v5080
      %v5113 = vpack.c.b16 %v5089, %v5085
      %v5114 = vpack.c.b16 %v5090, %v5086
      %v5115 = vpack.c.b16 %v5091, %v5087
      %v5116 = vpack.c.b16 %v5092, %v5088
      %v5117 = vpack.c.b16 %v5093, %v5093
      %v5118 = vpack.c.b16 %v5094, %v5094
      %v5119 = vpack.c.b16 %v5095, %v5095
      %v5120 = vpack.c.b16 %v5096, %v5096
      %v5209 = vunpack.c.l.b16 %v4960
      %v5210 = vunpack.c.l.b16 %v4961
      %v5211 = vunpack.c.l.b16 %v4962
      %v5212 = vunpack.c.l.b16 %v4963
      %v5213 = vunpack.c.l.b16 %v4964
      %v5214 = vunpack.c.l.b16 %v4965
      %v5215 = vunpack.c.l.b16 %v4966
      %v5216 = vunpack.c.l.b16 %v4967
      %v5217 = vunpack.c.l.b16 %v4968
      %v5218 = vunpack.c.l.b16 %v4969
      %v5219 = vunpack.c.l.b16 %v4970
      %v5220 = vunpack.c.l.b16 %v4971
      %v5221 = vunpack.c.l.b16 %v4972
      %v5222 = vunpack.c.l.b16 %v4973
      %v5223 = vunpack.c.l.b16 %v4974
      %v5224 = vunpack.c.l.b16 %v4975
      %v5225 = vunpack.c.l.b16 %v4976
      %v5226 = vunpack.c.l.b16 %v4977
      %v5227 = vunpack.c.l.b16 %v4978
      %v5228 = vunpack.c.l.b16 %v4979
      %v5229 = vunpack.c.l.b16 %v4980
      %v5230 = vunpack.c.l.b16 %v4981
      %v5231 = vunpack.c.l.b16 %v4982
      %v5232 = vunpack.c.l.b16 %v4983
      %v5233 = vunpack.c.l.b16 %v4984
      %v5234 = vunpack.c.l.b16 %v4985
      %v5235 = vunpack.c.l.b16 %v4986
      %v5236 = vunpack.c.l.b16 %v4987
      %v5237 = vunpack.c.l.b16 %v4988
      %v5238 = vunpack.c.l.b16 %v4989
      %v5239 = vunpack.c.l.b16 %v4990
      %v5240 = vunpack.c.l.b16 %v4991
      %v5241 = vunpack.c.l.b16 %v4992
      %v5242 = vunpack.c.l.b16 %v4993
      %v5243 = vunpack.c.l.b16 %v4994
      %v5244 = vunpack.c.l.b16 %v4995
      %v5245 = vunpack.c.l.b16 %v4996
      %v5246 = vunpack.c.l.b16 %v4997
      %v5247 = vunpack.c.l.b16 %v4998
      %v5248 = vunpack.c.l.b16 %v4999
      %v5249 = vunpack.c.l.b16 %v5000
      %v5250 = vunpack.c.l.b16 %v5001
      %v5251 = vunpack.c.l.b16 %v5002
      %v5252 = vunpack.c.l.b16 %v5003
      %v5253 = vunpack.c.l.b16 %v5004
      %v5254 = vunpack.c.l.b16 %v5005
      %v5255 = vunpack.c.l.b16 %v5006
      %v5256 = vunpack.c.l.b16 %v5007
      %v5257 = vunpack.c.l.b16 %v5008
      %v5258 = vunpack.c.l.b16 %v5009
      %v5259 = vunpack.c.l.b16 %v5010
      %v5260 = vunpack.c.l.b16 %v5011
      %v5261 = vunpack.c.l.b16 %v5012
      %v5262 = vunpack.c.l.b16 %v5013
      %v5263 = vunpack.c.l.b16 %v5014
      %v5264 = vunpack.c.l.b16 %v5015
      %v5265 = vunpack.c.l.b16 %v5016
      %v5266 = vunpack.c.l.b16 %v5017
      %v5267 = vunpack.c.l.b16 %v5018
      %v5268 = vunpack.c.l.b16 %v5019
      %v5269 = vunpack.c.l.b16 %v5020
      %v5270 = vunpack.c.l.b16 %v5021
      %v5271 = vunpack.c.l.b16 %v5022
      %v5272 = vunpack.c.l.b16 %v5023
      %v5273 = vpack.c.b16 %v5210, %v5209
      %v5274 = vpack.c.b16 %v5212, %v5211
      %v5275 = vpack.c.b16 %v5214, %v5213
      %v5276 = vpack.c.b16 %v5216, %v5215
      %v5277 = vpack.c.b16 %v5218, %v5217
      %v5278 = vpack.c.b16 %v5220, %v5219
      %v5279 = vpack.c.b16 %v5222, %v5221
      %v5280 = vpack.c.b16 %v5224, %v5223
      %v5281 = vpack.c.b16 %v5226, %v5225
      %v5282 = vpack.c.b16 %v5228, %v5227
      %v5283 = vpack.c.b16 %v5230, %v5229
      %v5284 = vpack.c.b16 %v5232, %v5231
      %v5285 = vpack.c.b16 %v5234, %v5233
      %v5286 = vpack.c.b16 %v5236, %v5235
      %v5287 = vpack.c.b16 %v5238, %v5237
      %v5288 = vpack.c.b16 %v5240, %v5239
      %v5289 = vpack.c.b16 %v5242, %v5241
      %v5290 = vpack.c.b16 %v5244, %v5243
      %v5291 = vpack.c.b16 %v5246, %v5245
      %v5292 = vpack.c.b16 %v5248, %v5247
      %v5293 = vpack.c.b16 %v5250, %v5249
      %v5294 = vpack.c.b16 %v5252, %v5251
      %v5295 = vpack.c.b16 %v5254, %v5253
      %v5296 = vpack.c.b16 %v5256, %v5255
      %v5297 = vpack.c.b16 %v5258, %v5257
      %v5298 = vpack.c.b16 %v5260, %v5259
      %v5299 = vpack.c.b16 %v5262, %v5261
      %v5300 = vpack.c.b16 %v5264, %v5263
      %v5301 = vpack.c.b16 %v5266, %v5265
      %v5302 = vpack.c.b16 %v5268, %v5267
      %v5303 = vpack.c.b16 %v5270, %v5269
      %v5304 = vpack.c.b16 %v5272, %v5271
      %5337 = vmatprep.subr.bf16.mxu0 0
      %5338 = vmatpush1.bf16.msra.mxu0 %v5273
      %5339 = vmatprep.subr.bf16.mxu0 0
      %5340 = vmatpush1.bf16.msra.mxu0 %v5274
      %5341 = vmatprep.subr.bf16.mxu0 0
      %5342 = vmatpush1.bf16.msra.mxu0 %v5275
      %5343 = vmatprep.subr.bf16.mxu0 0
      %5344 = vmatpush1.bf16.msra.mxu0 %v5276
      %5345 = vmatprep.subr.bf16.mxu0 0
      %5346 = vmatpush1.bf16.msra.mxu0 %v5277
      %5347 = vmatprep.subr.bf16.mxu0 0
      %5348 = vmatpush1.bf16.msra.mxu0 %v5278
      %5349 = vmatprep.subr.bf16.mxu0 0
      %5350 = vmatpush1.bf16.msra.mxu0 %v5279
      %5351 = vmatprep.subr.bf16.mxu0 0
      %5352 = vmatpush1.bf16.msra.mxu0 %v5280
      %5353 = vmatprep.subr.bf16.mxu0 0
      %5354 = vmatpush1.bf16.msra.mxu0 %v5281
      %5355 = vmatprep.subr.bf16.mxu0 0
      %5356 = vmatpush1.bf16.msra.mxu0 %v5282
      %5357 = vmatprep.subr.bf16.mxu0 0
      %5358 = vmatpush1.bf16.msra.mxu0 %v5283
      %5359 = vmatprep.subr.bf16.mxu0 0
      %5360 = vmatpush1.bf16.msra.mxu0 %v5284
      %5361 = vmatprep.subr.bf16.mxu0 0
      %5362 = vmatpush1.bf16.msra.mxu0 %v5285
      %5363 = vmatprep.subr.bf16.mxu0 0
      %5364 = vmatpush1.bf16.msra.mxu0 %v5286
      %5365 = vmatprep.subr.bf16.mxu0 0
      %5366 = vmatpush1.bf16.msra.mxu0 %v5287
      %5367 = vmatprep.subr.bf16.mxu0 0
      %5368 = vmatpush1.bf16.msra.mxu0 %v5288
      %5369 = vmatprep.mubr.bf16.mxu0 %v5098
      %5370 = vmatmul.mubr.bf16.gmra.mrb[0].mxu0 %v5097
      %v5371 = vpop.f32.mrb[0].mxu0
      %v5372 = vadd.f32 %v5029, %v5371
      %v5373 = vpop.f32.mrb[0].mxu0
      %v5374 = vpop.f32.mrb[0].mxu0
      %v5375 = vadd.f32 %v5029, %v5374
      %v5376 = vpop.f32.mrb[0].mxu0
      %5377 = vmatprep.mubr.bf16.mxu0 %v5102
      %5378 = vmatmul.mubr.bf16.gmra.mrb[0].mxu0 %v5101
      %v5379 = vpop.f32.mrb[0].mxu0
      %v5380 = vadd.f32 %v5029, %v5379
      %v5381 = vpop.f32.mrb[0].mxu0
      %v5382 = vpop.f32.mrb[0].mxu0
      %v5383 = vadd.f32 %v5029, %v5382
      %v5384 = vpop.f32.mrb[0].mxu0
      %5385 = vmatprep.mubr.bf16.mxu0 %v5106
      %5386 = vmatmul.mubr.bf16.gmra.mrb[0].mxu0 %v5105
      %v5387 = vpop.f32.mrb[0].mxu0
      %v5388 = vadd.f32 %v5029, %v5387
      %v5389 = vpop.f32.mrb[0].mxu0
      %v5390 = vpop.f32.mrb[0].mxu0
      %v5391 = vadd.f32 %v5029, %v5390
      %v5392 = vpop.f32.mrb[0].mxu0
      %5393 = vmatprep.mubr.bf16.mxu0 %v5110
      %5394 = vmatmul.mubr.bf16.gmra.mrb[0].mxu0 %v5109
      %v5395 = vpop.f32.mrb[0].mxu0
      %v5396 = vadd.f32 %v5029, %v5395
      %v5397 = vpop.f32.mrb[0].mxu0
      %v5398 = vpop.f32.mrb[0].mxu0
      %v5399 = vadd.f32 %v5029, %v5398
      %v5400 = vpop.f32.mrb[0].mxu0
      %5401 = vmatprep.mubr.bf16.mxu0 %v5114
      %5402 = vmatmul.mubr.bf16.gmra.mrb[0].mxu0 %v5113
      %v5403 = vpop.f32.mrb[0].mxu0
      %v5404 = vadd.f32 %v5029, %v5403
      %v5405 = vpop.f32.mrb[0].mxu0
      %v5406 = vpop.f32.mrb[0].mxu0
      %v5407 = vadd.f32 %v5029, %v5406
      %v5408 = vpop.f32.mrb[0].mxu0
      %5409 = vmatprep.mubr.bf16.mxu0 %v5118
      %5410 = vmatmul.mubr.bf16.gmra.mrb[0].mxu0 %v5117
      %v5411 = vpop.f32.mrb[0].mxu0
      %v5412 = vadd.f32 %v5029, %v5411
      %v5413 = vpop.f32.mrb[0].mxu0
      %v5414 = vpop.f32.mrb[0].mxu0
      %v5415 = vpop.f32.mrb[0].mxu0
      %5416 = vdwg.mxu0
      %5417 = vmatprep.subr.bf16.mxu0 0
      %5418 = vmatpush1.bf16.msra.mxu0 %v5289
      %5419 = vmatprep.subr.bf16.mxu0 0
      %5420 = vmatpush1.bf16.msra.mxu0 %v5290
      %5421 = vmatprep.subr.bf16.mxu0 0
      %5422 = vmatpush1.bf16.msra.mxu0 %v5291
      %5423 = vmatprep.subr.bf16.mxu0 0
      %5424 = vmatpush1.bf16.msra.mxu0 %v5292
      %5425 = vmatprep.subr.bf16.mxu0 0
      %5426 = vmatpush1.bf16.msra.mxu0 %v5293
      %5427 = vmatprep.subr.bf16.mxu0 0
      %5428 = vmatpush1.bf16.msra.mxu0 %v5294
      %5429 = vmatprep.subr.bf16.mxu0 0
      %5430 = vmatpush1.bf16.msra.mxu0 %v5295
      %5431 = vmatprep.subr.bf16.mxu0 0
      %5432 = vmatpush1.bf16.msra.mxu0 %v5296
      %5433 = vmatprep.subr.bf16.mxu0 0
      %5434 = vmatpush1.bf16.msra.mxu0 %v5297
      %5435 = vmatprep.subr.bf16.mxu0 0
      %5436 = vmatpush1.bf16.msra.mxu0 %v5298
      %5437 = vmatprep.subr.bf16.mxu0 0
      %5438 = vmatpush1.bf16.msra.mxu0 %v5299
      %5439 = vmatprep.subr.bf16.mxu0 0
      %5440 = vmatpush1.bf16.msra.mxu0 %v5300
      %5441 = vmatprep.subr.bf16.mxu0 0
      %5442 = vmatpush1.bf16.msra.mxu0 %v5301
      %5443 = vmatprep.subr.bf16.mxu0 0
      %5444 = vmatpush1.bf16.msra.mxu0 %v5302
      %5445 = vmatprep.subr.bf16.mxu0 0
      %5446 = vmatpush1.bf16.msra.mxu0 %v5303
      %5447 = vmatprep.subr.bf16.mxu0 0
      %5448 = vmatpush1.bf16.msra.mxu0 %v5304
      %5449 = vmatprep.mubr.bf16.mxu0 %v5100
      %5450 = vmatmul.mubr.bf16.gmra.mrb[0].mxu0 %v5099
      %v5451 = vpop.f32.mrb[0].mxu0
      %v5452 = vadd.f32 %v5372, %v5451
      %v5453 = vpop.f32.mrb[0].mxu0
      %v5454 = vpop.f32.mrb[0].mxu0
      %v5455 = vadd.f32 %v5375, %v5454
      %v5456 = vpop.f32.mrb[0].mxu0
      %5457 = vmatprep.mubr.bf16.mxu0 %v5104
      %5458 = vmatmul.mubr.bf16.gmra.mrb[0].mxu0 %v5103
      %v5459 = vpop.f32.mrb[0].mxu0
      %v5460 = vadd.f32 %v5380, %v5459
      %v5461 = vpop.f32.mrb[0].mxu0
      %v5462 = vpop.f32.mrb[0].mxu0
      %v5463 = vadd.f32 %v5383, %v5462
      %v5464 = vpop.f32.mrb[0].mxu0
      %5465 = vmatprep.mubr.bf16.mxu0 %v5108
      %5466 = vmatmul.mubr.bf16.gmra.mrb[0].mxu0 %v5107
      %v5467 = vpop.f32.mrb[0].mxu0
      %v5468 = vadd.f32 %v5388, %v5467
      %v5469 = vpop.f32.mrb[0].mxu0
      %v5470 = vpop.f32.mrb[0].mxu0
      %v5471 = vadd.f32 %v5391, %v5470
      %v5472 = vpop.f32.mrb[0].mxu0
      %5473 = vmatprep.mubr.bf16.mxu0 %v5112
      %5474 = vmatmul.mubr.bf16.gmra.mrb[0].mxu0 %v5111
      %v5475 = vpop.f32.mrb[0].mxu0
      %v5476 = vadd.f32 %v5396, %v5475
      %v5477 = vpop.f32.mrb[0].mxu0
      %v5478 = vpop.f32.mrb[0].mxu0
      %v5479 = vadd.f32 %v5399, %v5478
      %v5480 = vpop.f32.mrb[0].mxu0
      %5481 = vmatprep.mubr.bf16.mxu0 %v5116
      %5482 = vmatmul.mubr.bf16.gmra.mrb[0].mxu0 %v5115
      %v5483 = vpop.f32.mrb[0].mxu0
      %v5484 = vadd.f32 %v5404, %v5483
      %v5485 = vpop.f32.mrb[0].mxu0
      %v5486 = vpop.f32.mrb[0].mxu0
      %v5487 = vadd.f32 %v5407, %v5486
      %v5488 = vpop.f32.mrb[0].mxu0
      %5489 = vmatprep.mubr.bf16.mxu0 %v5120
      %5490 = vmatmul.mubr.bf16.gmra.mrb[0].mxu0 %v5119
      %v5491 = vpop.f32.mrb[0].mxu0
      %v5492 = vadd.f32 %v5412, %v5491
      %v5493 = vpop.f32.mrb[0].mxu0
      %v5494 = vpop.f32.mrb[0].mxu0
      %v5495 = vpop.f32.mrb[0].mxu0
      %5496 = vdwg.mxu0
      %v5497 = vmax.f32 %v5452, 0.0
      %v5498 = vmax.f32 %v5455, 0.0
      %v5499 = vmax.f32 %v5460, 0.0
      %v5500 = vmax.f32 %v5463, 0.0
      %v5501 = vmax.f32 %v5468, 0.0
      %v5502 = vmax.f32 %v5471, 0.0
      %v5503 = vmax.f32 %v5476, 0.0
      %v5504 = vmax.f32 %v5479, 0.0
      %v5505 = vmax.f32 %v5484, 0.0
      %v5506 = vmax.f32 %v5487, 0.0
      %v5507 = vmax.f32 %v5492, 0.0
      %v5508 = vpack.c.bf16 %v5498, %v5497
      %v5509 = vpack.c.bf16 %v5500, %v5499
      %v5510 = vpack.c.bf16 %v5502, %v5501
      %v5511 = vpack.c.bf16 %v5504, %v5503
      %v5512 = vpack.c.bf16 %v5506, %v5505
      %v5513 = vpack.c.bf16 %v5507, %v5507
      %v5520 = vunpack.c.l.b16 %v5508
      %v5521 = vunpack.c.h.b16 %v5508
      %v5522 = vunpack.c.l.b16 %v5509
      %v5523 = vunpack.c.h.b16 %v5509
      %v5524 = vunpack.c.l.b16 %v5510
      %v5525 = vunpack.c.h.b16 %v5510
      %v5526 = vunpack.c.l.b16 %v5511
      %v5527 = vunpack.c.h.b16 %v5511
      %v5528 = vunpack.c.l.b16 %v5512
      %v5529 = vunpack.c.h.b16 %v5512
      %v5530 = vunpack.c.l.b16 %v5513
      %v5531 = vpack.c.b16 %v5520, %v5520
      %v5532 = vpack.c.b16 %v5521, %v5521
      %v5533 = vpack.c.b16 %v5522, %v5522
      %v5534 = vpack.c.b16 %v5523, %v5523
      %v5535 = vpack.c.b16 %v5524, %v5524
      %v5536 = vpack.c.b16 %v5525, %v5525
      %v5537 = vpack.c.b16 %v5526, %v5526
      %v5538 = vpack.c.b16 %v5527, %v5527
      %v5539 = vpack.c.b16 %v5528, %v5528
      %v5540 = vpack.c.b16 %v5529, %v5529
      %v5541 = vpack.c.b16 %v5530, %v5530
      %vm5553 = vcmask 519168
      %5554 = vst.msk [vmem:[#allocation4] sm:$0xf] %vm5553, %v5531
      %5555 = vst.msk [vmem:[#allocation4 + $0x4] sm:$0xf] %vm5553, %v5532
      %5556 = vst.msk [vmem:[#allocation4 + $0x8] sm:$0xf] %vm5553, %v5533
      %5557 = vst.msk [vmem:[#allocation4 + $0xc] sm:$0xf] %vm5553, %v5534
      %5558 = vst.msk [vmem:[#allocation4 + $0x10] sm:$0xf] %vm5553, %v5535
      %5559 = vst.msk [vmem:[#allocation4 + $0x14] sm:$0xf] %vm5553, %v5536
      %5560 = vst.msk [vmem:[#allocation4 + $0x18] sm:$0xf] %vm5553, %v5537
      %5561 = vst.msk [vmem:[#allocation4 + $0x1c] sm:$0xf] %vm5553, %v5538
      %5562 = vst.msk [vmem:[#allocation4 + $0x20] sm:$0xf] %vm5553, %v5539
      %5563 = vst.msk [vmem:[#allocation4 + $0x24] sm:$0xf] %vm5553, %v5540
      %vm5564 = vcmask 516096
      %vm5565 = vmand %vm5564, %vm1060
      %v5566 = vld [vmem:[#allocation4 + $0x28] sm:$0x1]
      %v5567 = vsel %vm5565, %v5541, %v5566
      %5568 = vst [vmem:[#allocation4 + $0x28] sm:$0x1] %v5567
      %v5569 = vld [vmem:[#allocation4] sm:$0xf]
      %vm5570 = vcmask 519168
      %vm5571 = vmand %vm5570, %vm1100
      %v5572 = vld [vmem:[#allocation5] sm:$0xf]
      %v5573 = vsel %vm5571, %v5569, %v5572
      %5574 = vst [vmem:[#allocation5] sm:$0xf] %v5573
      %v5575 = vld [vmem:[#allocation4] sm:$0xf]
      %v5577 = vshrl.u32 %v5575, 16
      %v5579 = vrot.slane %v5577, 4
      %v5580 = vshll.u32 %v5575, 16
      %v5582 = vrot.slane %v5580, 5
      %v5583 = vor.u32 %v5579, %v5582
      %v5584 = vrot.slane %v5583, 4
      %5585 = vrot.lane.b32.xlu0 %v5584, 64
      %v5586 = vpop.permute.xlu0 %5585
      %vm5588 = vcmask 1043968
      %vm5589 = vmand %vm5588, %vm1100
      %v5590 = vld [vmem:[#allocation5] sm:$0xf]
      %v5591 = vsel %vm5589, %v5586, %v5590
      %5592 = vst [vmem:[#allocation5] sm:$0xf] %v5591
      %v5593 = vld [vmem:[#allocation4] sm:$0xe]
      %v5594 = vld [vmem:[#allocation4 + $0x4] sm:$0x1]
      %v5597 = vrot.slane %v5593, 5
      %v5598 = vrot.slane %v5597, 4
      %v5599 = vrot.slane %v5594, 5
      %v5600 = vsel %vm1075, %v5598, %v5599
      %v5602 = vld [vmem:[#allocation5 + $0x4] sm:$0xf]
      %v5603 = vsel %vm5571, %v5600, %v5602
      %5604 = vst [vmem:[#allocation5 + $0x4] sm:$0xf] %v5603
      %v5605 = vld [vmem:[#allocation4 + $0x4] sm:$0xf]
      %v5607 = vshrl.u32 %v5605, 16
      %v5609 = vrot.slane %v5607, 4
      %v5610 = vshll.u32 %v5605, 16
      %v5612 = vrot.slane %v5610, 5
      %v5613 = vor.u32 %v5609, %v5612
      %v5614 = vrot.slane %v5613, 4
      %5615 = vrot.lane.b32.xlu0 %v5614, 64
      %v5616 = vpop.permute.xlu0 %5615
      %v5618 = vld [vmem:[#allocation5 + $0x4] sm:$0xf]
      %v5619 = vsel %vm5589, %v5616, %v5618
      %5620 = vst [vmem:[#allocation5 + $0x4] sm:$0xf] %v5619
      %v5621 = vld [vmem:[#allocation4 + $0x4] sm:$0xe]
      %v5622 = vld [vmem:[#allocation4 + $0x8] sm:$0x1]
      %v5625 = vrot.slane %v5621, 5
      %v5626 = vrot.slane %v5625, 4
      %v5627 = vrot.slane %v5622, 5
      %v5628 = vsel %vm1075, %v5626, %v5627
      %v5630 = vld [vmem:[#allocation5 + $0x8] sm:$0xf]
      %v5631 = vsel %vm5571, %v5628, %v5630
      %5632 = vst [vmem:[#allocation5 + $0x8] sm:$0xf] %v5631
      %v5633 = vld [vmem:[#allocation4 + $0x4] sm:$0xe]
      %v5634 = vld [vmem:[#allocation4 + $0x8] sm:$0x1]
      %v5636 = vshrl.u32 %v5633, 16
      %v5638 = vrot.slane %v5636, 5
      %v5639 = vshll.u32 %v5633, 16
      %v5641 = vrot.slane %v5639, 6
      %v5642 = vor.u32 %v5638, %v5641
      %v5643 = vrot.slane %v5642, 4
      %v5645 = vshrl.u32 %v5634, 16
      %v5647 = vrot.slane %v5645, 5
      %v5648 = vshll.u32 %v5634, 16
      %v5650 = vrot.slane %v5648, 6
      %v5651 = vor.u32 %v5647, %v5650
      %v5652 = vsel %vm1144, %v5643, %v5651
      %5653 = vrot.lane.b32.xlu0 %v5652, 64
      %v5654 = vpop.permute.xlu0 %5653
      %v5656 = vld [vmem:[#allocation5 + $0x8] sm:$0xf]
      %v5657 = vsel %vm5589, %v5654, %v5656
      %5658 = vst [vmem:[#allocation5 + $0x8] sm:$0xf] %v5657
      %v5659 = vld [vmem:[#allocation4 + $0x8] sm:$0xe]
      %v5660 = vld [vmem:[#allocation4 + $0xc] sm:$0x1]
      %v5663 = vrot.slane %v5659, 5
      %v5664 = vrot.slane %v5663, 4
      %v5665 = vrot.slane %v5660, 5
      %v5666 = vsel %vm1075, %v5664, %v5665
      %v5668 = vld [vmem:[#allocation5 + $0xc] sm:$0xf]
      %v5669 = vsel %vm5571, %v5666, %v5668
      %5670 = vst [vmem:[#allocation5 + $0xc] sm:$0xf] %v5669
      %v5671 = vld [vmem:[#allocation4 + $0x8] sm:$0xe]
      %v5672 = vld [vmem:[#allocation4 + $0xc] sm:$0x1]
      %v5674 = vshrl.u32 %v5671, 16
      %v5676 = vrot.slane %v5674, 5
      %v5677 = vshll.u32 %v5671, 16
      %v5679 = vrot.slane %v5677, 6
      %v5680 = vor.u32 %v5676, %v5679
      %v5681 = vrot.slane %v5680, 4
      %v5683 = vshrl.u32 %v5672, 16
      %v5685 = vrot.slane %v5683, 5
      %v5686 = vshll.u32 %v5672, 16
      %v5688 = vrot.slane %v5686, 6
      %v5689 = vor.u32 %v5685, %v5688
      %v5690 = vsel %vm1144, %v5681, %v5689
      %5691 = vrot.lane.b32.xlu0 %v5690, 64
      %v5692 = vpop.permute.xlu0 %5691
      %v5694 = vld [vmem:[#allocation5 + $0xc] sm:$0xf]
      %v5695 = vsel %vm5589, %v5692, %v5694
      %5696 = vst [vmem:[#allocation5 + $0xc] sm:$0xf] %v5695
      %v5697 = vld [vmem:[#allocation4 + $0x8] sm:$0xc]
      %v5698 = vld [vmem:[#allocation4 + $0xc] sm:$0x3]
      %v5701 = vrot.slane %v5697, 6
      %v5702 = vrot.slane %v5701, 4
      %v5703 = vrot.slane %v5698, 6
      %v5704 = vsel %vm1185, %v5702, %v5703
      %v5706 = vld [vmem:[#allocation5 + $0x10] sm:$0xf]
      %v5707 = vsel %vm5571, %v5704, %v5706
      %5708 = vst [vmem:[#allocation5 + $0x10] sm:$0xf] %v5707
      %v5709 = vld [vmem:[#allocation4 + $0x4] sm:$0xf]
      %v5711 = vrot.slane %v5709, 5
      %v5712 = vrot.slane %v5711, 4
      %vm5715 = vcmask 519171
      %vm5716 = vmand %vm5715, %vm4118
      %v5717 = vld [vmem:[#allocation5] sm:$0x8]
      %v5718 = vsel %vm5716, %v5711, %v5717
      %5719 = vst [vmem:[#allocation5] sm:$0x8] %v5718
      %vm5720 = vcmask 518144
      %5721 = vst.msk [vmem:[#allocation5 + $0x14] sm:$0x7] %vm5720, %v5712
      %v5722 = vld [vmem:[#allocation4 + $0x4] sm:$0xe]
      %v5723 = vld [vmem:[#allocation4 + $0x8] sm:$0x1]
      %v5725 = vshll.u32 %v5722, 16
      %v5727 = vrot.slane %v5725, 6
      %v5728 = vshrl.u32 %v5722, 16
      %v5730 = vrot.slane %v5728, 5
      %v5731 = vor.u32 %v5730, %v5727
      %v5732 = vrot.slane %v5731, 4
      %v5734 = vshll.u32 %v5723, 16
      %v5736 = vrot.slane %v5734, 6
      %v5737 = vsel %vm1144, %v5732, %v5736
      %5738 = vrot.lane.b32.xlu0 %v5727, 64
      %v5739 = vpop.permute.xlu0 %5738
      %5740 = vrot.lane.b32.xlu0 %v5737, 64
      %v5741 = vpop.permute.xlu0 %5740
      %vm5744 = vcmask 1043971
      %vm5745 = vmand %vm5744, %vm4118
      %v5746 = vld [vmem:[#allocation5] sm:$0x8]
      %v5747 = vsel %vm5745, %v5739, %v5746
      %5748 = vst [vmem:[#allocation5] sm:$0x8] %v5747
      %vm5749 = vcmask 1042944
      %5750 = vst.msk [vmem:[#allocation5 + $0x14] sm:$0x7] %vm5749, %v5741
      %v5751 = vld [vmem:[#allocation4 + $0x4] sm:$0xe]
      %v5752 = vld [vmem:[#allocation4 + $0x8] sm:$0x1]
      %v5755 = vrot.slane %v5751, 6
      %v5756 = vrot.slane %v5755, 4
      %v5757 = vrot.slane %v5752, 6
      %v5758 = vsel %vm1185, %v5756, %v5757
      %v5761 = vld [vmem:[#allocation5 + $0x4] sm:$0x8]
      %v5762 = vsel %vm5716, %v5755, %v5761
      %5763 = vst [vmem:[#allocation5 + $0x4] sm:$0x8] %v5762
      %5764 = vst.msk [vmem:[#allocation5 + $0x18] sm:$0x7] %vm5720, %v5758
      %v5765 = vld [vmem:[#allocation4 + $0x8] sm:$0xe]
      %v5766 = vld [vmem:[#allocation4 + $0xc] sm:$0x1]
      %v5768 = vshll.u32 %v5765, 16
      %v5770 = vrot.slane %v5768, 6
      %v5771 = vshrl.u32 %v5765, 16
      %v5773 = vrot.slane %v5771, 5
      %v5774 = vor.u32 %v5773, %v5770
      %v5775 = vrot.slane %v5774, 4
      %v5777 = vshll.u32 %v5766, 16
      %v5779 = vrot.slane %v5777, 6
      %v5780 = vsel %vm1144, %v5775, %v5779
      %5781 = vrot.lane.b32.xlu0 %v5770, 64
      %v5782 = vpop.permute.xlu0 %5781
      %5783 = vrot.lane.b32.xlu0 %v5780, 64
      %v5784 = vpop.permute.xlu0 %5783
      %v5787 = vld [vmem:[#allocation5 + $0x4] sm:$0x8]
      %v5788 = vsel %vm5745, %v5782, %v5787
      %5789 = vst [vmem:[#allocation5 + $0x4] sm:$0x8] %v5788
      %5790 = vst.msk [vmem:[#allocation5 + $0x18] sm:$0x7] %vm5749, %v5784
      %v5791 = vld [vmem:[#allocation4 + $0x8] sm:$0xe]
      %v5792 = vld [vmem:[#allocation4 + $0xc] sm:$0x1]
      %v5795 = vrot.slane %v5791, 6
      %v5796 = vrot.slane %v5795, 4
      %v5797 = vrot.slane %v5792, 6
      %v5798 = vsel %vm1185, %v5796, %v5797
      %v5801 = vld [vmem:[#allocation5 + $0x8] sm:$0x8]
      %v5802 = vsel %vm5716, %v5795, %v5801
      %5803 = vst [vmem:[#allocation5 + $0x8] sm:$0x8] %v5802
      %5804 = vst.msk [vmem:[#allocation5 + $0x1c] sm:$0x7] %vm5720, %v5798
      %v5805 = vld [vmem:[#allocation4 + $0x8] sm:$0xc]
      %v5806 = vld [vmem:[#allocation4 + $0xc] sm:$0x3]
      %v5808 = vshll.u32 %v5805, 16
      %v5810 = vrot.slane %v5808, 7
      %v5811 = vshrl.u32 %v5805, 16
      %v5813 = vrot.slane %v5811, 6
      %v5814 = vor.u32 %v5813, %v5810
      %v5815 = vrot.slane %v5814, 4
      %v5817 = vshrl.u32 %v5806, 16
      %v5819 = vrot.slane %v5817, 6
      %v5820 = vshll.u32 %v5806, 16
      %v5822 = vrot.slane %v5820, 7
      %v5823 = vor.u32 %v5819, %v5822
      %v5824 = vsel %vm1231, %v5815, %v5823
      %5825 = vrot.lane.b32.xlu0 %v5810, 64
      %v5826 = vpop.permute.xlu0 %5825
      %5827 = vrot.lane.b32.xlu0 %v5824, 64
      %v5828 = vpop.permute.xlu0 %5827
      %v5831 = vld [vmem:[#allocation5 + $0x8] sm:$0x8]
      %v5832 = vsel %vm5745, %v5826, %v5831
      %5833 = vst [vmem:[#allocation5 + $0x8] sm:$0x8] %v5832
      %5834 = vst.msk [vmem:[#allocation5 + $0x1c] sm:$0x7] %vm5749, %v5828
      %v5835 = vld [vmem:[#allocation4 + $0xc] sm:$0xe]
      %v5836 = vld [vmem:[#allocation4 + $0x10] sm:$0x1]
      %v5839 = vrot.slane %v5835, 6
      %v5840 = vrot.slane %v5839, 4
      %v5841 = vrot.slane %v5836, 6
      %v5842 = vsel %vm1185, %v5840, %v5841
      %v5845 = vld [vmem:[#allocation5 + $0xc] sm:$0x8]
      %v5846 = vsel %vm5716, %v5839, %v5845
      %5847 = vst [vmem:[#allocation5 + $0xc] sm:$0x8] %v5846
      %5848 = vst.msk [vmem:[#allocation5 + $0x20] sm:$0x7] %vm5720, %v5842
      %v5849 = vld [vmem:[#allocation4 + $0xc] sm:$0xc]
      %v5850 = vld [vmem:[#allocation4 + $0x10] sm:$0x3]
      %v5852 = vshll.u32 %v5849, 16
      %v5854 = vrot.slane %v5852, 7
      %v5855 = vshrl.u32 %v5849, 16
      %v5857 = vrot.slane %v5855, 6
      %v5858 = vor.u32 %v5857, %v5854
      %v5859 = vrot.slane %v5858, 4
      %v5861 = vshrl.u32 %v5850, 16
      %v5863 = vrot.slane %v5861, 6
      %v5864 = vshll.u32 %v5850, 16
      %v5866 = vrot.slane %v5864, 7
      %v5867 = vor.u32 %v5863, %v5866
      %v5868 = vsel %vm1231, %v5859, %v5867
      %5869 = vrot.lane.b32.xlu0 %v5854, 64
      %v5870 = vpop.permute.xlu0 %5869
      %5871 = vrot.lane.b32.xlu0 %v5868, 64
      %v5872 = vpop.permute.xlu0 %5871
      %v5875 = vld [vmem:[#allocation5 + $0xc] sm:$0x8]
      %v5876 = vsel %vm5745, %v5870, %v5875
      %5877 = vst [vmem:[#allocation5 + $0xc] sm:$0x8] %v5876
      %5878 = vst.msk [vmem:[#allocation5 + $0x20] sm:$0x7] %vm5749, %v5872
      %v5879 = vld [vmem:[#allocation4 + $0xc] sm:$0xc]
      %v5880 = vld [vmem:[#allocation4 + $0x10] sm:$0x3]
      %v5883 = vrot.slane %v5879, 7
      %v5884 = vrot.slane %v5883, 4
      %v5885 = vrot.slane %v5880, 7
      %v5886 = vsel %vm1207, %v5884, %v5885
      %v5889 = vld [vmem:[#allocation5 + $0x10] sm:$0x8]
      %v5890 = vsel %vm5716, %v5883, %v5889
      %5891 = vst [vmem:[#allocation5 + $0x10] sm:$0x8] %v5890
      %5892 = vst.msk [vmem:[#allocation5 + $0x24] sm:$0x7] %vm5720, %v5886
      %v5893 = vld [vmem:[#allocation4 + $0x8] sm:$0xe]
      %v5894 = vld [vmem:[#allocation4 + $0xc] sm:$0x1]
      %v5897 = vrot.slane %v5893, 6
      %v5898 = vrot.slane %v5897, 4
      %v5899 = vrot.slane %v5894, 6
      %v5900 = vsel %vm1185, %v5898, %v5899
      %vm5903 = vcmask 519171
      %5904 = vst.msk [vmem:[#allocation5 + $0x14] sm:$0x8] %vm5903, %v5897
      %vm5905 = vcmask 518144
      %vm5906 = vmand %vm5905, %vm1142
      %v5907 = vld [vmem:[#allocation5 + $0x28] sm:$0x7]
      %v5908 = vsel %vm5906, %v5900, %v5907
      %5909 = vst [vmem:[#allocation5 + $0x28] sm:$0x7] %v5908
      %v5910 = vld [vmem:[#allocation4 + $0x8] sm:$0xe]
      %v5911 = vld [vmem:[#allocation4 + $0xc] sm:$0x1]
      %v5913 = vshrl.u32 %v5910, 16
      %v5915 = vrot.slane %v5913, 6
      %v5916 = vshll.u32 %v5910, 16
      %v5918 = vrot.slane %v5916, 7
      %v5919 = vor.u32 %v5915, %v5918
      %v5920 = vrot.slane %v5919, 4
      %v5922 = vshrl.u32 %v5911, 16
      %v5924 = vrot.slane %v5922, 6
      %v5925 = vshll.u32 %v5911, 16
      %v5927 = vrot.slane %v5925, 7
      %v5928 = vor.u32 %v5924, %v5927
      %v5929 = vsel %vm1231, %v5920, %v5928
      %5930 = vrot.lane.b32.xlu0 %v5919, 64
      %v5931 = vpop.permute.xlu0 %5930
      %5932 = vrot.lane.b32.xlu0 %v5929, 64
      %v5933 = vpop.permute.xlu0 %5932
      %vm5936 = vcmask 1043971
      %5937 = vst.msk [vmem:[#allocation5 + $0x14] sm:$0x8] %vm5936, %v5931
      %vm5938 = vcmask 1042944
      %vm5939 = vmand %vm5938, %vm1142
      %v5940 = vld [vmem:[#allocation5 + $0x28] sm:$0x7]
      %v5941 = vsel %vm5939, %v5933, %v5940
      %5942 = vst [vmem:[#allocation5 + $0x28] sm:$0x7] %v5941
      %v5943 = vld [vmem:[#allocation4 + $0x8] sm:$0xc]
      %v5944 = vld [vmem:[#allocation4 + $0xc] sm:$0x3]
      %v5947 = vrot.slane %v5943, 7
      %v5948 = vrot.slane %v5947, 4
      %v5949 = vrot.slane %v5944, 7
      %v5950 = vsel %vm1207, %v5948, %v5949
      %5953 = vst.msk [vmem:[#allocation5 + $0x18] sm:$0x8] %vm5903, %v5947
      %v5954 = vld [vmem:[#allocation5 + $0x2c] sm:$0x7]
      %v5955 = vsel %vm5906, %v5950, %v5954
      %5956 = vst [vmem:[#allocation5 + $0x2c] sm:$0x7] %v5955
      %v5957 = vld [vmem:[#allocation4 + $0xc] sm:$0xe]
      %v5958 = vld [vmem:[#allocation4 + $0x10] sm:$0x1]
      %v5960 = vshrl.u32 %v5957, 16
      %v5962 = vrot.slane %v5960, 6
      %v5963 = vshll.u32 %v5957, 16
      %v5965 = vrot.slane %v5963, 7
      %v5966 = vor.u32 %v5962, %v5965
      %v5967 = vrot.slane %v5966, 4
      %v5969 = vshrl.u32 %v5958, 16
      %v5971 = vrot.slane %v5969, 6
      %v5972 = vshll.u32 %v5958, 16
      %v5974 = vrot.slane %v5972, 7
      %v5975 = vor.u32 %v5971, %v5974
      %v5976 = vsel %vm1231, %v5967, %v5975
      %5977 = vrot.lane.b32.xlu0 %v5966, 64
      %v5978 = vpop.permute.xlu0 %5977
      %5979 = vrot.lane.b32.xlu0 %v5976, 64
      %v5980 = vpop.permute.xlu0 %5979
      %5983 = vst.msk [vmem:[#allocation5 + $0x18] sm:$0x8] %vm5936, %v5978
      %v5984 = vld [vmem:[#allocation5 + $0x2c] sm:$0x7]
      %v5985 = vsel %vm5939, %v5980, %v5984
      %5986 = vst [vmem:[#allocation5 + $0x2c] sm:$0x7] %v5985
      %v5987 = vld [vmem:[#allocation4 + $0xc] sm:$0xc]
      %v5988 = vld [vmem:[#allocation4 + $0x10] sm:$0x3]
      %v5991 = vrot.slane %v5987, 7
      %v5992 = vrot.slane %v5991, 4
      %v5993 = vrot.slane %v5988, 7
      %v5994 = vsel %vm1207, %v5992, %v5993
      %5997 = vst.msk [vmem:[#allocation5 + $0x1c] sm:$0x8] %vm5903, %v5991
      %v5998 = vld [vmem:[#allocation5 + $0x30] sm:$0x7]
      %v5999 = vsel %vm5906, %v5994, %v5998
      %6000 = vst [vmem:[#allocation5 + $0x30] sm:$0x7] %v5999
      %v6001 = vld [vmem:[#allocation4 + $0xc] sm:$0xc]
      %v6002 = vld [vmem:[#allocation4 + $0x10] sm:$0x3]
      %v6004 = vshrl.u32 %v6001, 16
      %v6006 = vrot.slane %v6004, 7
      %v6007 = vshll.u32 %v6001, 16
      %v6009 = vor.u32 %v6006, %v6007
      %v6010 = vrot.slane %v6006, 4
      %v6012 = vshrl.u32 %v6002, 16
      %v6014 = vrot.slane %v6012, 7
      %v6015 = vshll.u32 %v6002, 16
      %v6017 = vor.u32 %v6014, %v6015
      %v6018 = vsel %vm1270, %v6010, %v6017
      %6019 = vrot.lane.b32.xlu0 %v6009, 64
      %v6020 = vpop.permute.xlu0 %6019
      %6021 = vrot.lane.b32.xlu0 %v6018, 64
      %v6022 = vpop.permute.xlu0 %6021
      %6025 = vst.msk [vmem:[#allocation5 + $0x1c] sm:$0x8] %vm5936, %v6020
      %v6026 = vld [vmem:[#allocation5 + $0x30] sm:$0x7]
      %v6027 = vsel %vm5939, %v6022, %v6026
      %6028 = vst [vmem:[#allocation5 + $0x30] sm:$0x7] %v6027
      %v6029 = vld [vmem:[#allocation4 + $0x10] sm:$0xc]
      %v6030 = vld [vmem:[#allocation4 + $0x14] sm:$0x3]
      %v6033 = vrot.slane %v6029, 7
      %v6034 = vrot.slane %v6033, 4
      %v6035 = vrot.slane %v6030, 7
      %v6036 = vsel %vm1207, %v6034, %v6035
      %6039 = vst.msk [vmem:[#allocation5 + $0x20] sm:$0x8] %vm5903, %v6033
      %v6040 = vld [vmem:[#allocation5 + $0x34] sm:$0x7]
      %v6041 = vsel %vm5906, %v6036, %v6040
      %6042 = vst [vmem:[#allocation5 + $0x34] sm:$0x7] %v6041
      %v6043 = vld [vmem:[#allocation4 + $0x10] sm:$0xc]
      %v6044 = vld [vmem:[#allocation4 + $0x14] sm:$0x3]
      %v6046 = vshrl.u32 %v6043, 16
      %v6048 = vrot.slane %v6046, 7
      %v6049 = vshll.u32 %v6043, 16
      %v6051 = vor.u32 %v6048, %v6049
      %v6052 = vrot.slane %v6048, 4
      %v6054 = vshrl.u32 %v6044, 16
      %v6056 = vrot.slane %v6054, 7
      %v6057 = vshll.u32 %v6044, 16
      %v6059 = vor.u32 %v6056, %v6057
      %v6060 = vsel %vm1270, %v6052, %v6059
      %6061 = vrot.lane.b32.xlu0 %v6051, 64
      %v6062 = vpop.permute.xlu0 %6061
      %6063 = vrot.lane.b32.xlu0 %v6060, 64
      %v6064 = vpop.permute.xlu0 %6063
      %6067 = vst.msk [vmem:[#allocation5 + $0x20] sm:$0x8] %vm5936, %v6062
      %v6068 = vld [vmem:[#allocation5 + $0x34] sm:$0x7]
      %v6069 = vsel %vm5939, %v6064, %v6068
      %6070 = vst [vmem:[#allocation5 + $0x34] sm:$0x7] %v6069
      %v6071 = vld [vmem:[#allocation4 + $0x10] sm:$0x8]
      %v6072 = vld [vmem:[#allocation4 + $0x14] sm:$0x7]
      %6073 = vst.msk [vmem:[#allocation5 + $0x24] sm:$0x8] %vm5903, %v6071
      %v6074 = vld [vmem:[#allocation5 + $0x38] sm:$0x7]
      %v6075 = vsel %vm5906, %v6072, %v6074
      %6076 = vst [vmem:[#allocation5 + $0x38] sm:$0x7] %v6075
      %v6077 = vld [vmem:[#allocation4 + $0xc] sm:$0xe]
      %v6078 = vld [vmem:[#allocation4 + $0x10] sm:$0x1]
      %v6081 = vrot.slane %v6077, 7
      %v6082 = vrot.slane %v6081, 4
      %v6083 = vrot.slane %v6078, 7
      %v6084 = vsel %vm1207, %v6082, %v6083
      %vm6087 = vcmask 519170
      %vm6088 = vmand %vm6087, %vm3267
      %v6089 = vld [vmem:[#allocation5 + $0x28] sm:$0xc]
      %v6090 = vsel %vm6088, %v6081, %v6089
      %6091 = vst [vmem:[#allocation5 + $0x28] sm:$0xc] %v6090
      %vm6092 = vcmask 517120
      %6093 = vst.msk [vmem:[#allocation5 + $0x3c] sm:$0x3] %vm6092, %v6084
      %v6094 = vld [vmem:[#allocation4 + $0xc] sm:$0xc]
      %v6095 = vld [vmem:[#allocation4 + $0x10] sm:$0x3]
      %v6097 = vshrl.u32 %v6094, 16
      %v6099 = vrot.slane %v6097, 7
      %v6100 = vshll.u32 %v6094, 16
      %v6102 = vor.u32 %v6099, %v6100
      %v6103 = vrot.slane %v6099, 4
      %v6105 = vshrl.u32 %v6095, 16
      %v6107 = vrot.slane %v6105, 7
      %v6108 = vshll.u32 %v6095, 16
      %v6110 = vor.u32 %v6107, %v6108
      %v6111 = vsel %vm1270, %v6103, %v6110
      %6112 = vrot.lane.b32.xlu0 %v6102, 64
      %v6113 = vpop.permute.xlu0 %6112
      %6114 = vrot.lane.b32.xlu0 %v6111, 64
      %v6115 = vpop.permute.xlu0 %6114
      %vm6118 = vcmask 1043970
      %vm6119 = vmand %vm6118, %vm3267
      %v6120 = vld [vmem:[#allocation5 + $0x28] sm:$0xc]
      %v6121 = vsel %vm6119, %v6113, %v6120
      %6122 = vst [vmem:[#allocation5 + $0x28] sm:$0xc] %v6121
      %vm6123 = vcmask 1041920
      %6124 = vst.msk [vmem:[#allocation5 + $0x3c] sm:$0x3] %vm6123, %v6115
      %v6125 = vld [vmem:[#allocation4 + $0xc] sm:$0xc]
      %v6126 = vld [vmem:[#allocation4 + $0x10] sm:$0x3]
      %v6127 = vld [vmem:[#allocation5 + $0x2c] sm:$0xc]
      %v6128 = vsel %vm6088, %v6125, %v6127
      %6129 = vst [vmem:[#allocation5 + $0x2c] sm:$0xc] %v6128
      %6130 = vst.msk [vmem:[#allocation5 + $0x40] sm:$0x3] %vm6092, %v6126
      %v6131 = vld [vmem:[#allocation4 + $0x10] sm:$0xc]
      %v6132 = vld [vmem:[#allocation4 + $0x14] sm:$0x3]
      %v6134 = vshrl.u32 %v6131, 16
      %v6136 = vrot.slane %v6134, 7
      %v6137 = vshll.u32 %v6131, 16
      %v6139 = vor.u32 %v6136, %v6137
      %v6140 = vrot.slane %v6136, 4
      %v6142 = vshrl.u32 %v6132, 16
      %v6144 = vrot.slane %v6142, 7
      %v6145 = vshll.u32 %v6132, 16
      %v6147 = vor.u32 %v6144, %v6145
      %v6148 = vsel %vm1270, %v6140, %v6147
      %6149 = vrot.lane.b32.xlu0 %v6139, 64
      %v6150 = vpop.permute.xlu0 %6149
      %6151 = vrot.lane.b32.xlu0 %v6148, 64
      %v6152 = vpop.permute.xlu0 %6151
      %v6155 = vld [vmem:[#allocation5 + $0x2c] sm:$0xc]
      %v6156 = vsel %vm6119, %v6150, %v6155
      %6157 = vst [vmem:[#allocation5 + $0x2c] sm:$0xc] %v6156
      %6158 = vst.msk [vmem:[#allocation5 + $0x40] sm:$0x3] %vm6123, %v6152
      %v6159 = vld [vmem:[#allocation4 + $0x10] sm:$0xc]
      %v6160 = vld [vmem:[#allocation4 + $0x14] sm:$0x3]
      %v6161 = vld [vmem:[#allocation5 + $0x30] sm:$0xc]
      %v6162 = vsel %vm6088, %v6159, %v6161
      %6163 = vst [vmem:[#allocation5 + $0x30] sm:$0xc] %v6162
      %6164 = vst.msk [vmem:[#allocation5 + $0x44] sm:$0x3] %vm6092, %v6160
      %v6165 = vld [vmem:[#allocation4 + $0x10] sm:$0x8]
      %v6166 = vld [vmem:[#allocation4 + $0x14] sm:$0x7]
      %v6168 = vshrl.u32 %v6165, 16
      %v6170 = vrot.slane %v6168, 4
      %v6171 = vshll.u32 %v6165, 16
      %v6173 = vrot.slane %v6171, 5
      %v6174 = vor.u32 %v6170, %v6173
      %v6175 = vrot.slane %v6174, 4
      %v6177 = vshll.u32 %v6166, 16
      %v6179 = vrot.slane %v6177, 5
      %v6180 = vsel %vm1102, %v6175, %v6179
      %v6181 = vshrl.u32 %v6166, 16
      %v6183 = vrot.slane %v6181, 4
      %v6184 = vor.u32 %v6183, %v6179
      %v6185 = vrot.slane %v6184, 4
      %6186 = vrot.lane.b32.xlu0 %v6180, 64
      %v6187 = vpop.permute.xlu0 %6186
      %6188 = vrot.lane.b32.xlu0 %v6185, 64
      %v6189 = vpop.permute.xlu0 %6188
      %v6192 = vld [vmem:[#allocation5 + $0x30] sm:$0xc]
      %v6193 = vsel %vm6119, %v6187, %v6192
      %6194 = vst [vmem:[#allocation5 + $0x30] sm:$0xc] %v6193
      %6195 = vst.msk [vmem:[#allocation5 + $0x44] sm:$0x3] %vm6123, %v6189
      %v6196 = vld [vmem:[#allocation4 + $0x14] sm:$0xc]
      %v6197 = vld [vmem:[#allocation4 + $0x18] sm:$0x3]
      %v6198 = vld [vmem:[#allocation5 + $0x34] sm:$0xc]
      %v6199 = vsel %vm6088, %v6196, %v6198
      %6200 = vst [vmem:[#allocation5 + $0x34] sm:$0xc] %v6199
      %6201 = vst.msk [vmem:[#allocation5 + $0x48] sm:$0x3] %vm6092, %v6197
      %v6202 = vld [vmem:[#allocation4 + $0x14] sm:$0x8]
      %v6203 = vld [vmem:[#allocation4 + $0x18] sm:$0x7]
      %v6205 = vshrl.u32 %v6202, 16
      %v6207 = vrot.slane %v6205, 4
      %v6208 = vshll.u32 %v6202, 16
      %v6210 = vrot.slane %v6208, 5
      %v6211 = vor.u32 %v6207, %v6210
      %v6212 = vrot.slane %v6211, 4
      %v6214 = vshll.u32 %v6203, 16
      %v6216 = vrot.slane %v6214, 5
      %v6217 = vsel %vm1102, %v6212, %v6216
      %v6218 = vshrl.u32 %v6203, 16
      %v6220 = vrot.slane %v6218, 4
      %v6221 = vor.u32 %v6220, %v6216
      %v6222 = vrot.slane %v6221, 4
      %6223 = vrot.lane.b32.xlu0 %v6217, 64
      %v6224 = vpop.permute.xlu0 %6223
      %6225 = vrot.lane.b32.xlu0 %v6222, 64
      %v6226 = vpop.permute.xlu0 %6225
      %v6229 = vld [vmem:[#allocation5 + $0x34] sm:$0xc]
      %v6230 = vsel %vm6119, %v6224, %v6229
      %6231 = vst [vmem:[#allocation5 + $0x34] sm:$0xc] %v6230
      %6232 = vst.msk [vmem:[#allocation5 + $0x48] sm:$0x3] %vm6123, %v6226
      %v6233 = vld [vmem:[#allocation4 + $0x14] sm:$0x8]
      %v6234 = vld [vmem:[#allocation4 + $0x18] sm:$0x7]
      %v6237 = vrot.slane %v6233, 5
      %v6238 = vrot.slane %v6237, 4
      %v6239 = vrot.slane %v6234, 5
      %v6240 = vsel %vm1075, %v6238, %v6239
      %v6241 = vrot.slane %v6239, 4
      %v6244 = vld [vmem:[#allocation5 + $0x38] sm:$0xc]
      %v6245 = vsel %vm6088, %v6240, %v6244
      %6246 = vst [vmem:[#allocation5 + $0x38] sm:$0xc] %v6245
      %6247 = vst.msk [vmem:[#allocation5 + $0x4c] sm:$0x3] %vm6092, %v6241
      %v6248 = vld [vmem:[#allocation4 + $0x10] sm:$0xc]
      %v6249 = vld [vmem:[#allocation4 + $0x14] sm:$0x3]
      %vm6250 = vcmask 519170
      %6251 = vst.msk [vmem:[#allocation5 + $0x3c] sm:$0xc] %vm6250, %v6248
      %vm6252 = vcmask 517120
      %vm6253 = vmand %vm6252, %vm1229
      %v6254 = vld [vmem:[#allocation5 + $0x50] sm:$0x3]
      %v6255 = vsel %vm6253, %v6249, %v6254
      %6256 = vst [vmem:[#allocation5 + $0x50] sm:$0x3] %v6255
      %v6257 = vld [vmem:[#allocation4 + $0x10] sm:$0xc]
      %v6258 = vld [vmem:[#allocation4 + $0x14] sm:$0x3]
      %v6260 = vshrl.u32 %v6257, 16
      %v6262 = vrot.slane %v6260, 4
      %v6263 = vshll.u32 %v6257, 16
      %v6265 = vrot.slane %v6263, 5
      %v6266 = vor.u32 %v6262, %v6265
      %v6267 = vrot.slane %v6266, 4
      %v6269 = vshll.u32 %v6258, 16
      %v6271 = vrot.slane %v6269, 5
      %v6272 = vsel %vm1102, %v6267, %v6271
      %v6273 = vshrl.u32 %v6258, 16
      %v6275 = vrot.slane %v6273, 4
      %v6276 = vor.u32 %v6275, %v6271
      %v6277 = vrot.slane %v6276, 4
      %6278 = vrot.lane.b32.xlu0 %v6272, 64
      %v6279 = vpop.permute.xlu0 %6278
      %6280 = vrot.lane.b32.xlu0 %v6277, 64
      %v6281 = vpop.permute.xlu0 %6280
      %vm6284 = vcmask 1043970
      %6285 = vst.msk [vmem:[#allocation5 + $0x3c] sm:$0xc] %vm6284, %v6279
      %vm6286 = vcmask 1041920
      %vm6287 = vmand %vm6286, %vm1229
      %v6288 = vld [vmem:[#allocation5 + $0x50] sm:$0x3]
      %v6289 = vsel %vm6287, %v6281, %v6288
      %6290 = vst [vmem:[#allocation5 + $0x50] sm:$0x3] %v6289
      %v6291 = vld [vmem:[#allocation4 + $0x10] sm:$0x8]
      %v6292 = vld [vmem:[#allocation4 + $0x14] sm:$0x7]
      %v6295 = vrot.slane %v6291, 5
      %v6296 = vrot.slane %v6295, 4
      %v6297 = vrot.slane %v6292, 5
      %v6298 = vsel %vm1075, %v6296, %v6297
      %v6299 = vrot.slane %v6297, 4
      %6302 = vst.msk [vmem:[#allocation5 + $0x40] sm:$0xc] %vm6250, %v6298
      %v6303 = vld [vmem:[#allocation5 + $0x54] sm:$0x3]
      %v6304 = vsel %vm6253, %v6299, %v6303
      %6305 = vst [vmem:[#allocation5 + $0x54] sm:$0x3] %v6304
      %v6306 = vld [vmem:[#allocation4 + $0x14] sm:$0xc]
      %v6307 = vld [vmem:[#allocation4 + $0x18] sm:$0x3]
      %v6309 = vshrl.u32 %v6306, 16
      %v6311 = vrot.slane %v6309, 4
      %v6312 = vshll.u32 %v6306, 16
      %v6314 = vrot.slane %v6312, 5
      %v6315 = vor.u32 %v6311, %v6314
      %v6316 = vrot.slane %v6315, 4
      %v6318 = vshll.u32 %v6307, 16
      %v6320 = vrot.slane %v6318, 5
      %v6321 = vsel %vm1102, %v6316, %v6320
      %v6322 = vshrl.u32 %v6307, 16
      %v6324 = vrot.slane %v6322, 4
      %v6325 = vor.u32 %v6324, %v6320
      %v6326 = vrot.slane %v6325, 4
      %6327 = vrot.lane.b32.xlu0 %v6321, 64
      %v6328 = vpop.permute.xlu0 %6327
      %6329 = vrot.lane.b32.xlu0 %v6326, 64
      %v6330 = vpop.permute.xlu0 %6329
      %6333 = vst.msk [vmem:[#allocation5 + $0x40] sm:$0xc] %vm6284, %v6328
      %v6334 = vld [vmem:[#allocation5 + $0x54] sm:$0x3]
      %v6335 = vsel %vm6287, %v6330, %v6334
      %6336 = vst [vmem:[#allocation5 + $0x54] sm:$0x3] %v6335
      %v6337 = vld [vmem:[#allocation4 + $0x14] sm:$0x8]
      %v6338 = vld [vmem:[#allocation4 + $0x18] sm:$0x7]
      %v6341 = vrot.slane %v6337, 5
      %v6342 = vrot.slane %v6341, 4
      %v6343 = vrot.slane %v6338, 5
      %v6344 = vsel %vm1075, %v6342, %v6343
      %v6345 = vrot.slane %v6343, 4
      %6348 = vst.msk [vmem:[#allocation5 + $0x44] sm:$0xc] %vm6250, %v6344
      %v6349 = vld [vmem:[#allocation5 + $0x58] sm:$0x3]
      %v6350 = vsel %vm6253, %v6345, %v6349
      %6351 = vst [vmem:[#allocation5 + $0x58] sm:$0x3] %v6350
      %v6352 = vld [vmem:[#allocation4 + $0x14] sm:$0x8]
      %v6353 = vld [vmem:[#allocation4 + $0x18] sm:$0x7]
      %v6355 = vshrl.u32 %v6352, 16
      %v6357 = vrot.slane %v6355, 5
      %v6358 = vrot.slane %v6357, 4
      %v6360 = vshrl.u32 %v6353, 16
      %v6362 = vrot.slane %v6360, 5
      %v6363 = vshll.u32 %v6353, 16
      %v6365 = vrot.slane %v6363, 6
      %v6366 = vor.u32 %v6362, %v6365
      %v6367 = vsel %vm1144, %v6358, %v6366
      %v6368 = vrot.slane %v6366, 4
      %6369 = vrot.lane.b32.xlu0 %v6367, 64
      %v6370 = vpop.permute.xlu0 %6369
      %6371 = vrot.lane.b32.xlu0 %v6368, 64
      %v6372 = vpop.permute.xlu0 %6371
      %6375 = vst.msk [vmem:[#allocation5 + $0x44] sm:$0xc] %vm6284, %v6370
      %v6376 = vld [vmem:[#allocation5 + $0x58] sm:$0x3]
      %v6377 = vsel %vm6287, %v6372, %v6376
      %6378 = vst [vmem:[#allocation5 + $0x58] sm:$0x3] %v6377
      %v6379 = vld [vmem:[#allocation4 + $0x18] sm:$0x8]
      %v6380 = vld [vmem:[#allocation4 + $0x1c] sm:$0x7]
      %v6383 = vrot.slane %v6379, 5
      %v6384 = vrot.slane %v6383, 4
      %v6385 = vrot.slane %v6380, 5
      %v6386 = vsel %vm1075, %v6384, %v6385
      %v6387 = vrot.slane %v6385, 4
      %6390 = vst.msk [vmem:[#allocation5 + $0x48] sm:$0xc] %vm6250, %v6386
      %v6391 = vld [vmem:[#allocation5 + $0x5c] sm:$0x3]
      %v6392 = vsel %vm6253, %v6387, %v6391
      %6393 = vst [vmem:[#allocation5 + $0x5c] sm:$0x3] %v6392
      %v6394 = vld [vmem:[#allocation4 + $0x18] sm:$0x8]
      %v6395 = vld [vmem:[#allocation4 + $0x1c] sm:$0x7]
      %v6397 = vshrl.u32 %v6394, 16
      %v6399 = vrot.slane %v6397, 5
      %v6400 = vrot.slane %v6399, 4
      %v6402 = vshrl.u32 %v6395, 16
      %v6404 = vrot.slane %v6402, 5
      %v6405 = vshll.u32 %v6395, 16
      %v6407 = vrot.slane %v6405, 6
      %v6408 = vor.u32 %v6404, %v6407
      %v6409 = vsel %vm1144, %v6400, %v6408
      %v6410 = vrot.slane %v6408, 4
      %6411 = vrot.lane.b32.xlu0 %v6409, 64
      %v6412 = vpop.permute.xlu0 %6411
      %6413 = vrot.lane.b32.xlu0 %v6410, 64
      %v6414 = vpop.permute.xlu0 %6413
      %6417 = vst.msk [vmem:[#allocation5 + $0x48] sm:$0xc] %vm6284, %v6412
      %v6418 = vld [vmem:[#allocation5 + $0x5c] sm:$0x3]
      %v6419 = vsel %vm6287, %v6414, %v6418
      %6420 = vst [vmem:[#allocation5 + $0x5c] sm:$0x3] %v6419
      %v6421 = vld [vmem:[#allocation4 + $0x1c] sm:$0xf]
      %v6423 = vrot.slane %v6421, 6
      %v6424 = vrot.slane %v6423, 4
      %6427 = vst.msk [vmem:[#allocation5 + $0x4c] sm:$0xc] %vm6250, %v6423
      %v6428 = vld [vmem:[#allocation5 + $0x60] sm:$0x3]
      %v6429 = vsel %vm6253, %v6424, %v6428
      %6430 = vst [vmem:[#allocation5 + $0x60] sm:$0x3] %v6429
      %v6431 = vld [vmem:[#allocation4 + $0x14] sm:$0xc]
      %v6432 = vld [vmem:[#allocation4 + $0x18] sm:$0x3]
      %v6435 = vrot.slane %v6431, 5
      %v6436 = vrot.slane %v6435, 4
      %v6437 = vrot.slane %v6432, 5
      %v6438 = vsel %vm1075, %v6436, %v6437
      %v6439 = vrot.slane %v6437, 4
      %vm6442 = vcmask 519169
      %vm6443 = vmand %vm6442, %vm2404
      %v6444 = vld [vmem:[#allocation5 + $0x50] sm:$0xe]
      %v6445 = vsel %vm6443, %v6438, %v6444
      %6446 = vst [vmem:[#allocation5 + $0x50] sm:$0xe] %v6445
      %vm6447 = vcmask 516096
      %6448 = vst.msk [vmem:[#allocation5 + $0x64] sm:$0x1] %vm6447, %v6439
      %v6449 = vld [vmem:[#allocation4 + $0x14] sm:$0x8]
      %v6450 = vld [vmem:[#allocation4 + $0x18] sm:$0x7]
      %v6452 = vshrl.u32 %v6449, 16
      %v6454 = vrot.slane %v6452, 5
      %v6455 = vshll.u32 %v6449, 16
      %v6457 = vrot.slane %v6455, 6
      %v6458 = vor.u32 %v6454, %v6457
      %v6459 = vrot.slane %v6458, 4
      %v6461 = vshrl.u32 %v6450, 16
      %v6463 = vrot.slane %v6461, 5
      %v6464 = vshll.u32 %v6450, 16
      %v6466 = vrot.slane %v6464, 6
      %v6467 = vor.u32 %v6463, %v6466
      %v6468 = vsel %vm1144, %v6459, %v6467
      %v6469 = vrot.slane %v6467, 4
      %6470 = vrot.lane.b32.xlu0 %v6468, 64
      %v6471 = vpop.permute.xlu0 %6470
      %6472 = vrot.lane.b32.xlu0 %v6469, 64
      %v6473 = vpop.permute.xlu0 %6472
      %vm6476 = vcmask 1043969
      %vm6477 = vmand %vm6476, %vm2404
      %v6478 = vld [vmem:[#allocation5 + $0x50] sm:$0xe]
      %v6479 = vsel %vm6477, %v6471, %v6478
      %6480 = vst [vmem:[#allocation5 + $0x50] sm:$0xe] %v6479
      %vm6481 = vcmask 1040896
      %6482 = vst.msk [vmem:[#allocation5 + $0x64] sm:$0x1] %vm6481, %v6473
      %v6483 = vld [vmem:[#allocation4 + $0x14] sm:$0x8]
      %v6484 = vld [vmem:[#allocation4 + $0x18] sm:$0x7]
      %v6487 = vrot.slane %v6483, 6
      %v6488 = vrot.slane %v6487, 4
      %v6489 = vrot.slane %v6484, 6
      %v6490 = vsel %vm1185, %v6488, %v6489
      %v6491 = vrot.slane %v6489, 4
      %v6494 = vld [vmem:[#allocation5 + $0x54] sm:$0xe]
      %v6495 = vsel %vm6443, %v6490, %v6494
      %6496 = vst [vmem:[#allocation5 + $0x54] sm:$0xe] %v6495
      %6497 = vst.msk [vmem:[#allocation5 + $0x68] sm:$0x1] %vm6447, %v6491
      %v6498 = vld [vmem:[#allocation4 + $0x18] sm:$0x8]
      %v6499 = vld [vmem:[#allocation4 + $0x1c] sm:$0x7]
      %v6501 = vshrl.u32 %v6498, 16
      %v6503 = vrot.slane %v6501, 5
      %v6504 = vshll.u32 %v6498, 16
      %v6506 = vrot.slane %v6504, 6
      %v6507 = vor.u32 %v6503, %v6506
      %v6508 = vrot.slane %v6507, 4
      %v6510 = vshrl.u32 %v6499, 16
      %v6512 = vrot.slane %v6510, 5
      %v6513 = vshll.u32 %v6499, 16
      %v6515 = vrot.slane %v6513, 6
      %v6516 = vor.u32 %v6512, %v6515
      %v6517 = vsel %vm1144, %v6508, %v6516
      %v6518 = vrot.slane %v6516, 4
      %6519 = vrot.lane.b32.xlu0 %v6517, 64
      %v6520 = vpop.permute.xlu0 %6519
      %6521 = vrot.lane.b32.xlu0 %v6518, 64
      %v6522 = vpop.permute.xlu0 %6521
      %v6525 = vld [vmem:[#allocation5 + $0x54] sm:$0xe]
      %v6526 = vsel %vm6477, %v6520, %v6525
      %6527 = vst [vmem:[#allocation5 + $0x54] sm:$0xe] %v6526
      %6528 = vst.msk [vmem:[#allocation5 + $0x68] sm:$0x1] %vm6481, %v6522
      %v6529 = vld [vmem:[#allocation4 + $0x18] sm:$0x8]
      %v6530 = vld [vmem:[#allocation4 + $0x1c] sm:$0x7]
      %v6533 = vrot.slane %v6529, 6
      %v6534 = vrot.slane %v6533, 4
      %v6535 = vrot.slane %v6530, 6
      %v6536 = vsel %vm1185, %v6534, %v6535
      %v6537 = vrot.slane %v6535, 4
      %v6540 = vld [vmem:[#allocation5 + $0x58] sm:$0xe]
      %v6541 = vsel %vm6443, %v6536, %v6540
      %6542 = vst [vmem:[#allocation5 + $0x58] sm:$0xe] %v6541
      %6543 = vst.msk [vmem:[#allocation5 + $0x6c] sm:$0x1] %vm6447, %v6537
      %v6544 = vld [vmem:[#allocation4 + $0x1c] sm:$0xf]
      %v6546 = vshrl.u32 %v6544, 16
      %v6548 = vrot.slane %v6546, 6
      %v6549 = vshll.u32 %v6544, 16
      %v6551 = vrot.slane %v6549, 7
      %v6552 = vor.u32 %v6548, %v6551
      %v6553 = vrot.slane %v6552, 4
      %6554 = vrot.lane.b32.xlu0 %v6552, 64
      %v6555 = vpop.permute.xlu0 %6554
      %6556 = vrot.lane.b32.xlu0 %v6553, 64
      %v6557 = vpop.permute.xlu0 %6556
      %v6560 = vld [vmem:[#allocation5 + $0x58] sm:$0xe]
      %v6561 = vsel %vm6477, %v6555, %v6560
      %6562 = vst [vmem:[#allocation5 + $0x58] sm:$0xe] %v6561
      %6563 = vst.msk [vmem:[#allocation5 + $0x6c] sm:$0x1] %vm6481, %v6557
      %v6564 = vld [vmem:[#allocation4 + $0x1c] sm:$0x8]
      %v6565 = vld [vmem:[#allocation4 + $0x20] sm:$0x7]
      %v6568 = vrot.slane %v6564, 6
      %v6569 = vrot.slane %v6568, 4
      %v6570 = vrot.slane %v6565, 6
      %v6571 = vsel %vm1185, %v6569, %v6570
      %v6572 = vrot.slane %v6570, 4
      %v6575 = vld [vmem:[#allocation5 + $0x5c] sm:$0xe]
      %v6576 = vsel %vm6443, %v6571, %v6575
      %6577 = vst [vmem:[#allocation5 + $0x5c] sm:$0xe] %v6576
      %6578 = vst.msk [vmem:[#allocation5 + $0x70] sm:$0x1] %vm6447, %v6572
      %v6579 = vld [vmem:[#allocation4 + $0x20] sm:$0xf]
      %v6581 = vshrl.u32 %v6579, 16
      %v6583 = vrot.slane %v6581, 6
      %v6584 = vshll.u32 %v6579, 16
      %v6586 = vrot.slane %v6584, 7
      %v6587 = vor.u32 %v6583, %v6586
      %v6588 = vrot.slane %v6587, 4
      %6589 = vrot.lane.b32.xlu0 %v6587, 64
      %v6590 = vpop.permute.xlu0 %6589
      %6591 = vrot.lane.b32.xlu0 %v6588, 64
      %v6592 = vpop.permute.xlu0 %6591
      %v6595 = vld [vmem:[#allocation5 + $0x5c] sm:$0xe]
      %v6596 = vsel %vm6477, %v6590, %v6595
      %6597 = vst [vmem:[#allocation5 + $0x5c] sm:$0xe] %v6596
      %6598 = vst.msk [vmem:[#allocation5 + $0x70] sm:$0x1] %vm6481, %v6592
      %v6599 = vld [vmem:[#allocation4 + $0x20] sm:$0xf]
      %v6601 = vrot.slane %v6599, 7
      %v6602 = vrot.slane %v6601, 4
      %v6605 = vld [vmem:[#allocation5 + $0x60] sm:$0xe]
      %v6606 = vsel %vm6443, %v6601, %v6605
      %6607 = vst [vmem:[#allocation5 + $0x60] sm:$0xe] %v6606
      %6608 = vst.msk [vmem:[#allocation5 + $0x74] sm:$0x1] %vm6447, %v6602
      %v6609 = vld [vmem:[#allocation4 + $0x18] sm:$0x8]
      %v6610 = vld [vmem:[#allocation4 + $0x1c] sm:$0x7]
      %v6613 = vrot.slane %v6609, 6
      %v6614 = vrot.slane %v6613, 4
      %v6615 = vrot.slane %v6610, 6
      %v6616 = vsel %vm1185, %v6614, %v6615
      %v6617 = vrot.slane %v6615, 4
      %vm6620 = vcmask 519169
      %6621 = vst.msk [vmem:[#allocation5 + $0x64] sm:$0xe] %vm6620, %v6616
      %v6622 = vld [vmem:[#allocation5 + $0x78] sm:$0x1]
      %v6623 = vsel %vm5565, %v6617, %v6622
      %6624 = vst [vmem:[#allocation5 + $0x78] sm:$0x1] %v6623
      %v6625 = vld [vmem:[#allocation4 + $0x18] sm:$0x8]
      %v6626 = vld [vmem:[#allocation4 + $0x1c] sm:$0x7]
      %v6628 = vshrl.u32 %v6625, 16
      %v6630 = vrot.slane %v6628, 6
      %v6631 = vrot.slane %v6630, 4
      %v6633 = vshrl.u32 %v6626, 16
      %v6635 = vrot.slane %v6633, 6
      %v6636 = vshll.u32 %v6626, 16
      %v6638 = vrot.slane %v6636, 7
      %v6639 = vor.u32 %v6635, %v6638
      %v6640 = vsel %vm1231, %v6631, %v6639
      %v6641 = vrot.slane %v6635, 4
      %6642 = vrot.lane.b32.xlu0 %v6640, 64
      %v6643 = vpop.permute.xlu0 %6642
      %6644 = vrot.lane.b32.xlu0 %v6641, 64
      %v6645 = vpop.permute.xlu0 %6644
      %vm6648 = vcmask 1043969
      %6649 = vst.msk [vmem:[#allocation5 + $0x64] sm:$0xe] %vm6648, %v6643
      %vm6650 = vcmask 1040896
      %vm6651 = vmand %vm6650, %vm1060
      %v6652 = vld [vmem:[#allocation5 + $0x78] sm:$0x1]
      %v6653 = vsel %vm6651, %v6645, %v6652
      %6654 = vst [vmem:[#allocation5 + $0x78] sm:$0x1] %v6653
      %v6655 = vld [vmem:[#allocation4 + $0x1c] sm:$0xf]
      %v6657 = vrot.slane %v6655, 7
      %v6658 = vrot.slane %v6657, 4
      %6661 = vst.msk [vmem:[#allocation5 + $0x68] sm:$0xe] %vm6620, %v6657
      %v6662 = vld [vmem:[#allocation5 + $0x7c] sm:$0x1]
      %v6663 = vsel %vm5565, %v6658, %v6662
      %6664 = vst [vmem:[#allocation5 + $0x7c] sm:$0x1] %v6663
      %v6665 = vld [vmem:[#allocation4 + $0x1c] sm:$0x8]
      %v6666 = vld [vmem:[#allocation4 + $0x20] sm:$0x7]
      %v6668 = vshrl.u32 %v6665, 16
      %v6670 = vrot.slane %v6668, 6
      %v6671 = vrot.slane %v6670, 4
      %v6673 = vshrl.u32 %v6666, 16
      %v6675 = vrot.slane %v6673, 6
      %v6676 = vshll.u32 %v6666, 16
      %v6678 = vrot.slane %v6676, 7
      %v6679 = vor.u32 %v6675, %v6678
      %v6680 = vsel %vm1231, %v6671, %v6679
      %v6681 = vrot.slane %v6675, 4
      %6682 = vrot.lane.b32.xlu0 %v6680, 64
      %v6683 = vpop.permute.xlu0 %6682
      %6684 = vrot.lane.b32.xlu0 %v6681, 64
      %v6685 = vpop.permute.xlu0 %6684
      %6688 = vst.msk [vmem:[#allocation5 + $0x68] sm:$0xe] %vm6648, %v6683
      %v6689 = vld [vmem:[#allocation5 + $0x7c] sm:$0x1]
      %v6690 = vsel %vm6651, %v6685, %v6689
      %6691 = vst [vmem:[#allocation5 + $0x7c] sm:$0x1] %v6690
      %v6692 = vld [vmem:[#allocation4 + $0x20] sm:$0xf]
      %v6694 = vrot.slane %v6692, 7
      %v6695 = vrot.slane %v6694, 4
      %6698 = vst.msk [vmem:[#allocation5 + $0x6c] sm:$0xe] %vm6620, %v6694
      %v6699 = vld [vmem:[#allocation5 + $0x80] sm:$0x1]
      %v6700 = vsel %vm5565, %v6695, %v6699
      %6701 = vst [vmem:[#allocation5 + $0x80] sm:$0x1] %v6700
      %v6702 = vld [vmem:[#allocation4 + $0x20] sm:$0xf]
      %v6704 = vshrl.u32 %v6702, 16
      %v6706 = vrot.slane %v6704, 7
      %v6707 = vshll.u32 %v6702, 16
      %v6709 = vor.u32 %v6706, %v6707
      %v6710 = vrot.slane %v6706, 4
      %6711 = vrot.lane.b32.xlu0 %v6709, 64
      %v6712 = vpop.permute.xlu0 %6711
      %6713 = vrot.lane.b32.xlu0 %v6710, 64
      %v6714 = vpop.permute.xlu0 %6713
      %6717 = vst.msk [vmem:[#allocation5 + $0x6c] sm:$0xe] %vm6648, %v6712
      %v6718 = vld [vmem:[#allocation5 + $0x80] sm:$0x1]
      %v6719 = vsel %vm6651, %v6714, %v6718
      %6720 = vst [vmem:[#allocation5 + $0x80] sm:$0x1] %v6719
      %v6721 = vld [vmem:[#allocation4 + $0x24] sm:$0xf]
      %v6723 = vrot.slane %v6721, 7
      %v6724 = vrot.slane %v6723, 4
      %6727 = vst.msk [vmem:[#allocation5 + $0x70] sm:$0xe] %vm6620, %v6723
      %v6728 = vld [vmem:[#allocation5 + $0x84] sm:$0x1]
      %v6729 = vsel %vm5565, %v6724, %v6728
      %6730 = vst [vmem:[#allocation5 + $0x84] sm:$0x1] %v6729
      %v6731 = vld [vmem:[#allocation4 + $0x24] sm:$0xf]
      %v6733 = vshrl.u32 %v6731, 16
      %v6735 = vrot.slane %v6733, 7
      %v6736 = vshll.u32 %v6731, 16
      %v6738 = vor.u32 %v6735, %v6736
      %v6739 = vrot.slane %v6735, 4
      %6740 = vrot.lane.b32.xlu0 %v6738, 64
      %v6741 = vpop.permute.xlu0 %6740
      %6742 = vrot.lane.b32.xlu0 %v6739, 64
      %v6743 = vpop.permute.xlu0 %6742
      %6746 = vst.msk [vmem:[#allocation5 + $0x70] sm:$0xe] %vm6648, %v6741
      %v6747 = vld [vmem:[#allocation5 + $0x84] sm:$0x1]
      %v6748 = vsel %vm6651, %v6743, %v6747
      %6749 = vst [vmem:[#allocation5 + $0x84] sm:$0x1] %v6748
      %v6750 = vld [vmem:[#allocation4 + $0x24] sm:$0xe]
      %v6751 = vld [vmem:[#allocation4 + $0x28] sm:$0x1]
      %6752 = vst.msk [vmem:[#allocation5 + $0x74] sm:$0xe] %vm6620, %v6750
      %v6753 = vld [vmem:[#allocation5 + $0x88] sm:$0x1]
      %v6754 = vsel %vm5565, %v6751, %v6753
      %6755 = vst [vmem:[#allocation5 + $0x88] sm:$0x1] %v6754
      %v6756 = vld [vmem:[#allocation5] sm:$0xff]
      %v6757 = vld [vmem:[#allocation5 + $0x8] sm:$0xff]
      %v6758 = vld [vmem:[#allocation5 + $0x10] sm:$0xf]
      %v6759 = vld [vmem:[#allocation5 + $0x14] sm:$0xff]
      %v6760 = vld [vmem:[#allocation5 + $0x1c] sm:$0xff]
      %v6761 = vld [vmem:[#allocation5 + $0x24] sm:$0xf]
      %v6762 = vld [vmem:[#allocation5 + $0x28] sm:$0xff]
      %v6763 = vld [vmem:[#allocation5 + $0x30] sm:$0xff]
      %v6764 = vld [vmem:[#allocation5 + $0x38] sm:$0xf]
      %v6765 = vld [vmem:[#allocation5 + $0x3c] sm:$0xff]
      %v6766 = vld [vmem:[#allocation5 + $0x44] sm:$0xff]
      %v6767 = vld [vmem:[#allocation5 + $0x4c] sm:$0xf]
      %v6768 = vld [vmem:[#allocation5 + $0x50] sm:$0xff]
      %v6769 = vld [vmem:[#allocation5 + $0x58] sm:$0xff]
      %v6770 = vld [vmem:[#allocation5 + $0x60] sm:$0xf]
      %v6771 = vld [vmem:[#allocation5 + $0x64] sm:$0xff]
      %v6772 = vld [vmem:[#allocation5 + $0x6c] sm:$0xff]
      %v6773 = vld [vmem:[#allocation5 + $0x74] sm:$0xf]
      %v6774 = vld [vmem:[#allocation5 + $0x78] sm:$0x11]
      %v6775 = vld [vmem:[#allocation5 + $0x80] sm:$0x11]
      %v6776 = vld [vmem:[#allocation5 + $0x88] sm:$0x1]
      %v6777 = vld [vmem:[%s5] sm:$0xf]
      %v6778 = vld [vmem:[%s5 + $0x4] sm:$0xf]
      %v6779 = vld [vmem:[%s5 + $0x8] sm:$0xf]
      %v6780 = vld [vmem:[%s5 + $0xc] sm:$0xf]
      %v6781 = vld [vmem:[%s5 + $0x10] sm:$0xf]
      %v6782 = vld [vmem:[%s5 + $0x14] sm:$0xf]
      %v6783 = vld [vmem:[%s5 + $0x18] sm:$0xf]
      %v6784 = vld [vmem:[%s5 + $0x1c] sm:$0xf]
      %v6785 = vld [vmem:[%s5 + $0x20] sm:$0xf]
      %v6786 = vld [vmem:[%s5 + $0x24] sm:$0xf]
      %v6787 = vld [vmem:[%s5 + $0x28] sm:$0xf]
      %v6788 = vld [vmem:[%s5 + $0x2c] sm:$0xf]
      %v6789 = vld [vmem:[%s5 + $0x30] sm:$0xf]
      %v6790 = vld [vmem:[%s5 + $0x34] sm:$0xf]
      %v6791 = vld [vmem:[%s5 + $0x38] sm:$0xf]
      %v6792 = vld [vmem:[%s5 + $0x3c] sm:$0xf]
      %v6793 = vld [vmem:[%s5 + $0x40] sm:$0xf]
      %v6794 = vld [vmem:[%s5 + $0x44] sm:$0xf]
      %v6795 = vld [vmem:[%s5 + $0x48] sm:$0xf]
      %v6796 = vld [vmem:[%s5 + $0x4c] sm:$0xf]
      %v6797 = vld [vmem:[%s5 + $0x50] sm:$0xf]
      %v6798 = vld [vmem:[%s5 + $0x54] sm:$0xf]
      %v6799 = vld [vmem:[%s5 + $0x58] sm:$0xf]
      %v6800 = vld [vmem:[%s5 + $0x5c] sm:$0xf]
      %v6801 = vld [vmem:[%s5 + $0x60] sm:$0xf]
      %v6802 = vld [vmem:[%s5 + $0x64] sm:$0xf]
      %v6803 = vld [vmem:[%s5 + $0x68] sm:$0xf]
      %v6804 = vld [vmem:[%s5 + $0x6c] sm:$0xf]
      %v6805 = vld [vmem:[%s5 + $0x70] sm:$0xf]
      %v6806 = vld [vmem:[%s5 + $0x74] sm:$0xf]
      %v6807 = vld [vmem:[%s5 + $0x78] sm:$0xf]
      %v6808 = vld [vmem:[%s5 + $0x7c] sm:$0xf]
      %v6809 = vld [vmem:[%s5 + $0x80] sm:$0xf]
      %v6810 = vld [vmem:[%s5 + $0x84] sm:$0xf]
      %v6811 = vld [vmem:[%s5 + $0x88] sm:$0xf]
      %v6812 = vld [vmem:[%s5 + $0x8c] sm:$0xf]
      %v6813 = vld [vmem:[%s5 + $0x90] sm:$0xf]
      %v6814 = vld [vmem:[%s5 + $0x94] sm:$0xf]
      %v6815 = vld [vmem:[%s5 + $0x98] sm:$0xf]
      %v6816 = vld [vmem:[%s5 + $0x9c] sm:$0xf]
      %v6817 = vld [vmem:[%s5 + $0xa0] sm:$0xf]
      %v6818 = vld [vmem:[%s5 + $0xa4] sm:$0xf]
      %v6819 = vld [vmem:[%s5 + $0xa8] sm:$0xf]
      %v6820 = vld [vmem:[%s5 + $0xac] sm:$0xf]
      %v6821 = vld [vmem:[%s5 + $0xb0] sm:$0xf]
      %v6822 = vld [vmem:[%s5 + $0xb4] sm:$0xf]
      %v6823 = vld [vmem:[%s5 + $0xb8] sm:$0xf]
      %v6824 = vld [vmem:[%s5 + $0xbc] sm:$0xf]
      %v6825 = vld [vmem:[%s5 + $0xc0] sm:$0xf]
      %v6826 = vld [vmem:[%s5 + $0xc4] sm:$0xf]
      %v6827 = vld [vmem:[%s5 + $0xc8] sm:$0xf]
      %v6828 = vld [vmem:[%s5 + $0xcc] sm:$0xf]
      %v6829 = vld [vmem:[%s5 + $0xd0] sm:$0xf]
      %v6830 = vld [vmem:[%s5 + $0xd4] sm:$0xf]
      %v6831 = vld [vmem:[%s5 + $0xd8] sm:$0xf]
      %v6832 = vld [vmem:[%s5 + $0xdc] sm:$0xf]
      %v6833 = vld [vmem:[%s5 + $0xe0] sm:$0xf]
      %v6834 = vld [vmem:[%s5 + $0xe4] sm:$0xf]
      %v6835 = vld [vmem:[%s5 + $0xe8] sm:$0xf]
      %v6836 = vld [vmem:[%s5 + $0xec] sm:$0xf]
      %v6837 = vld [vmem:[%s5 + $0xf0] sm:$0xf]
      %v6838 = vld [vmem:[%s5 + $0xf4] sm:$0xf]
      %v6839 = vld [vmem:[%s5 + $0xf8] sm:$0xf]
      %v6840 = vld [vmem:[%s5 + $0xfc] sm:$0xf]
      %v6841 = vld [vmem:[%s5 + $0x100] sm:$0xf]
      %v6842 = vld [vmem:[%s5 + $0x104] sm:$0xf]
      %v6843 = vld [vmem:[%s5 + $0x108] sm:$0xf]
      %v6844 = vld [vmem:[%s5 + $0x10c] sm:$0xf]
      %v6845 = vld [vmem:[%s5 + $0x110] sm:$0xf]
      %v6846 = vld [vmem:[%s5 + $0x114] sm:$0xf]
      %v6847 = vld [vmem:[%s5 + $0x118] sm:$0xf]
      %v6848 = vld [vmem:[%s5 + $0x11c] sm:$0xf]
      %v6849 = vld [vmem:[%s6] sm:$0x1]
      %v6851 = vlaneseq
      %v6852 = vshrl.u32 %v6851, 7
      %v6853 = vsub.s32 0, %v6852
      %v6854 = vrot.slane %v6849, %v6853
      %v6877 = vunpack.c.l.b16 %v6756
      %v6878 = vunpack.c.h.b16 %v6756
      %v6879 = vunpack.c.l.b16 %v6757
      %v6880 = vunpack.c.h.b16 %v6757
      %v6881 = vunpack.c.l.b16 %v6758
      %v6882 = vunpack.c.l.b16 %v6759
      %v6883 = vunpack.c.h.b16 %v6759
      %v6884 = vunpack.c.l.b16 %v6760
      %v6885 = vunpack.c.h.b16 %v6760
      %v6886 = vunpack.c.l.b16 %v6761
      %v6887 = vunpack.c.l.b16 %v6762
      %v6888 = vunpack.c.h.b16 %v6762
      %v6889 = vunpack.c.l.b16 %v6763
      %v6890 = vunpack.c.h.b16 %v6763
      %v6891 = vunpack.c.l.b16 %v6764
      %v6892 = vunpack.c.l.b16 %v6765
      %v6893 = vunpack.c.h.b16 %v6765
      %v6894 = vunpack.c.l.b16 %v6766
      %v6895 = vunpack.c.h.b16 %v6766
      %v6896 = vunpack.c.l.b16 %v6767
      %v6897 = vunpack.c.l.b16 %v6768
      %v6898 = vunpack.c.h.b16 %v6768
      %v6899 = vunpack.c.l.b16 %v6769
      %v6900 = vunpack.c.h.b16 %v6769
      %v6901 = vunpack.c.l.b16 %v6770
      %v6902 = vunpack.c.l.b16 %v6771
      %v6903 = vunpack.c.h.b16 %v6771
      %v6904 = vunpack.c.l.b16 %v6772
      %v6905 = vunpack.c.h.b16 %v6772
      %v6906 = vunpack.c.l.b16 %v6773
      %v6907 = vunpack.c.l.b16 %v6774
      %v6908 = vunpack.c.h.b16 %v6774
      %v6909 = vunpack.c.l.b16 %v6775
      %v6910 = vunpack.c.h.b16 %v6775
      %v6911 = vunpack.c.l.b16 %v6776
      %v6912 = vpack.c.b16 %v6882, %v6877
      %v6913 = vpack.c.b16 %v6883, %v6878
      %v6914 = vpack.c.b16 %v6884, %v6879
      %v6915 = vpack.c.b16 %v6885, %v6880
      %v6916 = vpack.c.b16 %v6886, %v6881
      %v6917 = vpack.c.b16 %v6892, %v6887
      %v6918 = vpack.c.b16 %v6893, %v6888
      %v6919 = vpack.c.b16 %v6894, %v6889
      %v6920 = vpack.c.b16 %v6895, %v6890
      %v6921 = vpack.c.b16 %v6896, %v6891
      %v6922 = vpack.c.b16 %v6902, %v6897
      %v6923 = vpack.c.b16 %v6903, %v6898
      %v6924 = vpack.c.b16 %v6904, %v6899
      %v6925 = vpack.c.b16 %v6905, %v6900
      %v6926 = vpack.c.b16 %v6906, %v6901
      %v6927 = vpack.c.b16 %v6907, %v6907
      %v6928 = vpack.c.b16 %v6908, %v6908
      %v6929 = vpack.c.b16 %v6909, %v6909
      %v6930 = vpack.c.b16 %v6910, %v6910
      %v6931 = vpack.c.b16 %v6911, %v6911
      %v7020 = vunpack.c.l.b16 %v6777
      %v7021 = vunpack.c.l.b16 %v6778
      %v7022 = vunpack.c.l.b16 %v6779
      %v7023 = vunpack.c.l.b16 %v6780
      %v7024 = vunpack.c.l.b16 %v6781
      %v7025 = vunpack.c.l.b16 %v6782
      %v7026 = vunpack.c.l.b16 %v6783
      %v7027 = vunpack.c.l.b16 %v6784
      %v7028 = vunpack.c.l.b16 %v6785
      %v7029 = vunpack.c.l.b16 %v6786
      %v7030 = vunpack.c.l.b16 %v6787
      %v7031 = vunpack.c.l.b16 %v6788
      %v7032 = vunpack.c.l.b16 %v6789
      %v7033 = vunpack.c.l.b16 %v6790
      %v7034 = vunpack.c.l.b16 %v6791
      %v7035 = vunpack.c.l.b16 %v6792
      %v7036 = vunpack.c.l.b16 %v6793
      %v7037 = vunpack.c.l.b16 %v6794
      %v7038 = vunpack.c.l.b16 %v6795
      %v7039 = vunpack.c.l.b16 %v6796
      %v7040 = vunpack.c.l.b16 %v6797
      %v7041 = vunpack.c.l.b16 %v6798
      %v7042 = vunpack.c.l.b16 %v6799
      %v7043 = vunpack.c.l.b16 %v6800
      %v7044 = vunpack.c.l.b16 %v6801
      %v7045 = vunpack.c.l.b16 %v6802
      %v7046 = vunpack.c.l.b16 %v6803
      %v7047 = vunpack.c.l.b16 %v6804
      %v7048 = vunpack.c.l.b16 %v6805
      %v7049 = vunpack.c.l.b16 %v6806
      %v7050 = vunpack.c.l.b16 %v6807
      %v7051 = vunpack.c.l.b16 %v6808
      %v7052 = vunpack.c.l.b16 %v6809
      %v7053 = vunpack.c.l.b16 %v6810
      %v7054 = vunpack.c.l.b16 %v6811
      %v7055 = vunpack.c.l.b16 %v6812
      %v7056 = vunpack.c.l.b16 %v6813
      %v7057 = vunpack.c.l.b16 %v6814
      %v7058 = vunpack.c.l.b16 %v6815
      %v7059 = vunpack.c.l.b16 %v6816
      %v7060 = vunpack.c.l.b16 %v6817
      %v7061 = vunpack.c.l.b16 %v6818
      %v7062 = vunpack.c.l.b16 %v6819
      %v7063 = vunpack.c.l.b16 %v6820
      %v7064 = vunpack.c.l.b16 %v6821
      %v7065 = vunpack.c.l.b16 %v6822
      %v7066 = vunpack.c.l.b16 %v6823
      %v7067 = vunpack.c.l.b16 %v6824
      %v7068 = vunpack.c.l.b16 %v6825
      %v7069 = vunpack.c.l.b16 %v6826
      %v7070 = vunpack.c.l.b16 %v6827
      %v7071 = vunpack.c.l.b16 %v6828
      %v7072 = vunpack.c.l.b16 %v6829
      %v7073 = vunpack.c.l.b16 %v6830
      %v7074 = vunpack.c.l.b16 %v6831
      %v7075 = vunpack.c.l.b16 %v6832
      %v7076 = vunpack.c.l.b16 %v6833
      %v7077 = vunpack.c.l.b16 %v6834
      %v7078 = vunpack.c.l.b16 %v6835
      %v7079 = vunpack.c.l.b16 %v6836
      %v7080 = vunpack.c.l.b16 %v6837
      %v7081 = vunpack.c.l.b16 %v6838
      %v7082 = vunpack.c.l.b16 %v6839
      %v7083 = vunpack.c.l.b16 %v6840
      %v7084 = vunpack.c.l.b16 %v6841
      %v7085 = vunpack.c.l.b16 %v6842
      %v7086 = vunpack.c.l.b16 %v6843
      %v7087 = vunpack.c.l.b16 %v6844
      %v7088 = vunpack.c.l.b16 %v6845
      %v7089 = vunpack.c.l.b16 %v6846
      %v7090 = vunpack.c.l.b16 %v6847
      %v7091 = vunpack.c.l.b16 %v6848
      %v7092 = vpack.c.b16 %v7021, %v7020
      %v7093 = vpack.c.b16 %v7023, %v7022
      %v7094 = vpack.c.b16 %v7025, %v7024
      %v7095 = vpack.c.b16 %v7027, %v7026
      %v7096 = vpack.c.b16 %v7029, %v7028
      %v7097 = vpack.c.b16 %v7031, %v7030
      %v7098 = vpack.c.b16 %v7033, %v7032
      %v7099 = vpack.c.b16 %v7035, %v7034
      %v7100 = vpack.c.b16 %v7037, %v7036
      %v7101 = vpack.c.b16 %v7039, %v7038
      %v7102 = vpack.c.b16 %v7041, %v7040
      %v7103 = vpack.c.b16 %v7043, %v7042
      %v7104 = vpack.c.b16 %v7045, %v7044
      %v7105 = vpack.c.b16 %v7047, %v7046
      %v7106 = vpack.c.b16 %v7049, %v7048
      %v7107 = vpack.c.b16 %v7051, %v7050
      %v7108 = vpack.c.b16 %v7053, %v7052
      %v7109 = vpack.c.b16 %v7055, %v7054
      %v7110 = vpack.c.b16 %v7057, %v7056
      %v7111 = vpack.c.b16 %v7059, %v7058
      %v7112 = vpack.c.b16 %v7061, %v7060
      %v7113 = vpack.c.b16 %v7063, %v7062
      %v7114 = vpack.c.b16 %v7065, %v7064
      %v7115 = vpack.c.b16 %v7067, %v7066
      %v7116 = vpack.c.b16 %v7069, %v7068
      %v7117 = vpack.c.b16 %v7071, %v7070
      %v7118 = vpack.c.b16 %v7073, %v7072
      %v7119 = vpack.c.b16 %v7075, %v7074
      %v7120 = vpack.c.b16 %v7077, %v7076
      %v7121 = vpack.c.b16 %v7079, %v7078
      %v7122 = vpack.c.b16 %v7081, %v7080
      %v7123 = vpack.c.b16 %v7083, %v7082
      %v7124 = vpack.c.b16 %v7085, %v7084
      %v7125 = vpack.c.b16 %v7087, %v7086
      %v7126 = vpack.c.b16 %v7089, %v7088
      %v7127 = vpack.c.b16 %v7091, %v7090
      %vm7164 = vcmask 523264
      %v7166 = vsel %vm7164, %v6916, 0
      %v7169 = vsel %vm7164, %v6921, 0
      %v7172 = vsel %vm7164, %v6926, 0
      %v7175 = vsel %vm7164, %v6931, 0
      %7177 = vmatprep.subr.bf16.mxu0 0
      %7178 = vmatpush1.bf16.msra.mxu0 %v7092
      %7179 = vmatprep.subr.bf16.mxu0 0
      %7180 = vmatpush1.bf16.msra.mxu0 %v7093
      %7181 = vmatprep.subr.bf16.mxu0 0
      %7182 = vmatpush1.bf16.msra.mxu0 %v7094
      %7183 = vmatprep.subr.bf16.mxu0 0
      %7184 = vmatpush1.bf16.msra.mxu0 %v7095
      %7185 = vmatprep.subr.bf16.mxu0 0
      %7186 = vmatpush1.bf16.msra.mxu0 %v7096
      %7187 = vmatprep.subr.bf16.mxu0 0
      %7188 = vmatpush1.bf16.msra.mxu0 %v7097
      %7189 = vmatprep.subr.bf16.mxu0 0
      %7190 = vmatpush1.bf16.msra.mxu0 %v7098
      %7191 = vmatprep.subr.bf16.mxu0 0
      %7192 = vmatpush1.bf16.msra.mxu0 %v7099
      %7193 = vmatprep.subr.bf16.mxu0 0
      %7194 = vmatpush1.bf16.msra.mxu0 %v7100
      %7195 = vmatprep.subr.bf16.mxu0 0
      %7196 = vmatpush1.bf16.msra.mxu0 %v7101
      %7197 = vmatprep.subr.bf16.mxu0 0
      %7198 = vmatpush1.bf16.msra.mxu0 %v7102
      %7199 = vmatprep.subr.bf16.mxu0 0
      %7200 = vmatpush1.bf16.msra.mxu0 %v7103
      %7201 = vmatprep.subr.bf16.mxu0 0
      %7202 = vmatpush1.bf16.msra.mxu0 %v7104
      %7203 = vmatprep.subr.bf16.mxu0 0
      %7204 = vmatpush1.bf16.msra.mxu0 %v7105
      %7205 = vmatprep.subr.bf16.mxu0 0
      %7206 = vmatpush1.bf16.msra.mxu0 %v7106
      %7207 = vmatprep.subr.bf16.mxu0 0
      %7208 = vmatpush1.bf16.msra.mxu0 %v7107
      %7209 = vmatprep.mubr.bf16.mxu0 %v6913
      %7210 = vmatmul.mubr.bf16.gmra.mrb[0].mxu0 %v6912
      %v7211 = vpop.f32.mrb[0].mxu0
      %v7212 = vadd.f32 %v6854, %v7211
      %v7213 = vpop.f32.mrb[0].mxu0
      %v7214 = vpop.f32.mrb[0].mxu0
      %v7215 = vadd.f32 %v6854, %v7214
      %v7216 = vpop.f32.mrb[0].mxu0
      %7217 = vmatprep.mubr.bf16.mxu0 %v6918
      %7218 = vmatmul.mubr.bf16.gmra.mrb[0].mxu0 %v6917
      %v7219 = vpop.f32.mrb[0].mxu0
      %v7220 = vadd.f32 %v6854, %v7219
      %v7221 = vpop.f32.mrb[0].mxu0
      %v7222 = vpop.f32.mrb[0].mxu0
      %v7223 = vadd.f32 %v6854, %v7222
      %v7224 = vpop.f32.mrb[0].mxu0
      %7225 = vmatprep.mubr.bf16.mxu0 %v6923
      %7226 = vmatmul.mubr.bf16.gmra.mrb[0].mxu0 %v6922
      %v7227 = vpop.f32.mrb[0].mxu0
      %v7228 = vadd.f32 %v6854, %v7227
      %v7229 = vpop.f32.mrb[0].mxu0
      %v7230 = vpop.f32.mrb[0].mxu0
      %v7231 = vadd.f32 %v6854, %v7230
      %v7232 = vpop.f32.mrb[0].mxu0
      %7233 = vmatprep.mubr.bf16.mxu0 %v6928
      %7234 = vmatmul.mubr.bf16.gmra.mrb[0].mxu0 %v6927
      %v7235 = vpop.f32.mrb[0].mxu0
      %v7236 = vadd.f32 %v6854, %v7235
      %v7237 = vpop.f32.mrb[0].mxu0
      %v7238 = vpop.f32.mrb[0].mxu0
      %v7239 = vpop.f32.mrb[0].mxu0
      %7240 = vdwg.mxu0
      %7241 = vmatprep.subr.bf16.mxu0 0
      %7242 = vmatpush1.bf16.msra.mxu0 %v7108
      %7243 = vmatprep.subr.bf16.mxu0 0
      %7244 = vmatpush1.bf16.msra.mxu0 %v7109
      %7245 = vmatprep.subr.bf16.mxu0 0
      %7246 = vmatpush1.bf16.msra.mxu0 %v7110
      %7247 = vmatprep.subr.bf16.mxu0 0
      %7248 = vmatpush1.bf16.msra.mxu0 %v7111
      %7249 = vmatprep.subr.bf16.mxu0 0
      %7250 = vmatpush1.bf16.msra.mxu0 %v7112
      %7251 = vmatprep.subr.bf16.mxu0 0
      %7252 = vmatpush1.bf16.msra.mxu0 %v7113
      %7253 = vmatprep.subr.bf16.mxu0 0
      %7254 = vmatpush1.bf16.msra.mxu0 %v7114
      %7255 = vmatprep.subr.bf16.mxu0 0
      %7256 = vmatpush1.bf16.msra.mxu0 %v7115
      %7257 = vmatprep.subr.bf16.mxu0 0
      %7258 = vmatpush1.bf16.msra.mxu0 %v7116
      %7259 = vmatprep.subr.bf16.mxu0 0
      %7260 = vmatpush1.bf16.msra.mxu0 %v7117
      %7261 = vmatprep.subr.bf16.mxu0 0
      %7262 = vmatpush1.bf16.msra.mxu0 %v7118
      %7263 = vmatprep.subr.bf16.mxu0 0
      %7264 = vmatpush1.bf16.msra.mxu0 %v7119
      %7265 = vmatprep.subr.bf16.mxu0 0
      %7266 = vmatpush1.bf16.msra.mxu0 %v7120
      %7267 = vmatprep.subr.bf16.mxu0 0
      %7268 = vmatpush1.bf16.msra.mxu0 %v7121
      %7269 = vmatprep.subr.bf16.mxu0 0
      %7270 = vmatpush1.bf16.msra.mxu0 %v7122
      %7271 = vmatprep.subr.bf16.mxu0 0
      %7272 = vmatpush1.bf16.msra.mxu0 %v7123
      %7273 = vmatprep.mubr.bf16.mxu0 %v6915
      %7274 = vmatmul.mubr.bf16.gmra.mrb[0].mxu0 %v6914
      %v7275 = vpop.f32.mrb[0].mxu0
      %v7276 = vadd.f32 %v7212, %v7275
      %v7277 = vpop.f32.mrb[0].mxu0
      %v7278 = vpop.f32.mrb[0].mxu0
      %v7279 = vadd.f32 %v7215, %v7278
      %v7280 = vpop.f32.mrb[0].mxu0
      %7281 = vmatprep.mubr.bf16.mxu0 %v6920
      %7282 = vmatmul.mubr.bf16.gmra.mrb[0].mxu0 %v6919
      %v7283 = vpop.f32.mrb[0].mxu0
      %v7284 = vadd.f32 %v7220, %v7283
      %v7285 = vpop.f32.mrb[0].mxu0
      %v7286 = vpop.f32.mrb[0].mxu0
      %v7287 = vadd.f32 %v7223, %v7286
      %v7288 = vpop.f32.mrb[0].mxu0
      %7289 = vmatprep.mubr.bf16.mxu0 %v6925
      %7290 = vmatmul.mubr.bf16.gmra.mrb[0].mxu0 %v6924
      %v7291 = vpop.f32.mrb[0].mxu0
      %v7292 = vadd.f32 %v7228, %v7291
      %v7293 = vpop.f32.mrb[0].mxu0
      %v7294 = vpop.f32.mrb[0].mxu0
      %v7295 = vadd.f32 %v7231, %v7294
      %v7296 = vpop.f32.mrb[0].mxu0
      %7297 = vmatprep.mubr.bf16.mxu0 %v6930
      %7298 = vmatmul.mubr.bf16.gmra.mrb[0].mxu0 %v6929
      %v7299 = vpop.f32.mrb[0].mxu0
      %v7300 = vadd.f32 %v7236, %v7299
      %v7301 = vpop.f32.mrb[0].mxu0
      %v7302 = vpop.f32.mrb[0].mxu0
      %v7303 = vpop.f32.mrb[0].mxu0
      %7304 = vdwg.mxu0
      %7305 = vmatprep.subr.bf16.mxu0 0
      %7306 = vmatpush1.bf16.msra.mxu0 %v7124
      %7307 = vmatprep.subr.bf16.mxu0 0
      %7308 = vmatpush1.bf16.msra.mxu0 %v7125
      %7309 = vmatprep.subr.bf16.mxu0 0
      %7310 = vmatpush1.bf16.msra.mxu0 %v7126
      %7311 = vmatprep.subr.bf16.mxu0 0
      %7312 = vmatpush1.bf16.msra.mxu0 %v7127
      %7313 = vmatprep.subr.bf16.mxu0 0
      %7314 = vmatpush1.bf16.msra.mxu0 0
      %7315 = vmatprep.subr.bf16.mxu0 0
      %7316 = vmatpush1.bf16.msra.mxu0 0
      %7317 = vmatprep.subr.bf16.mxu0 0
      %7318 = vmatpush1.bf16.msra.mxu0 0
      %7319 = vmatprep.subr.bf16.mxu0 0
      %7320 = vmatpush1.bf16.msra.mxu0 0
      %7321 = vmatprep.subr.bf16.mxu0 0
      %7322 = vmatpush1.bf16.msra.mxu0 0
      %7323 = vmatprep.subr.bf16.mxu0 0
      %7324 = vmatpush1.bf16.msra.mxu0 0
      %7325 = vmatprep.subr.bf16.mxu0 0
      %7326 = vmatpush1.bf16.msra.mxu0 0
      %7327 = vmatprep.subr.bf16.mxu0 0
      %7328 = vmatpush1.bf16.msra.mxu0 0
      %7329 = vmatprep.subr.bf16.mxu0 0
      %7330 = vmatpush1.bf16.msra.mxu0 0
      %7331 = vmatprep.subr.bf16.mxu0 0
      %7332 = vmatpush1.bf16.msra.mxu0 0
      %7333 = vmatprep.subr.bf16.mxu0 0
      %7334 = vmatpush1.bf16.msra.mxu0 0
      %7335 = vmatprep.subr.bf16.mxu0 0
      %7336 = vmatpush1.bf16.msra.mxu0 0
      %7337 = vmatprep.mubr.bf16.mxu0 0
      %7338 = vmatmul.mubr.bf16.gmra.mrb[0].mxu0 %v7166
      %v7339 = vpop.f32.mrb[0].mxu0
      %v7340 = vadd.f32 %v7276, %v7339
      %v7341 = vpop.f32.mrb[0].mxu0
      %v7342 = vpop.f32.mrb[0].mxu0
      %v7343 = vadd.f32 %v7279, %v7342
      %v7344 = vpop.f32.mrb[0].mxu0
      %7345 = vmatprep.mubr.bf16.mxu0 0
      %7346 = vmatmul.mubr.bf16.gmra.mrb[0].mxu0 %v7169
      %v7347 = vpop.f32.mrb[0].mxu0
      %v7348 = vadd.f32 %v7284, %v7347
      %v7349 = vpop.f32.mrb[0].mxu0
      %v7350 = vpop.f32.mrb[0].mxu0
      %v7351 = vadd.f32 %v7287, %v7350
      %v7352 = vpop.f32.mrb[0].mxu0
      %7353 = vmatprep.mubr.bf16.mxu0 0
      %7354 = vmatmul.mubr.bf16.gmra.mrb[0].mxu0 %v7172
      %v7355 = vpop.f32.mrb[0].mxu0
      %v7356 = vadd.f32 %v7292, %v7355
      %v7357 = vpop.f32.mrb[0].mxu0
      %v7358 = vpop.f32.mrb[0].mxu0
      %v7359 = vadd.f32 %v7295, %v7358
      %v7360 = vpop.f32.mrb[0].mxu0
      %7361 = vmatprep.mubr.bf16.mxu0 0
      %7362 = vmatmul.mubr.bf16.gmra.mrb[0].mxu0 %v7175
      %v7363 = vpop.f32.mrb[0].mxu0
      %v7364 = vadd.f32 %v7300, %v7363
      %v7365 = vpop.f32.mrb[0].mxu0
      %v7366 = vpop.f32.mrb[0].mxu0
      %v7367 = vpop.f32.mrb[0].mxu0
      %7368 = vdwg.mxu0
      %v7369 = vmax.f32 %v7340, 0.0
      %v7370 = vmax.f32 %v7343, 0.0
      %v7371 = vmax.f32 %v7348, 0.0
      %v7372 = vmax.f32 %v7351, 0.0
      %v7373 = vmax.f32 %v7356, 0.0
      %v7374 = vmax.f32 %v7359, 0.0
      %v7375 = vmax.f32 %v7364, 0.0
      %v7376 = vpack.c.bf16 %v7370, %v7369
      %v7377 = vpack.c.bf16 %v7372, %v7371
      %v7378 = vpack.c.bf16 %v7374, %v7373
      %v7379 = vpack.c.bf16 %v7375, %v7375
      %v7384 = vunpack.c.l.b16 %v7376
      %v7385 = vunpack.c.h.b16 %v7376
      %v7386 = vunpack.c.l.b16 %v7377
      %v7387 = vunpack.c.h.b16 %v7377
      %v7388 = vunpack.c.l.b16 %v7378
      %v7389 = vunpack.c.h.b16 %v7378
      %v7390 = vunpack.c.l.b16 %v7379
      %v7391 = vpack.c.b16 %v7384, %v7384
      %v7392 = vpack.c.b16 %v7385, %v7385
      %v7393 = vpack.c.b16 %v7386, %v7386
      %v7394 = vpack.c.b16 %v7387, %v7387
      %v7395 = vpack.c.b16 %v7388, %v7388
      %v7396 = vpack.c.b16 %v7389, %v7389
      %v7397 = vpack.c.b16 %v7390, %v7390
      %7405 = vst.msk [vmem:[%s278] sm:$0xf] %vm5553, %v7391
      %7406 = vst.msk [vmem:[%s278 + $0x4] sm:$0xf] %vm5553, %v7392
      %7407 = vst.msk [vmem:[%s278 + $0x8] sm:$0xf] %vm5553, %v7393
      %7408 = vst.msk [vmem:[%s278 + $0xc] sm:$0xf] %vm5553, %v7394
      %7409 = vst.msk [vmem:[%s278 + $0x10] sm:$0xf] %vm5553, %v7395
      %7410 = vst.msk [vmem:[%s278 + $0x14] sm:$0xf] %vm5553, %v7396
      %v7411 = vld [vmem:[%s278 + $0x18] sm:$0x1]
      %v7412 = vsel %vm5565, %v7397, %v7411
      %7413 = vst [vmem:[%s278 + $0x18] sm:$0x1] %v7412
      %vm7414 = vmand %vm5570, %vm1531
      %v7415 = vld [vmem:[%s278 + $0x18] sm:$0xf]
      %v7416 = vsel %vm7414, 0, %v7415
      %7417 = vst [vmem:[%s278 + $0x18] sm:$0xf] %v7416
      %p7418 = scmp.lt.s32.totalorder %s18, 1
      %s7419 = scalar_select %p7418, %s18, 1
      %s7420 = smul.addr %s7419, 7
      %s7421 = smul.addr %s7420, 4
      %s7422 = scalar_lea.vmem %s7, %s7421
      // Predicated region
      $region49: #{mario_forward.2} parent=47 // pred_check
        %p7423 = pneg %p188
      $region50: #{mario_forward.2} parent=47 // pred_check_branch
        %7425 = sbr.rel (%p7423) target = $region52
      $region51: #{mario_forward.2} parent=47 // pred_region
        _
      $region52: #{mario_forward.2} parent=47 // pred_fallthru
        _
    $region48: #{mario_forward.2} parent=5 // pred_fallthru
      _
    %p7426 = scmp.le.s32.totalorder 2, %s13
    // Predicated region
    $region53: #{mario_forward.2} parent=5 // pred_check
      %p7427 = pneg %p7426
    $region54: #{mario_forward.2} parent=5 // pred_check_branch
      %7429 = sbr.rel (%p7427) target = $region56
    $region55: #{mario_forward.2} parent=5 // pred_region
      %s7430 = ssub.s32 %s13, 2
      // Predicated region
      $region57: #{mario_forward.2} parent=55 // pred_check
        %p7431 = pneg %p194
      $region58: #{mario_forward.2} parent=55 // pred_check_branch
        %7433 = sbr.rel (%p7431) target = $region60
      $region59: #{mario_forward.2} parent=55 // pred_region
        %p7434 = scmp.lt.s32.totalorder %s19, 1
        %s7435 = scalar_select %p7434, %s19, 1
        %s7436 = smul.addr %s7435, 7
        %s7437 = smul.addr %s7436, 4
        %s7438 = scalar_lea.vmem %s7, %s7437
      $region60: #{mario_forward.2} parent=55 // pred_fallthru
        _
    $region56: #{mario_forward.2} parent=5 // pred_fallthru
      _
  $region6: #{mario_forward.2} parent=0 // loop_footer
    %s17 = sadd.s32 1, %s13
  $region7: #{mario_forward.2} parent=0 // loop_footer_branch
    %12 = sbr.rel target = $region3
  $region8: #{mario_forward.2} parent=0 // loop_exit
    _

</llo_original>
